<compile_context>
chip_gen: v7x
topology: tpu7x:2x2x1
jax: 0.10.0
libtpu: 0.0.40
codegen_flags: <defaults>
</compile_context>

<pallas_src>
import math

import jax
import jax.numpy as jnp
from jax.experimental import pallas as pl
from jax.experimental.pallas import tpu as pltpu

# ---------------- small synthetic config ----------------
B = 2              # batch
S = 8              # max_seq_len
VOCAB = 100
H = 32             # BERT hidden size (stands in for 768)
NH = 4             # attention heads
DH = H // NH
FFN = 64
NLAYERS = 3        # -> 4 hidden states; forward uses the last 3
CIN1 = H // 4      # channel split feeding the first FPN (stands in for 256)
FPN1_OUT = 8       # per-level output channels of first FPN
FPN2_OUT = 4       # per-level output channels of second FPN (fpn_seq)
C4_1 = 4 * FPN1_OUT          # 32
C4_2 = 4 * FPN2_OUT          # 16
NUM_CLASSES = 2
FC_HIDDEN = 3 * S * C4_2     # flattened features feeding fc1 (config.fc_hidden)
FC_PAD = 128                 # pad fc1 output lanes to one full 128-lane store


# ---------------- in-kernel helpers (operate on values) ----------------
def _ln(x, g, b, eps=1e-12):
    mu = jnp.mean(x, axis=-1, keepdims=True)
    var = jnp.mean(jnp.square(x - mu), axis=-1, keepdims=True)
    return (x - mu) * jax.lax.rsqrt(var + eps) * g + b


def _gelu(x):
    # TODO(synk): tanh-approx GELU; PyTorch's BertIntermediate uses the exact erf form.
    c = math.sqrt(2.0 / math.pi)
    return 0.5 * x * (1.0 + jnp.tanh(c * (x + 0.044715 * x * x * x)))


def _fpn_block(img, wf_ref, bf_ref, wsm_ref, bsm_ref):
    """One FPN level-set: block-packed lateral 1x1 convs + top-down adds as a single
    matmul, then the 3x3 'same' smooth convs as 9 shifted-window matmuls against
    per-tap block-diagonal weights -- all on register values (no VMEM scratch)."""
    L3, Sq, Cin = img.shape
    C4 = wf_ref.shape[1]
    m = L3 * Sq

    fused = (jnp.dot(img.reshape(m, Cin).astype(jnp.bfloat16), wf_ref[...],
                     preferred_element_type=jnp.float32) + bf_ref[...])     # (m, C4)
    fused = fused.reshape(L3, Sq, C4)

    # zero 'same' padding built in registers via concatenation (no scratch to re-zero)
    zrow = jnp.zeros((1, Sq, C4), jnp.float32)
    zcol = jnp.zeros((L3 + 2, 1, C4), jnp.float32)
    padded = jnp.concatenate([zrow, fused, zrow], axis=0)
    padded = jnp.concatenate([zcol, padded, zcol], axis=1)                  # (L3+2, Sq+2, C4)

    acc = jnp.zeros((m, C4), jnp.float32)
    for kh in range(3):
        for kw in range(3):
            win = padded[kh:kh + L3, kw:kw + Sq, :].reshape(m, C4)
            acc = acc + jnp.dot(win.astype(jnp.bfloat16), wsm_ref[kh * 3 + kw],
                                preferred_element_type=jnp.float32)
    return (acc + bsm_ref[...]).reshape(L3, Sq, C4)


# ---------------- the single fused forward kernel (per batch element) ----------------
def _fused_forward_kernel(
        emb_ref, bias_ref,
        embg_ref, embb_ref,
        wqkv_ref, bqkv_ref, wo_ref, bo_ref,
        ln1g_ref, ln1b_ref, w1_ref, b1_ref, w2_ref, b2_ref, ln2g_ref, ln2b_ref,
        wf1_ref, bf1_ref, wsm1_ref, bsm1_ref,
        wf2_ref, bf2_ref, wsm2_ref, bsm2_ref,
        fcw_ref, fcb_ref,
        o_ref):
    Sq, Hd = emb_ref.shape[1], emb_ref.shape[2]
    nlayers = wqkv_ref.shape[0]
    nh, dh = NH, Hd // NH
    scale = 1.0 / math.sqrt(dh)

    # ---- embedding LayerNorm ----
    x = _ln(emb_ref[0], embg_ref[...], embb_ref[...])                       # (S, H) f32

    # additive key mask, broadcast ONCE for all layers / heads (JAX does not CSE it)
    bias_full = jnp.broadcast_to(bias_ref[...], (nh, Sq, Sq))               # (NH, S, S)

    # ---- encoder layers (weights stacked along a leading layer dim, VMEM-resident) ----
    hidden = [x]
    for l in range(nlayers):
        xb = x.astype(jnp.bfloat16)
        # packed QKV projection: ONE (S,H)x(H,3H) matmul + ONE bias add
        qkv = jnp.dot(xb, wqkv_ref[l], preferred_element_type=jnp.float32) + bqkv_ref[l]

        # head-stacked (NH, S, DH) operands via lane slices + leading-dim stack
        q = jnp.stack([qkv[:, 0 * Hd + h * dh: 0 * Hd + (h + 1) * dh] for h in range(nh)], 0)
        k = jnp.stack([qkv[:, 1 * Hd + h * dh: 1 * Hd + (h + 1) * dh] for h in range(nh)], 0)
        v = jnp.stack([qkv[:, 2 * Hd + h * dh: 2 * Hd + (h + 1) * dh] for h in range(nh)], 0)
        q = q.astype(jnp.bfloat16)
        k = k.astype(jnp.bfloat16)
        v = v.astype(jnp.bfloat16)

        # head-batched attention
        s = jnp.einsum("hqd,hkd->hqk", q, k,
                       preferred_element_type=jnp.float32) * scale          # (NH, S, S)
        s = s + bias_full
        s = s - jnp.max(s, axis=-1, keepdims=True)
        p = jnp.exp(s)
        p = p * pl.reciprocal(jnp.sum(p, axis=-1, keepdims=True), approx=True)
        ctx = jnp.einsum("hqk,hkd->hqd", p.astype(jnp.bfloat16), v,
                         preferred_element_type=jnp.float32)                # (NH, S, DH)

        # concatenate heads along lanes -> (S, H), then ONE output projection
        ctx_cat = jnp.concatenate([ctx[h] for h in range(nh)], axis=1)
        attn = jnp.dot(ctx_cat.astype(jnp.bfloat16), wo_ref[l],
                       preferred_element_type=jnp.float32) + bo_ref[l]

        h1 = _ln(x + attn, ln1g_ref[l], ln1b_ref[l])
        ff = jnp.dot(h1.astype(jnp.bfloat16), w1_ref[l],
                     preferred_element_type=jnp.float32) + b1_ref[l]
        ff = _gelu(ff)
        ff = jnp.dot(ff.astype(jnp.bfloat16), w2_ref[l],
                     preferred_element_type=jnp.float32) + b2_ref[l]
        x = _ln(h1 + ff, ln2g_ref[l], ln2b_ref[l])
        hidden.append(x)

    # ---- channels-last "image" from the last 3 hidden states: (3, S, H) ----
    img = jnp.stack(hidden[-3:], axis=0)

    # ---- both FPNs fully in registers ----
    f1 = _fpn_block(img, wf1_ref, bf1_ref, wsm1_ref, bsm1_ref)              # (3, S, C4_1)
    f2 = _fpn_block(f1, wf2_ref, bf2_ref, wsm2_ref, bsm2_ref)               # (3, S, C4_2)

    # ---- flatten(start_dim=1) + fc1, fused; lane-dense 128-wide output store ----
    # The flatten is built as an explicit lane concatenation (row-major (level, s, c)
    # order, matching the fc1 weight packing) to avoid a minor-dim reshape in-kernel.
    pieces = []
    for lvl_i in range(f2.shape[0]):
        lvl = f2[lvl_i]                                                     # (S, C4_2)
        for si in range(Sq):
            pieces.append(lvl[si:si + 1, :])
    feat = jnp.concatenate(pieces, axis=1).astype(jnp.bfloat16)             # (1, FC_HIDDEN)
    # TODO(synk): nn.Dropout is inference-mode identity here (no train-time RNG).
    logits = jnp.dot(feat, fcw_ref[...],
                     preferred_element_type=jnp.float32) + fcb_ref[...]     # (1, FC_PAD)
    o_ref[...] = logits[None]                                               # (1, 1, FC_PAD)


# ---------------- wrapper: one pallas_call for the whole forward ----------------
def _wspec(arr):
    zeros = (0,) * arr.ndim
    return pl.BlockSpec(arr.shape, lambda b, _z=zeros: _z)


_WEIGHT_ORDER = (
    "emb_ln_g", "emb_ln_b",
    "wqkv", "bqkv", "wo", "bo",
    "ln1_g", "ln1_b", "w1", "b1", "w2", "b2", "ln2_g", "ln2_b",
    "fpn1_wf", "fpn1_bf", "fpn1_wsm", "fpn1_bsm",
    "fpn2_wf", "fpn2_bf", "fpn2_wsm", "fpn2_bsm",
    "fc1_w", "fc1_b",
)


def bert_yl_forward(params, input_ids, attention_mask, token_type_ids):
    Bb, Sq = input_ids.shape

    # embeddings: token/position/type table gathers stay in XLA (data-dependent
    # gather); everything downstream is one fused Pallas call.
    emb = (jnp.take(params["word_emb"], input_ids, axis=0)
           + params["pos_emb"][None, :Sq, :]
           + jnp.take(params["type_emb"], token_type_ids, axis=0))          # (B, S, H)
    attn_bias = ((1.0 - attention_mask.astype(jnp.float32)) * -1e9).reshape(Bb, 1, Sq)

    weights = [params[name] for name in _WEIGHT_ORDER]
    in_specs = ([pl.BlockSpec((1, Sq, H), lambda b: (b, 0, 0)),
                 pl.BlockSpec((1, 1, Sq), lambda b: (b, 0, 0))]
                + [_wspec(w) for w in weights])

    out = pl.pallas_call(
        _fused_forward_kernel,
        out_shape=jax.ShapeDtypeStruct((Bb, 1, FC_PAD), jnp.float32),
        grid=(Bb,),                       # batch axis -> shards over v7x's 2 TensorCores
        in_specs=in_specs,
        out_specs=pl.BlockSpec((1, 1, FC_PAD), lambda b: (b, 0, 0)),
        compiler_params=pltpu.CompilerParams(
            dimension_semantics=("parallel",)),
    )(emb, attn_bias, *weights)

    return out[:, 0, :NUM_CLASSES]


# ---------------- deterministic parameter init (+ packing for the fused kernel) ----------------
def _pack_fpn(lateral, smooth, cin, cout):
    n = len(lateral)
    c4 = n * cout
    # lateral 1x1 convs + top-down sum folded into one block matrix:
    #   fused_i = sum_{j >= i} (x_j @ W_j + b_j)
    wf = jnp.zeros((n * cin, c4), jnp.float32)
    bf = jnp.zeros((c4,), jnp.float32)
    for i in range(n):
        for j in range(i, n):
            wj, bj = lateral[j]
            wf = wf.at[j * cin:(j + 1) * cin, i * cout:(i + 1) * cout].set(wj)
            bf = bf.at[i * cout:(i + 1) * cout].add(bj)
    # per-tap block-diagonal 3x3 smooth weights (level i only sees its own block)
    wsm = jnp.zeros((9, c4, c4), jnp.float32)
    bsm = jnp.zeros((c4,), jnp.float32)
    for i in range(n):
        wi, bi = smooth[i]
        for kh in range(3):
            for kw in range(3):
                wsm = wsm.at[kh * 3 + kw,
                             i * cout:(i + 1) * cout,
                             i * cout:(i + 1) * cout].set(wi[kh, kw])
        bsm = bsm.at[i * cout:(i + 1) * cout].set(bi)
    return (wf.astype(jnp.bfloat16), bf.reshape(1, c4),
            wsm.astype(jnp.bfloat16), bsm.reshape(1, c4))


def init_params(key):
    keys = iter(jax.random.split(key, 256))

    def nrm(shape, std=0.02):
        return std * jax.random.normal(next(keys), shape, dtype=jnp.float32)

    p = {
        "word_emb": nrm((VOCAB, H)),
        "pos_emb": nrm((S, H)),
        "type_emb": nrm((2, H)),
        "emb_ln_g": jnp.ones((1, H), jnp.float32),
        "emb_ln_b": jnp.zeros((1, H), jnp.float32),
    }

    # TODO(synk): BertModel.from_pretrained cannot be loaded; a 3-layer post-LN
    # transformer encoder with the same forward structure is used.
    wqkv, bqkv, wo, bo = [], [], [], []
    ln1g, ln1b, w1, b1, w2, b2, ln2g, ln2b = [], [], [], [], [], [], [], []
    for _ in range(NLAYERS):
        wq, wk, wv, wo_l = nrm((H, H)), nrm((H, H)), nrm((H, H)), nrm((H, H))
        # packed QKV: columns [0:H]=Q, [H:2H]=K, [2H:3H]=V; head h = cols h*DH:(h+1)*DH
        wqkv.append(jnp.concatenate([wq, wk, wv], axis=1))
        bqkv.append(jnp.zeros((1, 3 * H), jnp.float32))
        wo.append(wo_l)
        bo.append(jnp.zeros((1, H), jnp.float32))
        ln1g.append(jnp.ones((1, H), jnp.float32))
        ln1b.append(jnp.zeros((1, H), jnp.float32))
        w1.append(nrm((H, FFN)))
        b1.append(jnp.zeros((1, FFN), jnp.float32))
        w2.append(nrm((FFN, H)))
        b2.append(jnp.zeros((1, H), jnp.float32))
        ln2g.append(jnp.ones((1, H), jnp.float32))
        ln2b.append(jnp.zeros((1, H), jnp.float32))

    p["wqkv"] = jnp.stack(wqkv).astype(jnp.bfloat16)      # (L, H, 3H)
    p["bqkv"] = jnp.stack(bqkv)                           # (L, 1, 3H)
    p["wo"] = jnp.stack(wo).astype(jnp.bfloat16)          # (L, H, H)
    p["bo"] = jnp.stack(bo)
    p["ln1_g"] = jnp.stack(ln1g)
    p["ln1_b"] = jnp.stack(ln1b)
    p["w1"] = jnp.stack(w1).astype(jnp.bfloat16)          # (L, H, FFN)
    p["b1"] = jnp.stack(b1)
    p["w2"] = jnp.stack(w2).astype(jnp.bfloat16)          # (L, FFN, H)
    p["b2"] = jnp.stack(b2)
    p["ln2_g"] = jnp.stack(ln2g)
    p["ln2_b"] = jnp.stack(ln2b)

    # TODO(synk): the original FPN class is not defined in the reference file; a
    # standard FPN (lateral 1x1 -> top-down add -> 3x3 smooth, identity upsample
    # since all levels share the (3, S) spatial size) is used, with its per-level
    # convs packed into block matrices so each FPN runs as packed matmuls.
    def make_fpn(cin, cout):
        lateral = [(nrm((cin, cout)), jnp.zeros((cout,), jnp.float32)) for _ in range(4)]
        smooth = [(nrm((3, 3, cout, cout)), jnp.zeros((cout,), jnp.float32)) for _ in range(4)]
        return _pack_fpn(lateral, smooth, cin, cout)

    p["fpn1_wf"], p["fpn1_bf"], p["fpn1_wsm"], p["fpn1_bsm"] = make_fpn(CIN1, FPN1_OUT)
    p["fpn2_wf"], p["fpn2_bf"], p["fpn2_wsm"], p["fpn2_bsm"] = make_fpn(FPN1_OUT, FPN2_OUT)

    # fc1 weight padded to a 128-wide (lane-dense) output; logits = cols [:NUM_CLASSES].
    fc_w = nrm((FC_HIDDEN, NUM_CLASSES))
    p["fc1_w"] = (jnp.zeros((FC_HIDDEN, FC_PAD), jnp.float32)
                  .at[:, :NUM_CLASSES].set(fc_w).astype(jnp.bfloat16))
    p["fc1_b"] = jnp.zeros((1, FC_PAD), jnp.float32)
    # NOTE: self.resnet is constructed in __init__ but never used in forward(); omitted.
    return p


if __name__ == "__main__":
    key = jax.random.PRNGKey(0)
    kp, ki = jax.random.split(key, 2)
    params = init_params(kp)

    input_ids = jax.random.randint(ki, (B, S), 0, VOCAB, dtype=jnp.int32)
    attention_mask = jnp.ones((B, S), dtype=jnp.int32).at[:, -2:].set(0)
    token_type_ids = jnp.zeros((B, S), dtype=jnp.int32)

    fwd = jax.jit(bert_yl_forward)
    logits = fwd(params, input_ids, attention_mask, token_type_ids)
    jax.block_until_ready(logits)

    assert logits.shape == (B, NUM_CLASSES), logits.shape
    assert bool(jnp.all(jnp.isfinite(logits)))
    print("KERNEL_OK")
</pallas_src>

<mosaic_0001>
module attributes {stable_mosaic.version = 11 : i64} {
  func.func @_fused_forward_kernel(%arg0: i32, %arg1: memref<1x8x32xf32, #tpu.memory_space<vmem>>, %arg2: memref<1x1x8xf32, #tpu.memory_space<vmem>>, %arg3: memref<1x32xf32, #tpu.memory_space<vmem>>, %arg4: memref<1x32xf32, #tpu.memory_space<vmem>>, %arg5: memref<3x32x96xbf16, #tpu.memory_space<vmem>>, %arg6: memref<3x1x96xf32, #tpu.memory_space<vmem>>, %arg7: memref<3x32x32xbf16, #tpu.memory_space<vmem>>, %arg8: memref<3x1x32xf32, #tpu.memory_space<vmem>>, %arg9: memref<3x1x32xf32, #tpu.memory_space<vmem>>, %arg10: memref<3x1x32xf32, #tpu.memory_space<vmem>>, %arg11: memref<3x32x64xbf16, #tpu.memory_space<vmem>>, %arg12: memref<3x1x64xf32, #tpu.memory_space<vmem>>, %arg13: memref<3x64x32xbf16, #tpu.memory_space<vmem>>, %arg14: memref<3x1x32xf32, #tpu.memory_space<vmem>>, %arg15: memref<3x1x32xf32, #tpu.memory_space<vmem>>, %arg16: memref<3x1x32xf32, #tpu.memory_space<vmem>>, %arg17: memref<32x32xbf16, #tpu.memory_space<vmem>>, %arg18: memref<1x32xf32, #tpu.memory_space<vmem>>, %arg19: memref<9x32x32xbf16, #tpu.memory_space<vmem>>, %arg20: memref<1x32xf32, #tpu.memory_space<vmem>>, %arg21: memref<32x16xbf16, #tpu.memory_space<vmem>>, %arg22: memref<1x16xf32, #tpu.memory_space<vmem>>, %arg23: memref<9x16x16xbf16, #tpu.memory_space<vmem>>, %arg24: memref<1x16xf32, #tpu.memory_space<vmem>>, %arg25: memref<384x128xbf16, #tpu.memory_space<vmem>>, %arg26: memref<1x128xf32, #tpu.memory_space<vmem>>, %arg27: memref<1x1x128xf32, #tpu.memory_space<vmem>>) attributes {dimension_semantics = [#tpu.dimension_semantics<parallel>], iteration_bounds = array<i64: 2>, scalar_prefetch = 0 : i64, scratch_operands = 0 : i64, tpu.core_type = #tpu.core_type<tc>, window_params = [{transform_indices = @transform_0, window_bounds = array<i64: 1, 8, 32>}, {transform_indices = @transform_1, window_bounds = array<i64: 1, 1, 8>}, {pipeline_mode = #tpu.pipeline_mode<synchronous>, transform_indices = @transform_2, window_bounds = array<i64: 1, 32>}, {pipeline_mode = #tpu.pipeline_mode<synchronous>, transform_indices = @transform_3, window_bounds = array<i64: 1, 32>}, {pipeline_mode = #tpu.pipeline_mode<synchronous>, transform_indices = @transform_4, window_bounds = array<i64: 3, 32, 96>}, {pipeline_mode = #tpu.pipeline_mode<synchronous>, transform_indices = @transform_5, window_bounds = array<i64: 3, 1, 96>}, {pipeline_mode = #tpu.pipeline_mode<synchronous>, transform_indices = @transform_6, window_bounds = array<i64: 3, 32, 32>}, {pipeline_mode = #tpu.pipeline_mode<synchronous>, transform_indices = @transform_7, window_bounds = array<i64: 3, 1, 32>}, {pipeline_mode = #tpu.pipeline_mode<synchronous>, transform_indices = @transform_8, window_bounds = array<i64: 3, 1, 32>}, {pipeline_mode = #tpu.pipeline_mode<synchronous>, transform_indices = @transform_9, window_bounds = array<i64: 3, 1, 32>}, {pipeline_mode = #tpu.pipeline_mode<synchronous>, transform_indices = @transform_10, window_bounds = array<i64: 3, 32, 64>}, {pipeline_mode = #tpu.pipeline_mode<synchronous>, transform_indices = @transform_11, window_bounds = array<i64: 3, 1, 64>}, {pipeline_mode = #tpu.pipeline_mode<synchronous>, transform_indices = @transform_12, window_bounds = array<i64: 3, 64, 32>}, {pipeline_mode = #tpu.pipeline_mode<synchronous>, transform_indices = @transform_13, window_bounds = array<i64: 3, 1, 32>}, {pipeline_mode = #tpu.pipeline_mode<synchronous>, transform_indices = @transform_14, window_bounds = array<i64: 3, 1, 32>}, {pipeline_mode = #tpu.pipeline_mode<synchronous>, transform_indices = @transform_15, window_bounds = array<i64: 3, 1, 32>}, {pipeline_mode = #tpu.pipeline_mode<synchronous>, transform_indices = @transform_16, window_bounds = array<i64: 32, 32>}, {pipeline_mode = #tpu.pipeline_mode<synchronous>, transform_indices = @transform_17, window_bounds = array<i64: 1, 32>}, {pipeline_mode = #tpu.pipeline_mode<synchronous>, transform_indices = @transform_18, window_bounds = array<i64: 9, 32, 32>}, {pipeline_mode = #tpu.pipeline_mode<synchronous>, transform_indices = @transform_19, window_bounds = array<i64: 1, 32>}, {pipeline_mode = #tpu.pipeline_mode<synchronous>, transform_indices = @transform_20, window_bounds = array<i64: 32, 16>}, {pipeline_mode = #tpu.pipeline_mode<synchronous>, transform_indices = @transform_21, window_bounds = array<i64: 1, 16>}, {pipeline_mode = #tpu.pipeline_mode<synchronous>, transform_indices = @transform_22, window_bounds = array<i64: 9, 16, 16>}, {pipeline_mode = #tpu.pipeline_mode<synchronous>, transform_indices = @transform_23, window_bounds = array<i64: 1, 16>}, {pipeline_mode = #tpu.pipeline_mode<synchronous>, transform_indices = @transform_24, window_bounds = array<i64: 384, 128>}, {pipeline_mode = #tpu.pipeline_mode<synchronous>, transform_indices = @transform_25, window_bounds = array<i64: 1, 128>}, {transform_indices = @transform_26, window_bounds = array<i64: 1, 1, 128>}]} {
    %c0 = arith.constant 0 : index
    %c0_0 = arith.constant 0 : index
    %c0_1 = arith.constant 0 : index
    %0 = vector.load %arg1[%c0, %c0_0, %c0_1] : memref<1x8x32xf32, #tpu.memory_space<vmem>>, vector<1x8x32xf32>
    %1 = vector.shape_cast %0 : vector<1x8x32xf32> to vector<8x32xf32>
    %c0_2 = arith.constant 0 : index
    %c0_3 = arith.constant 0 : index
    %2 = vector.load %arg3[%c0_2, %c0_3] : memref<1x32xf32, #tpu.memory_space<vmem>>, vector<1x32xf32>
    %c0_4 = arith.constant 0 : index
    %c0_5 = arith.constant 0 : index
    %3 = vector.load %arg4[%c0_4, %c0_5] : memref<1x32xf32, #tpu.memory_space<vmem>>, vector<1x32xf32>
    %cst = arith.constant dense<0.000000e+00> : vector<8xf32>
    %4 = vector.multi_reduction <add>, %1, %cst [1] : vector<8x32xf32> to vector<8xf32>
    %5 = vector.shape_cast %4 : vector<8xf32> to vector<8x1xf32>
    %cst_6 = arith.constant 3.200000e+01 : f32
    %6 = vector.broadcast %cst_6 : f32 to vector<8x1xf32>
    %7 = arith.divf %5, %6 : vector<8x1xf32>
    %8 = vector.broadcast %7 : vector<8x1xf32> to vector<8x32xf32>
    %9 = arith.subf %1, %8 : vector<8x32xf32>
    %10 = arith.mulf %9, %9 : vector<8x32xf32>
    %cst_7 = arith.constant dense<0.000000e+00> : vector<8xf32>
    %11 = vector.multi_reduction <add>, %10, %cst_7 [1] : vector<8x32xf32> to vector<8xf32>
    %12 = vector.shape_cast %11 : vector<8xf32> to vector<8x1xf32>
    %cst_8 = arith.constant 3.200000e+01 : f32
    %13 = vector.broadcast %cst_8 : f32 to vector<8x1xf32>
    %14 = arith.divf %12, %13 : vector<8x1xf32>
    %15 = vector.broadcast %7 : vector<8x1xf32> to vector<8x32xf32>
    %16 = arith.subf %1, %15 : vector<8x32xf32>
    %cst_9 = arith.constant 9.99999996E-13 : f32
    %17 = vector.broadcast %cst_9 : f32 to vector<8x1xf32>
    %18 = arith.addf %14, %17 : vector<8x1xf32>
    %19 = math.rsqrt %18 : vector<8x1xf32>
    %20 = vector.broadcast %19 : vector<8x1xf32> to vector<8x32xf32>
    %21 = arith.mulf %16, %20 : vector<8x32xf32>
    %22 = vector.broadcast %2 : vector<1x32xf32> to vector<8x32xf32>
    %23 = arith.mulf %21, %22 : vector<8x32xf32>
    %24 = vector.broadcast %3 : vector<1x32xf32> to vector<8x32xf32>
    %25 = arith.addf %23, %24 : vector<8x32xf32>
    %c0_10 = arith.constant 0 : index
    %c0_11 = arith.constant 0 : index
    %c0_12 = arith.constant 0 : index
    %26 = vector.load %arg2[%c0_10, %c0_11, %c0_12] : memref<1x1x8xf32, #tpu.memory_space<vmem>>, vector<1x1x8xf32>
    %27 = vector.shape_cast %26 : vector<1x1x8xf32> to vector<1x1x8xf32>
    %28 = vector.broadcast %27 : vector<1x1x8xf32> to vector<4x8x8xf32>
    %29 = arith.truncf %25 : vector<8x32xf32> to vector<8x32xbf16>
    %c0_13 = arith.constant 0 : index
    %c0_14 = arith.constant 0 : index
    %c0_15 = arith.constant 0 : index
    %30 = vector.load %arg5[%c0_13, %c0_14, %c0_15] : memref<3x32x96xbf16, #tpu.memory_space<vmem>>, vector<1x32x96xbf16>
    %31 = vector.shape_cast %30 : vector<1x32x96xbf16> to vector<32x96xbf16>
    %cst_16 = arith.constant dense<0.000000e+00> : vector<8x96xf32>
    %32 = tpu.matmul %29, %31, %cst_16 {dimension_numbers = #tpu.dot_dimension_numbers<[1], [0], [0], [1], [0, 0, 1, 1], [], []>} : vector<8x32xbf16>, vector<32x96xbf16>, vector<8x96xf32> -> vector<8x96xf32>
    %c0_17 = arith.constant 0 : index
    %c0_18 = arith.constant 0 : index
    %c0_19 = arith.constant 0 : index
    %33 = vector.load %arg6[%c0_17, %c0_18, %c0_19] : memref<3x1x96xf32, #tpu.memory_space<vmem>>, vector<1x1x96xf32>
    %34 = vector.shape_cast %33 : vector<1x1x96xf32> to vector<1x96xf32>
    %35 = vector.broadcast %34 : vector<1x96xf32> to vector<8x96xf32>
    %36 = arith.addf %32, %35 : vector<8x96xf32>
    %37 = vector.extract_strided_slice %36 {offsets = [0, 0], sizes = [8, 8], strides = [1, 1]} : vector<8x96xf32> to vector<8x8xf32>
    %38 = vector.extract_strided_slice %36 {offsets = [0, 8], sizes = [8, 8], strides = [1, 1]} : vector<8x96xf32> to vector<8x8xf32>
    %39 = vector.extract_strided_slice %36 {offsets = [0, 16], sizes = [8, 8], strides = [1, 1]} : vector<8x96xf32> to vector<8x8xf32>
    %40 = vector.extract_strided_slice %36 {offsets = [0, 24], sizes = [8, 8], strides = [1, 1]} : vector<8x96xf32> to vector<8x8xf32>
    %41 = vector.shape_cast %37 : vector<8x8xf32> to vector<1x8x8xf32>
    %42 = vector.shape_cast %38 : vector<8x8xf32> to vector<1x8x8xf32>
    %43 = vector.shape_cast %39 : vector<8x8xf32> to vector<1x8x8xf32>
    %44 = vector.shape_cast %40 : vector<8x8xf32> to vector<1x8x8xf32>
    %45 = tpu.concatenate %41, %42, %43, %44 in 0 : vector<1x8x8xf32>, vector<1x8x8xf32>, vector<1x8x8xf32>, vector<1x8x8xf32> -> vector<4x8x8xf32>
    %46 = vector.extract_strided_slice %36 {offsets = [0, 32], sizes = [8, 8], strides = [1, 1]} : vector<8x96xf32> to vector<8x8xf32>
    %47 = vector.extract_strided_slice %36 {offsets = [0, 40], sizes = [8, 8], strides = [1, 1]} : vector<8x96xf32> to vector<8x8xf32>
    %48 = vector.extract_strided_slice %36 {offsets = [0, 48], sizes = [8, 8], strides = [1, 1]} : vector<8x96xf32> to vector<8x8xf32>
    %49 = vector.extract_strided_slice %36 {offsets = [0, 56], sizes = [8, 8], strides = [1, 1]} : vector<8x96xf32> to vector<8x8xf32>
    %50 = vector.shape_cast %46 : vector<8x8xf32> to vector<1x8x8xf32>
    %51 = vector.shape_cast %47 : vector<8x8xf32> to vector<1x8x8xf32>
    %52 = vector.shape_cast %48 : vector<8x8xf32> to vector<1x8x8xf32>
    %53 = vector.shape_cast %49 : vector<8x8xf32> to vector<1x8x8xf32>
    %54 = tpu.concatenate %50, %51, %52, %53 in 0 : vector<1x8x8xf32>, vector<1x8x8xf32>, vector<1x8x8xf32>, vector<1x8x8xf32> -> vector<4x8x8xf32>
    %55 = vector.extract_strided_slice %36 {offsets = [0, 64], sizes = [8, 8], strides = [1, 1]} : vector<8x96xf32> to vector<8x8xf32>
    %56 = vector.extract_strided_slice %36 {offsets = [0, 72], sizes = [8, 8], strides = [1, 1]} : vector<8x96xf32> to vector<8x8xf32>
    %57 = vector.extract_strided_slice %36 {offsets = [0, 80], sizes = [8, 8], strides = [1, 1]} : vector<8x96xf32> to vector<8x8xf32>
    %58 = vector.extract_strided_slice %36 {offsets = [0, 88], sizes = [8, 8], strides = [1, 1]} : vector<8x96xf32> to vector<8x8xf32>
    %59 = vector.shape_cast %55 : vector<8x8xf32> to vector<1x8x8xf32>
    %60 = vector.shape_cast %56 : vector<8x8xf32> to vector<1x8x8xf32>
    %61 = vector.shape_cast %57 : vector<8x8xf32> to vector<1x8x8xf32>
    %62 = vector.shape_cast %58 : vector<8x8xf32> to vector<1x8x8xf32>
    %63 = tpu.concatenate %59, %60, %61, %62 in 0 : vector<1x8x8xf32>, vector<1x8x8xf32>, vector<1x8x8xf32>, vector<1x8x8xf32> -> vector<4x8x8xf32>
    %64 = arith.truncf %45 : vector<4x8x8xf32> to vector<4x8x8xbf16>
    %65 = arith.truncf %54 : vector<4x8x8xf32> to vector<4x8x8xbf16>
    %66 = arith.truncf %63 : vector<4x8x8xf32> to vector<4x8x8xbf16>
    "tpu.trace_start"() <{level = 10 : i32, message = "hqd,hkd->hqk"}> : () -> ()
    %cst_20 = arith.constant dense<0.000000e+00> : vector<4x8x8xf32>
    %67 = tpu.matmul %64, %65, %cst_20 {dimension_numbers = #tpu.dot_dimension_numbers<[2], [2], [1], [1], [0, 0, 0, 1, 1, 1], [0], [0]>} : vector<4x8x8xbf16>, vector<4x8x8xbf16>, vector<4x8x8xf32> -> vector<4x8x8xf32>
    "tpu.trace_stop"() : () -> ()
    %cst_21 = arith.constant 0.353553385 : f32
    %68 = vector.broadcast %cst_21 : f32 to vector<4x8x8xf32>
    %69 = arith.mulf %67, %68 : vector<4x8x8xf32>
    %70 = arith.addf %69, %28 : vector<4x8x8xf32>
    %cst_22 = arith.constant dense<0xFF800000> : vector<4x8xf32>
    %71 = vector.multi_reduction <maximumf>, %70, %cst_22 [2] : vector<4x8x8xf32> to vector<4x8xf32>
    %72 = vector.shape_cast %71 : vector<4x8xf32> to vector<4x8x1xf32>
    %73 = vector.broadcast %72 : vector<4x8x1xf32> to vector<4x8x8xf32>
    %74 = arith.subf %70, %73 : vector<4x8x8xf32>
    %75 = math.exp %74 : vector<4x8x8xf32>
    %cst_23 = arith.constant dense<0.000000e+00> : vector<4x8xf32>
    %76 = vector.multi_reduction <add>, %75, %cst_23 [2] : vector<4x8x8xf32> to vector<4x8xf32>
    %77 = vector.shape_cast %76 : vector<4x8xf32> to vector<4x8x1xf32>
    %78 = tpu.reciprocal %77 {approx = true} : vector<4x8x1xf32> -> vector<4x8x1xf32>
    %79 = vector.broadcast %78 : vector<4x8x1xf32> to vector<4x8x8xf32>
    %80 = arith.mulf %75, %79 : vector<4x8x8xf32>
    %81 = arith.truncf %80 : vector<4x8x8xf32> to vector<4x8x8xbf16>
    "tpu.trace_start"() <{level = 10 : i32, message = "hqk,hkd->hqd"}> : () -> ()
    %cst_24 = arith.constant dense<0.000000e+00> : vector<4x8x8xf32>
    %82 = tpu.matmul %81, %66, %cst_24 {dimension_numbers = #tpu.dot_dimension_numbers<[2], [1], [1], [2], [0, 0, 0, 1, 1, 2], [0], [0]>} : vector<4x8x8xbf16>, vector<4x8x8xbf16>, vector<4x8x8xf32> -> vector<4x8x8xf32>
    "tpu.trace_stop"() : () -> ()
    %83 = vector.extract_strided_slice %82 {offsets = [0, 0, 0], sizes = [1, 8, 8], strides = [1, 1, 1]} : vector<4x8x8xf32> to vector<1x8x8xf32>
    %84 = vector.shape_cast %83 : vector<1x8x8xf32> to vector<8x8xf32>
    %85 = vector.extract_strided_slice %82 {offsets = [1, 0, 0], sizes = [1, 8, 8], strides = [1, 1, 1]} : vector<4x8x8xf32> to vector<1x8x8xf32>
    %86 = vector.shape_cast %85 : vector<1x8x8xf32> to vector<8x8xf32>
    %87 = vector.extract_strided_slice %82 {offsets = [2, 0, 0], sizes = [1, 8, 8], strides = [1, 1, 1]} : vector<4x8x8xf32> to vector<1x8x8xf32>
    %88 = vector.shape_cast %87 : vector<1x8x8xf32> to vector<8x8xf32>
    %89 = vector.extract_strided_slice %82 {offsets = [3, 0, 0], sizes = [1, 8, 8], strides = [1, 1, 1]} : vector<4x8x8xf32> to vector<1x8x8xf32>
    %90 = vector.shape_cast %89 : vector<1x8x8xf32> to vector<8x8xf32>
    %91 = tpu.concatenate %84, %86, %88, %90 in 1 : vector<8x8xf32>, vector<8x8xf32>, vector<8x8xf32>, vector<8x8xf32> -> vector<8x32xf32>
    %92 = arith.truncf %91 : vector<8x32xf32> to vector<8x32xbf16>
    %c0_25 = arith.constant 0 : index
    %c0_26 = arith.constant 0 : index
    %c0_27 = arith.constant 0 : index
    %93 = vector.load %arg7[%c0_25, %c0_26, %c0_27] : memref<3x32x32xbf16, #tpu.memory_space<vmem>>, vector<1x32x32xbf16>
    %94 = vector.shape_cast %93 : vector<1x32x32xbf16> to vector<32x32xbf16>
    %cst_28 = arith.constant dense<0.000000e+00> : vector<8x32xf32>
    %95 = tpu.matmul %92, %94, %cst_28 {dimension_numbers = #tpu.dot_dimension_numbers<[1], [0], [0], [1], [0, 0, 1, 1], [], []>} : vector<8x32xbf16>, vector<32x32xbf16>, vector<8x32xf32> -> vector<8x32xf32>
    %c0_29 = arith.constant 0 : index
    %c0_30 = arith.constant 0 : index
    %c0_31 = arith.constant 0 : index
    %96 = vector.load %arg8[%c0_29, %c0_30, %c0_31] : memref<3x1x32xf32, #tpu.memory_space<vmem>>, vector<1x1x32xf32>
    %97 = vector.shape_cast %96 : vector<1x1x32xf32> to vector<1x32xf32>
    %98 = vector.broadcast %97 : vector<1x32xf32> to vector<8x32xf32>
    %99 = arith.addf %95, %98 : vector<8x32xf32>
    %100 = arith.addf %25, %99 : vector<8x32xf32>
    %c0_32 = arith.constant 0 : index
    %c0_33 = arith.constant 0 : index
    %c0_34 = arith.constant 0 : index
    %101 = vector.load %arg9[%c0_32, %c0_33, %c0_34] : memref<3x1x32xf32, #tpu.memory_space<vmem>>, vector<1x1x32xf32>
    %102 = vector.shape_cast %101 : vector<1x1x32xf32> to vector<1x32xf32>
    %c0_35 = arith.constant 0 : index
    %c0_36 = arith.constant 0 : index
    %c0_37 = arith.constant 0 : index
    %103 = vector.load %arg10[%c0_35, %c0_36, %c0_37] : memref<3x1x32xf32, #tpu.memory_space<vmem>>, vector<1x1x32xf32>
    %104 = vector.shape_cast %103 : vector<1x1x32xf32> to vector<1x32xf32>
    %cst_38 = arith.constant dense<0.000000e+00> : vector<8xf32>
    %105 = vector.multi_reduction <add>, %100, %cst_38 [1] : vector<8x32xf32> to vector<8xf32>
    %106 = vector.shape_cast %105 : vector<8xf32> to vector<8x1xf32>
    %cst_39 = arith.constant 3.200000e+01 : f32
    %107 = vector.broadcast %cst_39 : f32 to vector<8x1xf32>
    %108 = arith.divf %106, %107 : vector<8x1xf32>
    %109 = vector.broadcast %108 : vector<8x1xf32> to vector<8x32xf32>
    %110 = arith.subf %100, %109 : vector<8x32xf32>
    %111 = arith.mulf %110, %110 : vector<8x32xf32>
    %cst_40 = arith.constant dense<0.000000e+00> : vector<8xf32>
    %112 = vector.multi_reduction <add>, %111, %cst_40 [1] : vector<8x32xf32> to vector<8xf32>
    %113 = vector.shape_cast %112 : vector<8xf32> to vector<8x1xf32>
    %cst_41 = arith.constant 3.200000e+01 : f32
    %114 = vector.broadcast %cst_41 : f32 to vector<8x1xf32>
    %115 = arith.divf %113, %114 : vector<8x1xf32>
    %116 = vector.broadcast %108 : vector<8x1xf32> to vector<8x32xf32>
    %117 = arith.subf %100, %116 : vector<8x32xf32>
    %cst_42 = arith.constant 9.99999996E-13 : f32
    %118 = vector.broadcast %cst_42 : f32 to vector<8x1xf32>
    %119 = arith.addf %115, %118 : vector<8x1xf32>
    %120 = math.rsqrt %119 : vector<8x1xf32>
    %121 = vector.broadcast %120 : vector<8x1xf32> to vector<8x32xf32>
    %122 = arith.mulf %117, %121 : vector<8x32xf32>
    %123 = vector.broadcast %102 : vector<1x32xf32> to vector<8x32xf32>
    %124 = arith.mulf %122, %123 : vector<8x32xf32>
    %125 = vector.broadcast %104 : vector<1x32xf32> to vector<8x32xf32>
    %126 = arith.addf %124, %125 : vector<8x32xf32>
    %127 = arith.truncf %126 : vector<8x32xf32> to vector<8x32xbf16>
    %c0_43 = arith.constant 0 : index
    %c0_44 = arith.constant 0 : index
    %c0_45 = arith.constant 0 : index
    %128 = vector.load %arg11[%c0_43, %c0_44, %c0_45] : memref<3x32x64xbf16, #tpu.memory_space<vmem>>, vector<1x32x64xbf16>
    %129 = vector.shape_cast %128 : vector<1x32x64xbf16> to vector<32x64xbf16>
    %cst_46 = arith.constant dense<0.000000e+00> : vector<8x64xf32>
    %130 = tpu.matmul %127, %129, %cst_46 {dimension_numbers = #tpu.dot_dimension_numbers<[1], [0], [0], [1], [0, 0, 1, 1], [], []>} : vector<8x32xbf16>, vector<32x64xbf16>, vector<8x64xf32> -> vector<8x64xf32>
    %c0_47 = arith.constant 0 : index
    %c0_48 = arith.constant 0 : index
    %c0_49 = arith.constant 0 : index
    %131 = vector.load %arg12[%c0_47, %c0_48, %c0_49] : memref<3x1x64xf32, #tpu.memory_space<vmem>>, vector<1x1x64xf32>
    %132 = vector.shape_cast %131 : vector<1x1x64xf32> to vector<1x64xf32>
    %133 = vector.broadcast %132 : vector<1x64xf32> to vector<8x64xf32>
    %134 = arith.addf %130, %133 : vector<8x64xf32>
    %cst_50 = arith.constant 5.000000e-01 : f32
    %135 = vector.broadcast %cst_50 : f32 to vector<8x64xf32>
    %136 = arith.mulf %135, %134 : vector<8x64xf32>
    %cst_51 = arith.constant 4.471500e-02 : f32
    %137 = vector.broadcast %cst_51 : f32 to vector<8x64xf32>
    %138 = arith.mulf %137, %134 : vector<8x64xf32>
    %139 = arith.mulf %138, %134 : vector<8x64xf32>
    %140 = arith.mulf %139, %134 : vector<8x64xf32>
    %141 = arith.addf %134, %140 : vector<8x64xf32>
    %cst_52 = arith.constant 0.797884583 : f32
    %142 = vector.broadcast %cst_52 : f32 to vector<8x64xf32>
    %143 = arith.mulf %142, %141 : vector<8x64xf32>
    %144 = math.tanh %143 : vector<8x64xf32>
    %cst_53 = arith.constant 1.000000e+00 : f32
    %145 = vector.broadcast %cst_53 : f32 to vector<8x64xf32>
    %146 = arith.addf %145, %144 : vector<8x64xf32>
    %147 = arith.mulf %136, %146 : vector<8x64xf32>
    %148 = arith.truncf %147 : vector<8x64xf32> to vector<8x64xbf16>
    %c0_54 = arith.constant 0 : index
    %c0_55 = arith.constant 0 : index
    %c0_56 = arith.constant 0 : index
    %149 = vector.load %arg13[%c0_54, %c0_55, %c0_56] : memref<3x64x32xbf16, #tpu.memory_space<vmem>>, vector<1x64x32xbf16>
    %150 = vector.shape_cast %149 : vector<1x64x32xbf16> to vector<64x32xbf16>
    %cst_57 = arith.constant dense<0.000000e+00> : vector<8x32xf32>
    %151 = tpu.matmul %148, %150, %cst_57 {dimension_numbers = #tpu.dot_dimension_numbers<[1], [0], [0], [1], [0, 0, 1, 1], [], []>} : vector<8x64xbf16>, vector<64x32xbf16>, vector<8x32xf32> -> vector<8x32xf32>
    %c0_58 = arith.constant 0 : index
    %c0_59 = arith.constant 0 : index
    %c0_60 = arith.constant 0 : index
    %152 = vector.load %arg14[%c0_58, %c0_59, %c0_60] : memref<3x1x32xf32, #tpu.memory_space<vmem>>, vector<1x1x32xf32>
    %153 = vector.shape_cast %152 : vector<1x1x32xf32> to vector<1x32xf32>
    %154 = vector.broadcast %153 : vector<1x32xf32> to vector<8x32xf32>
    %155 = arith.addf %151, %154 : vector<8x32xf32>
    %156 = arith.addf %126, %155 : vector<8x32xf32>
    %c0_61 = arith.constant 0 : index
    %c0_62 = arith.constant 0 : index
    %c0_63 = arith.constant 0 : index
    %157 = vector.load %arg15[%c0_61, %c0_62, %c0_63] : memref<3x1x32xf32, #tpu.memory_space<vmem>>, vector<1x1x32xf32>
    %158 = vector.shape_cast %157 : vector<1x1x32xf32> to vector<1x32xf32>
    %c0_64 = arith.constant 0 : index
    %c0_65 = arith.constant 0 : index
    %c0_66 = arith.constant 0 : index
    %159 = vector.load %arg16[%c0_64, %c0_65, %c0_66] : memref<3x1x32xf32, #tpu.memory_space<vmem>>, vector<1x1x32xf32>
    %160 = vector.shape_cast %159 : vector<1x1x32xf32> to vector<1x32xf32>
    %cst_67 = arith.constant dense<0.000000e+00> : vector<8xf32>
    %161 = vector.multi_reduction <add>, %156, %cst_67 [1] : vector<8x32xf32> to vector<8xf32>
    %162 = vector.shape_cast %161 : vector<8xf32> to vector<8x1xf32>
    %cst_68 = arith.constant 3.200000e+01 : f32
    %163 = vector.broadcast %cst_68 : f32 to vector<8x1xf32>
    %164 = arith.divf %162, %163 : vector<8x1xf32>
    %165 = vector.broadcast %164 : vector<8x1xf32> to vector<8x32xf32>
    %166 = arith.subf %156, %165 : vector<8x32xf32>
    %167 = arith.mulf %166, %166 : vector<8x32xf32>
    %cst_69 = arith.constant dense<0.000000e+00> : vector<8xf32>
    %168 = vector.multi_reduction <add>, %167, %cst_69 [1] : vector<8x32xf32> to vector<8xf32>
    %169 = vector.shape_cast %168 : vector<8xf32> to vector<8x1xf32>
    %cst_70 = arith.constant 3.200000e+01 : f32
    %170 = vector.broadcast %cst_70 : f32 to vector<8x1xf32>
    %171 = arith.divf %169, %170 : vector<8x1xf32>
    %172 = vector.broadcast %164 : vector<8x1xf32> to vector<8x32xf32>
    %173 = arith.subf %156, %172 : vector<8x32xf32>
    %cst_71 = arith.constant 9.99999996E-13 : f32
    %174 = vector.broadcast %cst_71 : f32 to vector<8x1xf32>
    %175 = arith.addf %171, %174 : vector<8x1xf32>
    %176 = math.rsqrt %175 : vector<8x1xf32>
    %177 = vector.broadcast %176 : vector<8x1xf32> to vector<8x32xf32>
    %178 = arith.mulf %173, %177 : vector<8x32xf32>
    %179 = vector.broadcast %158 : vector<1x32xf32> to vector<8x32xf32>
    %180 = arith.mulf %178, %179 : vector<8x32xf32>
    %181 = vector.broadcast %160 : vector<1x32xf32> to vector<8x32xf32>
    %182 = arith.addf %180, %181 : vector<8x32xf32>
    %183 = arith.truncf %182 : vector<8x32xf32> to vector<8x32xbf16>
    %c1 = arith.constant 1 : index
    %c0_72 = arith.constant 0 : index
    %c0_73 = arith.constant 0 : index
    %184 = vector.load %arg5[%c1, %c0_72, %c0_73] : memref<3x32x96xbf16, #tpu.memory_space<vmem>>, vector<1x32x96xbf16>
    %185 = vector.shape_cast %184 : vector<1x32x96xbf16> to vector<32x96xbf16>
    %cst_74 = arith.constant dense<0.000000e+00> : vector<8x96xf32>
    %186 = tpu.matmul %183, %185, %cst_74 {dimension_numbers = #tpu.dot_dimension_numbers<[1], [0], [0], [1], [0, 0, 1, 1], [], []>} : vector<8x32xbf16>, vector<32x96xbf16>, vector<8x96xf32> -> vector<8x96xf32>
    %c1_75 = arith.constant 1 : index
    %c0_76 = arith.constant 0 : index
    %c0_77 = arith.constant 0 : index
    %187 = vector.load %arg6[%c1_75, %c0_76, %c0_77] : memref<3x1x96xf32, #tpu.memory_space<vmem>>, vector<1x1x96xf32>
    %188 = vector.shape_cast %187 : vector<1x1x96xf32> to vector<1x96xf32>
    %189 = vector.broadcast %188 : vector<1x96xf32> to vector<8x96xf32>
    %190 = arith.addf %186, %189 : vector<8x96xf32>
    %191 = vector.extract_strided_slice %190 {offsets = [0, 0], sizes = [8, 8], strides = [1, 1]} : vector<8x96xf32> to vector<8x8xf32>
    %192 = vector.extract_strided_slice %190 {offsets = [0, 8], sizes = [8, 8], strides = [1, 1]} : vector<8x96xf32> to vector<8x8xf32>
    %193 = vector.extract_strided_slice %190 {offsets = [0, 16], sizes = [8, 8], strides = [1, 1]} : vector<8x96xf32> to vector<8x8xf32>
    %194 = vector.extract_strided_slice %190 {offsets = [0, 24], sizes = [8, 8], strides = [1, 1]} : vector<8x96xf32> to vector<8x8xf32>
    %195 = vector.shape_cast %191 : vector<8x8xf32> to vector<1x8x8xf32>
    %196 = vector.shape_cast %192 : vector<8x8xf32> to vector<1x8x8xf32>
    %197 = vector.shape_cast %193 : vector<8x8xf32> to vector<1x8x8xf32>
    %198 = vector.shape_cast %194 : vector<8x8xf32> to vector<1x8x8xf32>
    %199 = tpu.concatenate %195, %196, %197, %198 in 0 : vector<1x8x8xf32>, vector<1x8x8xf32>, vector<1x8x8xf32>, vector<1x8x8xf32> -> vector<4x8x8xf32>
    %200 = vector.extract_strided_slice %190 {offsets = [0, 32], sizes = [8, 8], strides = [1, 1]} : vector<8x96xf32> to vector<8x8xf32>
    %201 = vector.extract_strided_slice %190 {offsets = [0, 40], sizes = [8, 8], strides = [1, 1]} : vector<8x96xf32> to vector<8x8xf32>
    %202 = vector.extract_strided_slice %190 {offsets = [0, 48], sizes = [8, 8], strides = [1, 1]} : vector<8x96xf32> to vector<8x8xf32>
    %203 = vector.extract_strided_slice %190 {offsets = [0, 56], sizes = [8, 8], strides = [1, 1]} : vector<8x96xf32> to vector<8x8xf32>
    %204 = vector.shape_cast %200 : vector<8x8xf32> to vector<1x8x8xf32>
    %205 = vector.shape_cast %201 : vector<8x8xf32> to vector<1x8x8xf32>
    %206 = vector.shape_cast %202 : vector<8x8xf32> to vector<1x8x8xf32>
    %207 = vector.shape_cast %203 : vector<8x8xf32> to vector<1x8x8xf32>
    %208 = tpu.concatenate %204, %205, %206, %207 in 0 : vector<1x8x8xf32>, vector<1x8x8xf32>, vector<1x8x8xf32>, vector<1x8x8xf32> -> vector<4x8x8xf32>
    %209 = vector.extract_strided_slice %190 {offsets = [0, 64], sizes = [8, 8], strides = [1, 1]} : vector<8x96xf32> to vector<8x8xf32>
    %210 = vector.extract_strided_slice %190 {offsets = [0, 72], sizes = [8, 8], strides = [1, 1]} : vector<8x96xf32> to vector<8x8xf32>
    %211 = vector.extract_strided_slice %190 {offsets = [0, 80], sizes = [8, 8], strides = [1, 1]} : vector<8x96xf32> to vector<8x8xf32>
    %212 = vector.extract_strided_slice %190 {offsets = [0, 88], sizes = [8, 8], strides = [1, 1]} : vector<8x96xf32> to vector<8x8xf32>
    %213 = vector.shape_cast %209 : vector<8x8xf32> to vector<1x8x8xf32>
    %214 = vector.shape_cast %210 : vector<8x8xf32> to vector<1x8x8xf32>
    %215 = vector.shape_cast %211 : vector<8x8xf32> to vector<1x8x8xf32>
    %216 = vector.shape_cast %212 : vector<8x8xf32> to vector<1x8x8xf32>
    %217 = tpu.concatenate %213, %214, %215, %216 in 0 : vector<1x8x8xf32>, vector<1x8x8xf32>, vector<1x8x8xf32>, vector<1x8x8xf32> -> vector<4x8x8xf32>
    %218 = arith.truncf %199 : vector<4x8x8xf32> to vector<4x8x8xbf16>
    %219 = arith.truncf %208 : vector<4x8x8xf32> to vector<4x8x8xbf16>
    %220 = arith.truncf %217 : vector<4x8x8xf32> to vector<4x8x8xbf16>
    "tpu.trace_start"() <{level = 10 : i32, message = "hqd,hkd->hqk"}> : () -> ()
    %cst_78 = arith.constant dense<0.000000e+00> : vector<4x8x8xf32>
    %221 = tpu.matmul %218, %219, %cst_78 {dimension_numbers = #tpu.dot_dimension_numbers<[2], [2], [1], [1], [0, 0, 0, 1, 1, 1], [0], [0]>} : vector<4x8x8xbf16>, vector<4x8x8xbf16>, vector<4x8x8xf32> -> vector<4x8x8xf32>
    "tpu.trace_stop"() : () -> ()
    %cst_79 = arith.constant 0.353553385 : f32
    %222 = vector.broadcast %cst_79 : f32 to vector<4x8x8xf32>
    %223 = arith.mulf %221, %222 : vector<4x8x8xf32>
    %224 = arith.addf %223, %28 : vector<4x8x8xf32>
    %cst_80 = arith.constant dense<0xFF800000> : vector<4x8xf32>
    %225 = vector.multi_reduction <maximumf>, %224, %cst_80 [2] : vector<4x8x8xf32> to vector<4x8xf32>
    %226 = vector.shape_cast %225 : vector<4x8xf32> to vector<4x8x1xf32>
    %227 = vector.broadcast %226 : vector<4x8x1xf32> to vector<4x8x8xf32>
    %228 = arith.subf %224, %227 : vector<4x8x8xf32>
    %229 = math.exp %228 : vector<4x8x8xf32>
    %cst_81 = arith.constant dense<0.000000e+00> : vector<4x8xf32>
    %230 = vector.multi_reduction <add>, %229, %cst_81 [2] : vector<4x8x8xf32> to vector<4x8xf32>
    %231 = vector.shape_cast %230 : vector<4x8xf32> to vector<4x8x1xf32>
    %232 = tpu.reciprocal %231 {approx = true} : vector<4x8x1xf32> -> vector<4x8x1xf32>
    %233 = vector.broadcast %232 : vector<4x8x1xf32> to vector<4x8x8xf32>
    %234 = arith.mulf %229, %233 : vector<4x8x8xf32>
    %235 = arith.truncf %234 : vector<4x8x8xf32> to vector<4x8x8xbf16>
    "tpu.trace_start"() <{level = 10 : i32, message = "hqk,hkd->hqd"}> : () -> ()
    %cst_82 = arith.constant dense<0.000000e+00> : vector<4x8x8xf32>
    %236 = tpu.matmul %235, %220, %cst_82 {dimension_numbers = #tpu.dot_dimension_numbers<[2], [1], [1], [2], [0, 0, 0, 1, 1, 2], [0], [0]>} : vector<4x8x8xbf16>, vector<4x8x8xbf16>, vector<4x8x8xf32> -> vector<4x8x8xf32>
    "tpu.trace_stop"() : () -> ()
    %237 = vector.extract_strided_slice %236 {offsets = [0, 0, 0], sizes = [1, 8, 8], strides = [1, 1, 1]} : vector<4x8x8xf32> to vector<1x8x8xf32>
    %238 = vector.shape_cast %237 : vector<1x8x8xf32> to vector<8x8xf32>
    %239 = vector.extract_strided_slice %236 {offsets = [1, 0, 0], sizes = [1, 8, 8], strides = [1, 1, 1]} : vector<4x8x8xf32> to vector<1x8x8xf32>
    %240 = vector.shape_cast %239 : vector<1x8x8xf32> to vector<8x8xf32>
    %241 = vector.extract_strided_slice %236 {offsets = [2, 0, 0], sizes = [1, 8, 8], strides = [1, 1, 1]} : vector<4x8x8xf32> to vector<1x8x8xf32>
    %242 = vector.shape_cast %241 : vector<1x8x8xf32> to vector<8x8xf32>
    %243 = vector.extract_strided_slice %236 {offsets = [3, 0, 0], sizes = [1, 8, 8], strides = [1, 1, 1]} : vector<4x8x8xf32> to vector<1x8x8xf32>
    %244 = vector.shape_cast %243 : vector<1x8x8xf32> to vector<8x8xf32>
    %245 = tpu.concatenate %238, %240, %242, %244 in 1 : vector<8x8xf32>, vector<8x8xf32>, vector<8x8xf32>, vector<8x8xf32> -> vector<8x32xf32>
    %246 = arith.truncf %245 : vector<8x32xf32> to vector<8x32xbf16>
    %c1_83 = arith.constant 1 : index
    %c0_84 = arith.constant 0 : index
    %c0_85 = arith.constant 0 : index
    %247 = vector.load %arg7[%c1_83, %c0_84, %c0_85] : memref<3x32x32xbf16, #tpu.memory_space<vmem>>, vector<1x32x32xbf16>
    %248 = vector.shape_cast %247 : vector<1x32x32xbf16> to vector<32x32xbf16>
    %cst_86 = arith.constant dense<0.000000e+00> : vector<8x32xf32>
    %249 = tpu.matmul %246, %248, %cst_86 {dimension_numbers = #tpu.dot_dimension_numbers<[1], [0], [0], [1], [0, 0, 1, 1], [], []>} : vector<8x32xbf16>, vector<32x32xbf16>, vector<8x32xf32> -> vector<8x32xf32>
    %c1_87 = arith.constant 1 : index
    %c0_88 = arith.constant 0 : index
    %c0_89 = arith.constant 0 : index
    %250 = vector.load %arg8[%c1_87, %c0_88, %c0_89] : memref<3x1x32xf32, #tpu.memory_space<vmem>>, vector<1x1x32xf32>
    %251 = vector.shape_cast %250 : vector<1x1x32xf32> to vector<1x32xf32>
    %252 = vector.broadcast %251 : vector<1x32xf32> to vector<8x32xf32>
    %253 = arith.addf %249, %252 : vector<8x32xf32>
    %254 = arith.addf %182, %253 : vector<8x32xf32>
    %c1_90 = arith.constant 1 : index
    %c0_91 = arith.constant 0 : index
    %c0_92 = arith.constant 0 : index
    %255 = vector.load %arg9[%c1_90, %c0_91, %c0_92] : memref<3x1x32xf32, #tpu.memory_space<vmem>>, vector<1x1x32xf32>
    %256 = vector.shape_cast %255 : vector<1x1x32xf32> to vector<1x32xf32>
    %c1_93 = arith.constant 1 : index
    %c0_94 = arith.constant 0 : index
    %c0_95 = arith.constant 0 : index
    %257 = vector.load %arg10[%c1_93, %c0_94, %c0_95] : memref<3x1x32xf32, #tpu.memory_space<vmem>>, vector<1x1x32xf32>
    %258 = vector.shape_cast %257 : vector<1x1x32xf32> to vector<1x32xf32>
    %cst_96 = arith.constant dense<0.000000e+00> : vector<8xf32>
    %259 = vector.multi_reduction <add>, %254, %cst_96 [1] : vector<8x32xf32> to vector<8xf32>
    %260 = vector.shape_cast %259 : vector<8xf32> to vector<8x1xf32>
    %cst_97 = arith.constant 3.200000e+01 : f32
    %261 = vector.broadcast %cst_97 : f32 to vector<8x1xf32>
    %262 = arith.divf %260, %261 : vector<8x1xf32>
    %263 = vector.broadcast %262 : vector<8x1xf32> to vector<8x32xf32>
    %264 = arith.subf %254, %263 : vector<8x32xf32>
    %265 = arith.mulf %264, %264 : vector<8x32xf32>
    %cst_98 = arith.constant dense<0.000000e+00> : vector<8xf32>
    %266 = vector.multi_reduction <add>, %265, %cst_98 [1] : vector<8x32xf32> to vector<8xf32>
    %267 = vector.shape_cast %266 : vector<8xf32> to vector<8x1xf32>
    %cst_99 = arith.constant 3.200000e+01 : f32
    %268 = vector.broadcast %cst_99 : f32 to vector<8x1xf32>
    %269 = arith.divf %267, %268 : vector<8x1xf32>
    %270 = vector.broadcast %262 : vector<8x1xf32> to vector<8x32xf32>
    %271 = arith.subf %254, %270 : vector<8x32xf32>
    %cst_100 = arith.constant 9.99999996E-13 : f32
    %272 = vector.broadcast %cst_100 : f32 to vector<8x1xf32>
    %273 = arith.addf %269, %272 : vector<8x1xf32>
    %274 = math.rsqrt %273 : vector<8x1xf32>
    %275 = vector.broadcast %274 : vector<8x1xf32> to vector<8x32xf32>
    %276 = arith.mulf %271, %275 : vector<8x32xf32>
    %277 = vector.broadcast %256 : vector<1x32xf32> to vector<8x32xf32>
    %278 = arith.mulf %276, %277 : vector<8x32xf32>
    %279 = vector.broadcast %258 : vector<1x32xf32> to vector<8x32xf32>
    %280 = arith.addf %278, %279 : vector<8x32xf32>
    %281 = arith.truncf %280 : vector<8x32xf32> to vector<8x32xbf16>
    %c1_101 = arith.constant 1 : index
    %c0_102 = arith.constant 0 : index
    %c0_103 = arith.constant 0 : index
    %282 = vector.load %arg11[%c1_101, %c0_102, %c0_103] : memref<3x32x64xbf16, #tpu.memory_space<vmem>>, vector<1x32x64xbf16>
    %283 = vector.shape_cast %282 : vector<1x32x64xbf16> to vector<32x64xbf16>
    %cst_104 = arith.constant dense<0.000000e+00> : vector<8x64xf32>
    %284 = tpu.matmul %281, %283, %cst_104 {dimension_numbers = #tpu.dot_dimension_numbers<[1], [0], [0], [1], [0, 0, 1, 1], [], []>} : vector<8x32xbf16>, vector<32x64xbf16>, vector<8x64xf32> -> vector<8x64xf32>
    %c1_105 = arith.constant 1 : index
    %c0_106 = arith.constant 0 : index
    %c0_107 = arith.constant 0 : index
    %285 = vector.load %arg12[%c1_105, %c0_106, %c0_107] : memref<3x1x64xf32, #tpu.memory_space<vmem>>, vector<1x1x64xf32>
    %286 = vector.shape_cast %285 : vector<1x1x64xf32> to vector<1x64xf32>
    %287 = vector.broadcast %286 : vector<1x64xf32> to vector<8x64xf32>
    %288 = arith.addf %284, %287 : vector<8x64xf32>
    %cst_108 = arith.constant 5.000000e-01 : f32
    %289 = vector.broadcast %cst_108 : f32 to vector<8x64xf32>
    %290 = arith.mulf %289, %288 : vector<8x64xf32>
    %cst_109 = arith.constant 4.471500e-02 : f32
    %291 = vector.broadcast %cst_109 : f32 to vector<8x64xf32>
    %292 = arith.mulf %291, %288 : vector<8x64xf32>
    %293 = arith.mulf %292, %288 : vector<8x64xf32>
    %294 = arith.mulf %293, %288 : vector<8x64xf32>
    %295 = arith.addf %288, %294 : vector<8x64xf32>
    %cst_110 = arith.constant 0.797884583 : f32
    %296 = vector.broadcast %cst_110 : f32 to vector<8x64xf32>
    %297 = arith.mulf %296, %295 : vector<8x64xf32>
    %298 = math.tanh %297 : vector<8x64xf32>
    %cst_111 = arith.constant 1.000000e+00 : f32
    %299 = vector.broadcast %cst_111 : f32 to vector<8x64xf32>
    %300 = arith.addf %299, %298 : vector<8x64xf32>
    %301 = arith.mulf %290, %300 : vector<8x64xf32>
    %302 = arith.truncf %301 : vector<8x64xf32> to vector<8x64xbf16>
    %c1_112 = arith.constant 1 : index
    %c0_113 = arith.constant 0 : index
    %c0_114 = arith.constant 0 : index
    %303 = vector.load %arg13[%c1_112, %c0_113, %c0_114] : memref<3x64x32xbf16, #tpu.memory_space<vmem>>, vector<1x64x32xbf16>
    %304 = vector.shape_cast %303 : vector<1x64x32xbf16> to vector<64x32xbf16>
    %cst_115 = arith.constant dense<0.000000e+00> : vector<8x32xf32>
    %305 = tpu.matmul %302, %304, %cst_115 {dimension_numbers = #tpu.dot_dimension_numbers<[1], [0], [0], [1], [0, 0, 1, 1], [], []>} : vector<8x64xbf16>, vector<64x32xbf16>, vector<8x32xf32> -> vector<8x32xf32>
    %c1_116 = arith.constant 1 : index
    %c0_117 = arith.constant 0 : index
    %c0_118 = arith.constant 0 : index
    %306 = vector.load %arg14[%c1_116, %c0_117, %c0_118] : memref<3x1x32xf32, #tpu.memory_space<vmem>>, vector<1x1x32xf32>
    %307 = vector.shape_cast %306 : vector<1x1x32xf32> to vector<1x32xf32>
    %308 = vector.broadcast %307 : vector<1x32xf32> to vector<8x32xf32>
    %309 = arith.addf %305, %308 : vector<8x32xf32>
    %310 = arith.addf %280, %309 : vector<8x32xf32>
    %c1_119 = arith.constant 1 : index
    %c0_120 = arith.constant 0 : index
    %c0_121 = arith.constant 0 : index
    %311 = vector.load %arg15[%c1_119, %c0_120, %c0_121] : memref<3x1x32xf32, #tpu.memory_space<vmem>>, vector<1x1x32xf32>
    %312 = vector.shape_cast %311 : vector<1x1x32xf32> to vector<1x32xf32>
    %c1_122 = arith.constant 1 : index
    %c0_123 = arith.constant 0 : index
    %c0_124 = arith.constant 0 : index
    %313 = vector.load %arg16[%c1_122, %c0_123, %c0_124] : memref<3x1x32xf32, #tpu.memory_space<vmem>>, vector<1x1x32xf32>
    %314 = vector.shape_cast %313 : vector<1x1x32xf32> to vector<1x32xf32>
    %cst_125 = arith.constant dense<0.000000e+00> : vector<8xf32>
    %315 = vector.multi_reduction <add>, %310, %cst_125 [1] : vector<8x32xf32> to vector<8xf32>
    %316 = vector.shape_cast %315 : vector<8xf32> to vector<8x1xf32>
    %cst_126 = arith.constant 3.200000e+01 : f32
    %317 = vector.broadcast %cst_126 : f32 to vector<8x1xf32>
    %318 = arith.divf %316, %317 : vector<8x1xf32>
    %319 = vector.broadcast %318 : vector<8x1xf32> to vector<8x32xf32>
    %320 = arith.subf %310, %319 : vector<8x32xf32>
    %321 = arith.mulf %320, %320 : vector<8x32xf32>
    %cst_127 = arith.constant dense<0.000000e+00> : vector<8xf32>
    %322 = vector.multi_reduction <add>, %321, %cst_127 [1] : vector<8x32xf32> to vector<8xf32>
    %323 = vector.shape_cast %322 : vector<8xf32> to vector<8x1xf32>
    %cst_128 = arith.constant 3.200000e+01 : f32
    %324 = vector.broadcast %cst_128 : f32 to vector<8x1xf32>
    %325 = arith.divf %323, %324 : vector<8x1xf32>
    %326 = vector.broadcast %318 : vector<8x1xf32> to vector<8x32xf32>
    %327 = arith.subf %310, %326 : vector<8x32xf32>
    %cst_129 = arith.constant 9.99999996E-13 : f32
    %328 = vector.broadcast %cst_129 : f32 to vector<8x1xf32>
    %329 = arith.addf %325, %328 : vector<8x1xf32>
    %330 = math.rsqrt %329 : vector<8x1xf32>
    %331 = vector.broadcast %330 : vector<8x1xf32> to vector<8x32xf32>
    %332 = arith.mulf %327, %331 : vector<8x32xf32>
    %333 = vector.broadcast %312 : vector<1x32xf32> to vector<8x32xf32>
    %334 = arith.mulf %332, %333 : vector<8x32xf32>
    %335 = vector.broadcast %314 : vector<1x32xf32> to vector<8x32xf32>
    %336 = arith.addf %334, %335 : vector<8x32xf32>
    %337 = arith.truncf %336 : vector<8x32xf32> to vector<8x32xbf16>
    %c2 = arith.constant 2 : index
    %c0_130 = arith.constant 0 : index
    %c0_131 = arith.constant 0 : index
    %338 = vector.load %arg5[%c2, %c0_130, %c0_131] : memref<3x32x96xbf16, #tpu.memory_space<vmem>>, vector<1x32x96xbf16>
    %339 = vector.shape_cast %338 : vector<1x32x96xbf16> to vector<32x96xbf16>
    %cst_132 = arith.constant dense<0.000000e+00> : vector<8x96xf32>
    %340 = tpu.matmul %337, %339, %cst_132 {dimension_numbers = #tpu.dot_dimension_numbers<[1], [0], [0], [1], [0, 0, 1, 1], [], []>} : vector<8x32xbf16>, vector<32x96xbf16>, vector<8x96xf32> -> vector<8x96xf32>
    %c2_133 = arith.constant 2 : index
    %c0_134 = arith.constant 0 : index
    %c0_135 = arith.constant 0 : index
    %341 = vector.load %arg6[%c2_133, %c0_134, %c0_135] : memref<3x1x96xf32, #tpu.memory_space<vmem>>, vector<1x1x96xf32>
    %342 = vector.shape_cast %341 : vector<1x1x96xf32> to vector<1x96xf32>
    %343 = vector.broadcast %342 : vector<1x96xf32> to vector<8x96xf32>
    %344 = arith.addf %340, %343 : vector<8x96xf32>
    %345 = vector.extract_strided_slice %344 {offsets = [0, 0], sizes = [8, 8], strides = [1, 1]} : vector<8x96xf32> to vector<8x8xf32>
    %346 = vector.extract_strided_slice %344 {offsets = [0, 8], sizes = [8, 8], strides = [1, 1]} : vector<8x96xf32> to vector<8x8xf32>
    %347 = vector.extract_strided_slice %344 {offsets = [0, 16], sizes = [8, 8], strides = [1, 1]} : vector<8x96xf32> to vector<8x8xf32>
    %348 = vector.extract_strided_slice %344 {offsets = [0, 24], sizes = [8, 8], strides = [1, 1]} : vector<8x96xf32> to vector<8x8xf32>
    %349 = vector.shape_cast %345 : vector<8x8xf32> to vector<1x8x8xf32>
    %350 = vector.shape_cast %346 : vector<8x8xf32> to vector<1x8x8xf32>
    %351 = vector.shape_cast %347 : vector<8x8xf32> to vector<1x8x8xf32>
    %352 = vector.shape_cast %348 : vector<8x8xf32> to vector<1x8x8xf32>
    %353 = tpu.concatenate %349, %350, %351, %352 in 0 : vector<1x8x8xf32>, vector<1x8x8xf32>, vector<1x8x8xf32>, vector<1x8x8xf32> -> vector<4x8x8xf32>
    %354 = vector.extract_strided_slice %344 {offsets = [0, 32], sizes = [8, 8], strides = [1, 1]} : vector<8x96xf32> to vector<8x8xf32>
    %355 = vector.extract_strided_slice %344 {offsets = [0, 40], sizes = [8, 8], strides = [1, 1]} : vector<8x96xf32> to vector<8x8xf32>
    %356 = vector.extract_strided_slice %344 {offsets = [0, 48], sizes = [8, 8], strides = [1, 1]} : vector<8x96xf32> to vector<8x8xf32>
    %357 = vector.extract_strided_slice %344 {offsets = [0, 56], sizes = [8, 8], strides = [1, 1]} : vector<8x96xf32> to vector<8x8xf32>
    %358 = vector.shape_cast %354 : vector<8x8xf32> to vector<1x8x8xf32>
    %359 = vector.shape_cast %355 : vector<8x8xf32> to vector<1x8x8xf32>
    %360 = vector.shape_cast %356 : vector<8x8xf32> to vector<1x8x8xf32>
    %361 = vector.shape_cast %357 : vector<8x8xf32> to vector<1x8x8xf32>
    %362 = tpu.concatenate %358, %359, %360, %361 in 0 : vector<1x8x8xf32>, vector<1x8x8xf32>, vector<1x8x8xf32>, vector<1x8x8xf32> -> vector<4x8x8xf32>
    %363 = vector.extract_strided_slice %344 {offsets = [0, 64], sizes = [8, 8], strides = [1, 1]} : vector<8x96xf32> to vector<8x8xf32>
    %364 = vector.extract_strided_slice %344 {offsets = [0, 72], sizes = [8, 8], strides = [1, 1]} : vector<8x96xf32> to vector<8x8xf32>
    %365 = vector.extract_strided_slice %344 {offsets = [0, 80], sizes = [8, 8], strides = [1, 1]} : vector<8x96xf32> to vector<8x8xf32>
    %366 = vector.extract_strided_slice %344 {offsets = [0, 88], sizes = [8, 8], strides = [1, 1]} : vector<8x96xf32> to vector<8x8xf32>
    %367 = vector.shape_cast %363 : vector<8x8xf32> to vector<1x8x8xf32>
    %368 = vector.shape_cast %364 : vector<8x8xf32> to vector<1x8x8xf32>
    %369 = vector.shape_cast %365 : vector<8x8xf32> to vector<1x8x8xf32>
    %370 = vector.shape_cast %366 : vector<8x8xf32> to vector<1x8x8xf32>
    %371 = tpu.concatenate %367, %368, %369, %370 in 0 : vector<1x8x8xf32>, vector<1x8x8xf32>, vector<1x8x8xf32>, vector<1x8x8xf32> -> vector<4x8x8xf32>
    %372 = arith.truncf %353 : vector<4x8x8xf32> to vector<4x8x8xbf16>
    %373 = arith.truncf %362 : vector<4x8x8xf32> to vector<4x8x8xbf16>
    %374 = arith.truncf %371 : vector<4x8x8xf32> to vector<4x8x8xbf16>
    "tpu.trace_start"() <{level = 10 : i32, message = "hqd,hkd->hqk"}> : () -> ()
    %cst_136 = arith.constant dense<0.000000e+00> : vector<4x8x8xf32>
    %375 = tpu.matmul %372, %373, %cst_136 {dimension_numbers = #tpu.dot_dimension_numbers<[2], [2], [1], [1], [0, 0, 0, 1, 1, 1], [0], [0]>} : vector<4x8x8xbf16>, vector<4x8x8xbf16>, vector<4x8x8xf32> -> vector<4x8x8xf32>
    "tpu.trace_stop"() : () -> ()
    %cst_137 = arith.constant 0.353553385 : f32
    %376 = vector.broadcast %cst_137 : f32 to vector<4x8x8xf32>
    %377 = arith.mulf %375, %376 : vector<4x8x8xf32>
    %378 = arith.addf %377, %28 : vector<4x8x8xf32>
    %cst_138 = arith.constant dense<0xFF800000> : vector<4x8xf32>
    %379 = vector.multi_reduction <maximumf>, %378, %cst_138 [2] : vector<4x8x8xf32> to vector<4x8xf32>
    %380 = vector.shape_cast %379 : vector<4x8xf32> to vector<4x8x1xf32>
    %381 = vector.broadcast %380 : vector<4x8x1xf32> to vector<4x8x8xf32>
    %382 = arith.subf %378, %381 : vector<4x8x8xf32>
    %383 = math.exp %382 : vector<4x8x8xf32>
    %cst_139 = arith.constant dense<0.000000e+00> : vector<4x8xf32>
    %384 = vector.multi_reduction <add>, %383, %cst_139 [2] : vector<4x8x8xf32> to vector<4x8xf32>
    %385 = vector.shape_cast %384 : vector<4x8xf32> to vector<4x8x1xf32>
    %386 = tpu.reciprocal %385 {approx = true} : vector<4x8x1xf32> -> vector<4x8x1xf32>
    %387 = vector.broadcast %386 : vector<4x8x1xf32> to vector<4x8x8xf32>
    %388 = arith.mulf %383, %387 : vector<4x8x8xf32>
    %389 = arith.truncf %388 : vector<4x8x8xf32> to vector<4x8x8xbf16>
    "tpu.trace_start"() <{level = 10 : i32, message = "hqk,hkd->hqd"}> : () -> ()
    %cst_140 = arith.constant dense<0.000000e+00> : vector<4x8x8xf32>
    %390 = tpu.matmul %389, %374, %cst_140 {dimension_numbers = #tpu.dot_dimension_numbers<[2], [1], [1], [2], [0, 0, 0, 1, 1, 2], [0], [0]>} : vector<4x8x8xbf16>, vector<4x8x8xbf16>, vector<4x8x8xf32> -> vector<4x8x8xf32>
    "tpu.trace_stop"() : () -> ()
    %391 = vector.extract_strided_slice %390 {offsets = [0, 0, 0], sizes = [1, 8, 8], strides = [1, 1, 1]} : vector<4x8x8xf32> to vector<1x8x8xf32>
    %392 = vector.shape_cast %391 : vector<1x8x8xf32> to vector<8x8xf32>
    %393 = vector.extract_strided_slice %390 {offsets = [1, 0, 0], sizes = [1, 8, 8], strides = [1, 1, 1]} : vector<4x8x8xf32> to vector<1x8x8xf32>
    %394 = vector.shape_cast %393 : vector<1x8x8xf32> to vector<8x8xf32>
    %395 = vector.extract_strided_slice %390 {offsets = [2, 0, 0], sizes = [1, 8, 8], strides = [1, 1, 1]} : vector<4x8x8xf32> to vector<1x8x8xf32>
    %396 = vector.shape_cast %395 : vector<1x8x8xf32> to vector<8x8xf32>
    %397 = vector.extract_strided_slice %390 {offsets = [3, 0, 0], sizes = [1, 8, 8], strides = [1, 1, 1]} : vector<4x8x8xf32> to vector<1x8x8xf32>
    %398 = vector.shape_cast %397 : vector<1x8x8xf32> to vector<8x8xf32>
    %399 = tpu.concatenate %392, %394, %396, %398 in 1 : vector<8x8xf32>, vector<8x8xf32>, vector<8x8xf32>, vector<8x8xf32> -> vector<8x32xf32>
    %400 = arith.truncf %399 : vector<8x32xf32> to vector<8x32xbf16>
    %c2_141 = arith.constant 2 : index
    %c0_142 = arith.constant 0 : index
    %c0_143 = arith.constant 0 : index
    %401 = vector.load %arg7[%c2_141, %c0_142, %c0_143] : memref<3x32x32xbf16, #tpu.memory_space<vmem>>, vector<1x32x32xbf16>
    %402 = vector.shape_cast %401 : vector<1x32x32xbf16> to vector<32x32xbf16>
    %cst_144 = arith.constant dense<0.000000e+00> : vector<8x32xf32>
    %403 = tpu.matmul %400, %402, %cst_144 {dimension_numbers = #tpu.dot_dimension_numbers<[1], [0], [0], [1], [0, 0, 1, 1], [], []>} : vector<8x32xbf16>, vector<32x32xbf16>, vector<8x32xf32> -> vector<8x32xf32>
    %c2_145 = arith.constant 2 : index
    %c0_146 = arith.constant 0 : index
    %c0_147 = arith.constant 0 : index
    %404 = vector.load %arg8[%c2_145, %c0_146, %c0_147] : memref<3x1x32xf32, #tpu.memory_space<vmem>>, vector<1x1x32xf32>
    %405 = vector.shape_cast %404 : vector<1x1x32xf32> to vector<1x32xf32>
    %406 = vector.broadcast %405 : vector<1x32xf32> to vector<8x32xf32>
    %407 = arith.addf %403, %406 : vector<8x32xf32>
    %408 = arith.addf %336, %407 : vector<8x32xf32>
    %c2_148 = arith.constant 2 : index
    %c0_149 = arith.constant 0 : index
    %c0_150 = arith.constant 0 : index
    %409 = vector.load %arg9[%c2_148, %c0_149, %c0_150] : memref<3x1x32xf32, #tpu.memory_space<vmem>>, vector<1x1x32xf32>
    %410 = vector.shape_cast %409 : vector<1x1x32xf32> to vector<1x32xf32>
    %c2_151 = arith.constant 2 : index
    %c0_152 = arith.constant 0 : index
    %c0_153 = arith.constant 0 : index
    %411 = vector.load %arg10[%c2_151, %c0_152, %c0_153] : memref<3x1x32xf32, #tpu.memory_space<vmem>>, vector<1x1x32xf32>
    %412 = vector.shape_cast %411 : vector<1x1x32xf32> to vector<1x32xf32>
    %cst_154 = arith.constant dense<0.000000e+00> : vector<8xf32>
    %413 = vector.multi_reduction <add>, %408, %cst_154 [1] : vector<8x32xf32> to vector<8xf32>
    %414 = vector.shape_cast %413 : vector<8xf32> to vector<8x1xf32>
    %cst_155 = arith.constant 3.200000e+01 : f32
    %415 = vector.broadcast %cst_155 : f32 to vector<8x1xf32>
    %416 = arith.divf %414, %415 : vector<8x1xf32>
    %417 = vector.broadcast %416 : vector<8x1xf32> to vector<8x32xf32>
    %418 = arith.subf %408, %417 : vector<8x32xf32>
    %419 = arith.mulf %418, %418 : vector<8x32xf32>
    %cst_156 = arith.constant dense<0.000000e+00> : vector<8xf32>
    %420 = vector.multi_reduction <add>, %419, %cst_156 [1] : vector<8x32xf32> to vector<8xf32>
    %421 = vector.shape_cast %420 : vector<8xf32> to vector<8x1xf32>
    %cst_157 = arith.constant 3.200000e+01 : f32
    %422 = vector.broadcast %cst_157 : f32 to vector<8x1xf32>
    %423 = arith.divf %421, %422 : vector<8x1xf32>
    %424 = vector.broadcast %416 : vector<8x1xf32> to vector<8x32xf32>
    %425 = arith.subf %408, %424 : vector<8x32xf32>
    %cst_158 = arith.constant 9.99999996E-13 : f32
    %426 = vector.broadcast %cst_158 : f32 to vector<8x1xf32>
    %427 = arith.addf %423, %426 : vector<8x1xf32>
    %428 = math.rsqrt %427 : vector<8x1xf32>
    %429 = vector.broadcast %428 : vector<8x1xf32> to vector<8x32xf32>
    %430 = arith.mulf %425, %429 : vector<8x32xf32>
    %431 = vector.broadcast %410 : vector<1x32xf32> to vector<8x32xf32>
    %432 = arith.mulf %430, %431 : vector<8x32xf32>
    %433 = vector.broadcast %412 : vector<1x32xf32> to vector<8x32xf32>
    %434 = arith.addf %432, %433 : vector<8x32xf32>
    %435 = arith.truncf %434 : vector<8x32xf32> to vector<8x32xbf16>
    %c2_159 = arith.constant 2 : index
    %c0_160 = arith.constant 0 : index
    %c0_161 = arith.constant 0 : index
    %436 = vector.load %arg11[%c2_159, %c0_160, %c0_161] : memref<3x32x64xbf16, #tpu.memory_space<vmem>>, vector<1x32x64xbf16>
    %437 = vector.shape_cast %436 : vector<1x32x64xbf16> to vector<32x64xbf16>
    %cst_162 = arith.constant dense<0.000000e+00> : vector<8x64xf32>
    %438 = tpu.matmul %435, %437, %cst_162 {dimension_numbers = #tpu.dot_dimension_numbers<[1], [0], [0], [1], [0, 0, 1, 1], [], []>} : vector<8x32xbf16>, vector<32x64xbf16>, vector<8x64xf32> -> vector<8x64xf32>
    %c2_163 = arith.constant 2 : index
    %c0_164 = arith.constant 0 : index
    %c0_165 = arith.constant 0 : index
    %439 = vector.load %arg12[%c2_163, %c0_164, %c0_165] : memref<3x1x64xf32, #tpu.memory_space<vmem>>, vector<1x1x64xf32>
    %440 = vector.shape_cast %439 : vector<1x1x64xf32> to vector<1x64xf32>
    %441 = vector.broadcast %440 : vector<1x64xf32> to vector<8x64xf32>
    %442 = arith.addf %438, %441 : vector<8x64xf32>
    %cst_166 = arith.constant 5.000000e-01 : f32
    %443 = vector.broadcast %cst_166 : f32 to vector<8x64xf32>
    %444 = arith.mulf %443, %442 : vector<8x64xf32>
    %cst_167 = arith.constant 4.471500e-02 : f32
    %445 = vector.broadcast %cst_167 : f32 to vector<8x64xf32>
    %446 = arith.mulf %445, %442 : vector<8x64xf32>
    %447 = arith.mulf %446, %442 : vector<8x64xf32>
    %448 = arith.mulf %447, %442 : vector<8x64xf32>
    %449 = arith.addf %442, %448 : vector<8x64xf32>
    %cst_168 = arith.constant 0.797884583 : f32
    %450 = vector.broadcast %cst_168 : f32 to vector<8x64xf32>
    %451 = arith.mulf %450, %449 : vector<8x64xf32>
    %452 = math.tanh %451 : vector<8x64xf32>
    %cst_169 = arith.constant 1.000000e+00 : f32
    %453 = vector.broadcast %cst_169 : f32 to vector<8x64xf32>
    %454 = arith.addf %453, %452 : vector<8x64xf32>
    %455 = arith.mulf %444, %454 : vector<8x64xf32>
    %456 = arith.truncf %455 : vector<8x64xf32> to vector<8x64xbf16>
    %c2_170 = arith.constant 2 : index
    %c0_171 = arith.constant 0 : index
    %c0_172 = arith.constant 0 : index
    %457 = vector.load %arg13[%c2_170, %c0_171, %c0_172] : memref<3x64x32xbf16, #tpu.memory_space<vmem>>, vector<1x64x32xbf16>
    %458 = vector.shape_cast %457 : vector<1x64x32xbf16> to vector<64x32xbf16>
    %cst_173 = arith.constant dense<0.000000e+00> : vector<8x32xf32>
    %459 = tpu.matmul %456, %458, %cst_173 {dimension_numbers = #tpu.dot_dimension_numbers<[1], [0], [0], [1], [0, 0, 1, 1], [], []>} : vector<8x64xbf16>, vector<64x32xbf16>, vector<8x32xf32> -> vector<8x32xf32>
    %c2_174 = arith.constant 2 : index
    %c0_175 = arith.constant 0 : index
    %c0_176 = arith.constant 0 : index
    %460 = vector.load %arg14[%c2_174, %c0_175, %c0_176] : memref<3x1x32xf32, #tpu.memory_space<vmem>>, vector<1x1x32xf32>
    %461 = vector.shape_cast %460 : vector<1x1x32xf32> to vector<1x32xf32>
    %462 = vector.broadcast %461 : vector<1x32xf32> to vector<8x32xf32>
    %463 = arith.addf %459, %462 : vector<8x32xf32>
    %464 = arith.addf %434, %463 : vector<8x32xf32>
    %c2_177 = arith.constant 2 : index
    %c0_178 = arith.constant 0 : index
    %c0_179 = arith.constant 0 : index
    %465 = vector.load %arg15[%c2_177, %c0_178, %c0_179] : memref<3x1x32xf32, #tpu.memory_space<vmem>>, vector<1x1x32xf32>
    %466 = vector.shape_cast %465 : vector<1x1x32xf32> to vector<1x32xf32>
    %c2_180 = arith.constant 2 : index
    %c0_181 = arith.constant 0 : index
    %c0_182 = arith.constant 0 : index
    %467 = vector.load %arg16[%c2_180, %c0_181, %c0_182] : memref<3x1x32xf32, #tpu.memory_space<vmem>>, vector<1x1x32xf32>
    %468 = vector.shape_cast %467 : vector<1x1x32xf32> to vector<1x32xf32>
    %cst_183 = arith.constant dense<0.000000e+00> : vector<8xf32>
    %469 = vector.multi_reduction <add>, %464, %cst_183 [1] : vector<8x32xf32> to vector<8xf32>
    %470 = vector.shape_cast %469 : vector<8xf32> to vector<8x1xf32>
    %cst_184 = arith.constant 3.200000e+01 : f32
    %471 = vector.broadcast %cst_184 : f32 to vector<8x1xf32>
    %472 = arith.divf %470, %471 : vector<8x1xf32>
    %473 = vector.broadcast %472 : vector<8x1xf32> to vector<8x32xf32>
    %474 = arith.subf %464, %473 : vector<8x32xf32>
    %475 = arith.mulf %474, %474 : vector<8x32xf32>
    %cst_185 = arith.constant dense<0.000000e+00> : vector<8xf32>
    %476 = vector.multi_reduction <add>, %475, %cst_185 [1] : vector<8x32xf32> to vector<8xf32>
    %477 = vector.shape_cast %476 : vector<8xf32> to vector<8x1xf32>
    %cst_186 = arith.constant 3.200000e+01 : f32
    %478 = vector.broadcast %cst_186 : f32 to vector<8x1xf32>
    %479 = arith.divf %477, %478 : vector<8x1xf32>
    %480 = vector.broadcast %472 : vector<8x1xf32> to vector<8x32xf32>
    %481 = arith.subf %464, %480 : vector<8x32xf32>
    %cst_187 = arith.constant 9.99999996E-13 : f32
    %482 = vector.broadcast %cst_187 : f32 to vector<8x1xf32>
    %483 = arith.addf %479, %482 : vector<8x1xf32>
    %484 = math.rsqrt %483 : vector<8x1xf32>
    %485 = vector.broadcast %484 : vector<8x1xf32> to vector<8x32xf32>
    %486 = arith.mulf %481, %485 : vector<8x32xf32>
    %487 = vector.broadcast %466 : vector<1x32xf32> to vector<8x32xf32>
    %488 = arith.mulf %486, %487 : vector<8x32xf32>
    %489 = vector.broadcast %468 : vector<1x32xf32> to vector<8x32xf32>
    %490 = arith.addf %488, %489 : vector<8x32xf32>
    %491 = vector.shape_cast %182 : vector<8x32xf32> to vector<1x8x32xf32>
    %492 = vector.shape_cast %336 : vector<8x32xf32> to vector<1x8x32xf32>
    %493 = vector.shape_cast %490 : vector<8x32xf32> to vector<1x8x32xf32>
    %494 = tpu.concatenate %491, %492, %493 in 0 : vector<1x8x32xf32>, vector<1x8x32xf32>, vector<1x8x32xf32> -> vector<3x8x32xf32>
    %495 = vector.shape_cast %494 : vector<3x8x32xf32> to vector<24x32xf32>
    %496 = arith.truncf %495 : vector<24x32xf32> to vector<24x32xbf16>
    %c0_188 = arith.constant 0 : index
    %c0_189 = arith.constant 0 : index
    %497 = vector.load %arg17[%c0_188, %c0_189] : memref<32x32xbf16, #tpu.memory_space<vmem>>, vector<32x32xbf16>
    %cst_190 = arith.constant dense<0.000000e+00> : vector<24x32xf32>
    %498 = tpu.matmul %496, %497, %cst_190 {dimension_numbers = #tpu.dot_dimension_numbers<[1], [0], [0], [1], [0, 0, 1, 1], [], []>} : vector<24x32xbf16>, vector<32x32xbf16>, vector<24x32xf32> -> vector<24x32xf32>
    %c0_191 = arith.constant 0 : index
    %c0_192 = arith.constant 0 : index
    %499 = vector.load %arg18[%c0_191, %c0_192] : memref<1x32xf32, #tpu.memory_space<vmem>>, vector<1x32xf32>
    %500 = vector.broadcast %499 : vector<1x32xf32> to vector<24x32xf32>
    %501 = arith.addf %498, %500 : vector<24x32xf32>
    %502 = vector.shape_cast %501 : vector<24x32xf32> to vector<3x8x32xf32>
    %cst_193 = arith.constant 0.000000e+00 : f32
    %503 = vector.broadcast %cst_193 : f32 to vector<1x8x32xf32>
    %cst_194 = arith.constant 0.000000e+00 : f32
    %504 = vector.broadcast %cst_194 : f32 to vector<5x1x32xf32>
    %505 = tpu.concatenate %503, %502, %503 in 0 : vector<1x8x32xf32>, vector<3x8x32xf32>, vector<1x8x32xf32> -> vector<5x8x32xf32>
    %506 = tpu.concatenate %504, %505, %504 in 1 : vector<5x1x32xf32>, vector<5x8x32xf32>, vector<5x1x32xf32> -> vector<5x10x32xf32>
    %cst_195 = arith.constant 0.000000e+00 : f32
    %507 = vector.broadcast %cst_195 : f32 to vector<24x32xf32>
    %508 = vector.extract_strided_slice %506 {offsets = [0, 0, 0], sizes = [3, 8, 32], strides = [1, 1, 1]} : vector<5x10x32xf32> to vector<3x8x32xf32>
    %509 = vector.shape_cast %508 : vector<3x8x32xf32> to vector<24x32xf32>
    %510 = arith.truncf %509 : vector<24x32xf32> to vector<24x32xbf16>
    %c0_196 = arith.constant 0 : index
    %c0_197 = arith.constant 0 : index
    %c0_198 = arith.constant 0 : index
    %511 = vector.load %arg19[%c0_196, %c0_197, %c0_198] : memref<9x32x32xbf16, #tpu.memory_space<vmem>>, vector<1x32x32xbf16>
    %512 = vector.shape_cast %511 : vector<1x32x32xbf16> to vector<32x32xbf16>
    %cst_199 = arith.constant dense<0.000000e+00> : vector<24x32xf32>
    %513 = tpu.matmul %510, %512, %cst_199 {dimension_numbers = #tpu.dot_dimension_numbers<[1], [0], [0], [1], [0, 0, 1, 1], [], []>} : vector<24x32xbf16>, vector<32x32xbf16>, vector<24x32xf32> -> vector<24x32xf32>
    %514 = arith.addf %507, %513 : vector<24x32xf32>
    %515 = vector.extract_strided_slice %506 {offsets = [0, 1, 0], sizes = [3, 8, 32], strides = [1, 1, 1]} : vector<5x10x32xf32> to vector<3x8x32xf32>
    %516 = vector.shape_cast %515 : vector<3x8x32xf32> to vector<24x32xf32>
    %517 = arith.truncf %516 : vector<24x32xf32> to vector<24x32xbf16>
    %c1_200 = arith.constant 1 : index
    %c0_201 = arith.constant 0 : index
    %c0_202 = arith.constant 0 : index
    %518 = vector.load %arg19[%c1_200, %c0_201, %c0_202] : memref<9x32x32xbf16, #tpu.memory_space<vmem>>, vector<1x32x32xbf16>
    %519 = vector.shape_cast %518 : vector<1x32x32xbf16> to vector<32x32xbf16>
    %cst_203 = arith.constant dense<0.000000e+00> : vector<24x32xf32>
    %520 = tpu.matmul %517, %519, %cst_203 {dimension_numbers = #tpu.dot_dimension_numbers<[1], [0], [0], [1], [0, 0, 1, 1], [], []>} : vector<24x32xbf16>, vector<32x32xbf16>, vector<24x32xf32> -> vector<24x32xf32>
    %521 = arith.addf %514, %520 : vector<24x32xf32>
    %522 = vector.extract_strided_slice %506 {offsets = [0, 2, 0], sizes = [3, 8, 32], strides = [1, 1, 1]} : vector<5x10x32xf32> to vector<3x8x32xf32>
    %523 = vector.shape_cast %522 : vector<3x8x32xf32> to vector<24x32xf32>
    %524 = arith.truncf %523 : vector<24x32xf32> to vector<24x32xbf16>
    %c2_204 = arith.constant 2 : index
    %c0_205 = arith.constant 0 : index
    %c0_206 = arith.constant 0 : index
    %525 = vector.load %arg19[%c2_204, %c0_205, %c0_206] : memref<9x32x32xbf16, #tpu.memory_space<vmem>>, vector<1x32x32xbf16>
    %526 = vector.shape_cast %525 : vector<1x32x32xbf16> to vector<32x32xbf16>
    %cst_207 = arith.constant dense<0.000000e+00> : vector<24x32xf32>
    %527 = tpu.matmul %524, %526, %cst_207 {dimension_numbers = #tpu.dot_dimension_numbers<[1], [0], [0], [1], [0, 0, 1, 1], [], []>} : vector<24x32xbf16>, vector<32x32xbf16>, vector<24x32xf32> -> vector<24x32xf32>
    %528 = arith.addf %521, %527 : vector<24x32xf32>
    %529 = vector.extract_strided_slice %506 {offsets = [1, 0, 0], sizes = [3, 8, 32], strides = [1, 1, 1]} : vector<5x10x32xf32> to vector<3x8x32xf32>
    %530 = vector.shape_cast %529 : vector<3x8x32xf32> to vector<24x32xf32>
    %531 = arith.truncf %530 : vector<24x32xf32> to vector<24x32xbf16>
    %c3 = arith.constant 3 : index
    %c0_208 = arith.constant 0 : index
    %c0_209 = arith.constant 0 : index
    %532 = vector.load %arg19[%c3, %c0_208, %c0_209] : memref<9x32x32xbf16, #tpu.memory_space<vmem>>, vector<1x32x32xbf16>
    %533 = vector.shape_cast %532 : vector<1x32x32xbf16> to vector<32x32xbf16>
    %cst_210 = arith.constant dense<0.000000e+00> : vector<24x32xf32>
    %534 = tpu.matmul %531, %533, %cst_210 {dimension_numbers = #tpu.dot_dimension_numbers<[1], [0], [0], [1], [0, 0, 1, 1], [], []>} : vector<24x32xbf16>, vector<32x32xbf16>, vector<24x32xf32> -> vector<24x32xf32>
    %535 = arith.addf %528, %534 : vector<24x32xf32>
    %536 = vector.extract_strided_slice %506 {offsets = [1, 1, 0], sizes = [3, 8, 32], strides = [1, 1, 1]} : vector<5x10x32xf32> to vector<3x8x32xf32>
    %537 = vector.shape_cast %536 : vector<3x8x32xf32> to vector<24x32xf32>
    %538 = arith.truncf %537 : vector<24x32xf32> to vector<24x32xbf16>
    %c4 = arith.constant 4 : index
    %c0_211 = arith.constant 0 : index
    %c0_212 = arith.constant 0 : index
    %539 = vector.load %arg19[%c4, %c0_211, %c0_212] : memref<9x32x32xbf16, #tpu.memory_space<vmem>>, vector<1x32x32xbf16>
    %540 = vector.shape_cast %539 : vector<1x32x32xbf16> to vector<32x32xbf16>
    %cst_213 = arith.constant dense<0.000000e+00> : vector<24x32xf32>
    %541 = tpu.matmul %538, %540, %cst_213 {dimension_numbers = #tpu.dot_dimension_numbers<[1], [0], [0], [1], [0, 0, 1, 1], [], []>} : vector<24x32xbf16>, vector<32x32xbf16>, vector<24x32xf32> -> vector<24x32xf32>
    %542 = arith.addf %535, %541 : vector<24x32xf32>
    %543 = vector.extract_strided_slice %506 {offsets = [1, 2, 0], sizes = [3, 8, 32], strides = [1, 1, 1]} : vector<5x10x32xf32> to vector<3x8x32xf32>
    %544 = vector.shape_cast %543 : vector<3x8x32xf32> to vector<24x32xf32>
    %545 = arith.truncf %544 : vector<24x32xf32> to vector<24x32xbf16>
    %c5 = arith.constant 5 : index
    %c0_214 = arith.constant 0 : index
    %c0_215 = arith.constant 0 : index
    %546 = vector.load %arg19[%c5, %c0_214, %c0_215] : memref<9x32x32xbf16, #tpu.memory_space<vmem>>, vector<1x32x32xbf16>
    %547 = vector.shape_cast %546 : vector<1x32x32xbf16> to vector<32x32xbf16>
    %cst_216 = arith.constant dense<0.000000e+00> : vector<24x32xf32>
    %548 = tpu.matmul %545, %547, %cst_216 {dimension_numbers = #tpu.dot_dimension_numbers<[1], [0], [0], [1], [0, 0, 1, 1], [], []>} : vector<24x32xbf16>, vector<32x32xbf16>, vector<24x32xf32> -> vector<24x32xf32>
    %549 = arith.addf %542, %548 : vector<24x32xf32>
    %550 = vector.extract_strided_slice %506 {offsets = [2, 0, 0], sizes = [3, 8, 32], strides = [1, 1, 1]} : vector<5x10x32xf32> to vector<3x8x32xf32>
    %551 = vector.shape_cast %550 : vector<3x8x32xf32> to vector<24x32xf32>
    %552 = arith.truncf %551 : vector<24x32xf32> to vector<24x32xbf16>
    %c6 = arith.constant 6 : index
    %c0_217 = arith.constant 0 : index
    %c0_218 = arith.constant 0 : index
    %553 = vector.load %arg19[%c6, %c0_217, %c0_218] : memref<9x32x32xbf16, #tpu.memory_space<vmem>>, vector<1x32x32xbf16>
    %554 = vector.shape_cast %553 : vector<1x32x32xbf16> to vector<32x32xbf16>
    %cst_219 = arith.constant dense<0.000000e+00> : vector<24x32xf32>
    %555 = tpu.matmul %552, %554, %cst_219 {dimension_numbers = #tpu.dot_dimension_numbers<[1], [0], [0], [1], [0, 0, 1, 1], [], []>} : vector<24x32xbf16>, vector<32x32xbf16>, vector<24x32xf32> -> vector<24x32xf32>
    %556 = arith.addf %549, %555 : vector<24x32xf32>
    %557 = vector.extract_strided_slice %506 {offsets = [2, 1, 0], sizes = [3, 8, 32], strides = [1, 1, 1]} : vector<5x10x32xf32> to vector<3x8x32xf32>
    %558 = vector.shape_cast %557 : vector<3x8x32xf32> to vector<24x32xf32>
    %559 = arith.truncf %558 : vector<24x32xf32> to vector<24x32xbf16>
    %c7 = arith.constant 7 : index
    %c0_220 = arith.constant 0 : index
    %c0_221 = arith.constant 0 : index
    %560 = vector.load %arg19[%c7, %c0_220, %c0_221] : memref<9x32x32xbf16, #tpu.memory_space<vmem>>, vector<1x32x32xbf16>
    %561 = vector.shape_cast %560 : vector<1x32x32xbf16> to vector<32x32xbf16>
    %cst_222 = arith.constant dense<0.000000e+00> : vector<24x32xf32>
    %562 = tpu.matmul %559, %561, %cst_222 {dimension_numbers = #tpu.dot_dimension_numbers<[1], [0], [0], [1], [0, 0, 1, 1], [], []>} : vector<24x32xbf16>, vector<32x32xbf16>, vector<24x32xf32> -> vector<24x32xf32>
    %563 = arith.addf %556, %562 : vector<24x32xf32>
    %564 = vector.extract_strided_slice %506 {offsets = [2, 2, 0], sizes = [3, 8, 32], strides = [1, 1, 1]} : vector<5x10x32xf32> to vector<3x8x32xf32>
    %565 = vector.shape_cast %564 : vector<3x8x32xf32> to vector<24x32xf32>
    %566 = arith.truncf %565 : vector<24x32xf32> to vector<24x32xbf16>
    %c8 = arith.constant 8 : index
    %c0_223 = arith.constant 0 : index
    %c0_224 = arith.constant 0 : index
    %567 = vector.load %arg19[%c8, %c0_223, %c0_224] : memref<9x32x32xbf16, #tpu.memory_space<vmem>>, vector<1x32x32xbf16>
    %568 = vector.shape_cast %567 : vector<1x32x32xbf16> to vector<32x32xbf16>
    %cst_225 = arith.constant dense<0.000000e+00> : vector<24x32xf32>
    %569 = tpu.matmul %566, %568, %cst_225 {dimension_numbers = #tpu.dot_dimension_numbers<[1], [0], [0], [1], [0, 0, 1, 1], [], []>} : vector<24x32xbf16>, vector<32x32xbf16>, vector<24x32xf32> -> vector<24x32xf32>
    %570 = arith.addf %563, %569 : vector<24x32xf32>
    %c0_226 = arith.constant 0 : index
    %c0_227 = arith.constant 0 : index
    %571 = vector.load %arg20[%c0_226, %c0_227] : memref<1x32xf32, #tpu.memory_space<vmem>>, vector<1x32xf32>
    %572 = vector.broadcast %571 : vector<1x32xf32> to vector<24x32xf32>
    %573 = arith.addf %570, %572 : vector<24x32xf32>
    %574 = vector.shape_cast %573 : vector<24x32xf32> to vector<3x8x32xf32>
    %575 = vector.shape_cast %574 : vector<3x8x32xf32> to vector<24x32xf32>
    %576 = arith.truncf %575 : vector<24x32xf32> to vector<24x32xbf16>
    %c0_228 = arith.constant 0 : index
    %c0_229 = arith.constant 0 : index
    %577 = vector.load %arg21[%c0_228, %c0_229] : memref<32x16xbf16, #tpu.memory_space<vmem>>, vector<32x16xbf16>
    %cst_230 = arith.constant dense<0.000000e+00> : vector<24x16xf32>
    %578 = tpu.matmul %576, %577, %cst_230 {dimension_numbers = #tpu.dot_dimension_numbers<[1], [0], [0], [1], [0, 0, 1, 1], [], []>} : vector<24x32xbf16>, vector<32x16xbf16>, vector<24x16xf32> -> vector<24x16xf32>
    %c0_231 = arith.constant 0 : index
    %c0_232 = arith.constant 0 : index
    %579 = vector.load %arg22[%c0_231, %c0_232] : memref<1x16xf32, #tpu.memory_space<vmem>>, vector<1x16xf32>
    %580 = vector.broadcast %579 : vector<1x16xf32> to vector<24x16xf32>
    %581 = arith.addf %578, %580 : vector<24x16xf32>
    %582 = vector.shape_cast %581 : vector<24x16xf32> to vector<3x8x16xf32>
    %cst_233 = arith.constant 0.000000e+00 : f32
    %583 = vector.broadcast %cst_233 : f32 to vector<1x8x16xf32>
    %cst_234 = arith.constant 0.000000e+00 : f32
    %584 = vector.broadcast %cst_234 : f32 to vector<5x1x16xf32>
    %585 = tpu.concatenate %583, %582, %583 in 0 : vector<1x8x16xf32>, vector<3x8x16xf32>, vector<1x8x16xf32> -> vector<5x8x16xf32>
    %586 = tpu.concatenate %584, %585, %584 in 1 : vector<5x1x16xf32>, vector<5x8x16xf32>, vector<5x1x16xf32> -> vector<5x10x16xf32>
    %cst_235 = arith.constant 0.000000e+00 : f32
    %587 = vector.broadcast %cst_235 : f32 to vector<24x16xf32>
    %588 = vector.extract_strided_slice %586 {offsets = [0, 0, 0], sizes = [3, 8, 16], strides = [1, 1, 1]} : vector<5x10x16xf32> to vector<3x8x16xf32>
    %589 = vector.shape_cast %588 : vector<3x8x16xf32> to vector<24x16xf32>
    %590 = arith.truncf %589 : vector<24x16xf32> to vector<24x16xbf16>
    %c0_236 = arith.constant 0 : index
    %c0_237 = arith.constant 0 : index
    %c0_238 = arith.constant 0 : index
    %591 = vector.load %arg23[%c0_236, %c0_237, %c0_238] : memref<9x16x16xbf16, #tpu.memory_space<vmem>>, vector<1x16x16xbf16>
    %592 = vector.shape_cast %591 : vector<1x16x16xbf16> to vector<16x16xbf16>
    %cst_239 = arith.constant dense<0.000000e+00> : vector<24x16xf32>
    %593 = tpu.matmul %590, %592, %cst_239 {dimension_numbers = #tpu.dot_dimension_numbers<[1], [0], [0], [1], [0, 0, 1, 1], [], []>} : vector<24x16xbf16>, vector<16x16xbf16>, vector<24x16xf32> -> vector<24x16xf32>
    %594 = arith.addf %587, %593 : vector<24x16xf32>
    %595 = vector.extract_strided_slice %586 {offsets = [0, 1, 0], sizes = [3, 8, 16], strides = [1, 1, 1]} : vector<5x10x16xf32> to vector<3x8x16xf32>
    %596 = vector.shape_cast %595 : vector<3x8x16xf32> to vector<24x16xf32>
    %597 = arith.truncf %596 : vector<24x16xf32> to vector<24x16xbf16>
    %c1_240 = arith.constant 1 : index
    %c0_241 = arith.constant 0 : index
    %c0_242 = arith.constant 0 : index
    %598 = vector.load %arg23[%c1_240, %c0_241, %c0_242] : memref<9x16x16xbf16, #tpu.memory_space<vmem>>, vector<1x16x16xbf16>
    %599 = vector.shape_cast %598 : vector<1x16x16xbf16> to vector<16x16xbf16>
    %cst_243 = arith.constant dense<0.000000e+00> : vector<24x16xf32>
    %600 = tpu.matmul %597, %599, %cst_243 {dimension_numbers = #tpu.dot_dimension_numbers<[1], [0], [0], [1], [0, 0, 1, 1], [], []>} : vector<24x16xbf16>, vector<16x16xbf16>, vector<24x16xf32> -> vector<24x16xf32>
    %601 = arith.addf %594, %600 : vector<24x16xf32>
    %602 = vector.extract_strided_slice %586 {offsets = [0, 2, 0], sizes = [3, 8, 16], strides = [1, 1, 1]} : vector<5x10x16xf32> to vector<3x8x16xf32>
    %603 = vector.shape_cast %602 : vector<3x8x16xf32> to vector<24x16xf32>
    %604 = arith.truncf %603 : vector<24x16xf32> to vector<24x16xbf16>
    %c2_244 = arith.constant 2 : index
    %c0_245 = arith.constant 0 : index
    %c0_246 = arith.constant 0 : index
    %605 = vector.load %arg23[%c2_244, %c0_245, %c0_246] : memref<9x16x16xbf16, #tpu.memory_space<vmem>>, vector<1x16x16xbf16>
    %606 = vector.shape_cast %605 : vector<1x16x16xbf16> to vector<16x16xbf16>
    %cst_247 = arith.constant dense<0.000000e+00> : vector<24x16xf32>
    %607 = tpu.matmul %604, %606, %cst_247 {dimension_numbers = #tpu.dot_dimension_numbers<[1], [0], [0], [1], [0, 0, 1, 1], [], []>} : vector<24x16xbf16>, vector<16x16xbf16>, vector<24x16xf32> -> vector<24x16xf32>
    %608 = arith.addf %601, %607 : vector<24x16xf32>
    %609 = vector.extract_strided_slice %586 {offsets = [1, 0, 0], sizes = [3, 8, 16], strides = [1, 1, 1]} : vector<5x10x16xf32> to vector<3x8x16xf32>
    %610 = vector.shape_cast %609 : vector<3x8x16xf32> to vector<24x16xf32>
    %611 = arith.truncf %610 : vector<24x16xf32> to vector<24x16xbf16>
    %c3_248 = arith.constant 3 : index
    %c0_249 = arith.constant 0 : index
    %c0_250 = arith.constant 0 : index
    %612 = vector.load %arg23[%c3_248, %c0_249, %c0_250] : memref<9x16x16xbf16, #tpu.memory_space<vmem>>, vector<1x16x16xbf16>
    %613 = vector.shape_cast %612 : vector<1x16x16xbf16> to vector<16x16xbf16>
    %cst_251 = arith.constant dense<0.000000e+00> : vector<24x16xf32>
    %614 = tpu.matmul %611, %613, %cst_251 {dimension_numbers = #tpu.dot_dimension_numbers<[1], [0], [0], [1], [0, 0, 1, 1], [], []>} : vector<24x16xbf16>, vector<16x16xbf16>, vector<24x16xf32> -> vector<24x16xf32>
    %615 = arith.addf %608, %614 : vector<24x16xf32>
    %616 = vector.extract_strided_slice %586 {offsets = [1, 1, 0], sizes = [3, 8, 16], strides = [1, 1, 1]} : vector<5x10x16xf32> to vector<3x8x16xf32>
    %617 = vector.shape_cast %616 : vector<3x8x16xf32> to vector<24x16xf32>
    %618 = arith.truncf %617 : vector<24x16xf32> to vector<24x16xbf16>
    %c4_252 = arith.constant 4 : index
    %c0_253 = arith.constant 0 : index
    %c0_254 = arith.constant 0 : index
    %619 = vector.load %arg23[%c4_252, %c0_253, %c0_254] : memref<9x16x16xbf16, #tpu.memory_space<vmem>>, vector<1x16x16xbf16>
    %620 = vector.shape_cast %619 : vector<1x16x16xbf16> to vector<16x16xbf16>
    %cst_255 = arith.constant dense<0.000000e+00> : vector<24x16xf32>
    %621 = tpu.matmul %618, %620, %cst_255 {dimension_numbers = #tpu.dot_dimension_numbers<[1], [0], [0], [1], [0, 0, 1, 1], [], []>} : vector<24x16xbf16>, vector<16x16xbf16>, vector<24x16xf32> -> vector<24x16xf32>
    %622 = arith.addf %615, %621 : vector<24x16xf32>
    %623 = vector.extract_strided_slice %586 {offsets = [1, 2, 0], sizes = [3, 8, 16], strides = [1, 1, 1]} : vector<5x10x16xf32> to vector<3x8x16xf32>
    %624 = vector.shape_cast %623 : vector<3x8x16xf32> to vector<24x16xf32>
    %625 = arith.truncf %624 : vector<24x16xf32> to vector<24x16xbf16>
    %c5_256 = arith.constant 5 : index
    %c0_257 = arith.constant 0 : index
    %c0_258 = arith.constant 0 : index
    %626 = vector.load %arg23[%c5_256, %c0_257, %c0_258] : memref<9x16x16xbf16, #tpu.memory_space<vmem>>, vector<1x16x16xbf16>
    %627 = vector.shape_cast %626 : vector<1x16x16xbf16> to vector<16x16xbf16>
    %cst_259 = arith.constant dense<0.000000e+00> : vector<24x16xf32>
    %628 = tpu.matmul %625, %627, %cst_259 {dimension_numbers = #tpu.dot_dimension_numbers<[1], [0], [0], [1], [0, 0, 1, 1], [], []>} : vector<24x16xbf16>, vector<16x16xbf16>, vector<24x16xf32> -> vector<24x16xf32>
    %629 = arith.addf %622, %628 : vector<24x16xf32>
    %630 = vector.extract_strided_slice %586 {offsets = [2, 0, 0], sizes = [3, 8, 16], strides = [1, 1, 1]} : vector<5x10x16xf32> to vector<3x8x16xf32>
    %631 = vector.shape_cast %630 : vector<3x8x16xf32> to vector<24x16xf32>
    %632 = arith.truncf %631 : vector<24x16xf32> to vector<24x16xbf16>
    %c6_260 = arith.constant 6 : index
    %c0_261 = arith.constant 0 : index
    %c0_262 = arith.constant 0 : index
    %633 = vector.load %arg23[%c6_260, %c0_261, %c0_262] : memref<9x16x16xbf16, #tpu.memory_space<vmem>>, vector<1x16x16xbf16>
    %634 = vector.shape_cast %633 : vector<1x16x16xbf16> to vector<16x16xbf16>
    %cst_263 = arith.constant dense<0.000000e+00> : vector<24x16xf32>
    %635 = tpu.matmul %632, %634, %cst_263 {dimension_numbers = #tpu.dot_dimension_numbers<[1], [0], [0], [1], [0, 0, 1, 1], [], []>} : vector<24x16xbf16>, vector<16x16xbf16>, vector<24x16xf32> -> vector<24x16xf32>
    %636 = arith.addf %629, %635 : vector<24x16xf32>
    %637 = vector.extract_strided_slice %586 {offsets = [2, 1, 0], sizes = [3, 8, 16], strides = [1, 1, 1]} : vector<5x10x16xf32> to vector<3x8x16xf32>
    %638 = vector.shape_cast %637 : vector<3x8x16xf32> to vector<24x16xf32>
    %639 = arith.truncf %638 : vector<24x16xf32> to vector<24x16xbf16>
    %c7_264 = arith.constant 7 : index
    %c0_265 = arith.constant 0 : index
    %c0_266 = arith.constant 0 : index
    %640 = vector.load %arg23[%c7_264, %c0_265, %c0_266] : memref<9x16x16xbf16, #tpu.memory_space<vmem>>, vector<1x16x16xbf16>
    %641 = vector.shape_cast %640 : vector<1x16x16xbf16> to vector<16x16xbf16>
    %cst_267 = arith.constant dense<0.000000e+00> : vector<24x16xf32>
    %642 = tpu.matmul %639, %641, %cst_267 {dimension_numbers = #tpu.dot_dimension_numbers<[1], [0], [0], [1], [0, 0, 1, 1], [], []>} : vector<24x16xbf16>, vector<16x16xbf16>, vector<24x16xf32> -> vector<24x16xf32>
    %643 = arith.addf %636, %642 : vector<24x16xf32>
    %644 = vector.extract_strided_slice %586 {offsets = [2, 2, 0], sizes = [3, 8, 16], strides = [1, 1, 1]} : vector<5x10x16xf32> to vector<3x8x16xf32>
    %645 = vector.shape_cast %644 : vector<3x8x16xf32> to vector<24x16xf32>
    %646 = arith.truncf %645 : vector<24x16xf32> to vector<24x16xbf16>
    %c8_268 = arith.constant 8 : index
    %c0_269 = arith.constant 0 : index
    %c0_270 = arith.constant 0 : index
    %647 = vector.load %arg23[%c8_268, %c0_269, %c0_270] : memref<9x16x16xbf16, #tpu.memory_space<vmem>>, vector<1x16x16xbf16>
    %648 = vector.shape_cast %647 : vector<1x16x16xbf16> to vector<16x16xbf16>
    %cst_271 = arith.constant dense<0.000000e+00> : vector<24x16xf32>
    %649 = tpu.matmul %646, %648, %cst_271 {dimension_numbers = #tpu.dot_dimension_numbers<[1], [0], [0], [1], [0, 0, 1, 1], [], []>} : vector<24x16xbf16>, vector<16x16xbf16>, vector<24x16xf32> -> vector<24x16xf32>
    %650 = arith.addf %643, %649 : vector<24x16xf32>
    %c0_272 = arith.constant 0 : index
    %c0_273 = arith.constant 0 : index
    %651 = vector.load %arg24[%c0_272, %c0_273] : memref<1x16xf32, #tpu.memory_space<vmem>>, vector<1x16xf32>
    %652 = vector.broadcast %651 : vector<1x16xf32> to vector<24x16xf32>
    %653 = arith.addf %650, %652 : vector<24x16xf32>
    %654 = vector.shape_cast %653 : vector<24x16xf32> to vector<3x8x16xf32>
    %655 = vector.extract_strided_slice %654 {offsets = [0, 0, 0], sizes = [1, 8, 16], strides = [1, 1, 1]} : vector<3x8x16xf32> to vector<1x8x16xf32>
    %656 = vector.shape_cast %655 : vector<1x8x16xf32> to vector<8x16xf32>
    %657 = vector.extract_strided_slice %656 {offsets = [0, 0], sizes = [1, 16], strides = [1, 1]} : vector<8x16xf32> to vector<1x16xf32>
    %658 = vector.extract_strided_slice %656 {offsets = [1, 0], sizes = [1, 16], strides = [1, 1]} : vector<8x16xf32> to vector<1x16xf32>
    %659 = vector.extract_strided_slice %656 {offsets = [2, 0], sizes = [1, 16], strides = [1, 1]} : vector<8x16xf32> to vector<1x16xf32>
    %660 = vector.extract_strided_slice %656 {offsets = [3, 0], sizes = [1, 16], strides = [1, 1]} : vector<8x16xf32> to vector<1x16xf32>
    %661 = vector.extract_strided_slice %656 {offsets = [4, 0], sizes = [1, 16], strides = [1, 1]} : vector<8x16xf32> to vector<1x16xf32>
    %662 = vector.extract_strided_slice %656 {offsets = [5, 0], sizes = [1, 16], strides = [1, 1]} : vector<8x16xf32> to vector<1x16xf32>
    %663 = vector.extract_strided_slice %656 {offsets = [6, 0], sizes = [1, 16], strides = [1, 1]} : vector<8x16xf32> to vector<1x16xf32>
    %664 = vector.extract_strided_slice %656 {offsets = [7, 0], sizes = [1, 16], strides = [1, 1]} : vector<8x16xf32> to vector<1x16xf32>
    %665 = vector.extract_strided_slice %654 {offsets = [1, 0, 0], sizes = [1, 8, 16], strides = [1, 1, 1]} : vector<3x8x16xf32> to vector<1x8x16xf32>
    %666 = vector.shape_cast %665 : vector<1x8x16xf32> to vector<8x16xf32>
    %667 = vector.extract_strided_slice %666 {offsets = [0, 0], sizes = [1, 16], strides = [1, 1]} : vector<8x16xf32> to vector<1x16xf32>
    %668 = vector.extract_strided_slice %666 {offsets = [1, 0], sizes = [1, 16], strides = [1, 1]} : vector<8x16xf32> to vector<1x16xf32>
    %669 = vector.extract_strided_slice %666 {offsets = [2, 0], sizes = [1, 16], strides = [1, 1]} : vector<8x16xf32> to vector<1x16xf32>
    %670 = vector.extract_strided_slice %666 {offsets = [3, 0], sizes = [1, 16], strides = [1, 1]} : vector<8x16xf32> to vector<1x16xf32>
    %671 = vector.extract_strided_slice %666 {offsets = [4, 0], sizes = [1, 16], strides = [1, 1]} : vector<8x16xf32> to vector<1x16xf32>
    %672 = vector.extract_strided_slice %666 {offsets = [5, 0], sizes = [1, 16], strides = [1, 1]} : vector<8x16xf32> to vector<1x16xf32>
    %673 = vector.extract_strided_slice %666 {offsets = [6, 0], sizes = [1, 16], strides = [1, 1]} : vector<8x16xf32> to vector<1x16xf32>
    %674 = vector.extract_strided_slice %666 {offsets = [7, 0], sizes = [1, 16], strides = [1, 1]} : vector<8x16xf32> to vector<1x16xf32>
    %675 = vector.extract_strided_slice %654 {offsets = [2, 0, 0], sizes = [1, 8, 16], strides = [1, 1, 1]} : vector<3x8x16xf32> to vector<1x8x16xf32>
    %676 = vector.shape_cast %675 : vector<1x8x16xf32> to vector<8x16xf32>
    %677 = vector.extract_strided_slice %676 {offsets = [0, 0], sizes = [1, 16], strides = [1, 1]} : vector<8x16xf32> to vector<1x16xf32>
    %678 = vector.extract_strided_slice %676 {offsets = [1, 0], sizes = [1, 16], strides = [1, 1]} : vector<8x16xf32> to vector<1x16xf32>
    %679 = vector.extract_strided_slice %676 {offsets = [2, 0], sizes = [1, 16], strides = [1, 1]} : vector<8x16xf32> to vector<1x16xf32>
    %680 = vector.extract_strided_slice %676 {offsets = [3, 0], sizes = [1, 16], strides = [1, 1]} : vector<8x16xf32> to vector<1x16xf32>
    %681 = vector.extract_strided_slice %676 {offsets = [4, 0], sizes = [1, 16], strides = [1, 1]} : vector<8x16xf32> to vector<1x16xf32>
    %682 = vector.extract_strided_slice %676 {offsets = [5, 0], sizes = [1, 16], strides = [1, 1]} : vector<8x16xf32> to vector<1x16xf32>
    %683 = vector.extract_strided_slice %676 {offsets = [6, 0], sizes = [1, 16], strides = [1, 1]} : vector<8x16xf32> to vector<1x16xf32>
    %684 = vector.extract_strided_slice %676 {offsets = [7, 0], sizes = [1, 16], strides = [1, 1]} : vector<8x16xf32> to vector<1x16xf32>
    %685 = tpu.concatenate %657, %658, %659, %660, %661, %662, %663, %664, %667, %668, %669, %670, %671, %672, %673, %674 in 1 : vector<1x16xf32>, vector<1x16xf32>, vector<1x16xf32>, vector<1x16xf32>, vector<1x16xf32>, vector<1x16xf32>, vector<1x16xf32>, vector<1x16xf32>, vector<1x16xf32>, vector<1x16xf32>, vector<1x16xf32>, vector<1x16xf32>, vector<1x16xf32>, vector<1x16xf32>, vector<1x16xf32>, vector<1x16xf32> -> vector<1x256xf32>
    %686 = tpu.concatenate %677, %678, %679, %680, %681, %682, %683, %684 in 1 : vector<1x16xf32>, vector<1x16xf32>, vector<1x16xf32>, vector<1x16xf32>, vector<1x16xf32>, vector<1x16xf32>, vector<1x16xf32>, vector<1x16xf32> -> vector<1x128xf32>
    %687 = tpu.concatenate %685, %686 in 1 : vector<1x256xf32>, vector<1x128xf32> -> vector<1x384xf32>
    %688 = arith.truncf %687 : vector<1x384xf32> to vector<1x384xbf16>
    %c0_274 = arith.constant 0 : index
    %c0_275 = arith.constant 0 : index
    %689 = vector.load %arg25[%c0_274, %c0_275] : memref<384x128xbf16, #tpu.memory_space<vmem>>, vector<384x128xbf16>
    %cst_276 = arith.constant dense<0.000000e+00> : vector<1x128xf32>
    %690 = tpu.matmul %688, %689, %cst_276 {dimension_numbers = #tpu.dot_dimension_numbers<[1], [0], [0], [1], [0, 0, 1, 1], [], []>} : vector<1x384xbf16>, vector<384x128xbf16>, vector<1x128xf32> -> vector<1x128xf32>
    %c0_277 = arith.constant 0 : index
    %c0_278 = arith.constant 0 : index
    %691 = vector.load %arg26[%c0_277, %c0_278] : memref<1x128xf32, #tpu.memory_space<vmem>>, vector<1x128xf32>
    %692 = arith.addf %690, %691 : vector<1x128xf32>
    %693 = vector.shape_cast %692 : vector<1x128xf32> to vector<1x1x128xf32>
    %c0_279 = arith.constant 0 : index
    %c0_280 = arith.constant 0 : index
    %c0_281 = arith.constant 0 : index
    %694 = vector.load %arg27[%c0_279, %c0_280, %c0_281] : memref<1x1x128xf32, #tpu.memory_space<vmem>>, vector<1x1x128xf32>
    tpu.vector_store %arg27[%c0_279, %c0_280, %c0_281], %693 {strides = array<i32>} : memref<1x1x128xf32, #tpu.memory_space<vmem>>, vector<1x1x128xf32>,
    return
  }
  func.func @transform_0(%arg0: i32) -> (i32, i32, i32) {
    %c0_i32 = arith.constant 0 : i32
    %c0_i32_0 = arith.constant 0 : i32
    %c0_i32_1 = arith.constant 0 : i32
    return %arg0, %c0_i32, %c0_i32_0 : i32, i32, i32
  }
  func.func @transform_1(%arg0: i32) -> (i32, i32, i32) {
    %c0_i32 = arith.constant 0 : i32
    %c0_i32_0 = arith.constant 0 : i32
    %c0_i32_1 = arith.constant 0 : i32
    return %arg0, %c0_i32, %c0_i32_0 : i32, i32, i32
  }
  func.func @transform_2(%arg0: i32) -> (i32, i32) {
    %c0_i32 = arith.constant 0 : i32
    %c0_i32_0 = arith.constant 0 : i32
    %c0_i32_1 = arith.constant 0 : i32
    return %c0_i32, %c0_i32_0 : i32, i32
  }
  func.func @transform_3(%arg0: i32) -> (i32, i32) {
    %c0_i32 = arith.constant 0 : i32
    %c0_i32_0 = arith.constant 0 : i32
    %c0_i32_1 = arith.constant 0 : i32
    return %c0_i32, %c0_i32_0 : i32, i32
  }
  func.func @transform_4(%arg0: i32) -> (i32, i32, i32) {
    %c0_i32 = arith.constant 0 : i32
    %c0_i32_0 = arith.constant 0 : i32
    %c0_i32_1 = arith.constant 0 : i32
    %c0_i32_2 = arith.constant 0 : i32
    return %c0_i32, %c0_i32_0, %c0_i32_1 : i32, i32, i32
  }
  func.func @transform_5(%arg0: i32) -> (i32, i32, i32) {
    %c0_i32 = arith.constant 0 : i32
    %c0_i32_0 = arith.constant 0 : i32
    %c0_i32_1 = arith.constant 0 : i32
    %c0_i32_2 = arith.constant 0 : i32
    return %c0_i32, %c0_i32_0, %c0_i32_1 : i32, i32, i32
  }
  func.func @transform_6(%arg0: i32) -> (i32, i32, i32) {
    %c0_i32 = arith.constant 0 : i32
    %c0_i32_0 = arith.constant 0 : i32
    %c0_i32_1 = arith.constant 0 : i32
    %c0_i32_2 = arith.constant 0 : i32
    return %c0_i32, %c0_i32_0, %c0_i32_1 : i32, i32, i32
  }
  func.func @transform_7(%arg0: i32) -> (i32, i32, i32) {
    %c0_i32 = arith.constant 0 : i32
    %c0_i32_0 = arith.constant 0 : i32
    %c0_i32_1 = arith.constant 0 : i32
    %c0_i32_2 = arith.constant 0 : i32
    return %c0_i32, %c0_i32_0, %c0_i32_1 : i32, i32, i32
  }
  func.func @transform_8(%arg0: i32) -> (i32, i32, i32) {
    %c0_i32 = arith.constant 0 : i32
    %c0_i32_0 = arith.constant 0 : i32
    %c0_i32_1 = arith.constant 0 : i32
    %c0_i32_2 = arith.constant 0 : i32
    return %c0_i32, %c0_i32_0, %c0_i32_1 : i32, i32, i32
  }
  func.func @transform_9(%arg0: i32) -> (i32, i32, i32) {
    %c0_i32 = arith.constant 0 : i32
    %c0_i32_0 = arith.constant 0 : i32
    %c0_i32_1 = arith.constant 0 : i32
    %c0_i32_2 = arith.constant 0 : i32
    return %c0_i32, %c0_i32_0, %c0_i32_1 : i32, i32, i32
  }
  func.func @transform_10(%arg0: i32) -> (i32, i32, i32) {
    %c0_i32 = arith.constant 0 : i32
    %c0_i32_0 = arith.constant 0 : i32
    %c0_i32_1 = arith.constant 0 : i32
    %c0_i32_2 = arith.constant 0 : i32
    return %c0_i32, %c0_i32_0, %c0_i32_1 : i32, i32, i32
  }
  func.func @transform_11(%arg0: i32) -> (i32, i32, i32) {
    %c0_i32 = arith.constant 0 : i32
    %c0_i32_0 = arith.constant 0 : i32
    %c0_i32_1 = arith.constant 0 : i32
    %c0_i32_2 = arith.constant 0 : i32
    return %c0_i32, %c0_i32_0, %c0_i32_1 : i32, i32, i32
  }
  func.func @transform_12(%arg0: i32) -> (i32, i32, i32) {
    %c0_i32 = arith.constant 0 : i32
    %c0_i32_0 = arith.constant 0 : i32
    %c0_i32_1 = arith.constant 0 : i32
    %c0_i32_2 = arith.constant 0 : i32
    return %c0_i32, %c0_i32_0, %c0_i32_1 : i32, i32, i32
  }
  func.func @transform_13(%arg0: i32) -> (i32, i32, i32) {
    %c0_i32 = arith.constant 0 : i32
    %c0_i32_0 = arith.constant 0 : i32
    %c0_i32_1 = arith.constant 0 : i32
    %c0_i32_2 = arith.constant 0 : i32
    return %c0_i32, %c0_i32_0, %c0_i32_1 : i32, i32, i32
  }
  func.func @transform_14(%arg0: i32) -> (i32, i32, i32) {
    %c0_i32 = arith.constant 0 : i32
    %c0_i32_0 = arith.constant 0 : i32
    %c0_i32_1 = arith.constant 0 : i32
    %c0_i32_2 = arith.constant 0 : i32
    return %c0_i32, %c0_i32_0, %c0_i32_1 : i32, i32, i32
  }
  func.func @transform_15(%arg0: i32) -> (i32, i32, i32) {
    %c0_i32 = arith.constant 0 : i32
    %c0_i32_0 = arith.constant 0 : i32
    %c0_i32_1 = arith.constant 0 : i32
    %c0_i32_2 = arith.constant 0 : i32
    return %c0_i32, %c0_i32_0, %c0_i32_1 : i32, i32, i32
  }
  func.func @transform_16(%arg0: i32) -> (i32, i32) {
    %c0_i32 = arith.constant 0 : i32
    %c0_i32_0 = arith.constant 0 : i32
    %c0_i32_1 = arith.constant 0 : i32
    return %c0_i32, %c0_i32_0 : i32, i32
  }
  func.func @transform_17(%arg0: i32) -> (i32, i32) {
    %c0_i32 = arith.constant 0 : i32
    %c0_i32_0 = arith.constant 0 : i32
    %c0_i32_1 = arith.constant 0 : i32
    return %c0_i32, %c0_i32_0 : i32, i32
  }
  func.func @transform_18(%arg0: i32) -> (i32, i32, i32) {
    %c0_i32 = arith.constant 0 : i32
    %c0_i32_0 = arith.constant 0 : i32
    %c0_i32_1 = arith.constant 0 : i32
    %c0_i32_2 = arith.constant 0 : i32
    return %c0_i32, %c0_i32_0, %c0_i32_1 : i32, i32, i32
  }
  func.func @transform_19(%arg0: i32) -> (i32, i32) {
    %c0_i32 = arith.constant 0 : i32
    %c0_i32_0 = arith.constant 0 : i32
    %c0_i32_1 = arith.constant 0 : i32
    return %c0_i32, %c0_i32_0 : i32, i32
  }
  func.func @transform_20(%arg0: i32) -> (i32, i32) {
    %c0_i32 = arith.constant 0 : i32
    %c0_i32_0 = arith.constant 0 : i32
    %c0_i32_1 = arith.constant 0 : i32
    return %c0_i32, %c0_i32_0 : i32, i32
  }
  func.func @transform_21(%arg0: i32) -> (i32, i32) {
    %c0_i32 = arith.constant 0 : i32
    %c0_i32_0 = arith.constant 0 : i32
    %c0_i32_1 = arith.constant 0 : i32
    return %c0_i32, %c0_i32_0 : i32, i32
  }
  func.func @transform_22(%arg0: i32) -> (i32, i32, i32) {
    %c0_i32 = arith.constant 0 : i32
    %c0_i32_0 = arith.constant 0 : i32
    %c0_i32_1 = arith.constant 0 : i32
    %c0_i32_2 = arith.constant 0 : i32
    return %c0_i32, %c0_i32_0, %c0_i32_1 : i32, i32, i32
  }
  func.func @transform_23(%arg0: i32) -> (i32, i32) {
    %c0_i32 = arith.constant 0 : i32
    %c0_i32_0 = arith.constant 0 : i32
    %c0_i32_1 = arith.constant 0 : i32
    return %c0_i32, %c0_i32_0 : i32, i32
  }
  func.func @transform_24(%arg0: i32) -> (i32, i32) {
    %c0_i32 = arith.constant 0 : i32
    %c0_i32_0 = arith.constant 0 : i32
    %c0_i32_1 = arith.constant 0 : i32
    return %c0_i32, %c0_i32_0 : i32, i32
  }
  func.func @transform_25(%arg0: i32) -> (i32, i32) {
    %c0_i32 = arith.constant 0 : i32
    %c0_i32_0 = arith.constant 0 : i32
    %c0_i32_1 = arith.constant 0 : i32
    return %c0_i32, %c0_i32_0 : i32, i32
  }
  func.func @transform_26(%arg0: i32) -> (i32, i32, i32) {
    %c0_i32 = arith.constant 0 : i32
    %c0_i32_0 = arith.constant 0 : i32
    %c0_i32_1 = arith.constant 0 : i32
    return %arg0, %c0_i32, %c0_i32_0 : i32, i32, i32
  }
}

</mosaic_0001>

<llo_original>
// kernel: bert_yl_forward.1
$region0: #{bert_yl_forward.1}
  #allocation0 [shape = 'u32[]', space=smem, size = 0x4, offset = 0x4, fixed_abs, tag = 'smem constant byte address 0x4 - core index']
  #allocation1 [shape = 'u32[144,128]{1,0:T(1,128)}', space=vmem, size = 0x12000, scoped, tag = 'internal scratch']
  %s0 = inlined_call_operand.vmem [shape: f32[2,8,32], index: 0, kind: input, shape index: {}]
  %s1 = inlined_call_operand.vmem [shape: f32[2,1,8], index: 1, kind: input, shape index: {}]
  %s2 = inlined_call_operand.vmem [shape: f32[1,32], index: 2, kind: input, shape index: {}]
  %s3 = inlined_call_operand.vmem [shape: f32[1,32], index: 3, kind: input, shape index: {}]
  %s4 = inlined_call_operand.vmem [shape: bf16[3,32,96], index: 4, kind: input, shape index: {}]
  %s5 = inlined_call_operand.vmem [shape: f32[3,1,96], index: 5, kind: input, shape index: {}]
  %s6 = inlined_call_operand.vmem [shape: bf16[3,32,32], index: 6, kind: input, shape index: {}]
  %s7 = inlined_call_operand.vmem [shape: f32[3,1,32], index: 7, kind: input, shape index: {}]
  %s8 = inlined_call_operand.vmem [shape: f32[3,1,32], index: 8, kind: input, shape index: {}]
  %s9 = inlined_call_operand.vmem [shape: f32[3,1,32], index: 9, kind: input, shape index: {}]
  %s10 = inlined_call_operand.vmem [shape: bf16[3,32,64], index: 10, kind: input, shape index: {}]
  %s11 = inlined_call_operand.vmem [shape: f32[3,1,64], index: 11, kind: input, shape index: {}]
  %s12 = inlined_call_operand.vmem [shape: bf16[3,64,32], index: 12, kind: input, shape index: {}]
  %s13 = inlined_call_operand.vmem [shape: f32[3,1,32], index: 13, kind: input, shape index: {}]
  %s14 = inlined_call_operand.vmem [shape: f32[3,1,32], index: 14, kind: input, shape index: {}]
  %s15 = inlined_call_operand.vmem [shape: f32[3,1,32], index: 15, kind: input, shape index: {}]
  %s16 = inlined_call_operand.vmem [shape: bf16[32,32], index: 16, kind: input, shape index: {}]
  %s17 = inlined_call_operand.vmem [shape: f32[1,32], index: 17, kind: input, shape index: {}]
  %s18 = inlined_call_operand.vmem [shape: bf16[9,32,32], index: 18, kind: input, shape index: {}]
  %s19 = inlined_call_operand.vmem [shape: f32[1,32], index: 19, kind: input, shape index: {}]
  %s20 = inlined_call_operand.vmem [shape: bf16[32,16], index: 20, kind: input, shape index: {}]
  %s21 = inlined_call_operand.vmem [shape: f32[1,16], index: 21, kind: input, shape index: {}]
  %s22 = inlined_call_operand.vmem [shape: bf16[9,16,16], index: 22, kind: input, shape index: {}]
  %s23 = inlined_call_operand.vmem [shape: f32[1,16], index: 23, kind: input, shape index: {}]
  %s24 = inlined_call_operand.vmem [shape: bf16[384,128], index: 24, kind: input, shape index: {}]
  %s25 = inlined_call_operand.vmem [shape: f32[1,128], index: 25, kind: input, shape index: {}]
  %s26 = inlined_call_operand.hbm [shape: f32[2,1,128], index: 26, kind: output, shape index: {}]
  %s27 = sld [smem:[#allocation0]]
  $region137: #{bert_yl_forward.1} parent=0
    _
  %s29 = ssub.s32 1, %s27
  %s30 = scalar_select 0, %s29, %s27
  $region1: #{bert_yl_forward.1} parent=0
    #allocation2 [shape = 'u8[1024]{0}', space=vmem, size = 0x400, scoped, tag = 'output window, operand 0']
    #allocation3 [shape = 's32[2]{0}', space=sflag, size = 0x8, scoped, tag = 'scoped memory for bert_yl_forward.1']
    %31 = vsyncpa [#allocation3], 0
    %s32 = scalar_lea.sflag [#allocation3], 1
    %33 = vsyncpa %s32, 0
    loop: start=0, step=1, limit=4
    $region2: #{bert_yl_forward.1} parent=1 // loop_pre_header
      _
    $region3: #{bert_yl_forward.1} parent=1 // loop_header
      %s35 = sphi 0, %s39
      %p36 = scmp.ge.s32.totalorder %s35, 4
      %s45 = sphi 0, %s47
      %s48 = sphi 0, %s45
      %s49 = sphi 0, %s48
      %s65 = sphi 0, %s49
      %s71 = sphi 0, %s73
      %s74 = sphi 0, %s71
      %s75 = sphi 0, %s74
      %s91 = sphi 0, %s75
      %s95 = sphi 0, %s95
      %s97 = sphi 0, %s95
      %s98 = sphi 0, %s97
      %s112 = sphi 0, %s98
      %s116 = sphi 0, %s116
      %s118 = sphi 0, %s116
      %s119 = sphi 0, %s118
      %s133 = sphi 0, %s119
      %s137 = sphi 0, %s137
      %s139 = sphi 0, %s137
      %s140 = sphi 0, %s139
      %s154 = sphi 0, %s140
      %s158 = sphi 0, %s158
      %s160 = sphi 0, %s158
      %s161 = sphi 0, %s160
      %s175 = sphi 0, %s161
      %s179 = sphi 0, %s179
      %s181 = sphi 0, %s179
      %s182 = sphi 0, %s181
      %s196 = sphi 0, %s182
      %s200 = sphi 0, %s200
      %s202 = sphi 0, %s200
      %s203 = sphi 0, %s202
      %s217 = sphi 0, %s203
      %s221 = sphi 0, %s221
      %s223 = sphi 0, %s221
      %s224 = sphi 0, %s223
      %s238 = sphi 0, %s224
      %s242 = sphi 0, %s242
      %s244 = sphi 0, %s242
      %s245 = sphi 0, %s244
      %s259 = sphi 0, %s245
      %s263 = sphi 0, %s263
      %s265 = sphi 0, %s263
      %s266 = sphi 0, %s265
      %s280 = sphi 0, %s266
      %s284 = sphi 0, %s284
      %s286 = sphi 0, %s284
      %s287 = sphi 0, %s286
      %s301 = sphi 0, %s287
      %s305 = sphi 0, %s305
      %s307 = sphi 0, %s305
      %s308 = sphi 0, %s307
      %s322 = sphi 0, %s308
      %s326 = sphi 0, %s326
      %s328 = sphi 0, %s326
      %s329 = sphi 0, %s328
      %s343 = sphi 0, %s329
      %s347 = sphi 0, %s347
      %s349 = sphi 0, %s347
      %s350 = sphi 0, %s349
      %s364 = sphi 0, %s350
      %s368 = sphi 0, %s368
      %s370 = sphi 0, %s368
      %s371 = sphi 0, %s370
      %s385 = sphi 0, %s371
      %s389 = sphi 0, %s389
      %s391 = sphi 0, %s389
      %s392 = sphi 0, %s391
      %s406 = sphi 0, %s392
      %s410 = sphi 0, %s410
      %s412 = sphi 0, %s410
      %s413 = sphi 0, %s412
      %s427 = sphi 0, %s413
      %s431 = sphi 0, %s431
      %s433 = sphi 0, %s431
      %s434 = sphi 0, %s433
      %s448 = sphi 0, %s434
      %s452 = sphi 0, %s452
      %s454 = sphi 0, %s452
      %s455 = sphi 0, %s454
      %s469 = sphi 0, %s455
      %s473 = sphi 0, %s473
      %s475 = sphi 0, %s473
      %s476 = sphi 0, %s475
      %s490 = sphi 0, %s476
      %s494 = sphi 0, %s494
      %s496 = sphi 0, %s494
      %s497 = sphi 0, %s496
      %s511 = sphi 0, %s497
      %s515 = sphi 0, %s515
      %s517 = sphi 0, %s515
      %s518 = sphi 0, %s517
      %s532 = sphi 0, %s518
      %s536 = sphi 0, %s536
      %s538 = sphi 0, %s536
      %s539 = sphi 0, %s538
      %s553 = sphi 0, %s539
      %s557 = sphi 0, %s557
      %s559 = sphi 0, %s557
      %s560 = sphi 0, %s559
      %s574 = sphi 0, %s560
      %s578 = sphi 0, %s578
      %s580 = sphi 0, %s578
      %s581 = sphi 0, %s580
      %s595 = sphi 0, %s581
      %s601 = sphi 0, %s603
      %s604 = sphi 0, %s601
      %s605 = sphi 0, %s604
      %s621 = sphi 0, %s605
    $region4: #{bert_yl_forward.1} parent=1 // loop_header_branch
      %38 = sbr.rel (%p36) target = $region8
    $region5: #{bert_yl_forward.1} parent=1 // loop_body
      %s40 = ssub.s32 %s35, 1
      %s41 = ssub.s32 %s35, 2
      %s42 = sadd.s32 %s35, 1
      %s43 = ssub.s32 %s35, %s42
      %p44 = scmp.eq.s32.totalorder %s43, 0
      %s46 = sadd.s32 %s45, 1
      %s47 = scalar_select %p44, %s45, %s46
      %p50 = pneg %p44
      %p51 = scmp.eq.s32.totalorder %s35, 1
      %p52 = por %p50, %p51
      %p53 = scmp.ne.s32.totalorder %s45, %s48
      %p54 = scmp.eq.s32.totalorder %s35, 0
      %p55 = por %p53, %p54
      %p56 = scmp.ne.s32.totalorder %s45, %s48
      %p57 = scmp.eq.s32.totalorder %s40, 1
      %p58 = por %p56, %p57
      %p59 = scmp.ne.s32.totalorder %s48, %s49
      %p60 = scmp.eq.s32.totalorder %s40, 0
      %p61 = por %p59, %p60
      %p62 = scmp.ne.s32.totalorder %s48, %s49
      %p63 = scmp.eq.s32.totalorder %s41, 1
      %p64 = por %p62, %p63
      %p66 = scmp.ne.s32.totalorder %s49, %s65
      %p67 = scmp.eq.s32.totalorder %s41, 0
      %p68 = por %p66, %p67
      %s69 = ssub.s32 %s35, %s42
      %p70 = scmp.eq.s32.totalorder %s69, 0
      %s72 = sadd.s32 %s71, 1
      %s73 = scalar_select %p70, %s71, %s72
      %p76 = pneg %p70
      %p77 = scmp.eq.s32.totalorder %s35, 1
      %p78 = por %p76, %p77
      %p79 = scmp.ne.s32.totalorder %s71, %s74
      %p80 = scmp.eq.s32.totalorder %s35, 0
      %p81 = por %p79, %p80
      %p82 = scmp.ne.s32.totalorder %s71, %s74
      %p83 = scmp.eq.s32.totalorder %s40, 1
      %p84 = por %p82, %p83
      %p85 = scmp.ne.s32.totalorder %s74, %s75
      %p86 = scmp.eq.s32.totalorder %s40, 0
      %p87 = por %p85, %p86
      %p88 = scmp.ne.s32.totalorder %s74, %s75
      %p89 = scmp.eq.s32.totalorder %s41, 1
      %p90 = por %p88, %p89
      %p92 = scmp.ne.s32.totalorder %s75, %s91
      %p93 = scmp.eq.s32.totalorder %s41, 0
      %p94 = por %p92, %p93
      %s96 = sadd.s32 %s95, 1
      %p99 = scmp.eq.s32.totalorder %s35, 1
      %p100 = scmp.ne.s32.totalorder %s95, %s97
      %p101 = scmp.eq.s32.totalorder %s35, 0
      %p102 = por %p100, %p101
      %p103 = scmp.ne.s32.totalorder %s95, %s97
      %p104 = scmp.eq.s32.totalorder %s40, 1
      %p105 = por %p103, %p104
      %p106 = scmp.ne.s32.totalorder %s97, %s98
      %p107 = scmp.eq.s32.totalorder %s40, 0
      %p108 = por %p106, %p107
      %p109 = scmp.ne.s32.totalorder %s97, %s98
      %p110 = scmp.eq.s32.totalorder %s41, 1
      %p111 = por %p109, %p110
      %p113 = scmp.ne.s32.totalorder %s98, %s112
      %p114 = scmp.eq.s32.totalorder %s41, 0
      %p115 = por %p113, %p114
      %s117 = sadd.s32 %s116, 1
      %p120 = scmp.eq.s32.totalorder %s35, 1
      %p121 = scmp.ne.s32.totalorder %s116, %s118
      %p122 = scmp.eq.s32.totalorder %s35, 0
      %p123 = por %p121, %p122
      %p124 = scmp.ne.s32.totalorder %s116, %s118
      %p125 = scmp.eq.s32.totalorder %s40, 1
      %p126 = por %p124, %p125
      %p127 = scmp.ne.s32.totalorder %s118, %s119
      %p128 = scmp.eq.s32.totalorder %s40, 0
      %p129 = por %p127, %p128
      %p130 = scmp.ne.s32.totalorder %s118, %s119
      %p131 = scmp.eq.s32.totalorder %s41, 1
      %p132 = por %p130, %p131
      %p134 = scmp.ne.s32.totalorder %s119, %s133
      %p135 = scmp.eq.s32.totalorder %s41, 0
      %p136 = por %p134, %p135
      %s138 = sadd.s32 %s137, 1
      %p141 = scmp.eq.s32.totalorder %s35, 1
      %p142 = scmp.ne.s32.totalorder %s137, %s139
      %p143 = scmp.eq.s32.totalorder %s35, 0
      %p144 = por %p142, %p143
      %p145 = scmp.ne.s32.totalorder %s137, %s139
      %p146 = scmp.eq.s32.totalorder %s40, 1
      %p147 = por %p145, %p146
      %p148 = scmp.ne.s32.totalorder %s139, %s140
      %p149 = scmp.eq.s32.totalorder %s40, 0
      %p150 = por %p148, %p149
      %p151 = scmp.ne.s32.totalorder %s139, %s140
      %p152 = scmp.eq.s32.totalorder %s41, 1
      %p153 = por %p151, %p152
      %p155 = scmp.ne.s32.totalorder %s140, %s154
      %p156 = scmp.eq.s32.totalorder %s41, 0
      %p157 = por %p155, %p156
      %s159 = sadd.s32 %s158, 1
      %p162 = scmp.eq.s32.totalorder %s35, 1
      %p163 = scmp.ne.s32.totalorder %s158, %s160
      %p164 = scmp.eq.s32.totalorder %s35, 0
      %p165 = por %p163, %p164
      %p166 = scmp.ne.s32.totalorder %s158, %s160
      %p167 = scmp.eq.s32.totalorder %s40, 1
      %p168 = por %p166, %p167
      %p169 = scmp.ne.s32.totalorder %s160, %s161
      %p170 = scmp.eq.s32.totalorder %s40, 0
      %p171 = por %p169, %p170
      %p172 = scmp.ne.s32.totalorder %s160, %s161
      %p173 = scmp.eq.s32.totalorder %s41, 1
      %p174 = por %p172, %p173
      %p176 = scmp.ne.s32.totalorder %s161, %s175
      %p177 = scmp.eq.s32.totalorder %s41, 0
      %p178 = por %p176, %p177
      %s180 = sadd.s32 %s179, 1
      %p183 = scmp.eq.s32.totalorder %s35, 1
      %p184 = scmp.ne.s32.totalorder %s179, %s181
      %p185 = scmp.eq.s32.totalorder %s35, 0
      %p186 = por %p184, %p185
      %p187 = scmp.ne.s32.totalorder %s179, %s181
      %p188 = scmp.eq.s32.totalorder %s40, 1
      %p189 = por %p187, %p188
      %p190 = scmp.ne.s32.totalorder %s181, %s182
      %p191 = scmp.eq.s32.totalorder %s40, 0
      %p192 = por %p190, %p191
      %p193 = scmp.ne.s32.totalorder %s181, %s182
      %p194 = scmp.eq.s32.totalorder %s41, 1
      %p195 = por %p193, %p194
      %p197 = scmp.ne.s32.totalorder %s182, %s196
      %p198 = scmp.eq.s32.totalorder %s41, 0
      %p199 = por %p197, %p198
      %s201 = sadd.s32 %s200, 1
      %p204 = scmp.eq.s32.totalorder %s35, 1
      %p205 = scmp.ne.s32.totalorder %s200, %s202
      %p206 = scmp.eq.s32.totalorder %s35, 0
      %p207 = por %p205, %p206
      %p208 = scmp.ne.s32.totalorder %s200, %s202
      %p209 = scmp.eq.s32.totalorder %s40, 1
      %p210 = por %p208, %p209
      %p211 = scmp.ne.s32.totalorder %s202, %s203
      %p212 = scmp.eq.s32.totalorder %s40, 0
      %p213 = por %p211, %p212
      %p214 = scmp.ne.s32.totalorder %s202, %s203
      %p215 = scmp.eq.s32.totalorder %s41, 1
      %p216 = por %p214, %p215
      %p218 = scmp.ne.s32.totalorder %s203, %s217
      %p219 = scmp.eq.s32.totalorder %s41, 0
      %p220 = por %p218, %p219
      %s222 = sadd.s32 %s221, 1
      %p225 = scmp.eq.s32.totalorder %s35, 1
      %p226 = scmp.ne.s32.totalorder %s221, %s223
      %p227 = scmp.eq.s32.totalorder %s35, 0
      %p228 = por %p226, %p227
      %p229 = scmp.ne.s32.totalorder %s221, %s223
      %p230 = scmp.eq.s32.totalorder %s40, 1
      %p231 = por %p229, %p230
      %p232 = scmp.ne.s32.totalorder %s223, %s224
      %p233 = scmp.eq.s32.totalorder %s40, 0
      %p234 = por %p232, %p233
      %p235 = scmp.ne.s32.totalorder %s223, %s224
      %p236 = scmp.eq.s32.totalorder %s41, 1
      %p237 = por %p235, %p236
      %p239 = scmp.ne.s32.totalorder %s224, %s238
      %p240 = scmp.eq.s32.totalorder %s41, 0
      %p241 = por %p239, %p240
      %s243 = sadd.s32 %s242, 1
      %p246 = scmp.eq.s32.totalorder %s35, 1
      %p247 = scmp.ne.s32.totalorder %s242, %s244
      %p248 = scmp.eq.s32.totalorder %s35, 0
      %p249 = por %p247, %p248
      %p250 = scmp.ne.s32.totalorder %s242, %s244
      %p251 = scmp.eq.s32.totalorder %s40, 1
      %p252 = por %p250, %p251
      %p253 = scmp.ne.s32.totalorder %s244, %s245
      %p254 = scmp.eq.s32.totalorder %s40, 0
      %p255 = por %p253, %p254
      %p256 = scmp.ne.s32.totalorder %s244, %s245
      %p257 = scmp.eq.s32.totalorder %s41, 1
      %p258 = por %p256, %p257
      %p260 = scmp.ne.s32.totalorder %s245, %s259
      %p261 = scmp.eq.s32.totalorder %s41, 0
      %p262 = por %p260, %p261
      %s264 = sadd.s32 %s263, 1
      %p267 = scmp.eq.s32.totalorder %s35, 1
      %p268 = scmp.ne.s32.totalorder %s263, %s265
      %p269 = scmp.eq.s32.totalorder %s35, 0
      %p270 = por %p268, %p269
      %p271 = scmp.ne.s32.totalorder %s263, %s265
      %p272 = scmp.eq.s32.totalorder %s40, 1
      %p273 = por %p271, %p272
      %p274 = scmp.ne.s32.totalorder %s265, %s266
      %p275 = scmp.eq.s32.totalorder %s40, 0
      %p276 = por %p274, %p275
      %p277 = scmp.ne.s32.totalorder %s265, %s266
      %p278 = scmp.eq.s32.totalorder %s41, 1
      %p279 = por %p277, %p278
      %p281 = scmp.ne.s32.totalorder %s266, %s280
      %p282 = scmp.eq.s32.totalorder %s41, 0
      %p283 = por %p281, %p282
      %s285 = sadd.s32 %s284, 1
      %p288 = scmp.eq.s32.totalorder %s35, 1
      %p289 = scmp.ne.s32.totalorder %s284, %s286
      %p290 = scmp.eq.s32.totalorder %s35, 0
      %p291 = por %p289, %p290
      %p292 = scmp.ne.s32.totalorder %s284, %s286
      %p293 = scmp.eq.s32.totalorder %s40, 1
      %p294 = por %p292, %p293
      %p295 = scmp.ne.s32.totalorder %s286, %s287
      %p296 = scmp.eq.s32.totalorder %s40, 0
      %p297 = por %p295, %p296
      %p298 = scmp.ne.s32.totalorder %s286, %s287
      %p299 = scmp.eq.s32.totalorder %s41, 1
      %p300 = por %p298, %p299
      %p302 = scmp.ne.s32.totalorder %s287, %s301
      %p303 = scmp.eq.s32.totalorder %s41, 0
      %p304 = por %p302, %p303
      %s306 = sadd.s32 %s305, 1
      %p309 = scmp.eq.s32.totalorder %s35, 1
      %p310 = scmp.ne.s32.totalorder %s305, %s307
      %p311 = scmp.eq.s32.totalorder %s35, 0
      %p312 = por %p310, %p311
      %p313 = scmp.ne.s32.totalorder %s305, %s307
      %p314 = scmp.eq.s32.totalorder %s40, 1
      %p315 = por %p313, %p314
      %p316 = scmp.ne.s32.totalorder %s307, %s308
      %p317 = scmp.eq.s32.totalorder %s40, 0
      %p318 = por %p316, %p317
      %p319 = scmp.ne.s32.totalorder %s307, %s308
      %p320 = scmp.eq.s32.totalorder %s41, 1
      %p321 = por %p319, %p320
      %p323 = scmp.ne.s32.totalorder %s308, %s322
      %p324 = scmp.eq.s32.totalorder %s41, 0
      %p325 = por %p323, %p324
      %s327 = sadd.s32 %s326, 1
      %p330 = scmp.eq.s32.totalorder %s35, 1
      %p331 = scmp.ne.s32.totalorder %s326, %s328
      %p332 = scmp.eq.s32.totalorder %s35, 0
      %p333 = por %p331, %p332
      %p334 = scmp.ne.s32.totalorder %s326, %s328
      %p335 = scmp.eq.s32.totalorder %s40, 1
      %p336 = por %p334, %p335
      %p337 = scmp.ne.s32.totalorder %s328, %s329
      %p338 = scmp.eq.s32.totalorder %s40, 0
      %p339 = por %p337, %p338
      %p340 = scmp.ne.s32.totalorder %s328, %s329
      %p341 = scmp.eq.s32.totalorder %s41, 1
      %p342 = por %p340, %p341
      %p344 = scmp.ne.s32.totalorder %s329, %s343
      %p345 = scmp.eq.s32.totalorder %s41, 0
      %p346 = por %p344, %p345
      %s348 = sadd.s32 %s347, 1
      %p351 = scmp.eq.s32.totalorder %s35, 1
      %p352 = scmp.ne.s32.totalorder %s347, %s349
      %p353 = scmp.eq.s32.totalorder %s35, 0
      %p354 = por %p352, %p353
      %p355 = scmp.ne.s32.totalorder %s347, %s349
      %p356 = scmp.eq.s32.totalorder %s40, 1
      %p357 = por %p355, %p356
      %p358 = scmp.ne.s32.totalorder %s349, %s350
      %p359 = scmp.eq.s32.totalorder %s40, 0
      %p360 = por %p358, %p359
      %p361 = scmp.ne.s32.totalorder %s349, %s350
      %p362 = scmp.eq.s32.totalorder %s41, 1
      %p363 = por %p361, %p362
      %p365 = scmp.ne.s32.totalorder %s350, %s364
      %p366 = scmp.eq.s32.totalorder %s41, 0
      %p367 = por %p365, %p366
      %s369 = sadd.s32 %s368, 1
      %p372 = scmp.eq.s32.totalorder %s35, 1
      %p373 = scmp.ne.s32.totalorder %s368, %s370
      %p374 = scmp.eq.s32.totalorder %s35, 0
      %p375 = por %p373, %p374
      %p376 = scmp.ne.s32.totalorder %s368, %s370
      %p377 = scmp.eq.s32.totalorder %s40, 1
      %p378 = por %p376, %p377
      %p379 = scmp.ne.s32.totalorder %s370, %s371
      %p380 = scmp.eq.s32.totalorder %s40, 0
      %p381 = por %p379, %p380
      %p382 = scmp.ne.s32.totalorder %s370, %s371
      %p383 = scmp.eq.s32.totalorder %s41, 1
      %p384 = por %p382, %p383
      %p386 = scmp.ne.s32.totalorder %s371, %s385
      %p387 = scmp.eq.s32.totalorder %s41, 0
      %p388 = por %p386, %p387
      %s390 = sadd.s32 %s389, 1
      %p393 = scmp.eq.s32.totalorder %s35, 1
      %p394 = scmp.ne.s32.totalorder %s389, %s391
      %p395 = scmp.eq.s32.totalorder %s35, 0
      %p396 = por %p394, %p395
      %p397 = scmp.ne.s32.totalorder %s389, %s391
      %p398 = scmp.eq.s32.totalorder %s40, 1
      %p399 = por %p397, %p398
      %p400 = scmp.ne.s32.totalorder %s391, %s392
      %p401 = scmp.eq.s32.totalorder %s40, 0
      %p402 = por %p400, %p401
      %p403 = scmp.ne.s32.totalorder %s391, %s392
      %p404 = scmp.eq.s32.totalorder %s41, 1
      %p405 = por %p403, %p404
      %p407 = scmp.ne.s32.totalorder %s392, %s406
      %p408 = scmp.eq.s32.totalorder %s41, 0
      %p409 = por %p407, %p408
      %s411 = sadd.s32 %s410, 1
      %p414 = scmp.eq.s32.totalorder %s35, 1
      %p415 = scmp.ne.s32.totalorder %s410, %s412
      %p416 = scmp.eq.s32.totalorder %s35, 0
      %p417 = por %p415, %p416
      %p418 = scmp.ne.s32.totalorder %s410, %s412
      %p419 = scmp.eq.s32.totalorder %s40, 1
      %p420 = por %p418, %p419
      %p421 = scmp.ne.s32.totalorder %s412, %s413
      %p422 = scmp.eq.s32.totalorder %s40, 0
      %p423 = por %p421, %p422
      %p424 = scmp.ne.s32.totalorder %s412, %s413
      %p425 = scmp.eq.s32.totalorder %s41, 1
      %p426 = por %p424, %p425
      %p428 = scmp.ne.s32.totalorder %s413, %s427
      %p429 = scmp.eq.s32.totalorder %s41, 0
      %p430 = por %p428, %p429
      %s432 = sadd.s32 %s431, 1
      %p435 = scmp.eq.s32.totalorder %s35, 1
      %p436 = scmp.ne.s32.totalorder %s431, %s433
      %p437 = scmp.eq.s32.totalorder %s35, 0
      %p438 = por %p436, %p437
      %p439 = scmp.ne.s32.totalorder %s431, %s433
      %p440 = scmp.eq.s32.totalorder %s40, 1
      %p441 = por %p439, %p440
      %p442 = scmp.ne.s32.totalorder %s433, %s434
      %p443 = scmp.eq.s32.totalorder %s40, 0
      %p444 = por %p442, %p443
      %p445 = scmp.ne.s32.totalorder %s433, %s434
      %p446 = scmp.eq.s32.totalorder %s41, 1
      %p447 = por %p445, %p446
      %p449 = scmp.ne.s32.totalorder %s434, %s448
      %p450 = scmp.eq.s32.totalorder %s41, 0
      %p451 = por %p449, %p450
      %s453 = sadd.s32 %s452, 1
      %p456 = scmp.eq.s32.totalorder %s35, 1
      %p457 = scmp.ne.s32.totalorder %s452, %s454
      %p458 = scmp.eq.s32.totalorder %s35, 0
      %p459 = por %p457, %p458
      %p460 = scmp.ne.s32.totalorder %s452, %s454
      %p461 = scmp.eq.s32.totalorder %s40, 1
      %p462 = por %p460, %p461
      %p463 = scmp.ne.s32.totalorder %s454, %s455
      %p464 = scmp.eq.s32.totalorder %s40, 0
      %p465 = por %p463, %p464
      %p466 = scmp.ne.s32.totalorder %s454, %s455
      %p467 = scmp.eq.s32.totalorder %s41, 1
      %p468 = por %p466, %p467
      %p470 = scmp.ne.s32.totalorder %s455, %s469
      %p471 = scmp.eq.s32.totalorder %s41, 0
      %p472 = por %p470, %p471
      %s474 = sadd.s32 %s473, 1
      %p477 = scmp.eq.s32.totalorder %s35, 1
      %p478 = scmp.ne.s32.totalorder %s473, %s475
      %p479 = scmp.eq.s32.totalorder %s35, 0
      %p480 = por %p478, %p479
      %p481 = scmp.ne.s32.totalorder %s473, %s475
      %p482 = scmp.eq.s32.totalorder %s40, 1
      %p483 = por %p481, %p482
      %p484 = scmp.ne.s32.totalorder %s475, %s476
      %p485 = scmp.eq.s32.totalorder %s40, 0
      %p486 = por %p484, %p485
      %p487 = scmp.ne.s32.totalorder %s475, %s476
      %p488 = scmp.eq.s32.totalorder %s41, 1
      %p489 = por %p487, %p488
      %p491 = scmp.ne.s32.totalorder %s476, %s490
      %p492 = scmp.eq.s32.totalorder %s41, 0
      %p493 = por %p491, %p492
      %s495 = sadd.s32 %s494, 1
      %p498 = scmp.eq.s32.totalorder %s35, 1
      %p499 = scmp.ne.s32.totalorder %s494, %s496
      %p500 = scmp.eq.s32.totalorder %s35, 0
      %p501 = por %p499, %p500
      %p502 = scmp.ne.s32.totalorder %s494, %s496
      %p503 = scmp.eq.s32.totalorder %s40, 1
      %p504 = por %p502, %p503
      %p505 = scmp.ne.s32.totalorder %s496, %s497
      %p506 = scmp.eq.s32.totalorder %s40, 0
      %p507 = por %p505, %p506
      %p508 = scmp.ne.s32.totalorder %s496, %s497
      %p509 = scmp.eq.s32.totalorder %s41, 1
      %p510 = por %p508, %p509
      %p512 = scmp.ne.s32.totalorder %s497, %s511
      %p513 = scmp.eq.s32.totalorder %s41, 0
      %p514 = por %p512, %p513
      %s516 = sadd.s32 %s515, 1
      %p519 = scmp.eq.s32.totalorder %s35, 1
      %p520 = scmp.ne.s32.totalorder %s515, %s517
      %p521 = scmp.eq.s32.totalorder %s35, 0
      %p522 = por %p520, %p521
      %p523 = scmp.ne.s32.totalorder %s515, %s517
      %p524 = scmp.eq.s32.totalorder %s40, 1
      %p525 = por %p523, %p524
      %p526 = scmp.ne.s32.totalorder %s517, %s518
      %p527 = scmp.eq.s32.totalorder %s40, 0
      %p528 = por %p526, %p527
      %p529 = scmp.ne.s32.totalorder %s517, %s518
      %p530 = scmp.eq.s32.totalorder %s41, 1
      %p531 = por %p529, %p530
      %p533 = scmp.ne.s32.totalorder %s518, %s532
      %p534 = scmp.eq.s32.totalorder %s41, 0
      %p535 = por %p533, %p534
      %s537 = sadd.s32 %s536, 1
      %p540 = scmp.eq.s32.totalorder %s35, 1
      %p541 = scmp.ne.s32.totalorder %s536, %s538
      %p542 = scmp.eq.s32.totalorder %s35, 0
      %p543 = por %p541, %p542
      %p544 = scmp.ne.s32.totalorder %s536, %s538
      %p545 = scmp.eq.s32.totalorder %s40, 1
      %p546 = por %p544, %p545
      %p547 = scmp.ne.s32.totalorder %s538, %s539
      %p548 = scmp.eq.s32.totalorder %s40, 0
      %p549 = por %p547, %p548
      %p550 = scmp.ne.s32.totalorder %s538, %s539
      %p551 = scmp.eq.s32.totalorder %s41, 1
      %p552 = por %p550, %p551
      %p554 = scmp.ne.s32.totalorder %s539, %s553
      %p555 = scmp.eq.s32.totalorder %s41, 0
      %p556 = por %p554, %p555
      %s558 = sadd.s32 %s557, 1
      %p561 = scmp.eq.s32.totalorder %s35, 1
      %p562 = scmp.ne.s32.totalorder %s557, %s559
      %p563 = scmp.eq.s32.totalorder %s35, 0
      %p564 = por %p562, %p563
      %p565 = scmp.ne.s32.totalorder %s557, %s559
      %p566 = scmp.eq.s32.totalorder %s40, 1
      %p567 = por %p565, %p566
      %p568 = scmp.ne.s32.totalorder %s559, %s560
      %p569 = scmp.eq.s32.totalorder %s40, 0
      %p570 = por %p568, %p569
      %p571 = scmp.ne.s32.totalorder %s559, %s560
      %p572 = scmp.eq.s32.totalorder %s41, 1
      %p573 = por %p571, %p572
      %p575 = scmp.ne.s32.totalorder %s560, %s574
      %p576 = scmp.eq.s32.totalorder %s41, 0
      %p577 = por %p575, %p576
      %s579 = sadd.s32 %s578, 1
      %p582 = scmp.eq.s32.totalorder %s35, 1
      %p583 = scmp.ne.s32.totalorder %s578, %s580
      %p584 = scmp.eq.s32.totalorder %s35, 0
      %p585 = por %p583, %p584
      %p586 = scmp.ne.s32.totalorder %s578, %s580
      %p587 = scmp.eq.s32.totalorder %s40, 1
      %p588 = por %p586, %p587
      %p589 = scmp.ne.s32.totalorder %s580, %s581
      %p590 = scmp.eq.s32.totalorder %s40, 0
      %p591 = por %p589, %p590
      %p592 = scmp.ne.s32.totalorder %s580, %s581
      %p593 = scmp.eq.s32.totalorder %s41, 1
      %p594 = por %p592, %p593
      %p596 = scmp.ne.s32.totalorder %s581, %s595
      %p597 = scmp.eq.s32.totalorder %s41, 0
      %p598 = por %p596, %p597
      %s599 = ssub.s32 %s35, %s42
      %p600 = scmp.eq.s32.totalorder %s599, 0
      %s602 = sadd.s32 %s601, 1
      %s603 = scalar_select %p600, %s601, %s602
      %p606 = pneg %p600
      %p607 = scmp.eq.s32.totalorder %s35, 1
      %p608 = por %p606, %p607
      %p609 = scmp.ne.s32.totalorder %s601, %s604
      %p610 = scmp.eq.s32.totalorder %s35, 0
      %p611 = por %p609, %p610
      %p612 = scmp.ne.s32.totalorder %s601, %s604
      %p613 = scmp.eq.s32.totalorder %s40, 1
      %p614 = por %p612, %p613
      %p615 = scmp.ne.s32.totalorder %s604, %s605
      %p616 = scmp.eq.s32.totalorder %s40, 0
      %p617 = por %p615, %p616
      %p618 = scmp.ne.s32.totalorder %s604, %s605
      %p619 = scmp.eq.s32.totalorder %s41, 1
      %p620 = por %p618, %p619
      %p622 = scmp.ne.s32.totalorder %s605, %s621
      %p623 = scmp.eq.s32.totalorder %s41, 0
      %p624 = por %p622, %p623
      %p625 = scmp.le.s32.totalorder 1, %s35
      %p626 = scmp.lt.s32.totalorder %s35, 3
      %p627 = pnand %p625, %p626
      %p628 = pneg %p627
      // Predicated region
      $region9: #{bert_yl_forward.1} parent=5 // pred_check
        _
      $region10: #{bert_yl_forward.1} parent=5 // pred_check_branch
        %630 = sbr.rel (%p627) target = $region12
      $region11: #{bert_yl_forward.1} parent=5 // pred_region
        %s631 = ssub.s32 %s35, 1
        // Predicated region
        $region13: #{bert_yl_forward.1} parent=11 // pred_check
          %p632 = pneg %p108
        $region14: #{bert_yl_forward.1} parent=11 // pred_check_branch
          %634 = sbr.rel (%p632) target = $region16
        $region15: #{bert_yl_forward.1} parent=11 // pred_region
          _
        $region16: #{bert_yl_forward.1} parent=11 // pred_fallthru
          _
        // Predicated region
        $region17: #{bert_yl_forward.1} parent=11 // pred_check
          %p635 = pneg %p129
        $region18: #{bert_yl_forward.1} parent=11 // pred_check_branch
          %637 = sbr.rel (%p635) target = $region20
        $region19: #{bert_yl_forward.1} parent=11 // pred_region
          _
        $region20: #{bert_yl_forward.1} parent=11 // pred_fallthru
          _
        // Predicated region
        $region21: #{bert_yl_forward.1} parent=11 // pred_check
          %p638 = pneg %p150
        $region22: #{bert_yl_forward.1} parent=11 // pred_check_branch
          %640 = sbr.rel (%p638) target = $region24
        $region23: #{bert_yl_forward.1} parent=11 // pred_region
          _
        $region24: #{bert_yl_forward.1} parent=11 // pred_fallthru
          _
        // Predicated region
        $region25: #{bert_yl_forward.1} parent=11 // pred_check
          %p641 = pneg %p171
        $region26: #{bert_yl_forward.1} parent=11 // pred_check_branch
          %643 = sbr.rel (%p641) target = $region28
        $region27: #{bert_yl_forward.1} parent=11 // pred_region
          _
        $region28: #{bert_yl_forward.1} parent=11 // pred_fallthru
          _
        // Predicated region
        $region29: #{bert_yl_forward.1} parent=11 // pred_check
          %p644 = pneg %p192
        $region30: #{bert_yl_forward.1} parent=11 // pred_check_branch
          %646 = sbr.rel (%p644) target = $region32
        $region31: #{bert_yl_forward.1} parent=11 // pred_region
          _
        $region32: #{bert_yl_forward.1} parent=11 // pred_fallthru
          _
        // Predicated region
        $region33: #{bert_yl_forward.1} parent=11 // pred_check
          %p647 = pneg %p213
        $region34: #{bert_yl_forward.1} parent=11 // pred_check_branch
          %649 = sbr.rel (%p647) target = $region36
        $region35: #{bert_yl_forward.1} parent=11 // pred_region
          _
        $region36: #{bert_yl_forward.1} parent=11 // pred_fallthru
          _
        // Predicated region
        $region37: #{bert_yl_forward.1} parent=11 // pred_check
          %p650 = pneg %p234
        $region38: #{bert_yl_forward.1} parent=11 // pred_check_branch
          %652 = sbr.rel (%p650) target = $region40
        $region39: #{bert_yl_forward.1} parent=11 // pred_region
          _
        $region40: #{bert_yl_forward.1} parent=11 // pred_fallthru
          _
        // Predicated region
        $region41: #{bert_yl_forward.1} parent=11 // pred_check
          %p653 = pneg %p255
        $region42: #{bert_yl_forward.1} parent=11 // pred_check_branch
          %655 = sbr.rel (%p653) target = $region44
        $region43: #{bert_yl_forward.1} parent=11 // pred_region
          _
        $region44: #{bert_yl_forward.1} parent=11 // pred_fallthru
          _
        // Predicated region
        $region45: #{bert_yl_forward.1} parent=11 // pred_check
          %p656 = pneg %p276
        $region46: #{bert_yl_forward.1} parent=11 // pred_check_branch
          %658 = sbr.rel (%p656) target = $region48
        $region47: #{bert_yl_forward.1} parent=11 // pred_region
          _
        $region48: #{bert_yl_forward.1} parent=11 // pred_fallthru
          _
        // Predicated region
        $region49: #{bert_yl_forward.1} parent=11 // pred_check
          %p659 = pneg %p297
        $region50: #{bert_yl_forward.1} parent=11 // pred_check_branch
          %661 = sbr.rel (%p659) target = $region52
        $region51: #{bert_yl_forward.1} parent=11 // pred_region
          _
        $region52: #{bert_yl_forward.1} parent=11 // pred_fallthru
          _
        // Predicated region
        $region53: #{bert_yl_forward.1} parent=11 // pred_check
          %p662 = pneg %p318
        $region54: #{bert_yl_forward.1} parent=11 // pred_check_branch
          %664 = sbr.rel (%p662) target = $region56
        $region55: #{bert_yl_forward.1} parent=11 // pred_region
          _
        $region56: #{bert_yl_forward.1} parent=11 // pred_fallthru
          _
        // Predicated region
        $region57: #{bert_yl_forward.1} parent=11 // pred_check
          %p665 = pneg %p339
        $region58: #{bert_yl_forward.1} parent=11 // pred_check_branch
          %667 = sbr.rel (%p665) target = $region60
        $region59: #{bert_yl_forward.1} parent=11 // pred_region
          _
        $region60: #{bert_yl_forward.1} parent=11 // pred_fallthru
          _
        // Predicated region
        $region61: #{bert_yl_forward.1} parent=11 // pred_check
          %p668 = pneg %p360
        $region62: #{bert_yl_forward.1} parent=11 // pred_check_branch
          %670 = sbr.rel (%p668) target = $region64
        $region63: #{bert_yl_forward.1} parent=11 // pred_region
          _
        $region64: #{bert_yl_forward.1} parent=11 // pred_fallthru
          _
        // Predicated region
        $region65: #{bert_yl_forward.1} parent=11 // pred_check
          %p671 = pneg %p381
        $region66: #{bert_yl_forward.1} parent=11 // pred_check_branch
          %673 = sbr.rel (%p671) target = $region68
        $region67: #{bert_yl_forward.1} parent=11 // pred_region
          _
        $region68: #{bert_yl_forward.1} parent=11 // pred_fallthru
          _
        // Predicated region
        $region69: #{bert_yl_forward.1} parent=11 // pred_check
          %p674 = pneg %p402
        $region70: #{bert_yl_forward.1} parent=11 // pred_check_branch
          %676 = sbr.rel (%p674) target = $region72
        $region71: #{bert_yl_forward.1} parent=11 // pred_region
          _
        $region72: #{bert_yl_forward.1} parent=11 // pred_fallthru
          _
        // Predicated region
        $region73: #{bert_yl_forward.1} parent=11 // pred_check
          %p677 = pneg %p423
        $region74: #{bert_yl_forward.1} parent=11 // pred_check_branch
          %679 = sbr.rel (%p677) target = $region76
        $region75: #{bert_yl_forward.1} parent=11 // pred_region
          _
        $region76: #{bert_yl_forward.1} parent=11 // pred_fallthru
          _
        // Predicated region
        $region77: #{bert_yl_forward.1} parent=11 // pred_check
          %p680 = pneg %p444
        $region78: #{bert_yl_forward.1} parent=11 // pred_check_branch
          %682 = sbr.rel (%p680) target = $region80
        $region79: #{bert_yl_forward.1} parent=11 // pred_region
          _
        $region80: #{bert_yl_forward.1} parent=11 // pred_fallthru
          _
        // Predicated region
        $region81: #{bert_yl_forward.1} parent=11 // pred_check
          %p683 = pneg %p465
        $region82: #{bert_yl_forward.1} parent=11 // pred_check_branch
          %685 = sbr.rel (%p683) target = $region84
        $region83: #{bert_yl_forward.1} parent=11 // pred_region
          _
        $region84: #{bert_yl_forward.1} parent=11 // pred_fallthru
          _
        // Predicated region
        $region85: #{bert_yl_forward.1} parent=11 // pred_check
          %p686 = pneg %p486
        $region86: #{bert_yl_forward.1} parent=11 // pred_check_branch
          %688 = sbr.rel (%p686) target = $region88
        $region87: #{bert_yl_forward.1} parent=11 // pred_region
          _
        $region88: #{bert_yl_forward.1} parent=11 // pred_fallthru
          _
        // Predicated region
        $region89: #{bert_yl_forward.1} parent=11 // pred_check
          %p689 = pneg %p507
        $region90: #{bert_yl_forward.1} parent=11 // pred_check_branch
          %691 = sbr.rel (%p689) target = $region92
        $region91: #{bert_yl_forward.1} parent=11 // pred_region
          _
        $region92: #{bert_yl_forward.1} parent=11 // pred_fallthru
          _
        // Predicated region
        $region93: #{bert_yl_forward.1} parent=11 // pred_check
          %p692 = pneg %p528
        $region94: #{bert_yl_forward.1} parent=11 // pred_check_branch
          %694 = sbr.rel (%p692) target = $region96
        $region95: #{bert_yl_forward.1} parent=11 // pred_region
          _
        $region96: #{bert_yl_forward.1} parent=11 // pred_fallthru
          _
        // Predicated region
        $region97: #{bert_yl_forward.1} parent=11 // pred_check
          %p695 = pneg %p549
        $region98: #{bert_yl_forward.1} parent=11 // pred_check_branch
          %697 = sbr.rel (%p695) target = $region100
        $region99: #{bert_yl_forward.1} parent=11 // pred_region
          _
        $region100: #{bert_yl_forward.1} parent=11 // pred_fallthru
          _
        // Predicated region
        $region101: #{bert_yl_forward.1} parent=11 // pred_check
          %p698 = pneg %p570
        $region102: #{bert_yl_forward.1} parent=11 // pred_check_branch
          %700 = sbr.rel (%p698) target = $region104
        $region103: #{bert_yl_forward.1} parent=11 // pred_region
          _
        $region104: #{bert_yl_forward.1} parent=11 // pred_fallthru
          _
        // Predicated region
        $region105: #{bert_yl_forward.1} parent=11 // pred_check
          %p701 = pneg %p591
        $region106: #{bert_yl_forward.1} parent=11 // pred_check_branch
          %703 = sbr.rel (%p701) target = $region108
        $region107: #{bert_yl_forward.1} parent=11 // pred_region
          _
        $region108: #{bert_yl_forward.1} parent=11 // pred_fallthru
          _
      $region12: #{bert_yl_forward.1} parent=5 // pred_fallthru
        _
      %p704 = scmp.lt.s32.totalorder %s35, 2
      // Predicated region
      $region109: #{bert_yl_forward.1} parent=5 // pred_check
        %p705 = pneg %p704
      $region110: #{bert_yl_forward.1} parent=5 // pred_check_branch
        %707 = sbr.rel (%p705) target = $region112
      $region111: #{bert_yl_forward.1} parent=5 // pred_region
        // Predicated region
        $region113: #{bert_yl_forward.1} parent=111 // pred_check
          %p708 = pneg %p55
        $region114: #{bert_yl_forward.1} parent=111 // pred_check_branch
          %710 = sbr.rel (%p708) target = $region116
        $region115: #{bert_yl_forward.1} parent=111 // pred_region
          %p711 = scmp.lt.s32.totalorder %s35, 1
          %s712 = scalar_select %p711, %s35, 1
          %s713 = smul.addr %s712, 8
          %s714 = scalar_lea.vmem %s0, %s713
        $region116: #{bert_yl_forward.1} parent=111 // pred_fallthru
          _
        // Predicated region
        $region117: #{bert_yl_forward.1} parent=111 // pred_check
          %p715 = pneg %p81
        $region118: #{bert_yl_forward.1} parent=111 // pred_check_branch
          %717 = sbr.rel (%p715) target = $region120
        $region119: #{bert_yl_forward.1} parent=111 // pred_region
          %p718 = scmp.lt.s32.totalorder %s35, 1
          %s719 = scalar_select %p718, %s35, 1
          %s720 = scalar_lea.vmem %s1, %s719
        $region120: #{bert_yl_forward.1} parent=111 // pred_fallthru
          _
      $region112: #{bert_yl_forward.1} parent=5 // pred_fallthru
        _
      %p721 = scmp.le.s32.totalorder 1, %s35
      %p722 = scmp.lt.s32.totalorder %s35, 3
      %p723 = pnand %p721, %p722
      %p724 = pneg %p723
      // Predicated region
      $region121: #{bert_yl_forward.1} parent=5 // pred_check
        _
      $region122: #{bert_yl_forward.1} parent=5 // pred_check_branch
        %726 = sbr.rel (%p723) target = $region124
      $region123: #{bert_yl_forward.1} parent=5 // pred_region
        %s727 = ssub.s32 %s35, 1
        %p728 = scmp.lt.s32.totalorder %s40, 1
        %s729 = scalar_select %p728, %s40, 1
        %s730 = smul.addr %s729, 8
        %s731 = scalar_lea.vmem %s0, %s730
        %p732 = pneg %p61
        %p733 = pneg %p58
        %p734 = scmp.lt.s32.totalorder %s40, 1
        %s735 = scalar_select %p734, %s40, 1
        %s736 = scalar_lea.vmem %s1, %s735
        %p737 = pneg %p87
        %p738 = pneg %p84
        %p739 = pneg %p108
        %p740 = pneg %p105
        %p741 = pneg %p129
        %p742 = pneg %p126
        %p743 = pneg %p150
        %p744 = pneg %p147
        %p745 = pneg %p171
        %p746 = pneg %p168
        %p747 = pneg %p192
        %p748 = pneg %p189
        %p749 = pneg %p213
        %p750 = pneg %p210
        %p751 = pneg %p234
        %p752 = pneg %p231
        %p753 = pneg %p255
        %p754 = pneg %p252
        %p755 = pneg %p276
        %p756 = pneg %p273
        %p757 = pneg %p297
        %p758 = pneg %p294
        %p759 = pneg %p318
        %p760 = pneg %p315
        %p761 = pneg %p339
        %p762 = pneg %p336
        %p763 = pneg %p360
        %p764 = pneg %p357
        %p765 = pneg %p381
        %p766 = pneg %p378
        %p767 = pneg %p402
        %p768 = pneg %p399
        %p769 = pneg %p423
        %p770 = pneg %p420
        %p771 = pneg %p444
        %p772 = pneg %p441
        %p773 = pneg %p465
        %p774 = pneg %p462
        %p775 = pneg %p486
        %p776 = pneg %p483
        %p777 = pneg %p507
        %p778 = pneg %p504
        %p779 = pneg %p528
        %p780 = pneg %p525
        %p781 = pneg %p549
        %p782 = pneg %p546
        %p783 = pneg %p570
        %p784 = pneg %p567
        %p785 = pneg %p591
        %p786 = pneg %p588
        %p787 = pneg %p617
        %p788 = pneg %p614
        %s789 = sand.u32 %s604, 1
        %s790 = scalar_lea.sflag [#allocation3], %s789
        %s791 = sand.u32 %s604, 1
        %s792 = scalar_lea.vmem [#allocation2], %s791
        %p793 = scmp.lt.s32.totalorder %s40, 1
        %s794 = scalar_select %p793, %s40, 1
        %s795 = smul.addr %s794, 8
        %s796 = scalar_lea.vmem %s0, %s795
        %p797 = scmp.lt.s32.totalorder %s40, 1
        %s798 = scalar_select %p797, %s40, 1
        %s799 = scalar_lea.vmem %s1, %s798
        %v801 = vld [vmem:[%s796] sm:$0xff]
        %v802 = vld [vmem:[%s2] sm:$0x1]
        %v803 = vld [vmem:[%s3] sm:$0x1]
        %vm804 = vcmask 261120
        %v805 = vsel %vm804, %v801, 0.0
        %806 = vadd.xlane.f32.xlu0 %v805
        %v807 = vpop.xlane.xlu0 %806
        %v808 = vrcp.pop 32.0
        %v809 = vmul.f32 %v807, %v808
        %v810 = vsub.f32 %v801, %v809
        %v811 = vmul.f32 %v810, %v810
        %v812 = vsel %vm804, %v811, 0.0
        %813 = vadd.xlane.f32.xlu0 %v812
        %v814 = vpop.xlane.xlu0 %813
        %v815 = vmul.f32 %v814, %v808
        %v816 = vadd.f32 %v815, 1e-12
        %v817 = vrsqrt.pop %v816
        %v818 = vmul.f32 %v810, %v817
        %v820 = vlaneseq
        %v821 = vshrl.u32 %v820, 7
        %v822 = vsub.s32 0, %v821
        %v823 = vrot.slane %v802, %v822
        %v825 = vmul.f32 %v818, %v823
        %v827 = vlaneseq
        %v828 = vshrl.u32 %v827, 7
        %v829 = vsub.s32 0, %v828
        %v830 = vrot.slane %v803, %v829
        %v832 = vadd.f32 %v825, %v830
        %v833 = vld [vmem:[%s799] sm:$0x1]
        %v835 = vlaneseq
        %v836 = vshrl.u32 %v835, 7
        %v837 = vsub.s32 0, %v836
        %v838 = vrot.slane %v833, %v837
        %v840 = vpack.c.bf16 %v832, %v832
        %v841 = vld [vmem:[%s4] sm:$0xf]
        %v842 = vld [vmem:[%s4 + $0x4] sm:$0xf]
        %v843 = vld [vmem:[%s4 + $0x8] sm:$0xf]
        %v844 = vld [vmem:[%s4 + $0xc] sm:$0xf]
        %v845 = vld [vmem:[%s5] sm:$0x1]
        %v847 = vlaneseq
        %v848 = vshrl.u32 %v847, 7
        %v849 = vsub.s32 0, %v848
        %v850 = vrot.slane %v845, %v849
        %v856 = vunpack.c.l.b16 %v841
        %v857 = vunpack.c.l.b16 %v842
        %v858 = vunpack.c.l.b16 %v843
        %v859 = vunpack.c.l.b16 %v844
        %v860 = vpack.c.b16 %v857, %v856
        %v861 = vpack.c.b16 %v859, %v858
        %v865 = vsel %vm804, %v840, 0
        %867 = vmatprep.subr.bf16.mxu0 0
        %868 = vmatpush1.bf16.msra.mxu0 %v860
        %869 = vmatprep.subr.bf16.mxu0 0
        %870 = vmatpush1.bf16.msra.mxu0 %v861
        %871 = vmatprep.subr.bf16.mxu0 0
        %872 = vmatpush1.bf16.msra.mxu0 0
        %873 = vmatprep.subr.bf16.mxu0 0
        %874 = vmatpush1.bf16.msra.mxu0 0
        %875 = vmatprep.subr.bf16.mxu0 0
        %876 = vmatpush1.bf16.msra.mxu0 0
        %877 = vmatprep.subr.bf16.mxu0 0
        %878 = vmatpush1.bf16.msra.mxu0 0
        %879 = vmatprep.subr.bf16.mxu0 0
        %880 = vmatpush1.bf16.msra.mxu0 0
        %881 = vmatprep.subr.bf16.mxu0 0
        %882 = vmatpush1.bf16.msra.mxu0 0
        %883 = vmatprep.subr.bf16.mxu0 0
        %884 = vmatpush1.bf16.msra.mxu0 0
        %885 = vmatprep.subr.bf16.mxu0 0
        %886 = vmatpush1.bf16.msra.mxu0 0
        %887 = vmatprep.subr.bf16.mxu0 0
        %888 = vmatpush1.bf16.msra.mxu0 0
        %889 = vmatprep.subr.bf16.mxu0 0
        %890 = vmatpush1.bf16.msra.mxu0 0
        %891 = vmatprep.subr.bf16.mxu0 0
        %892 = vmatpush1.bf16.msra.mxu0 0
        %893 = vmatprep.subr.bf16.mxu0 0
        %894 = vmatpush1.bf16.msra.mxu0 0
        %895 = vmatprep.subr.bf16.mxu0 0
        %896 = vmatpush1.bf16.msra.mxu0 0
        %897 = vmatprep.subr.bf16.mxu0 0
        %898 = vmatpush1.bf16.msra.mxu0 0
        %899 = vmatprep.mubr.bf16.mxu0 0
        %900 = vmatmul.mubr.bf16.gmra.mrb[0].mxu0 %v865
        %v901 = vpop.f32.mrb[0].mxu0
        %v902 = vadd.f32 %v850, %v901
        %v903 = vpop.f32.mrb[0].mxu0
        %v904 = vpop.f32.mrb[0].mxu0
        %v905 = vpop.f32.mrb[0].mxu0
        %906 = vdwg.mxu0
        %908 = vrot.lane.b32.xlu0 %v902, 120
        %v909 = vpop.permute.xlu0 %908
        %911 = vrot.lane.b32.xlu0 %v902, 112
        %v912 = vpop.permute.xlu0 %911
        %914 = vrot.lane.b32.xlu0 %v902, 104
        %v915 = vpop.permute.xlu0 %914
        %v917 = vpack.c.bf16 %v902, %v902
        %v918 = vpack.c.bf16 %v909, %v909
        %v919 = vpack.c.bf16 %v912, %v912
        %v920 = vpack.c.bf16 %v915, %v915
        %922 = vrot.lane.b32.xlu0 %v917, 96
        %v923 = vpop.permute.xlu0 %922
        %vm924 = vcmask 64512
        %v926 = vsel %vm924, %v917, 0
        %v929 = vsel %vm924, %v923, 0
        %931 = vmatprep.subr.bf16.mxu0 0
        %932 = vmatpush1.bf16.xpose.msra.mxu0 %v929
        %933 = vmatprep.subr.bf16.mxu0 0
        %934 = vmatpush1.bf16.xpose.msra.mxu0 0
        %935 = vmatprep.subr.bf16.mxu0 0
        %936 = vmatpush1.bf16.xpose.msra.mxu0 0
        %937 = vmatprep.subr.bf16.mxu0 0
        %938 = vmatpush1.bf16.xpose.msra.mxu0 0
        %939 = vmatprep.subr.bf16.mxu0 0
        %940 = vmatpush1.bf16.xpose.msra.mxu0 0
        %941 = vmatprep.subr.bf16.mxu0 0
        %942 = vmatpush1.bf16.xpose.msra.mxu0 0
        %943 = vmatprep.subr.bf16.mxu0 0
        %944 = vmatpush1.bf16.xpose.msra.mxu0 0
        %945 = vmatprep.subr.bf16.mxu0 0
        %946 = vmatpush1.bf16.xpose.msra.mxu0 0
        %947 = vmatprep.subr.bf16.mxu0 0
        %948 = vmatpush1.bf16.xpose.msra.mxu0 0
        %949 = vmatprep.subr.bf16.mxu0 0
        %950 = vmatpush1.bf16.xpose.msra.mxu0 0
        %951 = vmatprep.subr.bf16.mxu0 0
        %952 = vmatpush1.bf16.xpose.msra.mxu0 0
        %953 = vmatprep.subr.bf16.mxu0 0
        %954 = vmatpush1.bf16.xpose.msra.mxu0 0
        %955 = vmatprep.subr.bf16.mxu0 0
        %956 = vmatpush1.bf16.xpose.msra.mxu0 0
        %957 = vmatprep.subr.bf16.mxu0 0
        %958 = vmatpush1.bf16.xpose.msra.mxu0 0
        %959 = vmatprep.subr.bf16.mxu0 0
        %960 = vmatpush1.bf16.xpose.msra.mxu0 0
        %961 = vmatprep.subr.bf16.mxu0 0
        %962 = vmatpush1.bf16.xpose.msra.mxu0 0
        %963 = vmatprep.mubr.bf16.mxu0 0
        %964 = vmatmul.mubr.bf16.gmra.mrb[0].mxu0 %v926
        %v965 = vpop.f32.mrb[0].mxu0
        %v966 = vadd.f32 0.0, %v965
        %v967 = vpop.f32.mrb[0].mxu0
        %v968 = vpop.f32.mrb[0].mxu0
        %v969 = vpop.f32.mrb[0].mxu0
        %970 = vdwg.mxu0
        %972 = vrot.lane.b32.xlu0 %v918, 96
        %v973 = vpop.permute.xlu0 %972
        %v975 = vsel %vm924, %v918, 0
        %v978 = vsel %vm924, %v973, 0
        %980 = vmatprep.subr.bf16.mxu0 0
        %981 = vmatpush1.bf16.xpose.msra.mxu0 %v978
        %982 = vmatprep.subr.bf16.mxu0 0
        %983 = vmatpush1.bf16.xpose.msra.mxu0 0
        %984 = vmatprep.subr.bf16.mxu0 0
        %985 = vmatpush1.bf16.xpose.msra.mxu0 0
        %986 = vmatprep.subr.bf16.mxu0 0
        %987 = vmatpush1.bf16.xpose.msra.mxu0 0
        %988 = vmatprep.subr.bf16.mxu0 0
        %989 = vmatpush1.bf16.xpose.msra.mxu0 0
        %990 = vmatprep.subr.bf16.mxu0 0
        %991 = vmatpush1.bf16.xpose.msra.mxu0 0
        %992 = vmatprep.subr.bf16.mxu0 0
        %993 = vmatpush1.bf16.xpose.msra.mxu0 0
        %994 = vmatprep.subr.bf16.mxu0 0
        %995 = vmatpush1.bf16.xpose.msra.mxu0 0
        %996 = vmatprep.subr.bf16.mxu0 0
        %997 = vmatpush1.bf16.xpose.msra.mxu0 0
        %998 = vmatprep.subr.bf16.mxu0 0
        %999 = vmatpush1.bf16.xpose.msra.mxu0 0
        %1000 = vmatprep.subr.bf16.mxu0 0
        %1001 = vmatpush1.bf16.xpose.msra.mxu0 0
        %1002 = vmatprep.subr.bf16.mxu0 0
        %1003 = vmatpush1.bf16.xpose.msra.mxu0 0
        %1004 = vmatprep.subr.bf16.mxu0 0
        %1005 = vmatpush1.bf16.xpose.msra.mxu0 0
        %1006 = vmatprep.subr.bf16.mxu0 0
        %1007 = vmatpush1.bf16.xpose.msra.mxu0 0
        %1008 = vmatprep.subr.bf16.mxu0 0
        %1009 = vmatpush1.bf16.xpose.msra.mxu0 0
        %1010 = vmatprep.subr.bf16.mxu0 0
        %1011 = vmatpush1.bf16.xpose.msra.mxu0 0
        %1012 = vmatprep.mubr.bf16.mxu0 0
        %1013 = vmatmul.mubr.bf16.gmra.mrb[0].mxu0 %v975
        %v1014 = vpop.f32.mrb[0].mxu0
        %v1015 = vadd.f32 0.0, %v1014
        %v1016 = vpop.f32.mrb[0].mxu0
        %v1017 = vpop.f32.mrb[0].mxu0
        %v1018 = vpop.f32.mrb[0].mxu0
        %1019 = vdwg.mxu0
        %1021 = vrot.lane.b32.xlu0 %v919, 96
        %v1022 = vpop.permute.xlu0 %1021
        %v1024 = vsel %vm924, %v919, 0
        %v1027 = vsel %vm924, %v1022, 0
        %1029 = vmatprep.subr.bf16.mxu0 0
        %1030 = vmatpush1.bf16.xpose.msra.mxu0 %v1027
        %1031 = vmatprep.subr.bf16.mxu0 0
        %1032 = vmatpush1.bf16.xpose.msra.mxu0 0
        %1033 = vmatprep.subr.bf16.mxu0 0
        %1034 = vmatpush1.bf16.xpose.msra.mxu0 0
        %1035 = vmatprep.subr.bf16.mxu0 0
        %1036 = vmatpush1.bf16.xpose.msra.mxu0 0
        %1037 = vmatprep.subr.bf16.mxu0 0
        %1038 = vmatpush1.bf16.xpose.msra.mxu0 0
        %1039 = vmatprep.subr.bf16.mxu0 0
        %1040 = vmatpush1.bf16.xpose.msra.mxu0 0
        %1041 = vmatprep.subr.bf16.mxu0 0
        %1042 = vmatpush1.bf16.xpose.msra.mxu0 0
        %1043 = vmatprep.subr.bf16.mxu0 0
        %1044 = vmatpush1.bf16.xpose.msra.mxu0 0
        %1045 = vmatprep.subr.bf16.mxu0 0
        %1046 = vmatpush1.bf16.xpose.msra.mxu0 0
        %1047 = vmatprep.subr.bf16.mxu0 0
        %1048 = vmatpush1.bf16.xpose.msra.mxu0 0
        %1049 = vmatprep.subr.bf16.mxu0 0
        %1050 = vmatpush1.bf16.xpose.msra.mxu0 0
        %1051 = vmatprep.subr.bf16.mxu0 0
        %1052 = vmatpush1.bf16.xpose.msra.mxu0 0
        %1053 = vmatprep.subr.bf16.mxu0 0
        %1054 = vmatpush1.bf16.xpose.msra.mxu0 0
        %1055 = vmatprep.subr.bf16.mxu0 0
        %1056 = vmatpush1.bf16.xpose.msra.mxu0 0
        %1057 = vmatprep.subr.bf16.mxu0 0
        %1058 = vmatpush1.bf16.xpose.msra.mxu0 0
        %1059 = vmatprep.subr.bf16.mxu0 0
        %1060 = vmatpush1.bf16.xpose.msra.mxu0 0
        %1061 = vmatprep.mubr.bf16.mxu0 0
        %1062 = vmatmul.mubr.bf16.gmra.mrb[0].mxu0 %v1024
        %v1063 = vpop.f32.mrb[0].mxu0
        %v1064 = vadd.f32 0.0, %v1063
        %v1065 = vpop.f32.mrb[0].mxu0
        %v1066 = vpop.f32.mrb[0].mxu0
        %v1067 = vpop.f32.mrb[0].mxu0
        %1068 = vdwg.mxu0
        %1070 = vrot.lane.b32.xlu0 %v920, 96
        %v1071 = vpop.permute.xlu0 %1070
        %v1073 = vsel %vm924, %v920, 0
        %v1076 = vsel %vm924, %v1071, 0
        %1078 = vmatprep.subr.bf16.mxu0 0
        %1079 = vmatpush1.bf16.xpose.msra.mxu0 %v1076
        %1080 = vmatprep.subr.bf16.mxu0 0
        %1081 = vmatpush1.bf16.xpose.msra.mxu0 0
        %1082 = vmatprep.subr.bf16.mxu0 0
        %1083 = vmatpush1.bf16.xpose.msra.mxu0 0
        %1084 = vmatprep.subr.bf16.mxu0 0
        %1085 = vmatpush1.bf16.xpose.msra.mxu0 0
        %1086 = vmatprep.subr.bf16.mxu0 0
        %1087 = vmatpush1.bf16.xpose.msra.mxu0 0
        %1088 = vmatprep.subr.bf16.mxu0 0
        %1089 = vmatpush1.bf16.xpose.msra.mxu0 0
        %1090 = vmatprep.subr.bf16.mxu0 0
        %1091 = vmatpush1.bf16.xpose.msra.mxu0 0
        %1092 = vmatprep.subr.bf16.mxu0 0
        %1093 = vmatpush1.bf16.xpose.msra.mxu0 0
        %1094 = vmatprep.subr.bf16.mxu0 0
        %1095 = vmatpush1.bf16.xpose.msra.mxu0 0
        %1096 = vmatprep.subr.bf16.mxu0 0
        %1097 = vmatpush1.bf16.xpose.msra.mxu0 0
        %1098 = vmatprep.subr.bf16.mxu0 0
        %1099 = vmatpush1.bf16.xpose.msra.mxu0 0
        %1100 = vmatprep.subr.bf16.mxu0 0
        %1101 = vmatpush1.bf16.xpose.msra.mxu0 0
        %1102 = vmatprep.subr.bf16.mxu0 0
        %1103 = vmatpush1.bf16.xpose.msra.mxu0 0
        %1104 = vmatprep.subr.bf16.mxu0 0
        %1105 = vmatpush1.bf16.xpose.msra.mxu0 0
        %1106 = vmatprep.subr.bf16.mxu0 0
        %1107 = vmatpush1.bf16.xpose.msra.mxu0 0
        %1108 = vmatprep.subr.bf16.mxu0 0
        %1109 = vmatpush1.bf16.xpose.msra.mxu0 0
        %1110 = vmatprep.mubr.bf16.mxu0 0
        %1111 = vmatmul.mubr.bf16.gmra.mrb[0].mxu0 %v1073
        %v1112 = vpop.f32.mrb[0].mxu0
        %v1113 = vadd.f32 0.0, %v1112
        %v1114 = vpop.f32.mrb[0].mxu0
        %v1115 = vpop.f32.mrb[0].mxu0
        %v1116 = vpop.f32.mrb[0].mxu0
        %1117 = vdwg.mxu0
        %v1118 = vmul.f32 %v966, 0.35355338
        %v1119 = vmul.f32 %v1015, 0.35355338
        %v1120 = vmul.f32 %v1064, 0.35355338
        %v1121 = vmul.f32 %v1113, 0.35355338
        %v1122 = vadd.f32 %v1118, %v838
        %v1123 = vadd.f32 %v1119, %v838
        %v1124 = vadd.f32 %v1120, %v838
        %v1125 = vadd.f32 %v1121, %v838
        %v1126 = vsel %vm924, %v1122, -inf
        %1127 = vmax.xlane.f32.xlu0 %v1126
        %v1128 = vpop.xlane.xlu0 %1127
        %v1129 = vsel %vm924, %v1123, -inf
        %1130 = vmax.xlane.f32.xlu0 %v1129
        %v1131 = vpop.xlane.xlu0 %1130
        %v1132 = vsel %vm924, %v1124, -inf
        %1133 = vmax.xlane.f32.xlu0 %v1132
        %v1134 = vpop.xlane.xlu0 %1133
        %v1135 = vsel %vm924, %v1125, -inf
        %1136 = vmax.xlane.f32.xlu0 %v1135
        %v1137 = vpop.xlane.xlu0 %1136
        %v1138 = vsub.f32 %v1122, %v1128
        %v1139 = vsub.f32 %v1123, %v1131
        %v1140 = vsub.f32 %v1124, %v1134
        %v1141 = vsub.f32 %v1125, %v1137
        %v1142 = vmul.f32 %v1138, 1.442695
        %v1143 = vpow.pop %v1142
        %v1144 = vmul.f32 %v1139, 1.442695
        %v1145 = vpow.pop %v1144
        %v1146 = vmul.f32 %v1140, 1.442695
        %v1147 = vpow.pop %v1146
        %v1148 = vmul.f32 %v1141, 1.442695
        %v1149 = vpow.pop %v1148
        %v1150 = vsel %vm924, %v1143, 0.0
        %1151 = vadd.xlane.f32.xlu0 %v1150
        %v1152 = vpop.xlane.xlu0 %1151
        %v1153 = vsel %vm924, %v1145, 0.0
        %1154 = vadd.xlane.f32.xlu0 %v1153
        %v1155 = vpop.xlane.xlu0 %1154
        %v1156 = vsel %vm924, %v1147, 0.0
        %1157 = vadd.xlane.f32.xlu0 %v1156
        %v1158 = vpop.xlane.xlu0 %1157
        %v1159 = vsel %vm924, %v1149, 0.0
        %1160 = vadd.xlane.f32.xlu0 %v1159
        %v1161 = vpop.xlane.xlu0 %1160
        %v1162 = vrcp.pop %v1152
        %v1163 = vrcp.pop %v1155
        %v1164 = vrcp.pop %v1158
        %v1165 = vrcp.pop %v1161
        %v1166 = vmul.f32 %v1143, %v1162
        %v1167 = vmul.f32 %v1145, %v1163
        %v1168 = vmul.f32 %v1147, %v1164
        %v1169 = vmul.f32 %v1149, %v1165
        %v1170 = vpack.c.bf16 %v1166, %v1166
        %v1171 = vpack.c.bf16 %v1167, %v1167
        %v1172 = vpack.c.bf16 %v1168, %v1168
        %v1173 = vpack.c.bf16 %v1169, %v1169
        %1174 = vrot.lane.b32.xlu0 %v917, 64
        %v1175 = vpop.permute.xlu0 %1174
        %v1177 = vsel %vm924, %v1170, 0
        %vm1179 = vcmask 1043456
        %v1181 = vsel %vm1179, %v1175, 0
        %1183 = vmatprep.subr.bf16.mxu0 0
        %1184 = vmatpush1.bf16.msra.mxu0 %v1181
        %1185 = vmatprep.subr.bf16.mxu0 0
        %1186 = vmatpush1.bf16.msra.mxu0 0
        %1187 = vmatprep.subr.bf16.mxu0 0
        %1188 = vmatpush1.bf16.msra.mxu0 0
        %1189 = vmatprep.subr.bf16.mxu0 0
        %1190 = vmatpush1.bf16.msra.mxu0 0
        %1191 = vmatprep.subr.bf16.mxu0 0
        %1192 = vmatpush1.bf16.msra.mxu0 0
        %1193 = vmatprep.subr.bf16.mxu0 0
        %1194 = vmatpush1.bf16.msra.mxu0 0
        %1195 = vmatprep.subr.bf16.mxu0 0
        %1196 = vmatpush1.bf16.msra.mxu0 0
        %1197 = vmatprep.subr.bf16.mxu0 0
        %1198 = vmatpush1.bf16.msra.mxu0 0
        %1199 = vmatprep.subr.bf16.mxu0 0
        %1200 = vmatpush1.bf16.msra.mxu0 0
        %1201 = vmatprep.subr.bf16.mxu0 0
        %1202 = vmatpush1.bf16.msra.mxu0 0
        %1203 = vmatprep.subr.bf16.mxu0 0
        %1204 = vmatpush1.bf16.msra.mxu0 0
        %1205 = vmatprep.subr.bf16.mxu0 0
        %1206 = vmatpush1.bf16.msra.mxu0 0
        %1207 = vmatprep.subr.bf16.mxu0 0
        %1208 = vmatpush1.bf16.msra.mxu0 0
        %1209 = vmatprep.subr.bf16.mxu0 0
        %1210 = vmatpush1.bf16.msra.mxu0 0
        %1211 = vmatprep.subr.bf16.mxu0 0
        %1212 = vmatpush1.bf16.msra.mxu0 0
        %1213 = vmatprep.subr.bf16.mxu0 0
        %1214 = vmatpush1.bf16.msra.mxu0 0
        %1215 = vmatprep.mubr.bf16.mxu0 0
        %1216 = vmatmul.mubr.bf16.gmra.mrb[0].mxu0 %v1177
        %v1217 = vpop.f32.mrb[0].mxu0
        %v1218 = vadd.f32 0.0, %v1217
        %v1219 = vpop.f32.mrb[0].mxu0
        %v1220 = vpop.f32.mrb[0].mxu0
        %v1221 = vpop.f32.mrb[0].mxu0
        %1222 = vdwg.mxu0
        %1223 = vrot.lane.b32.xlu0 %v918, 64
        %v1224 = vpop.permute.xlu0 %1223
        %v1226 = vsel %vm924, %v1171, 0
        %v1229 = vsel %vm1179, %v1224, 0
        %1231 = vmatprep.subr.bf16.mxu0 0
        %1232 = vmatpush1.bf16.msra.mxu0 %v1229
        %1233 = vmatprep.subr.bf16.mxu0 0
        %1234 = vmatpush1.bf16.msra.mxu0 0
        %1235 = vmatprep.subr.bf16.mxu0 0
        %1236 = vmatpush1.bf16.msra.mxu0 0
        %1237 = vmatprep.subr.bf16.mxu0 0
        %1238 = vmatpush1.bf16.msra.mxu0 0
        %1239 = vmatprep.subr.bf16.mxu0 0
        %1240 = vmatpush1.bf16.msra.mxu0 0
        %1241 = vmatprep.subr.bf16.mxu0 0
        %1242 = vmatpush1.bf16.msra.mxu0 0
        %1243 = vmatprep.subr.bf16.mxu0 0
        %1244 = vmatpush1.bf16.msra.mxu0 0
        %1245 = vmatprep.subr.bf16.mxu0 0
        %1246 = vmatpush1.bf16.msra.mxu0 0
        %1247 = vmatprep.subr.bf16.mxu0 0
        %1248 = vmatpush1.bf16.msra.mxu0 0
        %1249 = vmatprep.subr.bf16.mxu0 0
        %1250 = vmatpush1.bf16.msra.mxu0 0
        %1251 = vmatprep.subr.bf16.mxu0 0
        %1252 = vmatpush1.bf16.msra.mxu0 0
        %1253 = vmatprep.subr.bf16.mxu0 0
        %1254 = vmatpush1.bf16.msra.mxu0 0
        %1255 = vmatprep.subr.bf16.mxu0 0
        %1256 = vmatpush1.bf16.msra.mxu0 0
        %1257 = vmatprep.subr.bf16.mxu0 0
        %1258 = vmatpush1.bf16.msra.mxu0 0
        %1259 = vmatprep.subr.bf16.mxu0 0
        %1260 = vmatpush1.bf16.msra.mxu0 0
        %1261 = vmatprep.subr.bf16.mxu0 0
        %1262 = vmatpush1.bf16.msra.mxu0 0
        %1263 = vmatprep.mubr.bf16.mxu0 0
        %1264 = vmatmul.mubr.bf16.gmra.mrb[0].mxu0 %v1226
        %v1265 = vpop.f32.mrb[0].mxu0
        %v1266 = vadd.f32 0.0, %v1265
        %v1267 = vpop.f32.mrb[0].mxu0
        %v1268 = vpop.f32.mrb[0].mxu0
        %v1269 = vpop.f32.mrb[0].mxu0
        %1270 = vdwg.mxu0
        %1271 = vrot.lane.b32.xlu0 %v919, 64
        %v1272 = vpop.permute.xlu0 %1271
        %v1274 = vsel %vm924, %v1172, 0
        %v1277 = vsel %vm1179, %v1272, 0
        %1279 = vmatprep.subr.bf16.mxu0 0
        %1280 = vmatpush1.bf16.msra.mxu0 %v1277
        %1281 = vmatprep.subr.bf16.mxu0 0
        %1282 = vmatpush1.bf16.msra.mxu0 0
        %1283 = vmatprep.subr.bf16.mxu0 0
        %1284 = vmatpush1.bf16.msra.mxu0 0
        %1285 = vmatprep.subr.bf16.mxu0 0
        %1286 = vmatpush1.bf16.msra.mxu0 0
        %1287 = vmatprep.subr.bf16.mxu0 0
        %1288 = vmatpush1.bf16.msra.mxu0 0
        %1289 = vmatprep.subr.bf16.mxu0 0
        %1290 = vmatpush1.bf16.msra.mxu0 0
        %1291 = vmatprep.subr.bf16.mxu0 0
        %1292 = vmatpush1.bf16.msra.mxu0 0
        %1293 = vmatprep.subr.bf16.mxu0 0
        %1294 = vmatpush1.bf16.msra.mxu0 0
        %1295 = vmatprep.subr.bf16.mxu0 0
        %1296 = vmatpush1.bf16.msra.mxu0 0
        %1297 = vmatprep.subr.bf16.mxu0 0
        %1298 = vmatpush1.bf16.msra.mxu0 0
        %1299 = vmatprep.subr.bf16.mxu0 0
        %1300 = vmatpush1.bf16.msra.mxu0 0
        %1301 = vmatprep.subr.bf16.mxu0 0
        %1302 = vmatpush1.bf16.msra.mxu0 0
        %1303 = vmatprep.subr.bf16.mxu0 0
        %1304 = vmatpush1.bf16.msra.mxu0 0
        %1305 = vmatprep.subr.bf16.mxu0 0
        %1306 = vmatpush1.bf16.msra.mxu0 0
        %1307 = vmatprep.subr.bf16.mxu0 0
        %1308 = vmatpush1.bf16.msra.mxu0 0
        %1309 = vmatprep.subr.bf16.mxu0 0
        %1310 = vmatpush1.bf16.msra.mxu0 0
        %1311 = vmatprep.mubr.bf16.mxu0 0
        %1312 = vmatmul.mubr.bf16.gmra.mrb[0].mxu0 %v1274
        %v1313 = vpop.f32.mrb[0].mxu0
        %v1314 = vadd.f32 0.0, %v1313
        %v1315 = vpop.f32.mrb[0].mxu0
        %v1316 = vpop.f32.mrb[0].mxu0
        %v1317 = vpop.f32.mrb[0].mxu0
        %1318 = vdwg.mxu0
        %1319 = vrot.lane.b32.xlu0 %v920, 64
        %v1320 = vpop.permute.xlu0 %1319
        %v1322 = vsel %vm924, %v1173, 0
        %v1325 = vsel %vm1179, %v1320, 0
        %1327 = vmatprep.subr.bf16.mxu0 0
        %1328 = vmatpush1.bf16.msra.mxu0 %v1325
        %1329 = vmatprep.subr.bf16.mxu0 0
        %1330 = vmatpush1.bf16.msra.mxu0 0
        %1331 = vmatprep.subr.bf16.mxu0 0
        %1332 = vmatpush1.bf16.msra.mxu0 0
        %1333 = vmatprep.subr.bf16.mxu0 0
        %1334 = vmatpush1.bf16.msra.mxu0 0
        %1335 = vmatprep.subr.bf16.mxu0 0
        %1336 = vmatpush1.bf16.msra.mxu0 0
        %1337 = vmatprep.subr.bf16.mxu0 0
        %1338 = vmatpush1.bf16.msra.mxu0 0
        %1339 = vmatprep.subr.bf16.mxu0 0
        %1340 = vmatpush1.bf16.msra.mxu0 0
        %1341 = vmatprep.subr.bf16.mxu0 0
        %1342 = vmatpush1.bf16.msra.mxu0 0
        %1343 = vmatprep.subr.bf16.mxu0 0
        %1344 = vmatpush1.bf16.msra.mxu0 0
        %1345 = vmatprep.subr.bf16.mxu0 0
        %1346 = vmatpush1.bf16.msra.mxu0 0
        %1347 = vmatprep.subr.bf16.mxu0 0
        %1348 = vmatpush1.bf16.msra.mxu0 0
        %1349 = vmatprep.subr.bf16.mxu0 0
        %1350 = vmatpush1.bf16.msra.mxu0 0
        %1351 = vmatprep.subr.bf16.mxu0 0
        %1352 = vmatpush1.bf16.msra.mxu0 0
        %1353 = vmatprep.subr.bf16.mxu0 0
        %1354 = vmatpush1.bf16.msra.mxu0 0
        %1355 = vmatprep.subr.bf16.mxu0 0
        %1356 = vmatpush1.bf16.msra.mxu0 0
        %1357 = vmatprep.subr.bf16.mxu0 0
        %1358 = vmatpush1.bf16.msra.mxu0 0
        %1359 = vmatprep.mubr.bf16.mxu0 0
        %1360 = vmatmul.mubr.bf16.gmra.mrb[0].mxu0 %v1322
        %v1361 = vpop.f32.mrb[0].mxu0
        %v1362 = vadd.f32 0.0, %v1361
        %v1363 = vpop.f32.mrb[0].mxu0
        %v1364 = vpop.f32.mrb[0].mxu0
        %v1365 = vpop.f32.mrb[0].mxu0
        %1366 = vdwg.mxu0
        %1368 = vrot.lane.b32.xlu0 %v1266, 8
        %v1369 = vpop.permute.xlu0 %1368
        %1372 = vrot.lane.b32.xlu0 %v1314, 16
        %v1373 = vpop.permute.xlu0 %1372
        %1376 = vrot.lane.b32.xlu0 %v1362, 24
        %v1377 = vpop.permute.xlu0 %1376
        %v1379 = vsel %vm924, %v1218, %v1369
        %vm1380 = vcmask 130048
        %v1381 = vsel %vm1380, %v1379, %v1373
        %vm1382 = vcmask 195584
        %v1383 = vsel %vm1382, %v1381, %v1377
        %v1384 = vpack.c.bf16 %v1383, %v1383
        %v1385 = vld [vmem:[%s6] sm:$0xf]
        %v1386 = vld [vmem:[%s6 + $0x4] sm:$0xf]
        %v1387 = vld [vmem:[%s6 + $0x8] sm:$0xf]
        %v1388 = vld [vmem:[%s6 + $0xc] sm:$0xf]
        %v1389 = vld [vmem:[%s7] sm:$0x1]
        %v1391 = vlaneseq
        %v1392 = vshrl.u32 %v1391, 7
        %v1393 = vsub.s32 0, %v1392
        %v1394 = vrot.slane %v1389, %v1393
        %v1400 = vunpack.c.l.b16 %v1385
        %v1401 = vunpack.c.l.b16 %v1386
        %v1402 = vunpack.c.l.b16 %v1387
        %v1403 = vunpack.c.l.b16 %v1388
        %v1404 = vpack.c.b16 %v1401, %v1400
        %v1405 = vpack.c.b16 %v1403, %v1402
        %v1409 = vsel %vm804, %v1384, 0
        %1411 = vmatprep.subr.bf16.mxu0 0
        %1412 = vmatpush1.bf16.msra.mxu0 %v1404
        %1413 = vmatprep.subr.bf16.mxu0 0
        %1414 = vmatpush1.bf16.msra.mxu0 %v1405
        %1415 = vmatprep.subr.bf16.mxu0 0
        %1416 = vmatpush1.bf16.msra.mxu0 0
        %1417 = vmatprep.subr.bf16.mxu0 0
        %1418 = vmatpush1.bf16.msra.mxu0 0
        %1419 = vmatprep.subr.bf16.mxu0 0
        %1420 = vmatpush1.bf16.msra.mxu0 0
        %1421 = vmatprep.subr.bf16.mxu0 0
        %1422 = vmatpush1.bf16.msra.mxu0 0
        %1423 = vmatprep.subr.bf16.mxu0 0
        %1424 = vmatpush1.bf16.msra.mxu0 0
        %1425 = vmatprep.subr.bf16.mxu0 0
        %1426 = vmatpush1.bf16.msra.mxu0 0
        %1427 = vmatprep.subr.bf16.mxu0 0
        %1428 = vmatpush1.bf16.msra.mxu0 0
        %1429 = vmatprep.subr.bf16.mxu0 0
        %1430 = vmatpush1.bf16.msra.mxu0 0
        %1431 = vmatprep.subr.bf16.mxu0 0
        %1432 = vmatpush1.bf16.msra.mxu0 0
        %1433 = vmatprep.subr.bf16.mxu0 0
        %1434 = vmatpush1.bf16.msra.mxu0 0
        %1435 = vmatprep.subr.bf16.mxu0 0
        %1436 = vmatpush1.bf16.msra.mxu0 0
        %1437 = vmatprep.subr.bf16.mxu0 0
        %1438 = vmatpush1.bf16.msra.mxu0 0
        %1439 = vmatprep.subr.bf16.mxu0 0
        %1440 = vmatpush1.bf16.msra.mxu0 0
        %1441 = vmatprep.subr.bf16.mxu0 0
        %1442 = vmatpush1.bf16.msra.mxu0 0
        %1443 = vmatprep.mubr.bf16.mxu0 0
        %1444 = vmatmul.mubr.bf16.gmra.mrb[0].mxu0 %v1409
        %v1445 = vpop.f32.mrb[0].mxu0
        %v1446 = vadd.f32 %v1394, %v1445
        %v1447 = vpop.f32.mrb[0].mxu0
        %v1448 = vpop.f32.mrb[0].mxu0
        %v1449 = vpop.f32.mrb[0].mxu0
        %1450 = vdwg.mxu0
        %v1451 = vadd.f32 %v832, %v1446
        %v1452 = vld [vmem:[%s8] sm:$0x1]
        %v1453 = vld [vmem:[%s9] sm:$0x1]
        %v1454 = vsel %vm804, %v1451, 0.0
        %1455 = vadd.xlane.f32.xlu0 %v1454
        %v1456 = vpop.xlane.xlu0 %1455
        %v1457 = vmul.f32 %v1456, %v808
        %v1458 = vsub.f32 %v1451, %v1457
        %v1459 = vmul.f32 %v1458, %v1458
        %v1460 = vsel %vm804, %v1459, 0.0
        %1461 = vadd.xlane.f32.xlu0 %v1460
        %v1462 = vpop.xlane.xlu0 %1461
        %v1463 = vmul.f32 %v1462, %v808
        %v1464 = vadd.f32 %v1463, 1e-12
        %v1465 = vrsqrt.pop %v1464
        %v1466 = vmul.f32 %v1458, %v1465
        %v1468 = vlaneseq
        %v1469 = vshrl.u32 %v1468, 7
        %v1470 = vsub.s32 0, %v1469
        %v1471 = vrot.slane %v1452, %v1470
        %v1473 = vmul.f32 %v1466, %v1471
        %v1475 = vlaneseq
        %v1476 = vshrl.u32 %v1475, 7
        %v1477 = vsub.s32 0, %v1476
        %v1478 = vrot.slane %v1453, %v1477
        %v1480 = vadd.f32 %v1473, %v1478
        %v1481 = vpack.c.bf16 %v1480, %v1480
        %v1482 = vld [vmem:[%s10] sm:$0xf]
        %v1483 = vld [vmem:[%s10 + $0x4] sm:$0xf]
        %v1484 = vld [vmem:[%s10 + $0x8] sm:$0xf]
        %v1485 = vld [vmem:[%s10 + $0xc] sm:$0xf]
        %v1486 = vld [vmem:[%s11] sm:$0x1]
        %v1488 = vlaneseq
        %v1489 = vshrl.u32 %v1488, 7
        %v1490 = vsub.s32 0, %v1489
        %v1491 = vrot.slane %v1486, %v1490
        %v1497 = vunpack.c.l.b16 %v1482
        %v1498 = vunpack.c.l.b16 %v1483
        %v1499 = vunpack.c.l.b16 %v1484
        %v1500 = vunpack.c.l.b16 %v1485
        %v1501 = vpack.c.b16 %v1498, %v1497
        %v1502 = vpack.c.b16 %v1500, %v1499
        %v1506 = vsel %vm804, %v1481, 0
        %1508 = vmatprep.subr.bf16.mxu0 0
        %1509 = vmatpush1.bf16.msra.mxu0 %v1501
        %1510 = vmatprep.subr.bf16.mxu0 0
        %1511 = vmatpush1.bf16.msra.mxu0 %v1502
        %1512 = vmatprep.subr.bf16.mxu0 0
        %1513 = vmatpush1.bf16.msra.mxu0 0
        %1514 = vmatprep.subr.bf16.mxu0 0
        %1515 = vmatpush1.bf16.msra.mxu0 0
        %1516 = vmatprep.subr.bf16.mxu0 0
        %1517 = vmatpush1.bf16.msra.mxu0 0
        %1518 = vmatprep.subr.bf16.mxu0 0
        %1519 = vmatpush1.bf16.msra.mxu0 0
        %1520 = vmatprep.subr.bf16.mxu0 0
        %1521 = vmatpush1.bf16.msra.mxu0 0
        %1522 = vmatprep.subr.bf16.mxu0 0
        %1523 = vmatpush1.bf16.msra.mxu0 0
        %1524 = vmatprep.subr.bf16.mxu0 0
        %1525 = vmatpush1.bf16.msra.mxu0 0
        %1526 = vmatprep.subr.bf16.mxu0 0
        %1527 = vmatpush1.bf16.msra.mxu0 0
        %1528 = vmatprep.subr.bf16.mxu0 0
        %1529 = vmatpush1.bf16.msra.mxu0 0
        %1530 = vmatprep.subr.bf16.mxu0 0
        %1531 = vmatpush1.bf16.msra.mxu0 0
        %1532 = vmatprep.subr.bf16.mxu0 0
        %1533 = vmatpush1.bf16.msra.mxu0 0
        %1534 = vmatprep.subr.bf16.mxu0 0
        %1535 = vmatpush1.bf16.msra.mxu0 0
        %1536 = vmatprep.subr.bf16.mxu0 0
        %1537 = vmatpush1.bf16.msra.mxu0 0
        %1538 = vmatprep.subr.bf16.mxu0 0
        %1539 = vmatpush1.bf16.msra.mxu0 0
        %1540 = vmatprep.mubr.bf16.mxu0 0
        %1541 = vmatmul.mubr.bf16.gmra.mrb[0].mxu0 %v1506
        %v1542 = vpop.f32.mrb[0].mxu0
        %v1543 = vadd.f32 %v1491, %v1542
        %v1544 = vpop.f32.mrb[0].mxu0
        %v1545 = vpop.f32.mrb[0].mxu0
        %v1546 = vpop.f32.mrb[0].mxu0
        %1547 = vdwg.mxu0
        %v1548 = vmul.f32 %v1543, 0.5
        %v1549 = vmul.f32 %v1543, 0.044715
        %v1550 = vmul.f32 %v1549, %v1543
        %v1551 = vmul.f32 %v1550, %v1543
        %v1552 = vadd.f32 %v1543, %v1551
        %v1553 = vmul.f32 %v1552, 0.7978846
        %v1554 = vtanh.pop %v1553
        %v1555 = vadd.f32 %v1554, 1.0
        %v1556 = vmul.f32 %v1548, %v1555
        %v1557 = vpack.c.bf16 %v1556, %v1556
        %v1558 = vld [vmem:[%s12] sm:$0xf]
        %v1559 = vld [vmem:[%s12 + $0x4] sm:$0xf]
        %v1560 = vld [vmem:[%s12 + $0x8] sm:$0xf]
        %v1561 = vld [vmem:[%s12 + $0xc] sm:$0xf]
        %v1562 = vld [vmem:[%s12 + $0x10] sm:$0xf]
        %v1563 = vld [vmem:[%s12 + $0x14] sm:$0xf]
        %v1564 = vld [vmem:[%s12 + $0x18] sm:$0xf]
        %v1565 = vld [vmem:[%s12 + $0x1c] sm:$0xf]
        %v1566 = vld [vmem:[%s13] sm:$0x1]
        %v1568 = vlaneseq
        %v1569 = vshrl.u32 %v1568, 7
        %v1570 = vsub.s32 0, %v1569
        %v1571 = vrot.slane %v1566, %v1570
        %v1581 = vunpack.c.l.b16 %v1558
        %v1582 = vunpack.c.l.b16 %v1559
        %v1583 = vunpack.c.l.b16 %v1560
        %v1584 = vunpack.c.l.b16 %v1561
        %v1585 = vunpack.c.l.b16 %v1562
        %v1586 = vunpack.c.l.b16 %v1563
        %v1587 = vunpack.c.l.b16 %v1564
        %v1588 = vunpack.c.l.b16 %v1565
        %v1589 = vpack.c.b16 %v1582, %v1581
        %v1590 = vpack.c.b16 %v1584, %v1583
        %v1591 = vpack.c.b16 %v1586, %v1585
        %v1592 = vpack.c.b16 %v1588, %v1587
        %vm1597 = vcmask 523264
        %v1599 = vsel %vm1597, %v1557, 0
        %1601 = vmatprep.subr.bf16.mxu0 0
        %1602 = vmatpush1.bf16.msra.mxu0 %v1589
        %1603 = vmatprep.subr.bf16.mxu0 0
        %1604 = vmatpush1.bf16.msra.mxu0 %v1590
        %1605 = vmatprep.subr.bf16.mxu0 0
        %1606 = vmatpush1.bf16.msra.mxu0 %v1591
        %1607 = vmatprep.subr.bf16.mxu0 0
        %1608 = vmatpush1.bf16.msra.mxu0 %v1592
        %1609 = vmatprep.subr.bf16.mxu0 0
        %1610 = vmatpush1.bf16.msra.mxu0 0
        %1611 = vmatprep.subr.bf16.mxu0 0
        %1612 = vmatpush1.bf16.msra.mxu0 0
        %1613 = vmatprep.subr.bf16.mxu0 0
        %1614 = vmatpush1.bf16.msra.mxu0 0
        %1615 = vmatprep.subr.bf16.mxu0 0
        %1616 = vmatpush1.bf16.msra.mxu0 0
        %1617 = vmatprep.subr.bf16.mxu0 0
        %1618 = vmatpush1.bf16.msra.mxu0 0
        %1619 = vmatprep.subr.bf16.mxu0 0
        %1620 = vmatpush1.bf16.msra.mxu0 0
        %1621 = vmatprep.subr.bf16.mxu0 0
        %1622 = vmatpush1.bf16.msra.mxu0 0
        %1623 = vmatprep.subr.bf16.mxu0 0
        %1624 = vmatpush1.bf16.msra.mxu0 0
        %1625 = vmatprep.subr.bf16.mxu0 0
        %1626 = vmatpush1.bf16.msra.mxu0 0
        %1627 = vmatprep.subr.bf16.mxu0 0
        %1628 = vmatpush1.bf16.msra.mxu0 0
        %1629 = vmatprep.subr.bf16.mxu0 0
        %1630 = vmatpush1.bf16.msra.mxu0 0
        %1631 = vmatprep.subr.bf16.mxu0 0
        %1632 = vmatpush1.bf16.msra.mxu0 0
        %1633 = vmatprep.mubr.bf16.mxu0 0
        %1634 = vmatmul.mubr.bf16.gmra.mrb[0].mxu0 %v1599
        %v1635 = vpop.f32.mrb[0].mxu0
        %v1636 = vadd.f32 %v1571, %v1635
        %v1637 = vpop.f32.mrb[0].mxu0
        %v1638 = vpop.f32.mrb[0].mxu0
        %v1639 = vpop.f32.mrb[0].mxu0
        %1640 = vdwg.mxu0
        %v1641 = vadd.f32 %v1480, %v1636
        %v1642 = vld [vmem:[%s14] sm:$0x1]
        %v1643 = vld [vmem:[%s15] sm:$0x1]
        %v1644 = vsel %vm804, %v1641, 0.0
        %1645 = vadd.xlane.f32.xlu0 %v1644
        %v1646 = vpop.xlane.xlu0 %1645
        %v1647 = vmul.f32 %v1646, %v808
        %v1648 = vsub.f32 %v1641, %v1647
        %v1649 = vmul.f32 %v1648, %v1648
        %v1650 = vsel %vm804, %v1649, 0.0
        %1651 = vadd.xlane.f32.xlu0 %v1650
        %v1652 = vpop.xlane.xlu0 %1651
        %v1653 = vmul.f32 %v1652, %v808
        %v1654 = vadd.f32 %v1653, 1e-12
        %v1655 = vrsqrt.pop %v1654
        %v1656 = vmul.f32 %v1648, %v1655
        %v1658 = vlaneseq
        %v1659 = vshrl.u32 %v1658, 7
        %v1660 = vsub.s32 0, %v1659
        %v1661 = vrot.slane %v1642, %v1660
        %v1663 = vmul.f32 %v1656, %v1661
        %v1665 = vlaneseq
        %v1666 = vshrl.u32 %v1665, 7
        %v1667 = vsub.s32 0, %v1666
        %v1668 = vrot.slane %v1643, %v1667
        %v1670 = vadd.f32 %v1663, %v1668
        %v1671 = vpack.c.bf16 %v1670, %v1670
        %s1672 = scalar_lea.vmem %s4, 16
        %v1673 = vld [vmem:[%s1672] sm:$0xf]
        %v1674 = vld [vmem:[%s1672 + $0x4] sm:$0xf]
        %v1675 = vld [vmem:[%s1672 + $0x8] sm:$0xf]
        %v1676 = vld [vmem:[%s1672 + $0xc] sm:$0xf]
        %s1677 = scalar_lea.vmem %s5, 1
        %v1678 = vld [vmem:[%s1677] sm:$0x1]
        %v1680 = vlaneseq
        %v1681 = vshrl.u32 %v1680, 7
        %v1682 = vsub.s32 0, %v1681
        %v1683 = vrot.slane %v1678, %v1682
        %v1689 = vunpack.c.l.b16 %v1673
        %v1690 = vunpack.c.l.b16 %v1674
        %v1691 = vunpack.c.l.b16 %v1675
        %v1692 = vunpack.c.l.b16 %v1676
        %v1693 = vpack.c.b16 %v1690, %v1689
        %v1694 = vpack.c.b16 %v1692, %v1691
        %v1698 = vsel %vm804, %v1671, 0
        %1700 = vmatprep.subr.bf16.mxu0 0
        %1701 = vmatpush1.bf16.msra.mxu0 %v1693
        %1702 = vmatprep.subr.bf16.mxu0 0
        %1703 = vmatpush1.bf16.msra.mxu0 %v1694
        %1704 = vmatprep.subr.bf16.mxu0 0
        %1705 = vmatpush1.bf16.msra.mxu0 0
        %1706 = vmatprep.subr.bf16.mxu0 0
        %1707 = vmatpush1.bf16.msra.mxu0 0
        %1708 = vmatprep.subr.bf16.mxu0 0
        %1709 = vmatpush1.bf16.msra.mxu0 0
        %1710 = vmatprep.subr.bf16.mxu0 0
        %1711 = vmatpush1.bf16.msra.mxu0 0
        %1712 = vmatprep.subr.bf16.mxu0 0
        %1713 = vmatpush1.bf16.msra.mxu0 0
        %1714 = vmatprep.subr.bf16.mxu0 0
        %1715 = vmatpush1.bf16.msra.mxu0 0
        %1716 = vmatprep.subr.bf16.mxu0 0
        %1717 = vmatpush1.bf16.msra.mxu0 0
        %1718 = vmatprep.subr.bf16.mxu0 0
        %1719 = vmatpush1.bf16.msra.mxu0 0
        %1720 = vmatprep.subr.bf16.mxu0 0
        %1721 = vmatpush1.bf16.msra.mxu0 0
        %1722 = vmatprep.subr.bf16.mxu0 0
        %1723 = vmatpush1.bf16.msra.mxu0 0
        %1724 = vmatprep.subr.bf16.mxu0 0
        %1725 = vmatpush1.bf16.msra.mxu0 0
        %1726 = vmatprep.subr.bf16.mxu0 0
        %1727 = vmatpush1.bf16.msra.mxu0 0
        %1728 = vmatprep.subr.bf16.mxu0 0
        %1729 = vmatpush1.bf16.msra.mxu0 0
        %1730 = vmatprep.subr.bf16.mxu0 0
        %1731 = vmatpush1.bf16.msra.mxu0 0
        %1732 = vmatprep.mubr.bf16.mxu0 0
        %1733 = vmatmul.mubr.bf16.gmra.mrb[0].mxu0 %v1698
        %v1734 = vpop.f32.mrb[0].mxu0
        %v1735 = vadd.f32 %v1683, %v1734
        %v1736 = vpop.f32.mrb[0].mxu0
        %v1737 = vpop.f32.mrb[0].mxu0
        %v1738 = vpop.f32.mrb[0].mxu0
        %1739 = vdwg.mxu0
        %1741 = vrot.lane.b32.xlu0 %v1735, 120
        %v1742 = vpop.permute.xlu0 %1741
        %1744 = vrot.lane.b32.xlu0 %v1735, 112
        %v1745 = vpop.permute.xlu0 %1744
        %1747 = vrot.lane.b32.xlu0 %v1735, 104
        %v1748 = vpop.permute.xlu0 %1747
        %v1750 = vpack.c.bf16 %v1735, %v1735
        %v1751 = vpack.c.bf16 %v1742, %v1742
        %v1752 = vpack.c.bf16 %v1745, %v1745
        %v1753 = vpack.c.bf16 %v1748, %v1748
        %1755 = vrot.lane.b32.xlu0 %v1750, 96
        %v1756 = vpop.permute.xlu0 %1755
        %v1758 = vsel %vm924, %v1750, 0
        %v1761 = vsel %vm924, %v1756, 0
        %1763 = vmatprep.subr.bf16.mxu0 0
        %1764 = vmatpush1.bf16.xpose.msra.mxu0 %v1761
        %1765 = vmatprep.subr.bf16.mxu0 0
        %1766 = vmatpush1.bf16.xpose.msra.mxu0 0
        %1767 = vmatprep.subr.bf16.mxu0 0
        %1768 = vmatpush1.bf16.xpose.msra.mxu0 0
        %1769 = vmatprep.subr.bf16.mxu0 0
        %1770 = vmatpush1.bf16.xpose.msra.mxu0 0
        %1771 = vmatprep.subr.bf16.mxu0 0
        %1772 = vmatpush1.bf16.xpose.msra.mxu0 0
        %1773 = vmatprep.subr.bf16.mxu0 0
        %1774 = vmatpush1.bf16.xpose.msra.mxu0 0
        %1775 = vmatprep.subr.bf16.mxu0 0
        %1776 = vmatpush1.bf16.xpose.msra.mxu0 0
        %1777 = vmatprep.subr.bf16.mxu0 0
        %1778 = vmatpush1.bf16.xpose.msra.mxu0 0
        %1779 = vmatprep.subr.bf16.mxu0 0
        %1780 = vmatpush1.bf16.xpose.msra.mxu0 0
        %1781 = vmatprep.subr.bf16.mxu0 0
        %1782 = vmatpush1.bf16.xpose.msra.mxu0 0
        %1783 = vmatprep.subr.bf16.mxu0 0
        %1784 = vmatpush1.bf16.xpose.msra.mxu0 0
        %1785 = vmatprep.subr.bf16.mxu0 0
        %1786 = vmatpush1.bf16.xpose.msra.mxu0 0
        %1787 = vmatprep.subr.bf16.mxu0 0
        %1788 = vmatpush1.bf16.xpose.msra.mxu0 0
        %1789 = vmatprep.subr.bf16.mxu0 0
        %1790 = vmatpush1.bf16.xpose.msra.mxu0 0
        %1791 = vmatprep.subr.bf16.mxu0 0
        %1792 = vmatpush1.bf16.xpose.msra.mxu0 0
        %1793 = vmatprep.subr.bf16.mxu0 0
        %1794 = vmatpush1.bf16.xpose.msra.mxu0 0
        %1795 = vmatprep.mubr.bf16.mxu0 0
        %1796 = vmatmul.mubr.bf16.gmra.mrb[0].mxu0 %v1758
        %v1797 = vpop.f32.mrb[0].mxu0
        %v1798 = vadd.f32 0.0, %v1797
        %v1799 = vpop.f32.mrb[0].mxu0
        %v1800 = vpop.f32.mrb[0].mxu0
        %v1801 = vpop.f32.mrb[0].mxu0
        %1802 = vdwg.mxu0
        %1804 = vrot.lane.b32.xlu0 %v1751, 96
        %v1805 = vpop.permute.xlu0 %1804
        %v1807 = vsel %vm924, %v1751, 0
        %v1810 = vsel %vm924, %v1805, 0
        %1812 = vmatprep.subr.bf16.mxu0 0
        %1813 = vmatpush1.bf16.xpose.msra.mxu0 %v1810
        %1814 = vmatprep.subr.bf16.mxu0 0
        %1815 = vmatpush1.bf16.xpose.msra.mxu0 0
        %1816 = vmatprep.subr.bf16.mxu0 0
        %1817 = vmatpush1.bf16.xpose.msra.mxu0 0
        %1818 = vmatprep.subr.bf16.mxu0 0
        %1819 = vmatpush1.bf16.xpose.msra.mxu0 0
        %1820 = vmatprep.subr.bf16.mxu0 0
        %1821 = vmatpush1.bf16.xpose.msra.mxu0 0
        %1822 = vmatprep.subr.bf16.mxu0 0
        %1823 = vmatpush1.bf16.xpose.msra.mxu0 0
        %1824 = vmatprep.subr.bf16.mxu0 0
        %1825 = vmatpush1.bf16.xpose.msra.mxu0 0
        %1826 = vmatprep.subr.bf16.mxu0 0
        %1827 = vmatpush1.bf16.xpose.msra.mxu0 0
        %1828 = vmatprep.subr.bf16.mxu0 0
        %1829 = vmatpush1.bf16.xpose.msra.mxu0 0
        %1830 = vmatprep.subr.bf16.mxu0 0
        %1831 = vmatpush1.bf16.xpose.msra.mxu0 0
        %1832 = vmatprep.subr.bf16.mxu0 0
        %1833 = vmatpush1.bf16.xpose.msra.mxu0 0
        %1834 = vmatprep.subr.bf16.mxu0 0
        %1835 = vmatpush1.bf16.xpose.msra.mxu0 0
        %1836 = vmatprep.subr.bf16.mxu0 0
        %1837 = vmatpush1.bf16.xpose.msra.mxu0 0
        %1838 = vmatprep.subr.bf16.mxu0 0
        %1839 = vmatpush1.bf16.xpose.msra.mxu0 0
        %1840 = vmatprep.subr.bf16.mxu0 0
        %1841 = vmatpush1.bf16.xpose.msra.mxu0 0
        %1842 = vmatprep.subr.bf16.mxu0 0
        %1843 = vmatpush1.bf16.xpose.msra.mxu0 0
        %1844 = vmatprep.mubr.bf16.mxu0 0
        %1845 = vmatmul.mubr.bf16.gmra.mrb[0].mxu0 %v1807
        %v1846 = vpop.f32.mrb[0].mxu0
        %v1847 = vadd.f32 0.0, %v1846
        %v1848 = vpop.f32.mrb[0].mxu0
        %v1849 = vpop.f32.mrb[0].mxu0
        %v1850 = vpop.f32.mrb[0].mxu0
        %1851 = vdwg.mxu0
        %1853 = vrot.lane.b32.xlu0 %v1752, 96
        %v1854 = vpop.permute.xlu0 %1853
        %v1856 = vsel %vm924, %v1752, 0
        %v1859 = vsel %vm924, %v1854, 0
        %1861 = vmatprep.subr.bf16.mxu0 0
        %1862 = vmatpush1.bf16.xpose.msra.mxu0 %v1859
        %1863 = vmatprep.subr.bf16.mxu0 0
        %1864 = vmatpush1.bf16.xpose.msra.mxu0 0
        %1865 = vmatprep.subr.bf16.mxu0 0
        %1866 = vmatpush1.bf16.xpose.msra.mxu0 0
        %1867 = vmatprep.subr.bf16.mxu0 0
        %1868 = vmatpush1.bf16.xpose.msra.mxu0 0
        %1869 = vmatprep.subr.bf16.mxu0 0
        %1870 = vmatpush1.bf16.xpose.msra.mxu0 0
        %1871 = vmatprep.subr.bf16.mxu0 0
        %1872 = vmatpush1.bf16.xpose.msra.mxu0 0
        %1873 = vmatprep.subr.bf16.mxu0 0
        %1874 = vmatpush1.bf16.xpose.msra.mxu0 0
        %1875 = vmatprep.subr.bf16.mxu0 0
        %1876 = vmatpush1.bf16.xpose.msra.mxu0 0
        %1877 = vmatprep.subr.bf16.mxu0 0
        %1878 = vmatpush1.bf16.xpose.msra.mxu0 0
        %1879 = vmatprep.subr.bf16.mxu0 0
        %1880 = vmatpush1.bf16.xpose.msra.mxu0 0
        %1881 = vmatprep.subr.bf16.mxu0 0
        %1882 = vmatpush1.bf16.xpose.msra.mxu0 0
        %1883 = vmatprep.subr.bf16.mxu0 0
        %1884 = vmatpush1.bf16.xpose.msra.mxu0 0
        %1885 = vmatprep.subr.bf16.mxu0 0
        %1886 = vmatpush1.bf16.xpose.msra.mxu0 0
        %1887 = vmatprep.subr.bf16.mxu0 0
        %1888 = vmatpush1.bf16.xpose.msra.mxu0 0
        %1889 = vmatprep.subr.bf16.mxu0 0
        %1890 = vmatpush1.bf16.xpose.msra.mxu0 0
        %1891 = vmatprep.subr.bf16.mxu0 0
        %1892 = vmatpush1.bf16.xpose.msra.mxu0 0
        %1893 = vmatprep.mubr.bf16.mxu0 0
        %1894 = vmatmul.mubr.bf16.gmra.mrb[0].mxu0 %v1856
        %v1895 = vpop.f32.mrb[0].mxu0
        %v1896 = vadd.f32 0.0, %v1895
        %v1897 = vpop.f32.mrb[0].mxu0
        %v1898 = vpop.f32.mrb[0].mxu0
        %v1899 = vpop.f32.mrb[0].mxu0
        %1900 = vdwg.mxu0
        %1902 = vrot.lane.b32.xlu0 %v1753, 96
        %v1903 = vpop.permute.xlu0 %1902
        %v1905 = vsel %vm924, %v1753, 0
        %v1908 = vsel %vm924, %v1903, 0
        %1910 = vmatprep.subr.bf16.mxu0 0
        %1911 = vmatpush1.bf16.xpose.msra.mxu0 %v1908
        %1912 = vmatprep.subr.bf16.mxu0 0
        %1913 = vmatpush1.bf16.xpose.msra.mxu0 0
        %1914 = vmatprep.subr.bf16.mxu0 0
        %1915 = vmatpush1.bf16.xpose.msra.mxu0 0
        %1916 = vmatprep.subr.bf16.mxu0 0
        %1917 = vmatpush1.bf16.xpose.msra.mxu0 0
        %1918 = vmatprep.subr.bf16.mxu0 0
        %1919 = vmatpush1.bf16.xpose.msra.mxu0 0
        %1920 = vmatprep.subr.bf16.mxu0 0
        %1921 = vmatpush1.bf16.xpose.msra.mxu0 0
        %1922 = vmatprep.subr.bf16.mxu0 0
        %1923 = vmatpush1.bf16.xpose.msra.mxu0 0
        %1924 = vmatprep.subr.bf16.mxu0 0
        %1925 = vmatpush1.bf16.xpose.msra.mxu0 0
        %1926 = vmatprep.subr.bf16.mxu0 0
        %1927 = vmatpush1.bf16.xpose.msra.mxu0 0
        %1928 = vmatprep.subr.bf16.mxu0 0
        %1929 = vmatpush1.bf16.xpose.msra.mxu0 0
        %1930 = vmatprep.subr.bf16.mxu0 0
        %1931 = vmatpush1.bf16.xpose.msra.mxu0 0
        %1932 = vmatprep.subr.bf16.mxu0 0
        %1933 = vmatpush1.bf16.xpose.msra.mxu0 0
        %1934 = vmatprep.subr.bf16.mxu0 0
        %1935 = vmatpush1.bf16.xpose.msra.mxu0 0
        %1936 = vmatprep.subr.bf16.mxu0 0
        %1937 = vmatpush1.bf16.xpose.msra.mxu0 0
        %1938 = vmatprep.subr.bf16.mxu0 0
        %1939 = vmatpush1.bf16.xpose.msra.mxu0 0
        %1940 = vmatprep.subr.bf16.mxu0 0
        %1941 = vmatpush1.bf16.xpose.msra.mxu0 0
        %1942 = vmatprep.mubr.bf16.mxu0 0
        %1943 = vmatmul.mubr.bf16.gmra.mrb[0].mxu0 %v1905
        %v1944 = vpop.f32.mrb[0].mxu0
        %v1945 = vadd.f32 0.0, %v1944
        %v1946 = vpop.f32.mrb[0].mxu0
        %v1947 = vpop.f32.mrb[0].mxu0
        %v1948 = vpop.f32.mrb[0].mxu0
        %1949 = vdwg.mxu0
        %v1950 = vmul.f32 %v1798, 0.35355338
        %v1951 = vmul.f32 %v1847, 0.35355338
        %v1952 = vmul.f32 %v1896, 0.35355338
        %v1953 = vmul.f32 %v1945, 0.35355338
        %v1954 = vadd.f32 %v1950, %v838
        %v1955 = vadd.f32 %v1951, %v838
        %v1956 = vadd.f32 %v1952, %v838
        %v1957 = vadd.f32 %v1953, %v838
        %v1958 = vsel %vm924, %v1954, -inf
        %1959 = vmax.xlane.f32.xlu0 %v1958
        %v1960 = vpop.xlane.xlu0 %1959
        %v1961 = vsel %vm924, %v1955, -inf
        %1962 = vmax.xlane.f32.xlu0 %v1961
        %v1963 = vpop.xlane.xlu0 %1962
        %v1964 = vsel %vm924, %v1956, -inf
        %1965 = vmax.xlane.f32.xlu0 %v1964
        %v1966 = vpop.xlane.xlu0 %1965
        %v1967 = vsel %vm924, %v1957, -inf
        %1968 = vmax.xlane.f32.xlu0 %v1967
        %v1969 = vpop.xlane.xlu0 %1968
        %v1970 = vsub.f32 %v1954, %v1960
        %v1971 = vsub.f32 %v1955, %v1963
        %v1972 = vsub.f32 %v1956, %v1966
        %v1973 = vsub.f32 %v1957, %v1969
        %v1974 = vmul.f32 %v1970, 1.442695
        %v1975 = vpow.pop %v1974
        %v1976 = vmul.f32 %v1971, 1.442695
        %v1977 = vpow.pop %v1976
        %v1978 = vmul.f32 %v1972, 1.442695
        %v1979 = vpow.pop %v1978
        %v1980 = vmul.f32 %v1973, 1.442695
        %v1981 = vpow.pop %v1980
        %v1982 = vsel %vm924, %v1975, 0.0
        %1983 = vadd.xlane.f32.xlu0 %v1982
        %v1984 = vpop.xlane.xlu0 %1983
        %v1985 = vsel %vm924, %v1977, 0.0
        %1986 = vadd.xlane.f32.xlu0 %v1985
        %v1987 = vpop.xlane.xlu0 %1986
        %v1988 = vsel %vm924, %v1979, 0.0
        %1989 = vadd.xlane.f32.xlu0 %v1988
        %v1990 = vpop.xlane.xlu0 %1989
        %v1991 = vsel %vm924, %v1981, 0.0
        %1992 = vadd.xlane.f32.xlu0 %v1991
        %v1993 = vpop.xlane.xlu0 %1992
        %v1994 = vrcp.pop %v1984
        %v1995 = vrcp.pop %v1987
        %v1996 = vrcp.pop %v1990
        %v1997 = vrcp.pop %v1993
        %v1998 = vmul.f32 %v1975, %v1994
        %v1999 = vmul.f32 %v1977, %v1995
        %v2000 = vmul.f32 %v1979, %v1996
        %v2001 = vmul.f32 %v1981, %v1997
        %v2002 = vpack.c.bf16 %v1998, %v1998
        %v2003 = vpack.c.bf16 %v1999, %v1999
        %v2004 = vpack.c.bf16 %v2000, %v2000
        %v2005 = vpack.c.bf16 %v2001, %v2001
        %2006 = vrot.lane.b32.xlu0 %v1750, 64
        %v2007 = vpop.permute.xlu0 %2006
        %v2009 = vsel %vm924, %v2002, 0
        %v2012 = vsel %vm1179, %v2007, 0
        %2014 = vmatprep.subr.bf16.mxu0 0
        %2015 = vmatpush1.bf16.msra.mxu0 %v2012
        %2016 = vmatprep.subr.bf16.mxu0 0
        %2017 = vmatpush1.bf16.msra.mxu0 0
        %2018 = vmatprep.subr.bf16.mxu0 0
        %2019 = vmatpush1.bf16.msra.mxu0 0
        %2020 = vmatprep.subr.bf16.mxu0 0
        %2021 = vmatpush1.bf16.msra.mxu0 0
        %2022 = vmatprep.subr.bf16.mxu0 0
        %2023 = vmatpush1.bf16.msra.mxu0 0
        %2024 = vmatprep.subr.bf16.mxu0 0
        %2025 = vmatpush1.bf16.msra.mxu0 0
        %2026 = vmatprep.subr.bf16.mxu0 0
        %2027 = vmatpush1.bf16.msra.mxu0 0
        %2028 = vmatprep.subr.bf16.mxu0 0
        %2029 = vmatpush1.bf16.msra.mxu0 0
        %2030 = vmatprep.subr.bf16.mxu0 0
        %2031 = vmatpush1.bf16.msra.mxu0 0
        %2032 = vmatprep.subr.bf16.mxu0 0
        %2033 = vmatpush1.bf16.msra.mxu0 0
        %2034 = vmatprep.subr.bf16.mxu0 0
        %2035 = vmatpush1.bf16.msra.mxu0 0
        %2036 = vmatprep.subr.bf16.mxu0 0
        %2037 = vmatpush1.bf16.msra.mxu0 0
        %2038 = vmatprep.subr.bf16.mxu0 0
        %2039 = vmatpush1.bf16.msra.mxu0 0
        %2040 = vmatprep.subr.bf16.mxu0 0
        %2041 = vmatpush1.bf16.msra.mxu0 0
        %2042 = vmatprep.subr.bf16.mxu0 0
        %2043 = vmatpush1.bf16.msra.mxu0 0
        %2044 = vmatprep.subr.bf16.mxu0 0
        %2045 = vmatpush1.bf16.msra.mxu0 0
        %2046 = vmatprep.mubr.bf16.mxu0 0
        %2047 = vmatmul.mubr.bf16.gmra.mrb[0].mxu0 %v2009
        %v2048 = vpop.f32.mrb[0].mxu0
        %v2049 = vadd.f32 0.0, %v2048
        %v2050 = vpop.f32.mrb[0].mxu0
        %v2051 = vpop.f32.mrb[0].mxu0
        %v2052 = vpop.f32.mrb[0].mxu0
        %2053 = vdwg.mxu0
        %2054 = vrot.lane.b32.xlu0 %v1751, 64
        %v2055 = vpop.permute.xlu0 %2054
        %v2057 = vsel %vm924, %v2003, 0
        %v2060 = vsel %vm1179, %v2055, 0
        %2062 = vmatprep.subr.bf16.mxu0 0
        %2063 = vmatpush1.bf16.msra.mxu0 %v2060
        %2064 = vmatprep.subr.bf16.mxu0 0
        %2065 = vmatpush1.bf16.msra.mxu0 0
        %2066 = vmatprep.subr.bf16.mxu0 0
        %2067 = vmatpush1.bf16.msra.mxu0 0
        %2068 = vmatprep.subr.bf16.mxu0 0
        %2069 = vmatpush1.bf16.msra.mxu0 0
        %2070 = vmatprep.subr.bf16.mxu0 0
        %2071 = vmatpush1.bf16.msra.mxu0 0
        %2072 = vmatprep.subr.bf16.mxu0 0
        %2073 = vmatpush1.bf16.msra.mxu0 0
        %2074 = vmatprep.subr.bf16.mxu0 0
        %2075 = vmatpush1.bf16.msra.mxu0 0
        %2076 = vmatprep.subr.bf16.mxu0 0
        %2077 = vmatpush1.bf16.msra.mxu0 0
        %2078 = vmatprep.subr.bf16.mxu0 0
        %2079 = vmatpush1.bf16.msra.mxu0 0
        %2080 = vmatprep.subr.bf16.mxu0 0
        %2081 = vmatpush1.bf16.msra.mxu0 0
        %2082 = vmatprep.subr.bf16.mxu0 0
        %2083 = vmatpush1.bf16.msra.mxu0 0
        %2084 = vmatprep.subr.bf16.mxu0 0
        %2085 = vmatpush1.bf16.msra.mxu0 0
        %2086 = vmatprep.subr.bf16.mxu0 0
        %2087 = vmatpush1.bf16.msra.mxu0 0
        %2088 = vmatprep.subr.bf16.mxu0 0
        %2089 = vmatpush1.bf16.msra.mxu0 0
        %2090 = vmatprep.subr.bf16.mxu0 0
        %2091 = vmatpush1.bf16.msra.mxu0 0
        %2092 = vmatprep.subr.bf16.mxu0 0
        %2093 = vmatpush1.bf16.msra.mxu0 0
        %2094 = vmatprep.mubr.bf16.mxu0 0
        %2095 = vmatmul.mubr.bf16.gmra.mrb[0].mxu0 %v2057
        %v2096 = vpop.f32.mrb[0].mxu0
        %v2097 = vadd.f32 0.0, %v2096
        %v2098 = vpop.f32.mrb[0].mxu0
        %v2099 = vpop.f32.mrb[0].mxu0
        %v2100 = vpop.f32.mrb[0].mxu0
        %2101 = vdwg.mxu0
        %2102 = vrot.lane.b32.xlu0 %v1752, 64
        %v2103 = vpop.permute.xlu0 %2102
        %v2105 = vsel %vm924, %v2004, 0
        %v2108 = vsel %vm1179, %v2103, 0
        %2110 = vmatprep.subr.bf16.mxu0 0
        %2111 = vmatpush1.bf16.msra.mxu0 %v2108
        %2112 = vmatprep.subr.bf16.mxu0 0
        %2113 = vmatpush1.bf16.msra.mxu0 0
        %2114 = vmatprep.subr.bf16.mxu0 0
        %2115 = vmatpush1.bf16.msra.mxu0 0
        %2116 = vmatprep.subr.bf16.mxu0 0
        %2117 = vmatpush1.bf16.msra.mxu0 0
        %2118 = vmatprep.subr.bf16.mxu0 0
        %2119 = vmatpush1.bf16.msra.mxu0 0
        %2120 = vmatprep.subr.bf16.mxu0 0
        %2121 = vmatpush1.bf16.msra.mxu0 0
        %2122 = vmatprep.subr.bf16.mxu0 0
        %2123 = vmatpush1.bf16.msra.mxu0 0
        %2124 = vmatprep.subr.bf16.mxu0 0
        %2125 = vmatpush1.bf16.msra.mxu0 0
        %2126 = vmatprep.subr.bf16.mxu0 0
        %2127 = vmatpush1.bf16.msra.mxu0 0
        %2128 = vmatprep.subr.bf16.mxu0 0
        %2129 = vmatpush1.bf16.msra.mxu0 0
        %2130 = vmatprep.subr.bf16.mxu0 0
        %2131 = vmatpush1.bf16.msra.mxu0 0
        %2132 = vmatprep.subr.bf16.mxu0 0
        %2133 = vmatpush1.bf16.msra.mxu0 0
        %2134 = vmatprep.subr.bf16.mxu0 0
        %2135 = vmatpush1.bf16.msra.mxu0 0
        %2136 = vmatprep.subr.bf16.mxu0 0
        %2137 = vmatpush1.bf16.msra.mxu0 0
        %2138 = vmatprep.subr.bf16.mxu0 0
        %2139 = vmatpush1.bf16.msra.mxu0 0
        %2140 = vmatprep.subr.bf16.mxu0 0
        %2141 = vmatpush1.bf16.msra.mxu0 0
        %2142 = vmatprep.mubr.bf16.mxu0 0
        %2143 = vmatmul.mubr.bf16.gmra.mrb[0].mxu0 %v2105
        %v2144 = vpop.f32.mrb[0].mxu0
        %v2145 = vadd.f32 0.0, %v2144
        %v2146 = vpop.f32.mrb[0].mxu0
        %v2147 = vpop.f32.mrb[0].mxu0
        %v2148 = vpop.f32.mrb[0].mxu0
        %2149 = vdwg.mxu0
        %2150 = vrot.lane.b32.xlu0 %v1753, 64
        %v2151 = vpop.permute.xlu0 %2150
        %v2153 = vsel %vm924, %v2005, 0
        %v2156 = vsel %vm1179, %v2151, 0
        %2158 = vmatprep.subr.bf16.mxu0 0
        %2159 = vmatpush1.bf16.msra.mxu0 %v2156
        %2160 = vmatprep.subr.bf16.mxu0 0
        %2161 = vmatpush1.bf16.msra.mxu0 0
        %2162 = vmatprep.subr.bf16.mxu0 0
        %2163 = vmatpush1.bf16.msra.mxu0 0
        %2164 = vmatprep.subr.bf16.mxu0 0
        %2165 = vmatpush1.bf16.msra.mxu0 0
        %2166 = vmatprep.subr.bf16.mxu0 0
        %2167 = vmatpush1.bf16.msra.mxu0 0
        %2168 = vmatprep.subr.bf16.mxu0 0
        %2169 = vmatpush1.bf16.msra.mxu0 0
        %2170 = vmatprep.subr.bf16.mxu0 0
        %2171 = vmatpush1.bf16.msra.mxu0 0
        %2172 = vmatprep.subr.bf16.mxu0 0
        %2173 = vmatpush1.bf16.msra.mxu0 0
        %2174 = vmatprep.subr.bf16.mxu0 0
        %2175 = vmatpush1.bf16.msra.mxu0 0
        %2176 = vmatprep.subr.bf16.mxu0 0
        %2177 = vmatpush1.bf16.msra.mxu0 0
        %2178 = vmatprep.subr.bf16.mxu0 0
        %2179 = vmatpush1.bf16.msra.mxu0 0
        %2180 = vmatprep.subr.bf16.mxu0 0
        %2181 = vmatpush1.bf16.msra.mxu0 0
        %2182 = vmatprep.subr.bf16.mxu0 0
        %2183 = vmatpush1.bf16.msra.mxu0 0
        %2184 = vmatprep.subr.bf16.mxu0 0
        %2185 = vmatpush1.bf16.msra.mxu0 0
        %2186 = vmatprep.subr.bf16.mxu0 0
        %2187 = vmatpush1.bf16.msra.mxu0 0
        %2188 = vmatprep.subr.bf16.mxu0 0
        %2189 = vmatpush1.bf16.msra.mxu0 0
        %2190 = vmatprep.mubr.bf16.mxu0 0
        %2191 = vmatmul.mubr.bf16.gmra.mrb[0].mxu0 %v2153
        %v2192 = vpop.f32.mrb[0].mxu0
        %v2193 = vadd.f32 0.0, %v2192
        %v2194 = vpop.f32.mrb[0].mxu0
        %v2195 = vpop.f32.mrb[0].mxu0
        %v2196 = vpop.f32.mrb[0].mxu0
        %2197 = vdwg.mxu0
        %2199 = vrot.lane.b32.xlu0 %v2097, 8
        %v2200 = vpop.permute.xlu0 %2199
        %2203 = vrot.lane.b32.xlu0 %v2145, 16
        %v2204 = vpop.permute.xlu0 %2203
        %2207 = vrot.lane.b32.xlu0 %v2193, 24
        %v2208 = vpop.permute.xlu0 %2207
        %v2210 = vsel %vm924, %v2049, %v2200
        %v2211 = vsel %vm1380, %v2210, %v2204
        %v2212 = vsel %vm1382, %v2211, %v2208
        %v2213 = vpack.c.bf16 %v2212, %v2212
        %s2214 = scalar_lea.vmem %s6, 16
        %v2215 = vld [vmem:[%s2214] sm:$0xf]
        %v2216 = vld [vmem:[%s2214 + $0x4] sm:$0xf]
        %v2217 = vld [vmem:[%s2214 + $0x8] sm:$0xf]
        %v2218 = vld [vmem:[%s2214 + $0xc] sm:$0xf]
        %s2219 = scalar_lea.vmem %s7, 1
        %v2220 = vld [vmem:[%s2219] sm:$0x1]
        %v2222 = vlaneseq
        %v2223 = vshrl.u32 %v2222, 7
        %v2224 = vsub.s32 0, %v2223
        %v2225 = vrot.slane %v2220, %v2224
        %v2231 = vunpack.c.l.b16 %v2215
        %v2232 = vunpack.c.l.b16 %v2216
        %v2233 = vunpack.c.l.b16 %v2217
        %v2234 = vunpack.c.l.b16 %v2218
        %v2235 = vpack.c.b16 %v2232, %v2231
        %v2236 = vpack.c.b16 %v2234, %v2233
        %v2240 = vsel %vm804, %v2213, 0
        %2242 = vmatprep.subr.bf16.mxu0 0
        %2243 = vmatpush1.bf16.msra.mxu0 %v2235
        %2244 = vmatprep.subr.bf16.mxu0 0
        %2245 = vmatpush1.bf16.msra.mxu0 %v2236
        %2246 = vmatprep.subr.bf16.mxu0 0
        %2247 = vmatpush1.bf16.msra.mxu0 0
        %2248 = vmatprep.subr.bf16.mxu0 0
        %2249 = vmatpush1.bf16.msra.mxu0 0
        %2250 = vmatprep.subr.bf16.mxu0 0
        %2251 = vmatpush1.bf16.msra.mxu0 0
        %2252 = vmatprep.subr.bf16.mxu0 0
        %2253 = vmatpush1.bf16.msra.mxu0 0
        %2254 = vmatprep.subr.bf16.mxu0 0
        %2255 = vmatpush1.bf16.msra.mxu0 0
        %2256 = vmatprep.subr.bf16.mxu0 0
        %2257 = vmatpush1.bf16.msra.mxu0 0
        %2258 = vmatprep.subr.bf16.mxu0 0
        %2259 = vmatpush1.bf16.msra.mxu0 0
        %2260 = vmatprep.subr.bf16.mxu0 0
        %2261 = vmatpush1.bf16.msra.mxu0 0
        %2262 = vmatprep.subr.bf16.mxu0 0
        %2263 = vmatpush1.bf16.msra.mxu0 0
        %2264 = vmatprep.subr.bf16.mxu0 0
        %2265 = vmatpush1.bf16.msra.mxu0 0
        %2266 = vmatprep.subr.bf16.mxu0 0
        %2267 = vmatpush1.bf16.msra.mxu0 0
        %2268 = vmatprep.subr.bf16.mxu0 0
        %2269 = vmatpush1.bf16.msra.mxu0 0
        %2270 = vmatprep.subr.bf16.mxu0 0
        %2271 = vmatpush1.bf16.msra.mxu0 0
        %2272 = vmatprep.subr.bf16.mxu0 0
        %2273 = vmatpush1.bf16.msra.mxu0 0
        %2274 = vmatprep.mubr.bf16.mxu0 0
        %2275 = vmatmul.mubr.bf16.gmra.mrb[0].mxu0 %v2240
        %v2276 = vpop.f32.mrb[0].mxu0
        %v2277 = vadd.f32 %v2225, %v2276
        %v2278 = vpop.f32.mrb[0].mxu0
        %v2279 = vpop.f32.mrb[0].mxu0
        %v2280 = vpop.f32.mrb[0].mxu0
        %2281 = vdwg.mxu0
        %v2282 = vadd.f32 %v1670, %v2277
        %s2283 = scalar_lea.vmem %s8, 1
        %v2284 = vld [vmem:[%s2283] sm:$0x1]
        %s2285 = scalar_lea.vmem %s9, 1
        %v2286 = vld [vmem:[%s2285] sm:$0x1]
        %v2287 = vsel %vm804, %v2282, 0.0
        %2288 = vadd.xlane.f32.xlu0 %v2287
        %v2289 = vpop.xlane.xlu0 %2288
        %v2290 = vmul.f32 %v2289, %v808
        %v2291 = vsub.f32 %v2282, %v2290
        %v2292 = vmul.f32 %v2291, %v2291
        %v2293 = vsel %vm804, %v2292, 0.0
        %2294 = vadd.xlane.f32.xlu0 %v2293
        %v2295 = vpop.xlane.xlu0 %2294
        %v2296 = vmul.f32 %v2295, %v808
        %v2297 = vadd.f32 %v2296, 1e-12
        %v2298 = vrsqrt.pop %v2297
        %v2299 = vmul.f32 %v2291, %v2298
        %v2301 = vlaneseq
        %v2302 = vshrl.u32 %v2301, 7
        %v2303 = vsub.s32 0, %v2302
        %v2304 = vrot.slane %v2284, %v2303
        %v2306 = vmul.f32 %v2299, %v2304
        %v2308 = vlaneseq
        %v2309 = vshrl.u32 %v2308, 7
        %v2310 = vsub.s32 0, %v2309
        %v2311 = vrot.slane %v2286, %v2310
        %v2313 = vadd.f32 %v2306, %v2311
        %v2314 = vpack.c.bf16 %v2313, %v2313
        %s2315 = scalar_lea.vmem %s10, 16
        %v2316 = vld [vmem:[%s2315] sm:$0xf]
        %v2317 = vld [vmem:[%s2315 + $0x4] sm:$0xf]
        %v2318 = vld [vmem:[%s2315 + $0x8] sm:$0xf]
        %v2319 = vld [vmem:[%s2315 + $0xc] sm:$0xf]
        %s2320 = scalar_lea.vmem %s11, 1
        %v2321 = vld [vmem:[%s2320] sm:$0x1]
        %v2323 = vlaneseq
        %v2324 = vshrl.u32 %v2323, 7
        %v2325 = vsub.s32 0, %v2324
        %v2326 = vrot.slane %v2321, %v2325
        %v2332 = vunpack.c.l.b16 %v2316
        %v2333 = vunpack.c.l.b16 %v2317
        %v2334 = vunpack.c.l.b16 %v2318
        %v2335 = vunpack.c.l.b16 %v2319
        %v2336 = vpack.c.b16 %v2333, %v2332
        %v2337 = vpack.c.b16 %v2335, %v2334
        %v2341 = vsel %vm804, %v2314, 0
        %2343 = vmatprep.subr.bf16.mxu0 0
        %2344 = vmatpush1.bf16.msra.mxu0 %v2336
        %2345 = vmatprep.subr.bf16.mxu0 0
        %2346 = vmatpush1.bf16.msra.mxu0 %v2337
        %2347 = vmatprep.subr.bf16.mxu0 0
        %2348 = vmatpush1.bf16.msra.mxu0 0
        %2349 = vmatprep.subr.bf16.mxu0 0
        %2350 = vmatpush1.bf16.msra.mxu0 0
        %2351 = vmatprep.subr.bf16.mxu0 0
        %2352 = vmatpush1.bf16.msra.mxu0 0
        %2353 = vmatprep.subr.bf16.mxu0 0
        %2354 = vmatpush1.bf16.msra.mxu0 0
        %2355 = vmatprep.subr.bf16.mxu0 0
        %2356 = vmatpush1.bf16.msra.mxu0 0
        %2357 = vmatprep.subr.bf16.mxu0 0
        %2358 = vmatpush1.bf16.msra.mxu0 0
        %2359 = vmatprep.subr.bf16.mxu0 0
        %2360 = vmatpush1.bf16.msra.mxu0 0
        %2361 = vmatprep.subr.bf16.mxu0 0
        %2362 = vmatpush1.bf16.msra.mxu0 0
        %2363 = vmatprep.subr.bf16.mxu0 0
        %2364 = vmatpush1.bf16.msra.mxu0 0
        %2365 = vmatprep.subr.bf16.mxu0 0
        %2366 = vmatpush1.bf16.msra.mxu0 0
        %2367 = vmatprep.subr.bf16.mxu0 0
        %2368 = vmatpush1.bf16.msra.mxu0 0
        %2369 = vmatprep.subr.bf16.mxu0 0
        %2370 = vmatpush1.bf16.msra.mxu0 0
        %2371 = vmatprep.subr.bf16.mxu0 0
        %2372 = vmatpush1.bf16.msra.mxu0 0
        %2373 = vmatprep.subr.bf16.mxu0 0
        %2374 = vmatpush1.bf16.msra.mxu0 0
        %2375 = vmatprep.mubr.bf16.mxu0 0
        %2376 = vmatmul.mubr.bf16.gmra.mrb[0].mxu0 %v2341
        %v2377 = vpop.f32.mrb[0].mxu0
        %v2378 = vadd.f32 %v2326, %v2377
        %v2379 = vpop.f32.mrb[0].mxu0
        %v2380 = vpop.f32.mrb[0].mxu0
        %v2381 = vpop.f32.mrb[0].mxu0
        %2382 = vdwg.mxu0
        %v2383 = vmul.f32 %v2378, 0.5
        %v2384 = vmul.f32 %v2378, 0.044715
        %v2385 = vmul.f32 %v2384, %v2378
        %v2386 = vmul.f32 %v2385, %v2378
        %v2387 = vadd.f32 %v2378, %v2386
        %v2388 = vmul.f32 %v2387, 0.7978846
        %v2389 = vtanh.pop %v2388
        %v2390 = vadd.f32 %v2389, 1.0
        %v2391 = vmul.f32 %v2383, %v2390
        %v2392 = vpack.c.bf16 %v2391, %v2391
        %s2393 = scalar_lea.vmem %s12, 32
        %v2394 = vld [vmem:[%s2393] sm:$0xf]
        %v2395 = vld [vmem:[%s2393 + $0x4] sm:$0xf]
        %v2396 = vld [vmem:[%s2393 + $0x8] sm:$0xf]
        %v2397 = vld [vmem:[%s2393 + $0xc] sm:$0xf]
        %v2398 = vld [vmem:[%s2393 + $0x10] sm:$0xf]
        %v2399 = vld [vmem:[%s2393 + $0x14] sm:$0xf]
        %v2400 = vld [vmem:[%s2393 + $0x18] sm:$0xf]
        %v2401 = vld [vmem:[%s2393 + $0x1c] sm:$0xf]
        %s2402 = scalar_lea.vmem %s13, 1
        %v2403 = vld [vmem:[%s2402] sm:$0x1]
        %v2405 = vlaneseq
        %v2406 = vshrl.u32 %v2405, 7
        %v2407 = vsub.s32 0, %v2406
        %v2408 = vrot.slane %v2403, %v2407
        %v2418 = vunpack.c.l.b16 %v2394
        %v2419 = vunpack.c.l.b16 %v2395
        %v2420 = vunpack.c.l.b16 %v2396
        %v2421 = vunpack.c.l.b16 %v2397
        %v2422 = vunpack.c.l.b16 %v2398
        %v2423 = vunpack.c.l.b16 %v2399
        %v2424 = vunpack.c.l.b16 %v2400
        %v2425 = vunpack.c.l.b16 %v2401
        %v2426 = vpack.c.b16 %v2419, %v2418
        %v2427 = vpack.c.b16 %v2421, %v2420
        %v2428 = vpack.c.b16 %v2423, %v2422
        %v2429 = vpack.c.b16 %v2425, %v2424
        %v2435 = vsel %vm1597, %v2392, 0
        %2437 = vmatprep.subr.bf16.mxu0 0
        %2438 = vmatpush1.bf16.msra.mxu0 %v2426
        %2439 = vmatprep.subr.bf16.mxu0 0
        %2440 = vmatpush1.bf16.msra.mxu0 %v2427
        %2441 = vmatprep.subr.bf16.mxu0 0
        %2442 = vmatpush1.bf16.msra.mxu0 %v2428
        %2443 = vmatprep.subr.bf16.mxu0 0
        %2444 = vmatpush1.bf16.msra.mxu0 %v2429
        %2445 = vmatprep.subr.bf16.mxu0 0
        %2446 = vmatpush1.bf16.msra.mxu0 0
        %2447 = vmatprep.subr.bf16.mxu0 0
        %2448 = vmatpush1.bf16.msra.mxu0 0
        %2449 = vmatprep.subr.bf16.mxu0 0
        %2450 = vmatpush1.bf16.msra.mxu0 0
        %2451 = vmatprep.subr.bf16.mxu0 0
        %2452 = vmatpush1.bf16.msra.mxu0 0
        %2453 = vmatprep.subr.bf16.mxu0 0
        %2454 = vmatpush1.bf16.msra.mxu0 0
        %2455 = vmatprep.subr.bf16.mxu0 0
        %2456 = vmatpush1.bf16.msra.mxu0 0
        %2457 = vmatprep.subr.bf16.mxu0 0
        %2458 = vmatpush1.bf16.msra.mxu0 0
        %2459 = vmatprep.subr.bf16.mxu0 0
        %2460 = vmatpush1.bf16.msra.mxu0 0
        %2461 = vmatprep.subr.bf16.mxu0 0
        %2462 = vmatpush1.bf16.msra.mxu0 0
        %2463 = vmatprep.subr.bf16.mxu0 0
        %2464 = vmatpush1.bf16.msra.mxu0 0
        %2465 = vmatprep.subr.bf16.mxu0 0
        %2466 = vmatpush1.bf16.msra.mxu0 0
        %2467 = vmatprep.subr.bf16.mxu0 0
        %2468 = vmatpush1.bf16.msra.mxu0 0
        %2469 = vmatprep.mubr.bf16.mxu0 0
        %2470 = vmatmul.mubr.bf16.gmra.mrb[0].mxu0 %v2435
        %v2471 = vpop.f32.mrb[0].mxu0
        %v2472 = vadd.f32 %v2408, %v2471
        %v2473 = vpop.f32.mrb[0].mxu0
        %v2474 = vpop.f32.mrb[0].mxu0
        %v2475 = vpop.f32.mrb[0].mxu0
        %2476 = vdwg.mxu0
        %v2477 = vadd.f32 %v2313, %v2472
        %s2478 = scalar_lea.vmem %s14, 1
        %v2479 = vld [vmem:[%s2478] sm:$0x1]
        %s2480 = scalar_lea.vmem %s15, 1
        %v2481 = vld [vmem:[%s2480] sm:$0x1]
        %v2482 = vsel %vm804, %v2477, 0.0
        %2483 = vadd.xlane.f32.xlu0 %v2482
        %v2484 = vpop.xlane.xlu0 %2483
        %v2485 = vmul.f32 %v2484, %v808
        %v2486 = vsub.f32 %v2477, %v2485
        %v2487 = vmul.f32 %v2486, %v2486
        %v2488 = vsel %vm804, %v2487, 0.0
        %2489 = vadd.xlane.f32.xlu0 %v2488
        %v2490 = vpop.xlane.xlu0 %2489
        %v2491 = vmul.f32 %v2490, %v808
        %v2492 = vadd.f32 %v2491, 1e-12
        %v2493 = vrsqrt.pop %v2492
        %v2494 = vmul.f32 %v2486, %v2493
        %v2496 = vlaneseq
        %v2497 = vshrl.u32 %v2496, 7
        %v2498 = vsub.s32 0, %v2497
        %v2499 = vrot.slane %v2479, %v2498
        %v2501 = vmul.f32 %v2494, %v2499
        %v2503 = vlaneseq
        %v2504 = vshrl.u32 %v2503, 7
        %v2505 = vsub.s32 0, %v2504
        %v2506 = vrot.slane %v2481, %v2505
        %v2508 = vadd.f32 %v2501, %v2506
        %v2509 = vpack.c.bf16 %v2508, %v2508
        %s2510 = scalar_lea.vmem %s4, 32
        %v2511 = vld [vmem:[%s2510] sm:$0xf]
        %v2512 = vld [vmem:[%s2510 + $0x4] sm:$0xf]
        %v2513 = vld [vmem:[%s2510 + $0x8] sm:$0xf]
        %v2514 = vld [vmem:[%s2510 + $0xc] sm:$0xf]
        %s2515 = scalar_lea.vmem %s5, 2
        %v2516 = vld [vmem:[%s2515] sm:$0x1]
        %v2518 = vlaneseq
        %v2519 = vshrl.u32 %v2518, 7
        %v2520 = vsub.s32 0, %v2519
        %v2521 = vrot.slane %v2516, %v2520
        %v2527 = vunpack.c.l.b16 %v2511
        %v2528 = vunpack.c.l.b16 %v2512
        %v2529 = vunpack.c.l.b16 %v2513
        %v2530 = vunpack.c.l.b16 %v2514
        %v2531 = vpack.c.b16 %v2528, %v2527
        %v2532 = vpack.c.b16 %v2530, %v2529
        %v2536 = vsel %vm804, %v2509, 0
        %2538 = vmatprep.subr.bf16.mxu0 0
        %2539 = vmatpush1.bf16.msra.mxu0 %v2531
        %2540 = vmatprep.subr.bf16.mxu0 0
        %2541 = vmatpush1.bf16.msra.mxu0 %v2532
        %2542 = vmatprep.subr.bf16.mxu0 0
        %2543 = vmatpush1.bf16.msra.mxu0 0
        %2544 = vmatprep.subr.bf16.mxu0 0
        %2545 = vmatpush1.bf16.msra.mxu0 0
        %2546 = vmatprep.subr.bf16.mxu0 0
        %2547 = vmatpush1.bf16.msra.mxu0 0
        %2548 = vmatprep.subr.bf16.mxu0 0
        %2549 = vmatpush1.bf16.msra.mxu0 0
        %2550 = vmatprep.subr.bf16.mxu0 0
        %2551 = vmatpush1.bf16.msra.mxu0 0
        %2552 = vmatprep.subr.bf16.mxu0 0
        %2553 = vmatpush1.bf16.msra.mxu0 0
        %2554 = vmatprep.subr.bf16.mxu0 0
        %2555 = vmatpush1.bf16.msra.mxu0 0
        %2556 = vmatprep.subr.bf16.mxu0 0
        %2557 = vmatpush1.bf16.msra.mxu0 0
        %2558 = vmatprep.subr.bf16.mxu0 0
        %2559 = vmatpush1.bf16.msra.mxu0 0
        %2560 = vmatprep.subr.bf16.mxu0 0
        %2561 = vmatpush1.bf16.msra.mxu0 0
        %2562 = vmatprep.subr.bf16.mxu0 0
        %2563 = vmatpush1.bf16.msra.mxu0 0
        %2564 = vmatprep.subr.bf16.mxu0 0
        %2565 = vmatpush1.bf16.msra.mxu0 0
        %2566 = vmatprep.subr.bf16.mxu0 0
        %2567 = vmatpush1.bf16.msra.mxu0 0
        %2568 = vmatprep.subr.bf16.mxu0 0
        %2569 = vmatpush1.bf16.msra.mxu0 0
        %2570 = vmatprep.mubr.bf16.mxu0 0
        %2571 = vmatmul.mubr.bf16.gmra.mrb[0].mxu0 %v2536
        %v2572 = vpop.f32.mrb[0].mxu0
        %v2573 = vadd.f32 %v2521, %v2572
        %v2574 = vpop.f32.mrb[0].mxu0
        %v2575 = vpop.f32.mrb[0].mxu0
        %v2576 = vpop.f32.mrb[0].mxu0
        %2577 = vdwg.mxu0
        %2579 = vrot.lane.b32.xlu0 %v2573, 120
        %v2580 = vpop.permute.xlu0 %2579
        %2582 = vrot.lane.b32.xlu0 %v2573, 112
        %v2583 = vpop.permute.xlu0 %2582
        %2585 = vrot.lane.b32.xlu0 %v2573, 104
        %v2586 = vpop.permute.xlu0 %2585
        %v2588 = vpack.c.bf16 %v2573, %v2573
        %v2589 = vpack.c.bf16 %v2580, %v2580
        %v2590 = vpack.c.bf16 %v2583, %v2583
        %v2591 = vpack.c.bf16 %v2586, %v2586
        %2593 = vrot.lane.b32.xlu0 %v2588, 96
        %v2594 = vpop.permute.xlu0 %2593
        %v2596 = vsel %vm924, %v2588, 0
        %v2599 = vsel %vm924, %v2594, 0
        %2601 = vmatprep.subr.bf16.mxu0 0
        %2602 = vmatpush1.bf16.xpose.msra.mxu0 %v2599
        %2603 = vmatprep.subr.bf16.mxu0 0
        %2604 = vmatpush1.bf16.xpose.msra.mxu0 0
        %2605 = vmatprep.subr.bf16.mxu0 0
        %2606 = vmatpush1.bf16.xpose.msra.mxu0 0
        %2607 = vmatprep.subr.bf16.mxu0 0
        %2608 = vmatpush1.bf16.xpose.msra.mxu0 0
        %2609 = vmatprep.subr.bf16.mxu0 0
        %2610 = vmatpush1.bf16.xpose.msra.mxu0 0
        %2611 = vmatprep.subr.bf16.mxu0 0
        %2612 = vmatpush1.bf16.xpose.msra.mxu0 0
        %2613 = vmatprep.subr.bf16.mxu0 0
        %2614 = vmatpush1.bf16.xpose.msra.mxu0 0
        %2615 = vmatprep.subr.bf16.mxu0 0
        %2616 = vmatpush1.bf16.xpose.msra.mxu0 0
        %2617 = vmatprep.subr.bf16.mxu0 0
        %2618 = vmatpush1.bf16.xpose.msra.mxu0 0
        %2619 = vmatprep.subr.bf16.mxu0 0
        %2620 = vmatpush1.bf16.xpose.msra.mxu0 0
        %2621 = vmatprep.subr.bf16.mxu0 0
        %2622 = vmatpush1.bf16.xpose.msra.mxu0 0
        %2623 = vmatprep.subr.bf16.mxu0 0
        %2624 = vmatpush1.bf16.xpose.msra.mxu0 0
        %2625 = vmatprep.subr.bf16.mxu0 0
        %2626 = vmatpush1.bf16.xpose.msra.mxu0 0
        %2627 = vmatprep.subr.bf16.mxu0 0
        %2628 = vmatpush1.bf16.xpose.msra.mxu0 0
        %2629 = vmatprep.subr.bf16.mxu0 0
        %2630 = vmatpush1.bf16.xpose.msra.mxu0 0
        %2631 = vmatprep.subr.bf16.mxu0 0
        %2632 = vmatpush1.bf16.xpose.msra.mxu0 0
        %2633 = vmatprep.mubr.bf16.mxu0 0
        %2634 = vmatmul.mubr.bf16.gmra.mrb[0].mxu0 %v2596
        %v2635 = vpop.f32.mrb[0].mxu0
        %v2636 = vadd.f32 0.0, %v2635
        %v2637 = vpop.f32.mrb[0].mxu0
        %v2638 = vpop.f32.mrb[0].mxu0
        %v2639 = vpop.f32.mrb[0].mxu0
        %2640 = vdwg.mxu0
        %2642 = vrot.lane.b32.xlu0 %v2589, 96
        %v2643 = vpop.permute.xlu0 %2642
        %v2645 = vsel %vm924, %v2589, 0
        %v2648 = vsel %vm924, %v2643, 0
        %2650 = vmatprep.subr.bf16.mxu0 0
        %2651 = vmatpush1.bf16.xpose.msra.mxu0 %v2648
        %2652 = vmatprep.subr.bf16.mxu0 0
        %2653 = vmatpush1.bf16.xpose.msra.mxu0 0
        %2654 = vmatprep.subr.bf16.mxu0 0
        %2655 = vmatpush1.bf16.xpose.msra.mxu0 0
        %2656 = vmatprep.subr.bf16.mxu0 0
        %2657 = vmatpush1.bf16.xpose.msra.mxu0 0
        %2658 = vmatprep.subr.bf16.mxu0 0
        %2659 = vmatpush1.bf16.xpose.msra.mxu0 0
        %2660 = vmatprep.subr.bf16.mxu0 0
        %2661 = vmatpush1.bf16.xpose.msra.mxu0 0
        %2662 = vmatprep.subr.bf16.mxu0 0
        %2663 = vmatpush1.bf16.xpose.msra.mxu0 0
        %2664 = vmatprep.subr.bf16.mxu0 0
        %2665 = vmatpush1.bf16.xpose.msra.mxu0 0
        %2666 = vmatprep.subr.bf16.mxu0 0
        %2667 = vmatpush1.bf16.xpose.msra.mxu0 0
        %2668 = vmatprep.subr.bf16.mxu0 0
        %2669 = vmatpush1.bf16.xpose.msra.mxu0 0
        %2670 = vmatprep.subr.bf16.mxu0 0
        %2671 = vmatpush1.bf16.xpose.msra.mxu0 0
        %2672 = vmatprep.subr.bf16.mxu0 0
        %2673 = vmatpush1.bf16.xpose.msra.mxu0 0
        %2674 = vmatprep.subr.bf16.mxu0 0
        %2675 = vmatpush1.bf16.xpose.msra.mxu0 0
        %2676 = vmatprep.subr.bf16.mxu0 0
        %2677 = vmatpush1.bf16.xpose.msra.mxu0 0
        %2678 = vmatprep.subr.bf16.mxu0 0
        %2679 = vmatpush1.bf16.xpose.msra.mxu0 0
        %2680 = vmatprep.subr.bf16.mxu0 0
        %2681 = vmatpush1.bf16.xpose.msra.mxu0 0
        %2682 = vmatprep.mubr.bf16.mxu0 0
        %2683 = vmatmul.mubr.bf16.gmra.mrb[0].mxu0 %v2645
        %v2684 = vpop.f32.mrb[0].mxu0
        %v2685 = vadd.f32 0.0, %v2684
        %v2686 = vpop.f32.mrb[0].mxu0
        %v2687 = vpop.f32.mrb[0].mxu0
        %v2688 = vpop.f32.mrb[0].mxu0
        %2689 = vdwg.mxu0
        %2691 = vrot.lane.b32.xlu0 %v2590, 96
        %v2692 = vpop.permute.xlu0 %2691
        %v2694 = vsel %vm924, %v2590, 0
        %v2697 = vsel %vm924, %v2692, 0
        %2699 = vmatprep.subr.bf16.mxu0 0
        %2700 = vmatpush1.bf16.xpose.msra.mxu0 %v2697
        %2701 = vmatprep.subr.bf16.mxu0 0
        %2702 = vmatpush1.bf16.xpose.msra.mxu0 0
        %2703 = vmatprep.subr.bf16.mxu0 0
        %2704 = vmatpush1.bf16.xpose.msra.mxu0 0
        %2705 = vmatprep.subr.bf16.mxu0 0
        %2706 = vmatpush1.bf16.xpose.msra.mxu0 0
        %2707 = vmatprep.subr.bf16.mxu0 0
        %2708 = vmatpush1.bf16.xpose.msra.mxu0 0
        %2709 = vmatprep.subr.bf16.mxu0 0
        %2710 = vmatpush1.bf16.xpose.msra.mxu0 0
        %2711 = vmatprep.subr.bf16.mxu0 0
        %2712 = vmatpush1.bf16.xpose.msra.mxu0 0
        %2713 = vmatprep.subr.bf16.mxu0 0
        %2714 = vmatpush1.bf16.xpose.msra.mxu0 0
        %2715 = vmatprep.subr.bf16.mxu0 0
        %2716 = vmatpush1.bf16.xpose.msra.mxu0 0
        %2717 = vmatprep.subr.bf16.mxu0 0
        %2718 = vmatpush1.bf16.xpose.msra.mxu0 0
        %2719 = vmatprep.subr.bf16.mxu0 0
        %2720 = vmatpush1.bf16.xpose.msra.mxu0 0
        %2721 = vmatprep.subr.bf16.mxu0 0
        %2722 = vmatpush1.bf16.xpose.msra.mxu0 0
        %2723 = vmatprep.subr.bf16.mxu0 0
        %2724 = vmatpush1.bf16.xpose.msra.mxu0 0
        %2725 = vmatprep.subr.bf16.mxu0 0
        %2726 = vmatpush1.bf16.xpose.msra.mxu0 0
        %2727 = vmatprep.subr.bf16.mxu0 0
        %2728 = vmatpush1.bf16.xpose.msra.mxu0 0
        %2729 = vmatprep.subr.bf16.mxu0 0
        %2730 = vmatpush1.bf16.xpose.msra.mxu0 0
        %2731 = vmatprep.mubr.bf16.mxu0 0
        %2732 = vmatmul.mubr.bf16.gmra.mrb[0].mxu0 %v2694
        %v2733 = vpop.f32.mrb[0].mxu0
        %v2734 = vadd.f32 0.0, %v2733
        %v2735 = vpop.f32.mrb[0].mxu0
        %v2736 = vpop.f32.mrb[0].mxu0
        %v2737 = vpop.f32.mrb[0].mxu0
        %2738 = vdwg.mxu0
        %2740 = vrot.lane.b32.xlu0 %v2591, 96
        %v2741 = vpop.permute.xlu0 %2740
        %v2743 = vsel %vm924, %v2591, 0
        %v2746 = vsel %vm924, %v2741, 0
        %2748 = vmatprep.subr.bf16.mxu0 0
        %2749 = vmatpush1.bf16.xpose.msra.mxu0 %v2746
        %2750 = vmatprep.subr.bf16.mxu0 0
        %2751 = vmatpush1.bf16.xpose.msra.mxu0 0
        %2752 = vmatprep.subr.bf16.mxu0 0
        %2753 = vmatpush1.bf16.xpose.msra.mxu0 0
        %2754 = vmatprep.subr.bf16.mxu0 0
        %2755 = vmatpush1.bf16.xpose.msra.mxu0 0
        %2756 = vmatprep.subr.bf16.mxu0 0
        %2757 = vmatpush1.bf16.xpose.msra.mxu0 0
        %2758 = vmatprep.subr.bf16.mxu0 0
        %2759 = vmatpush1.bf16.xpose.msra.mxu0 0
        %2760 = vmatprep.subr.bf16.mxu0 0
        %2761 = vmatpush1.bf16.xpose.msra.mxu0 0
        %2762 = vmatprep.subr.bf16.mxu0 0
        %2763 = vmatpush1.bf16.xpose.msra.mxu0 0
        %2764 = vmatprep.subr.bf16.mxu0 0
        %2765 = vmatpush1.bf16.xpose.msra.mxu0 0
        %2766 = vmatprep.subr.bf16.mxu0 0
        %2767 = vmatpush1.bf16.xpose.msra.mxu0 0
        %2768 = vmatprep.subr.bf16.mxu0 0
        %2769 = vmatpush1.bf16.xpose.msra.mxu0 0
        %2770 = vmatprep.subr.bf16.mxu0 0
        %2771 = vmatpush1.bf16.xpose.msra.mxu0 0
        %2772 = vmatprep.subr.bf16.mxu0 0
        %2773 = vmatpush1.bf16.xpose.msra.mxu0 0
        %2774 = vmatprep.subr.bf16.mxu0 0
        %2775 = vmatpush1.bf16.xpose.msra.mxu0 0
        %2776 = vmatprep.subr.bf16.mxu0 0
        %2777 = vmatpush1.bf16.xpose.msra.mxu0 0
        %2778 = vmatprep.subr.bf16.mxu0 0
        %2779 = vmatpush1.bf16.xpose.msra.mxu0 0
        %2780 = vmatprep.mubr.bf16.mxu0 0
        %2781 = vmatmul.mubr.bf16.gmra.mrb[0].mxu0 %v2743
        %v2782 = vpop.f32.mrb[0].mxu0
        %v2783 = vadd.f32 0.0, %v2782
        %v2784 = vpop.f32.mrb[0].mxu0
        %v2785 = vpop.f32.mrb[0].mxu0
        %v2786 = vpop.f32.mrb[0].mxu0
        %2787 = vdwg.mxu0
        %v2788 = vmul.f32 %v2636, 0.35355338
        %v2789 = vmul.f32 %v2685, 0.35355338
        %v2790 = vmul.f32 %v2734, 0.35355338
        %v2791 = vmul.f32 %v2783, 0.35355338
        %v2792 = vadd.f32 %v2788, %v838
        %v2793 = vadd.f32 %v2789, %v838
        %v2794 = vadd.f32 %v2790, %v838
        %v2795 = vadd.f32 %v2791, %v838
        %v2796 = vsel %vm924, %v2792, -inf
        %2797 = vmax.xlane.f32.xlu0 %v2796
        %v2798 = vpop.xlane.xlu0 %2797
        %v2799 = vsel %vm924, %v2793, -inf
        %2800 = vmax.xlane.f32.xlu0 %v2799
        %v2801 = vpop.xlane.xlu0 %2800
        %v2802 = vsel %vm924, %v2794, -inf
        %2803 = vmax.xlane.f32.xlu0 %v2802
        %v2804 = vpop.xlane.xlu0 %2803
        %v2805 = vsel %vm924, %v2795, -inf
        %2806 = vmax.xlane.f32.xlu0 %v2805
        %v2807 = vpop.xlane.xlu0 %2806
        %v2808 = vsub.f32 %v2792, %v2798
        %v2809 = vsub.f32 %v2793, %v2801
        %v2810 = vsub.f32 %v2794, %v2804
        %v2811 = vsub.f32 %v2795, %v2807
        %v2812 = vmul.f32 %v2808, 1.442695
        %v2813 = vpow.pop %v2812
        %v2814 = vmul.f32 %v2809, 1.442695
        %v2815 = vpow.pop %v2814
        %v2816 = vmul.f32 %v2810, 1.442695
        %v2817 = vpow.pop %v2816
        %v2818 = vmul.f32 %v2811, 1.442695
        %v2819 = vpow.pop %v2818
        %v2820 = vsel %vm924, %v2813, 0.0
        %2821 = vadd.xlane.f32.xlu0 %v2820
        %v2822 = vpop.xlane.xlu0 %2821
        %v2823 = vsel %vm924, %v2815, 0.0
        %2824 = vadd.xlane.f32.xlu0 %v2823
        %v2825 = vpop.xlane.xlu0 %2824
        %v2826 = vsel %vm924, %v2817, 0.0
        %2827 = vadd.xlane.f32.xlu0 %v2826
        %v2828 = vpop.xlane.xlu0 %2827
        %v2829 = vsel %vm924, %v2819, 0.0
        %2830 = vadd.xlane.f32.xlu0 %v2829
        %v2831 = vpop.xlane.xlu0 %2830
        %v2832 = vrcp.pop %v2822
        %v2833 = vrcp.pop %v2825
        %v2834 = vrcp.pop %v2828
        %v2835 = vrcp.pop %v2831
        %v2836 = vmul.f32 %v2813, %v2832
        %v2837 = vmul.f32 %v2815, %v2833
        %v2838 = vmul.f32 %v2817, %v2834
        %v2839 = vmul.f32 %v2819, %v2835
        %v2840 = vpack.c.bf16 %v2836, %v2836
        %v2841 = vpack.c.bf16 %v2837, %v2837
        %v2842 = vpack.c.bf16 %v2838, %v2838
        %v2843 = vpack.c.bf16 %v2839, %v2839
        %2844 = vrot.lane.b32.xlu0 %v2588, 64
        %v2845 = vpop.permute.xlu0 %2844
        %v2847 = vsel %vm924, %v2840, 0
        %v2850 = vsel %vm1179, %v2845, 0
        %2852 = vmatprep.subr.bf16.mxu0 0
        %2853 = vmatpush1.bf16.msra.mxu0 %v2850
        %2854 = vmatprep.subr.bf16.mxu0 0
        %2855 = vmatpush1.bf16.msra.mxu0 0
        %2856 = vmatprep.subr.bf16.mxu0 0
        %2857 = vmatpush1.bf16.msra.mxu0 0
        %2858 = vmatprep.subr.bf16.mxu0 0
        %2859 = vmatpush1.bf16.msra.mxu0 0
        %2860 = vmatprep.subr.bf16.mxu0 0
        %2861 = vmatpush1.bf16.msra.mxu0 0
        %2862 = vmatprep.subr.bf16.mxu0 0
        %2863 = vmatpush1.bf16.msra.mxu0 0
        %2864 = vmatprep.subr.bf16.mxu0 0
        %2865 = vmatpush1.bf16.msra.mxu0 0
        %2866 = vmatprep.subr.bf16.mxu0 0
        %2867 = vmatpush1.bf16.msra.mxu0 0
        %2868 = vmatprep.subr.bf16.mxu0 0
        %2869 = vmatpush1.bf16.msra.mxu0 0
        %2870 = vmatprep.subr.bf16.mxu0 0
        %2871 = vmatpush1.bf16.msra.mxu0 0
        %2872 = vmatprep.subr.bf16.mxu0 0
        %2873 = vmatpush1.bf16.msra.mxu0 0
        %2874 = vmatprep.subr.bf16.mxu0 0
        %2875 = vmatpush1.bf16.msra.mxu0 0
        %2876 = vmatprep.subr.bf16.mxu0 0
        %2877 = vmatpush1.bf16.msra.mxu0 0
        %2878 = vmatprep.subr.bf16.mxu0 0
        %2879 = vmatpush1.bf16.msra.mxu0 0
        %2880 = vmatprep.subr.bf16.mxu0 0
        %2881 = vmatpush1.bf16.msra.mxu0 0
        %2882 = vmatprep.subr.bf16.mxu0 0
        %2883 = vmatpush1.bf16.msra.mxu0 0
        %2884 = vmatprep.mubr.bf16.mxu0 0
        %2885 = vmatmul.mubr.bf16.gmra.mrb[0].mxu0 %v2847
        %v2886 = vpop.f32.mrb[0].mxu0
        %v2887 = vadd.f32 0.0, %v2886
        %v2888 = vpop.f32.mrb[0].mxu0
        %v2889 = vpop.f32.mrb[0].mxu0
        %v2890 = vpop.f32.mrb[0].mxu0
        %2891 = vdwg.mxu0
        %2892 = vrot.lane.b32.xlu0 %v2589, 64
        %v2893 = vpop.permute.xlu0 %2892
        %v2895 = vsel %vm924, %v2841, 0
        %v2898 = vsel %vm1179, %v2893, 0
        %2900 = vmatprep.subr.bf16.mxu0 0
        %2901 = vmatpush1.bf16.msra.mxu0 %v2898
        %2902 = vmatprep.subr.bf16.mxu0 0
        %2903 = vmatpush1.bf16.msra.mxu0 0
        %2904 = vmatprep.subr.bf16.mxu0 0
        %2905 = vmatpush1.bf16.msra.mxu0 0
        %2906 = vmatprep.subr.bf16.mxu0 0
        %2907 = vmatpush1.bf16.msra.mxu0 0
        %2908 = vmatprep.subr.bf16.mxu0 0
        %2909 = vmatpush1.bf16.msra.mxu0 0
        %2910 = vmatprep.subr.bf16.mxu0 0
        %2911 = vmatpush1.bf16.msra.mxu0 0
        %2912 = vmatprep.subr.bf16.mxu0 0
        %2913 = vmatpush1.bf16.msra.mxu0 0
        %2914 = vmatprep.subr.bf16.mxu0 0
        %2915 = vmatpush1.bf16.msra.mxu0 0
        %2916 = vmatprep.subr.bf16.mxu0 0
        %2917 = vmatpush1.bf16.msra.mxu0 0
        %2918 = vmatprep.subr.bf16.mxu0 0
        %2919 = vmatpush1.bf16.msra.mxu0 0
        %2920 = vmatprep.subr.bf16.mxu0 0
        %2921 = vmatpush1.bf16.msra.mxu0 0
        %2922 = vmatprep.subr.bf16.mxu0 0
        %2923 = vmatpush1.bf16.msra.mxu0 0
        %2924 = vmatprep.subr.bf16.mxu0 0
        %2925 = vmatpush1.bf16.msra.mxu0 0
        %2926 = vmatprep.subr.bf16.mxu0 0
        %2927 = vmatpush1.bf16.msra.mxu0 0
        %2928 = vmatprep.subr.bf16.mxu0 0
        %2929 = vmatpush1.bf16.msra.mxu0 0
        %2930 = vmatprep.subr.bf16.mxu0 0
        %2931 = vmatpush1.bf16.msra.mxu0 0
        %2932 = vmatprep.mubr.bf16.mxu0 0
        %2933 = vmatmul.mubr.bf16.gmra.mrb[0].mxu0 %v2895
        %v2934 = vpop.f32.mrb[0].mxu0
        %v2935 = vadd.f32 0.0, %v2934
        %v2936 = vpop.f32.mrb[0].mxu0
        %v2937 = vpop.f32.mrb[0].mxu0
        %v2938 = vpop.f32.mrb[0].mxu0
        %2939 = vdwg.mxu0
        %2940 = vrot.lane.b32.xlu0 %v2590, 64
        %v2941 = vpop.permute.xlu0 %2940
        %v2943 = vsel %vm924, %v2842, 0
        %v2946 = vsel %vm1179, %v2941, 0
        %2948 = vmatprep.subr.bf16.mxu0 0
        %2949 = vmatpush1.bf16.msra.mxu0 %v2946
        %2950 = vmatprep.subr.bf16.mxu0 0
        %2951 = vmatpush1.bf16.msra.mxu0 0
        %2952 = vmatprep.subr.bf16.mxu0 0
        %2953 = vmatpush1.bf16.msra.mxu0 0
        %2954 = vmatprep.subr.bf16.mxu0 0
        %2955 = vmatpush1.bf16.msra.mxu0 0
        %2956 = vmatprep.subr.bf16.mxu0 0
        %2957 = vmatpush1.bf16.msra.mxu0 0
        %2958 = vmatprep.subr.bf16.mxu0 0
        %2959 = vmatpush1.bf16.msra.mxu0 0
        %2960 = vmatprep.subr.bf16.mxu0 0
        %2961 = vmatpush1.bf16.msra.mxu0 0
        %2962 = vmatprep.subr.bf16.mxu0 0
        %2963 = vmatpush1.bf16.msra.mxu0 0
        %2964 = vmatprep.subr.bf16.mxu0 0
        %2965 = vmatpush1.bf16.msra.mxu0 0
        %2966 = vmatprep.subr.bf16.mxu0 0
        %2967 = vmatpush1.bf16.msra.mxu0 0
        %2968 = vmatprep.subr.bf16.mxu0 0
        %2969 = vmatpush1.bf16.msra.mxu0 0
        %2970 = vmatprep.subr.bf16.mxu0 0
        %2971 = vmatpush1.bf16.msra.mxu0 0
        %2972 = vmatprep.subr.bf16.mxu0 0
        %2973 = vmatpush1.bf16.msra.mxu0 0
        %2974 = vmatprep.subr.bf16.mxu0 0
        %2975 = vmatpush1.bf16.msra.mxu0 0
        %2976 = vmatprep.subr.bf16.mxu0 0
        %2977 = vmatpush1.bf16.msra.mxu0 0
        %2978 = vmatprep.subr.bf16.mxu0 0
        %2979 = vmatpush1.bf16.msra.mxu0 0
        %2980 = vmatprep.mubr.bf16.mxu0 0
        %2981 = vmatmul.mubr.bf16.gmra.mrb[0].mxu0 %v2943
        %v2982 = vpop.f32.mrb[0].mxu0
        %v2983 = vadd.f32 0.0, %v2982
        %v2984 = vpop.f32.mrb[0].mxu0
        %v2985 = vpop.f32.mrb[0].mxu0
        %v2986 = vpop.f32.mrb[0].mxu0
        %2987 = vdwg.mxu0
        %2988 = vrot.lane.b32.xlu0 %v2591, 64
        %v2989 = vpop.permute.xlu0 %2988
        %v2991 = vsel %vm924, %v2843, 0
        %v2994 = vsel %vm1179, %v2989, 0
        %2996 = vmatprep.subr.bf16.mxu0 0
        %2997 = vmatpush1.bf16.msra.mxu0 %v2994
        %2998 = vmatprep.subr.bf16.mxu0 0
        %2999 = vmatpush1.bf16.msra.mxu0 0
        %3000 = vmatprep.subr.bf16.mxu0 0
        %3001 = vmatpush1.bf16.msra.mxu0 0
        %3002 = vmatprep.subr.bf16.mxu0 0
        %3003 = vmatpush1.bf16.msra.mxu0 0
        %3004 = vmatprep.subr.bf16.mxu0 0
        %3005 = vmatpush1.bf16.msra.mxu0 0
        %3006 = vmatprep.subr.bf16.mxu0 0
        %3007 = vmatpush1.bf16.msra.mxu0 0
        %3008 = vmatprep.subr.bf16.mxu0 0
        %3009 = vmatpush1.bf16.msra.mxu0 0
        %3010 = vmatprep.subr.bf16.mxu0 0
        %3011 = vmatpush1.bf16.msra.mxu0 0
        %3012 = vmatprep.subr.bf16.mxu0 0
        %3013 = vmatpush1.bf16.msra.mxu0 0
        %3014 = vmatprep.subr.bf16.mxu0 0
        %3015 = vmatpush1.bf16.msra.mxu0 0
        %3016 = vmatprep.subr.bf16.mxu0 0
        %3017 = vmatpush1.bf16.msra.mxu0 0
        %3018 = vmatprep.subr.bf16.mxu0 0
        %3019 = vmatpush1.bf16.msra.mxu0 0
        %3020 = vmatprep.subr.bf16.mxu0 0
        %3021 = vmatpush1.bf16.msra.mxu0 0
        %3022 = vmatprep.subr.bf16.mxu0 0
        %3023 = vmatpush1.bf16.msra.mxu0 0
        %3024 = vmatprep.subr.bf16.mxu0 0
        %3025 = vmatpush1.bf16.msra.mxu0 0
        %3026 = vmatprep.subr.bf16.mxu0 0
        %3027 = vmatpush1.bf16.msra.mxu0 0
        %3028 = vmatprep.mubr.bf16.mxu0 0
        %3029 = vmatmul.mubr.bf16.gmra.mrb[0].mxu0 %v2991
        %v3030 = vpop.f32.mrb[0].mxu0
        %v3031 = vadd.f32 0.0, %v3030
        %v3032 = vpop.f32.mrb[0].mxu0
        %v3033 = vpop.f32.mrb[0].mxu0
        %v3034 = vpop.f32.mrb[0].mxu0
        %3035 = vdwg.mxu0
        %3037 = vrot.lane.b32.xlu0 %v2935, 8
        %v3038 = vpop.permute.xlu0 %3037
        %3041 = vrot.lane.b32.xlu0 %v2983, 16
        %v3042 = vpop.permute.xlu0 %3041
        %3045 = vrot.lane.b32.xlu0 %v3031, 24
        %v3046 = vpop.permute.xlu0 %3045
        %v3048 = vsel %vm924, %v2887, %v3038
        %v3049 = vsel %vm1380, %v3048, %v3042
        %v3050 = vsel %vm1382, %v3049, %v3046
        %v3051 = vpack.c.bf16 %v3050, %v3050
        %s3052 = scalar_lea.vmem %s6, 32
        %v3053 = vld [vmem:[%s3052] sm:$0xf]
        %v3054 = vld [vmem:[%s3052 + $0x4] sm:$0xf]
        %v3055 = vld [vmem:[%s3052 + $0x8] sm:$0xf]
        %v3056 = vld [vmem:[%s3052 + $0xc] sm:$0xf]
        %s3057 = scalar_lea.vmem %s7, 2
        %v3058 = vld [vmem:[%s3057] sm:$0x1]
        %v3060 = vlaneseq
        %v3061 = vshrl.u32 %v3060, 7
        %v3062 = vsub.s32 0, %v3061
        %v3063 = vrot.slane %v3058, %v3062
        %v3069 = vunpack.c.l.b16 %v3053
        %v3070 = vunpack.c.l.b16 %v3054
        %v3071 = vunpack.c.l.b16 %v3055
        %v3072 = vunpack.c.l.b16 %v3056
        %v3073 = vpack.c.b16 %v3070, %v3069
        %v3074 = vpack.c.b16 %v3072, %v3071
        %v3078 = vsel %vm804, %v3051, 0
        %3080 = vmatprep.subr.bf16.mxu0 0
        %3081 = vmatpush1.bf16.msra.mxu0 %v3073
        %3082 = vmatprep.subr.bf16.mxu0 0
        %3083 = vmatpush1.bf16.msra.mxu0 %v3074
        %3084 = vmatprep.subr.bf16.mxu0 0
        %3085 = vmatpush1.bf16.msra.mxu0 0
        %3086 = vmatprep.subr.bf16.mxu0 0
        %3087 = vmatpush1.bf16.msra.mxu0 0
        %3088 = vmatprep.subr.bf16.mxu0 0
        %3089 = vmatpush1.bf16.msra.mxu0 0
        %3090 = vmatprep.subr.bf16.mxu0 0
        %3091 = vmatpush1.bf16.msra.mxu0 0
        %3092 = vmatprep.subr.bf16.mxu0 0
        %3093 = vmatpush1.bf16.msra.mxu0 0
        %3094 = vmatprep.subr.bf16.mxu0 0
        %3095 = vmatpush1.bf16.msra.mxu0 0
        %3096 = vmatprep.subr.bf16.mxu0 0
        %3097 = vmatpush1.bf16.msra.mxu0 0
        %3098 = vmatprep.subr.bf16.mxu0 0
        %3099 = vmatpush1.bf16.msra.mxu0 0
        %3100 = vmatprep.subr.bf16.mxu0 0
        %3101 = vmatpush1.bf16.msra.mxu0 0
        %3102 = vmatprep.subr.bf16.mxu0 0
        %3103 = vmatpush1.bf16.msra.mxu0 0
        %3104 = vmatprep.subr.bf16.mxu0 0
        %3105 = vmatpush1.bf16.msra.mxu0 0
        %3106 = vmatprep.subr.bf16.mxu0 0
        %3107 = vmatpush1.bf16.msra.mxu0 0
        %3108 = vmatprep.subr.bf16.mxu0 0
        %3109 = vmatpush1.bf16.msra.mxu0 0
        %3110 = vmatprep.subr.bf16.mxu0 0
        %3111 = vmatpush1.bf16.msra.mxu0 0
        %3112 = vmatprep.mubr.bf16.mxu0 0
        %3113 = vmatmul.mubr.bf16.gmra.mrb[0].mxu0 %v3078
        %v3114 = vpop.f32.mrb[0].mxu0
        %v3115 = vadd.f32 %v3063, %v3114
        %v3116 = vpop.f32.mrb[0].mxu0
        %v3117 = vpop.f32.mrb[0].mxu0
        %v3118 = vpop.f32.mrb[0].mxu0
        %3119 = vdwg.mxu0
        %v3120 = vadd.f32 %v2508, %v3115
        %s3121 = scalar_lea.vmem %s8, 2
        %v3122 = vld [vmem:[%s3121] sm:$0x1]
        %s3123 = scalar_lea.vmem %s9, 2
        %v3124 = vld [vmem:[%s3123] sm:$0x1]
        %v3125 = vsel %vm804, %v3120, 0.0
        %3126 = vadd.xlane.f32.xlu0 %v3125
        %v3127 = vpop.xlane.xlu0 %3126
        %v3128 = vmul.f32 %v3127, %v808
        %v3129 = vsub.f32 %v3120, %v3128
        %v3130 = vmul.f32 %v3129, %v3129
        %v3131 = vsel %vm804, %v3130, 0.0
        %3132 = vadd.xlane.f32.xlu0 %v3131
        %v3133 = vpop.xlane.xlu0 %3132
        %v3134 = vmul.f32 %v3133, %v808
        %v3135 = vadd.f32 %v3134, 1e-12
        %v3136 = vrsqrt.pop %v3135
        %v3137 = vmul.f32 %v3129, %v3136
        %v3139 = vlaneseq
        %v3140 = vshrl.u32 %v3139, 7
        %v3141 = vsub.s32 0, %v3140
        %v3142 = vrot.slane %v3122, %v3141
        %v3144 = vmul.f32 %v3137, %v3142
        %v3146 = vlaneseq
        %v3147 = vshrl.u32 %v3146, 7
        %v3148 = vsub.s32 0, %v3147
        %v3149 = vrot.slane %v3124, %v3148
        %v3151 = vadd.f32 %v3144, %v3149
        %v3152 = vpack.c.bf16 %v3151, %v3151
        %s3153 = scalar_lea.vmem %s10, 32
        %v3154 = vld [vmem:[%s3153] sm:$0xf]
        %v3155 = vld [vmem:[%s3153 + $0x4] sm:$0xf]
        %v3156 = vld [vmem:[%s3153 + $0x8] sm:$0xf]
        %v3157 = vld [vmem:[%s3153 + $0xc] sm:$0xf]
        %s3158 = scalar_lea.vmem %s11, 2
        %v3159 = vld [vmem:[%s3158] sm:$0x1]
        %v3161 = vlaneseq
        %v3162 = vshrl.u32 %v3161, 7
        %v3163 = vsub.s32 0, %v3162
        %v3164 = vrot.slane %v3159, %v3163
        %v3170 = vunpack.c.l.b16 %v3154
        %v3171 = vunpack.c.l.b16 %v3155
        %v3172 = vunpack.c.l.b16 %v3156
        %v3173 = vunpack.c.l.b16 %v3157
        %v3174 = vpack.c.b16 %v3171, %v3170
        %v3175 = vpack.c.b16 %v3173, %v3172
        %v3179 = vsel %vm804, %v3152, 0
        %3181 = vmatprep.subr.bf16.mxu0 0
        %3182 = vmatpush1.bf16.msra.mxu0 %v3174
        %3183 = vmatprep.subr.bf16.mxu0 0
        %3184 = vmatpush1.bf16.msra.mxu0 %v3175
        %3185 = vmatprep.subr.bf16.mxu0 0
        %3186 = vmatpush1.bf16.msra.mxu0 0
        %3187 = vmatprep.subr.bf16.mxu0 0
        %3188 = vmatpush1.bf16.msra.mxu0 0
        %3189 = vmatprep.subr.bf16.mxu0 0
        %3190 = vmatpush1.bf16.msra.mxu0 0
        %3191 = vmatprep.subr.bf16.mxu0 0
        %3192 = vmatpush1.bf16.msra.mxu0 0
        %3193 = vmatprep.subr.bf16.mxu0 0
        %3194 = vmatpush1.bf16.msra.mxu0 0
        %3195 = vmatprep.subr.bf16.mxu0 0
        %3196 = vmatpush1.bf16.msra.mxu0 0
        %3197 = vmatprep.subr.bf16.mxu0 0
        %3198 = vmatpush1.bf16.msra.mxu0 0
        %3199 = vmatprep.subr.bf16.mxu0 0
        %3200 = vmatpush1.bf16.msra.mxu0 0
        %3201 = vmatprep.subr.bf16.mxu0 0
        %3202 = vmatpush1.bf16.msra.mxu0 0
        %3203 = vmatprep.subr.bf16.mxu0 0
        %3204 = vmatpush1.bf16.msra.mxu0 0
        %3205 = vmatprep.subr.bf16.mxu0 0
        %3206 = vmatpush1.bf16.msra.mxu0 0
        %3207 = vmatprep.subr.bf16.mxu0 0
        %3208 = vmatpush1.bf16.msra.mxu0 0
        %3209 = vmatprep.subr.bf16.mxu0 0
        %3210 = vmatpush1.bf16.msra.mxu0 0
        %3211 = vmatprep.subr.bf16.mxu0 0
        %3212 = vmatpush1.bf16.msra.mxu0 0
        %3213 = vmatprep.mubr.bf16.mxu0 0
        %3214 = vmatmul.mubr.bf16.gmra.mrb[0].mxu0 %v3179
        %v3215 = vpop.f32.mrb[0].mxu0
        %v3216 = vadd.f32 %v3164, %v3215
        %v3217 = vpop.f32.mrb[0].mxu0
        %v3218 = vpop.f32.mrb[0].mxu0
        %v3219 = vpop.f32.mrb[0].mxu0
        %3220 = vdwg.mxu0
        %v3221 = vmul.f32 %v3216, 0.5
        %v3222 = vmul.f32 %v3216, 0.044715
        %v3223 = vmul.f32 %v3222, %v3216
        %v3224 = vmul.f32 %v3223, %v3216
        %v3225 = vadd.f32 %v3216, %v3224
        %v3226 = vmul.f32 %v3225, 0.7978846
        %v3227 = vtanh.pop %v3226
        %v3228 = vadd.f32 %v3227, 1.0
        %v3229 = vmul.f32 %v3221, %v3228
        %v3230 = vpack.c.bf16 %v3229, %v3229
        %s3231 = scalar_lea.vmem %s12, 64
        %v3232 = vld [vmem:[%s3231] sm:$0xf]
        %v3233 = vld [vmem:[%s3231 + $0x4] sm:$0xf]
        %v3234 = vld [vmem:[%s3231 + $0x8] sm:$0xf]
        %v3235 = vld [vmem:[%s3231 + $0xc] sm:$0xf]
        %v3236 = vld [vmem:[%s3231 + $0x10] sm:$0xf]
        %v3237 = vld [vmem:[%s3231 + $0x14] sm:$0xf]
        %v3238 = vld [vmem:[%s3231 + $0x18] sm:$0xf]
        %v3239 = vld [vmem:[%s3231 + $0x1c] sm:$0xf]
        %s3240 = scalar_lea.vmem %s13, 2
        %v3241 = vld [vmem:[%s3240] sm:$0x1]
        %v3243 = vlaneseq
        %v3244 = vshrl.u32 %v3243, 7
        %v3245 = vsub.s32 0, %v3244
        %v3246 = vrot.slane %v3241, %v3245
        %v3256 = vunpack.c.l.b16 %v3232
        %v3257 = vunpack.c.l.b16 %v3233
        %v3258 = vunpack.c.l.b16 %v3234
        %v3259 = vunpack.c.l.b16 %v3235
        %v3260 = vunpack.c.l.b16 %v3236
        %v3261 = vunpack.c.l.b16 %v3237
        %v3262 = vunpack.c.l.b16 %v3238
        %v3263 = vunpack.c.l.b16 %v3239
        %v3264 = vpack.c.b16 %v3257, %v3256
        %v3265 = vpack.c.b16 %v3259, %v3258
        %v3266 = vpack.c.b16 %v3261, %v3260
        %v3267 = vpack.c.b16 %v3263, %v3262
        %v3273 = vsel %vm1597, %v3230, 0
        %3275 = vmatprep.subr.bf16.mxu0 0
        %3276 = vmatpush1.bf16.msra.mxu0 %v3264
        %3277 = vmatprep.subr.bf16.mxu0 0
        %3278 = vmatpush1.bf16.msra.mxu0 %v3265
        %3279 = vmatprep.subr.bf16.mxu0 0
        %3280 = vmatpush1.bf16.msra.mxu0 %v3266
        %3281 = vmatprep.subr.bf16.mxu0 0
        %3282 = vmatpush1.bf16.msra.mxu0 %v3267
        %3283 = vmatprep.subr.bf16.mxu0 0
        %3284 = vmatpush1.bf16.msra.mxu0 0
        %3285 = vmatprep.subr.bf16.mxu0 0
        %3286 = vmatpush1.bf16.msra.mxu0 0
        %3287 = vmatprep.subr.bf16.mxu0 0
        %3288 = vmatpush1.bf16.msra.mxu0 0
        %3289 = vmatprep.subr.bf16.mxu0 0
        %3290 = vmatpush1.bf16.msra.mxu0 0
        %3291 = vmatprep.subr.bf16.mxu0 0
        %3292 = vmatpush1.bf16.msra.mxu0 0
        %3293 = vmatprep.subr.bf16.mxu0 0
        %3294 = vmatpush1.bf16.msra.mxu0 0
        %3295 = vmatprep.subr.bf16.mxu0 0
        %3296 = vmatpush1.bf16.msra.mxu0 0
        %3297 = vmatprep.subr.bf16.mxu0 0
        %3298 = vmatpush1.bf16.msra.mxu0 0
        %3299 = vmatprep.subr.bf16.mxu0 0
        %3300 = vmatpush1.bf16.msra.mxu0 0
        %3301 = vmatprep.subr.bf16.mxu0 0
        %3302 = vmatpush1.bf16.msra.mxu0 0
        %3303 = vmatprep.subr.bf16.mxu0 0
        %3304 = vmatpush1.bf16.msra.mxu0 0
        %3305 = vmatprep.subr.bf16.mxu0 0
        %3306 = vmatpush1.bf16.msra.mxu0 0
        %3307 = vmatprep.mubr.bf16.mxu0 0
        %3308 = vmatmul.mubr.bf16.gmra.mrb[0].mxu0 %v3273
        %v3309 = vpop.f32.mrb[0].mxu0
        %v3310 = vadd.f32 %v3246, %v3309
        %v3311 = vpop.f32.mrb[0].mxu0
        %v3312 = vpop.f32.mrb[0].mxu0
        %v3313 = vpop.f32.mrb[0].mxu0
        %3314 = vdwg.mxu0
        %v3315 = vadd.f32 %v3151, %v3310
        %s3316 = scalar_lea.vmem %s14, 2
        %v3317 = vld [vmem:[%s3316] sm:$0x1]
        %s3318 = scalar_lea.vmem %s15, 2
        %v3319 = vld [vmem:[%s3318] sm:$0x1]
        %v3320 = vsel %vm804, %v3315, 0.0
        %3321 = vadd.xlane.f32.xlu0 %v3320
        %v3322 = vpop.xlane.xlu0 %3321
        %v3323 = vmul.f32 %v3322, %v808
        %v3324 = vsub.f32 %v3315, %v3323
        %v3325 = vmul.f32 %v3324, %v3324
        %v3326 = vsel %vm804, %v3325, 0.0
        %3327 = vadd.xlane.f32.xlu0 %v3326
        %v3328 = vpop.xlane.xlu0 %3327
        %v3329 = vmul.f32 %v3328, %v808
        %v3330 = vadd.f32 %v3329, 1e-12
        %v3331 = vrsqrt.pop %v3330
        %v3332 = vmul.f32 %v3324, %v3331
        %v3334 = vlaneseq
        %v3335 = vshrl.u32 %v3334, 7
        %v3336 = vsub.s32 0, %v3335
        %v3337 = vrot.slane %v3317, %v3336
        %v3339 = vmul.f32 %v3332, %v3337
        %v3341 = vlaneseq
        %v3342 = vshrl.u32 %v3341, 7
        %v3343 = vsub.s32 0, %v3342
        %v3344 = vrot.slane %v3319, %v3343
        %v3346 = vadd.f32 %v3339, %v3344
        %v3347 = vpack.c.bf16 %v2508, %v1670
        %v3348 = vpack.c.bf16 %v3346, %v3346
        %v3349 = vld [vmem:[%s16] sm:$0xf]
        %v3350 = vld [vmem:[%s16 + $0x4] sm:$0xf]
        %v3351 = vld [vmem:[%s16 + $0x8] sm:$0xf]
        %v3352 = vld [vmem:[%s16 + $0xc] sm:$0xf]
        %v3353 = vld [vmem:[%s17] sm:$0x1]
        %v3355 = vlaneseq
        %v3356 = vshrl.u32 %v3355, 7
        %v3357 = vsub.s32 0, %v3356
        %v3358 = vrot.slane %v3353, %v3357
        %v3364 = vunpack.c.l.b16 %v3349
        %v3365 = vunpack.c.l.b16 %v3350
        %v3366 = vunpack.c.l.b16 %v3351
        %v3367 = vunpack.c.l.b16 %v3352
        %v3368 = vpack.c.b16 %v3365, %v3364
        %v3369 = vpack.c.b16 %v3367, %v3366
        %v3373 = vsel %vm804, %v3347, 0
        %v3376 = vsel %vm804, %v3348, 0
        %3378 = vmatprep.subr.bf16.mxu0 0
        %3379 = vmatpush1.bf16.msra.mxu0 %v3368
        %3380 = vmatprep.subr.bf16.mxu0 0
        %3381 = vmatpush1.bf16.msra.mxu0 %v3369
        %3382 = vmatprep.subr.bf16.mxu0 0
        %3383 = vmatpush1.bf16.msra.mxu0 0
        %3384 = vmatprep.subr.bf16.mxu0 0
        %3385 = vmatpush1.bf16.msra.mxu0 0
        %3386 = vmatprep.subr.bf16.mxu0 0
        %3387 = vmatpush1.bf16.msra.mxu0 0
        %3388 = vmatprep.subr.bf16.mxu0 0
        %3389 = vmatpush1.bf16.msra.mxu0 0
        %3390 = vmatprep.subr.bf16.mxu0 0
        %3391 = vmatpush1.bf16.msra.mxu0 0
        %3392 = vmatprep.subr.bf16.mxu0 0
        %3393 = vmatpush1.bf16.msra.mxu0 0
        %3394 = vmatprep.subr.bf16.mxu0 0
        %3395 = vmatpush1.bf16.msra.mxu0 0
        %3396 = vmatprep.subr.bf16.mxu0 0
        %3397 = vmatpush1.bf16.msra.mxu0 0
        %3398 = vmatprep.subr.bf16.mxu0 0
        %3399 = vmatpush1.bf16.msra.mxu0 0
        %3400 = vmatprep.subr.bf16.mxu0 0
        %3401 = vmatpush1.bf16.msra.mxu0 0
        %3402 = vmatprep.subr.bf16.mxu0 0
        %3403 = vmatpush1.bf16.msra.mxu0 0
        %3404 = vmatprep.subr.bf16.mxu0 0
        %3405 = vmatpush1.bf16.msra.mxu0 0
        %3406 = vmatprep.subr.bf16.mxu0 0
        %3407 = vmatpush1.bf16.msra.mxu0 0
        %3408 = vmatprep.subr.bf16.mxu0 0
        %3409 = vmatpush1.bf16.msra.mxu0 0
        %3410 = vmatprep.mubr.bf16.mxu0 0
        %3411 = vmatmul.mubr.bf16.gmra.mrb[0].mxu0 %v3373
        %v3412 = vpop.f32.mrb[0].mxu0
        %v3413 = vadd.f32 %v3358, %v3412
        %v3414 = vpop.f32.mrb[0].mxu0
        %v3415 = vpop.f32.mrb[0].mxu0
        %v3416 = vadd.f32 %v3358, %v3415
        %v3417 = vpop.f32.mrb[0].mxu0
        %3418 = vmatprep.mubr.bf16.mxu0 0
        %3419 = vmatmul.mubr.bf16.gmra.mrb[0].mxu0 %v3376
        %v3420 = vpop.f32.mrb[0].mxu0
        %v3421 = vadd.f32 %v3358, %v3420
        %v3422 = vpop.f32.mrb[0].mxu0
        %v3423 = vpop.f32.mrb[0].mxu0
        %v3424 = vpop.f32.mrb[0].mxu0
        %3425 = vdwg.mxu0
        %v3430 = vrot.slane 0.0, 7
        %v3431 = vrot.slane %v3413, 7
        %v3432 = vrot.slane %v3416, 7
        %v3433 = vrot.slane %v3421, 7
        %vm3438 = vcmask 1040384
        %v3439 = vsel %vm3438, 0.0, %v3430
        %v3440 = vsel %vm3438, 0.0, %v3431
        %v3441 = vsel %vm3438, 0.0, %v3432
        %v3442 = vsel %vm3438, 0.0, %v3433
        %v3443 = vsel %vm3438, %v3430, 0.0
        %v3444 = vsel %vm3438, %v3431, 0.0
        %v3445 = vsel %vm3438, %v3432, 0.0
        %v3446 = vsel %vm3438, %v3433, 0.0
        %v3447 = vpack.c.bf16 %v3440, %v3439
        %v3448 = vpack.c.bf16 %v3441, %v3441
        %v3449 = vld [vmem:[%s18] sm:$0xf]
        %v3450 = vld [vmem:[%s18 + $0x4] sm:$0xf]
        %v3451 = vld [vmem:[%s18 + $0x8] sm:$0xf]
        %v3452 = vld [vmem:[%s18 + $0xc] sm:$0xf]
        %vm3459 = vcmask 1046528
        %v3460 = vrot.slane %v3439, 1
        %v3461 = vrot.slane %v3443, 1
        %v3462 = vsel %vm3459, %v3460, %v3461
        %v3463 = vrot.slane %v3440, 1
        %v3464 = vrot.slane %v3444, 1
        %v3465 = vsel %vm3459, %v3463, %v3464
        %v3466 = vrot.slane %v3441, 1
        %v3467 = vrot.slane %v3445, 1
        %v3468 = vsel %vm3459, %v3466, %v3467
        %v3472 = vpack.c.bf16 %v3465, %v3462
        %v3473 = vpack.c.bf16 %v3468, %v3468
        %s3474 = scalar_lea.vmem %s18, 16
        %v3475 = vld [vmem:[%s3474] sm:$0xf]
        %v3476 = vld [vmem:[%s3474 + $0x4] sm:$0xf]
        %v3477 = vld [vmem:[%s3474 + $0x8] sm:$0xf]
        %v3478 = vld [vmem:[%s3474 + $0xc] sm:$0xf]
        %v3483 = vunpack.c.l.b16 %v3475
        %v3484 = vunpack.c.l.b16 %v3476
        %v3485 = vunpack.c.l.b16 %v3477
        %v3486 = vunpack.c.l.b16 %v3478
        %v3487 = vpack.c.b16 %v3484, %v3483
        %v3488 = vpack.c.b16 %v3486, %v3485
        %v3492 = vsel %vm804, %v3472, 0
        %v3495 = vsel %vm804, %v3473, 0
        %3497 = vmatprep.subr.bf16.mxu0 0
        %3498 = vmatpush1.bf16.msra.mxu0 %v3487
        %3499 = vmatprep.subr.bf16.mxu0 0
        %3500 = vmatpush1.bf16.msra.mxu0 %v3488
        %3501 = vmatprep.subr.bf16.mxu0 0
        %3502 = vmatpush1.bf16.msra.mxu0 0
        %3503 = vmatprep.subr.bf16.mxu0 0
        %3504 = vmatpush1.bf16.msra.mxu0 0
        %3505 = vmatprep.subr.bf16.mxu0 0
        %3506 = vmatpush1.bf16.msra.mxu0 0
        %3507 = vmatprep.subr.bf16.mxu0 0
        %3508 = vmatpush1.bf16.msra.mxu0 0
        %3509 = vmatprep.subr.bf16.mxu0 0
        %3510 = vmatpush1.bf16.msra.mxu0 0
        %3511 = vmatprep.subr.bf16.mxu0 0
        %3512 = vmatpush1.bf16.msra.mxu0 0
        %3513 = vmatprep.subr.bf16.mxu0 0
        %3514 = vmatpush1.bf16.msra.mxu0 0
        %3515 = vmatprep.subr.bf16.mxu0 0
        %3516 = vmatpush1.bf16.msra.mxu0 0
        %3517 = vmatprep.subr.bf16.mxu0 0
        %3518 = vmatpush1.bf16.msra.mxu0 0
        %3519 = vmatprep.subr.bf16.mxu0 0
        %3520 = vmatpush1.bf16.msra.mxu0 0
        %3521 = vmatprep.subr.bf16.mxu0 0
        %3522 = vmatpush1.bf16.msra.mxu0 0
        %3523 = vmatprep.subr.bf16.mxu0 0
        %3524 = vmatpush1.bf16.msra.mxu0 0
        %3525 = vmatprep.subr.bf16.mxu0 0
        %3526 = vmatpush1.bf16.msra.mxu0 0
        %3527 = vmatprep.subr.bf16.mxu0 0
        %3528 = vmatpush1.bf16.msra.mxu0 0
        %3529 = vmatprep.mubr.bf16.mxu0 0
        %3530 = vmatmul.mubr.bf16.gmra.mrb[0].mxu0 %v3492
        %v3531 = vpop.f32.mrb[0].mxu0
        %v3532 = vadd.f32 0.0, %v3531
        %v3533 = vpop.f32.mrb[0].mxu0
        %v3534 = vpop.f32.mrb[0].mxu0
        %v3535 = vadd.f32 0.0, %v3534
        %v3536 = vpop.f32.mrb[0].mxu0
        %3537 = vmatprep.mubr.bf16.mxu0 0
        %3538 = vmatmul.mubr.bf16.gmra.mrb[0].mxu0 %v3495
        %v3539 = vpop.f32.mrb[0].mxu0
        %v3540 = vadd.f32 0.0, %v3539
        %v3541 = vpop.f32.mrb[0].mxu0
        %v3542 = vpop.f32.mrb[0].mxu0
        %v3543 = vpop.f32.mrb[0].mxu0
        %3544 = vdwg.mxu0
        %v3549 = vunpack.c.l.b16 %v3449
        %v3550 = vunpack.c.l.b16 %v3450
        %v3551 = vunpack.c.l.b16 %v3451
        %v3552 = vunpack.c.l.b16 %v3452
        %v3553 = vpack.c.b16 %v3550, %v3549
        %v3554 = vpack.c.b16 %v3552, %v3551
        %v3558 = vsel %vm804, %v3447, 0
        %v3561 = vsel %vm804, %v3448, 0
        %3563 = vmatprep.subr.bf16.mxu0 0
        %3564 = vmatpush1.bf16.msra.mxu0 %v3553
        %3565 = vmatprep.subr.bf16.mxu0 0
        %3566 = vmatpush1.bf16.msra.mxu0 %v3554
        %3567 = vmatprep.subr.bf16.mxu0 0
        %3568 = vmatpush1.bf16.msra.mxu0 0
        %3569 = vmatprep.subr.bf16.mxu0 0
        %3570 = vmatpush1.bf16.msra.mxu0 0
        %3571 = vmatprep.subr.bf16.mxu0 0
        %3572 = vmatpush1.bf16.msra.mxu0 0
        %3573 = vmatprep.subr.bf16.mxu0 0
        %3574 = vmatpush1.bf16.msra.mxu0 0
        %3575 = vmatprep.subr.bf16.mxu0 0
        %3576 = vmatpush1.bf16.msra.mxu0 0
        %3577 = vmatprep.subr.bf16.mxu0 0
        %3578 = vmatpush1.bf16.msra.mxu0 0
        %3579 = vmatprep.subr.bf16.mxu0 0
        %3580 = vmatpush1.bf16.msra.mxu0 0
        %3581 = vmatprep.subr.bf16.mxu0 0
        %3582 = vmatpush1.bf16.msra.mxu0 0
        %3583 = vmatprep.subr.bf16.mxu0 0
        %3584 = vmatpush1.bf16.msra.mxu0 0
        %3585 = vmatprep.subr.bf16.mxu0 0
        %3586 = vmatpush1.bf16.msra.mxu0 0
        %3587 = vmatprep.subr.bf16.mxu0 0
        %3588 = vmatpush1.bf16.msra.mxu0 0
        %3589 = vmatprep.subr.bf16.mxu0 0
        %3590 = vmatpush1.bf16.msra.mxu0 0
        %3591 = vmatprep.subr.bf16.mxu0 0
        %3592 = vmatpush1.bf16.msra.mxu0 0
        %3593 = vmatprep.subr.bf16.mxu0 0
        %3594 = vmatpush1.bf16.msra.mxu0 0
        %3595 = vmatprep.mubr.bf16.mxu0 0
        %3596 = vmatmul.mubr.bf16.gmra.mrb[0].mxu0 %v3558
        %v3597 = vpop.f32.mrb[0].mxu0
        %v3598 = vadd.f32 %v3532, %v3597
        %v3599 = vpop.f32.mrb[0].mxu0
        %v3600 = vpop.f32.mrb[0].mxu0
        %v3601 = vadd.f32 %v3535, %v3600
        %v3602 = vpop.f32.mrb[0].mxu0
        %3603 = vmatprep.mubr.bf16.mxu0 0
        %3604 = vmatmul.mubr.bf16.gmra.mrb[0].mxu0 %v3561
        %v3605 = vpop.f32.mrb[0].mxu0
        %v3606 = vadd.f32 %v3540, %v3605
        %v3607 = vpop.f32.mrb[0].mxu0
        %v3608 = vpop.f32.mrb[0].mxu0
        %v3609 = vpop.f32.mrb[0].mxu0
        %3610 = vdwg.mxu0
        %vm3611 = vcmask 1045504
        %v3612 = vrot.slane %v3439, 2
        %v3613 = vrot.slane %v3443, 2
        %v3614 = vsel %vm3611, %v3612, %v3613
        %v3615 = vrot.slane %v3440, 2
        %v3616 = vrot.slane %v3444, 2
        %v3617 = vsel %vm3611, %v3615, %v3616
        %v3618 = vrot.slane %v3441, 2
        %v3619 = vrot.slane %v3445, 2
        %v3620 = vsel %vm3611, %v3618, %v3619
        %v3624 = vpack.c.bf16 %v3617, %v3614
        %v3625 = vpack.c.bf16 %v3620, %v3620
        %s3626 = scalar_lea.vmem %s18, 32
        %v3627 = vld [vmem:[%s3626] sm:$0xf]
        %v3628 = vld [vmem:[%s3626 + $0x4] sm:$0xf]
        %v3629 = vld [vmem:[%s3626 + $0x8] sm:$0xf]
        %v3630 = vld [vmem:[%s3626 + $0xc] sm:$0xf]
        %v3635 = vunpack.c.l.b16 %v3627
        %v3636 = vunpack.c.l.b16 %v3628
        %v3637 = vunpack.c.l.b16 %v3629
        %v3638 = vunpack.c.l.b16 %v3630
        %v3639 = vpack.c.b16 %v3636, %v3635
        %v3640 = vpack.c.b16 %v3638, %v3637
        %v3644 = vsel %vm804, %v3624, 0
        %v3647 = vsel %vm804, %v3625, 0
        %3649 = vmatprep.subr.bf16.mxu0 0
        %3650 = vmatpush1.bf16.msra.mxu0 %v3639
        %3651 = vmatprep.subr.bf16.mxu0 0
        %3652 = vmatpush1.bf16.msra.mxu0 %v3640
        %3653 = vmatprep.subr.bf16.mxu0 0
        %3654 = vmatpush1.bf16.msra.mxu0 0
        %3655 = vmatprep.subr.bf16.mxu0 0
        %3656 = vmatpush1.bf16.msra.mxu0 0
        %3657 = vmatprep.subr.bf16.mxu0 0
        %3658 = vmatpush1.bf16.msra.mxu0 0
        %3659 = vmatprep.subr.bf16.mxu0 0
        %3660 = vmatpush1.bf16.msra.mxu0 0
        %3661 = vmatprep.subr.bf16.mxu0 0
        %3662 = vmatpush1.bf16.msra.mxu0 0
        %3663 = vmatprep.subr.bf16.mxu0 0
        %3664 = vmatpush1.bf16.msra.mxu0 0
        %3665 = vmatprep.subr.bf16.mxu0 0
        %3666 = vmatpush1.bf16.msra.mxu0 0
        %3667 = vmatprep.subr.bf16.mxu0 0
        %3668 = vmatpush1.bf16.msra.mxu0 0
        %3669 = vmatprep.subr.bf16.mxu0 0
        %3670 = vmatpush1.bf16.msra.mxu0 0
        %3671 = vmatprep.subr.bf16.mxu0 0
        %3672 = vmatpush1.bf16.msra.mxu0 0
        %3673 = vmatprep.subr.bf16.mxu0 0
        %3674 = vmatpush1.bf16.msra.mxu0 0
        %3675 = vmatprep.subr.bf16.mxu0 0
        %3676 = vmatpush1.bf16.msra.mxu0 0
        %3677 = vmatprep.subr.bf16.mxu0 0
        %3678 = vmatpush1.bf16.msra.mxu0 0
        %3679 = vmatprep.subr.bf16.mxu0 0
        %3680 = vmatpush1.bf16.msra.mxu0 0
        %3681 = vmatprep.mubr.bf16.mxu0 0
        %3682 = vmatmul.mubr.bf16.gmra.mrb[0].mxu0 %v3644
        %v3683 = vpop.f32.mrb[0].mxu0
        %v3684 = vadd.f32 0.0, %v3683
        %v3685 = vpop.f32.mrb[0].mxu0
        %v3686 = vpop.f32.mrb[0].mxu0
        %v3687 = vadd.f32 0.0, %v3686
        %v3688 = vpop.f32.mrb[0].mxu0
        %3689 = vmatprep.mubr.bf16.mxu0 0
        %3690 = vmatmul.mubr.bf16.gmra.mrb[0].mxu0 %v3647
        %v3691 = vpop.f32.mrb[0].mxu0
        %v3692 = vadd.f32 0.0, %v3691
        %v3693 = vpop.f32.mrb[0].mxu0
        %v3694 = vpop.f32.mrb[0].mxu0
        %v3695 = vpop.f32.mrb[0].mxu0
        %3696 = vdwg.mxu0
        %v3697 = vadd.f32 %v3598, %v3684
        %v3698 = vadd.f32 %v3601, %v3687
        %v3699 = vadd.f32 %v3606, %v3692
        %v3700 = vpack.c.bf16 %v3441, %v3440
        %v3701 = vpack.c.bf16 %v3442, %v3442
        %s3702 = scalar_lea.vmem %s18, 48
        %v3703 = vld [vmem:[%s3702] sm:$0xf]
        %v3704 = vld [vmem:[%s3702 + $0x4] sm:$0xf]
        %v3705 = vld [vmem:[%s3702 + $0x8] sm:$0xf]
        %v3706 = vld [vmem:[%s3702 + $0xc] sm:$0xf]
        %v3711 = vunpack.c.l.b16 %v3703
        %v3712 = vunpack.c.l.b16 %v3704
        %v3713 = vunpack.c.l.b16 %v3705
        %v3714 = vunpack.c.l.b16 %v3706
        %v3715 = vpack.c.b16 %v3712, %v3711
        %v3716 = vpack.c.b16 %v3714, %v3713
        %v3720 = vsel %vm804, %v3700, 0
        %v3723 = vsel %vm804, %v3701, 0
        %3725 = vmatprep.subr.bf16.mxu0 0
        %3726 = vmatpush1.bf16.msra.mxu0 %v3715
        %3727 = vmatprep.subr.bf16.mxu0 0
        %3728 = vmatpush1.bf16.msra.mxu0 %v3716
        %3729 = vmatprep.subr.bf16.mxu0 0
        %3730 = vmatpush1.bf16.msra.mxu0 0
        %3731 = vmatprep.subr.bf16.mxu0 0
        %3732 = vmatpush1.bf16.msra.mxu0 0
        %3733 = vmatprep.subr.bf16.mxu0 0
        %3734 = vmatpush1.bf16.msra.mxu0 0
        %3735 = vmatprep.subr.bf16.mxu0 0
        %3736 = vmatpush1.bf16.msra.mxu0 0
        %3737 = vmatprep.subr.bf16.mxu0 0
        %3738 = vmatpush1.bf16.msra.mxu0 0
        %3739 = vmatprep.subr.bf16.mxu0 0
        %3740 = vmatpush1.bf16.msra.mxu0 0
        %3741 = vmatprep.subr.bf16.mxu0 0
        %3742 = vmatpush1.bf16.msra.mxu0 0
        %3743 = vmatprep.subr.bf16.mxu0 0
        %3744 = vmatpush1.bf16.msra.mxu0 0
        %3745 = vmatprep.subr.bf16.mxu0 0
        %3746 = vmatpush1.bf16.msra.mxu0 0
        %3747 = vmatprep.subr.bf16.mxu0 0
        %3748 = vmatpush1.bf16.msra.mxu0 0
        %3749 = vmatprep.subr.bf16.mxu0 0
        %3750 = vmatpush1.bf16.msra.mxu0 0
        %3751 = vmatprep.subr.bf16.mxu0 0
        %3752 = vmatpush1.bf16.msra.mxu0 0
        %3753 = vmatprep.subr.bf16.mxu0 0
        %3754 = vmatpush1.bf16.msra.mxu0 0
        %3755 = vmatprep.subr.bf16.mxu0 0
        %3756 = vmatpush1.bf16.msra.mxu0 0
        %3757 = vmatprep.mubr.bf16.mxu0 0
        %3758 = vmatmul.mubr.bf16.gmra.mrb[0].mxu0 %v3720
        %v3759 = vpop.f32.mrb[0].mxu0
        %v3760 = vadd.f32 0.0, %v3759
        %v3761 = vpop.f32.mrb[0].mxu0
        %v3762 = vpop.f32.mrb[0].mxu0
        %v3763 = vadd.f32 0.0, %v3762
        %v3764 = vpop.f32.mrb[0].mxu0
        %3765 = vmatprep.mubr.bf16.mxu0 0
        %3766 = vmatmul.mubr.bf16.gmra.mrb[0].mxu0 %v3723
        %v3767 = vpop.f32.mrb[0].mxu0
        %v3768 = vadd.f32 0.0, %v3767
        %v3769 = vpop.f32.mrb[0].mxu0
        %v3770 = vpop.f32.mrb[0].mxu0
        %v3771 = vpop.f32.mrb[0].mxu0
        %3772 = vdwg.mxu0
        %v3773 = vadd.f32 %v3697, %v3760
        %v3774 = vadd.f32 %v3698, %v3763
        %v3775 = vadd.f32 %v3699, %v3768
        %v3778 = vrot.slane %v3442, 1
        %v3779 = vrot.slane %v3446, 1
        %v3780 = vsel %vm3459, %v3778, %v3779
        %v3782 = vpack.c.bf16 %v3468, %v3465
        %v3783 = vpack.c.bf16 %v3780, %v3780
        %s3784 = scalar_lea.vmem %s18, 64
        %v3785 = vld [vmem:[%s3784] sm:$0xf]
        %v3786 = vld [vmem:[%s3784 + $0x4] sm:$0xf]
        %v3787 = vld [vmem:[%s3784 + $0x8] sm:$0xf]
        %v3788 = vld [vmem:[%s3784 + $0xc] sm:$0xf]
        %v3793 = vunpack.c.l.b16 %v3785
        %v3794 = vunpack.c.l.b16 %v3786
        %v3795 = vunpack.c.l.b16 %v3787
        %v3796 = vunpack.c.l.b16 %v3788
        %v3797 = vpack.c.b16 %v3794, %v3793
        %v3798 = vpack.c.b16 %v3796, %v3795
        %v3802 = vsel %vm804, %v3782, 0
        %v3805 = vsel %vm804, %v3783, 0
        %3807 = vmatprep.subr.bf16.mxu0 0
        %3808 = vmatpush1.bf16.msra.mxu0 %v3797
        %3809 = vmatprep.subr.bf16.mxu0 0
        %3810 = vmatpush1.bf16.msra.mxu0 %v3798
        %3811 = vmatprep.subr.bf16.mxu0 0
        %3812 = vmatpush1.bf16.msra.mxu0 0
        %3813 = vmatprep.subr.bf16.mxu0 0
        %3814 = vmatpush1.bf16.msra.mxu0 0
        %3815 = vmatprep.subr.bf16.mxu0 0
        %3816 = vmatpush1.bf16.msra.mxu0 0
        %3817 = vmatprep.subr.bf16.mxu0 0
        %3818 = vmatpush1.bf16.msra.mxu0 0
        %3819 = vmatprep.subr.bf16.mxu0 0
        %3820 = vmatpush1.bf16.msra.mxu0 0
        %3821 = vmatprep.subr.bf16.mxu0 0
        %3822 = vmatpush1.bf16.msra.mxu0 0
        %3823 = vmatprep.subr.bf16.mxu0 0
        %3824 = vmatpush1.bf16.msra.mxu0 0
        %3825 = vmatprep.subr.bf16.mxu0 0
        %3826 = vmatpush1.bf16.msra.mxu0 0
        %3827 = vmatprep.subr.bf16.mxu0 0
        %3828 = vmatpush1.bf16.msra.mxu0 0
        %3829 = vmatprep.subr.bf16.mxu0 0
        %3830 = vmatpush1.bf16.msra.mxu0 0
        %3831 = vmatprep.subr.bf16.mxu0 0
        %3832 = vmatpush1.bf16.msra.mxu0 0
        %3833 = vmatprep.subr.bf16.mxu0 0
        %3834 = vmatpush1.bf16.msra.mxu0 0
        %3835 = vmatprep.subr.bf16.mxu0 0
        %3836 = vmatpush1.bf16.msra.mxu0 0
        %3837 = vmatprep.subr.bf16.mxu0 0
        %3838 = vmatpush1.bf16.msra.mxu0 0
        %3839 = vmatprep.mubr.bf16.mxu0 0
        %3840 = vmatmul.mubr.bf16.gmra.mrb[0].mxu0 %v3802
        %v3841 = vpop.f32.mrb[0].mxu0
        %v3842 = vadd.f32 0.0, %v3841
        %v3843 = vpop.f32.mrb[0].mxu0
        %v3844 = vpop.f32.mrb[0].mxu0
        %v3845 = vadd.f32 0.0, %v3844
        %v3846 = vpop.f32.mrb[0].mxu0
        %3847 = vmatprep.mubr.bf16.mxu0 0
        %3848 = vmatmul.mubr.bf16.gmra.mrb[0].mxu0 %v3805
        %v3849 = vpop.f32.mrb[0].mxu0
        %v3850 = vadd.f32 0.0, %v3849
        %v3851 = vpop.f32.mrb[0].mxu0
        %v3852 = vpop.f32.mrb[0].mxu0
        %v3853 = vpop.f32.mrb[0].mxu0
        %3854 = vdwg.mxu0
        %v3855 = vadd.f32 %v3773, %v3842
        %v3856 = vadd.f32 %v3774, %v3845
        %v3857 = vadd.f32 %v3775, %v3850
        %v3858 = vrot.slane %v3442, 2
        %v3859 = vrot.slane %v3446, 2
        %v3860 = vsel %vm3611, %v3858, %v3859
        %v3862 = vpack.c.bf16 %v3620, %v3617
        %v3863 = vpack.c.bf16 %v3860, %v3860
        %s3864 = scalar_lea.vmem %s18, 80
        %v3865 = vld [vmem:[%s3864] sm:$0xf]
        %v3866 = vld [vmem:[%s3864 + $0x4] sm:$0xf]
        %v3867 = vld [vmem:[%s3864 + $0x8] sm:$0xf]
        %v3868 = vld [vmem:[%s3864 + $0xc] sm:$0xf]
        %v3873 = vunpack.c.l.b16 %v3865
        %v3874 = vunpack.c.l.b16 %v3866
        %v3875 = vunpack.c.l.b16 %v3867
        %v3876 = vunpack.c.l.b16 %v3868
        %v3877 = vpack.c.b16 %v3874, %v3873
        %v3878 = vpack.c.b16 %v3876, %v3875
        %v3882 = vsel %vm804, %v3862, 0
        %v3885 = vsel %vm804, %v3863, 0
        %3887 = vmatprep.subr.bf16.mxu0 0
        %3888 = vmatpush1.bf16.msra.mxu0 %v3877
        %3889 = vmatprep.subr.bf16.mxu0 0
        %3890 = vmatpush1.bf16.msra.mxu0 %v3878
        %3891 = vmatprep.subr.bf16.mxu0 0
        %3892 = vmatpush1.bf16.msra.mxu0 0
        %3893 = vmatprep.subr.bf16.mxu0 0
        %3894 = vmatpush1.bf16.msra.mxu0 0
        %3895 = vmatprep.subr.bf16.mxu0 0
        %3896 = vmatpush1.bf16.msra.mxu0 0
        %3897 = vmatprep.subr.bf16.mxu0 0
        %3898 = vmatpush1.bf16.msra.mxu0 0
        %3899 = vmatprep.subr.bf16.mxu0 0
        %3900 = vmatpush1.bf16.msra.mxu0 0
        %3901 = vmatprep.subr.bf16.mxu0 0
        %3902 = vmatpush1.bf16.msra.mxu0 0
        %3903 = vmatprep.subr.bf16.mxu0 0
        %3904 = vmatpush1.bf16.msra.mxu0 0
        %3905 = vmatprep.subr.bf16.mxu0 0
        %3906 = vmatpush1.bf16.msra.mxu0 0
        %3907 = vmatprep.subr.bf16.mxu0 0
        %3908 = vmatpush1.bf16.msra.mxu0 0
        %3909 = vmatprep.subr.bf16.mxu0 0
        %3910 = vmatpush1.bf16.msra.mxu0 0
        %3911 = vmatprep.subr.bf16.mxu0 0
        %3912 = vmatpush1.bf16.msra.mxu0 0
        %3913 = vmatprep.subr.bf16.mxu0 0
        %3914 = vmatpush1.bf16.msra.mxu0 0
        %3915 = vmatprep.subr.bf16.mxu0 0
        %3916 = vmatpush1.bf16.msra.mxu0 0
        %3917 = vmatprep.subr.bf16.mxu0 0
        %3918 = vmatpush1.bf16.msra.mxu0 0
        %3919 = vmatprep.mubr.bf16.mxu0 0
        %3920 = vmatmul.mubr.bf16.gmra.mrb[0].mxu0 %v3882
        %v3921 = vpop.f32.mrb[0].mxu0
        %v3922 = vadd.f32 0.0, %v3921
        %v3923 = vpop.f32.mrb[0].mxu0
        %v3924 = vpop.f32.mrb[0].mxu0
        %v3925 = vadd.f32 0.0, %v3924
        %v3926 = vpop.f32.mrb[0].mxu0
        %3927 = vmatprep.mubr.bf16.mxu0 0
        %3928 = vmatmul.mubr.bf16.gmra.mrb[0].mxu0 %v3885
        %v3929 = vpop.f32.mrb[0].mxu0
        %v3930 = vadd.f32 0.0, %v3929
        %v3931 = vpop.f32.mrb[0].mxu0
        %v3932 = vpop.f32.mrb[0].mxu0
        %v3933 = vpop.f32.mrb[0].mxu0
        %3934 = vdwg.mxu0
        %v3935 = vadd.f32 %v3855, %v3922
        %v3936 = vadd.f32 %v3856, %v3925
        %v3937 = vadd.f32 %v3857, %v3930
        %v3938 = vpack.c.bf16 %v3442, %v3441
        %v3939 = vpack.c.bf16 %v3439, %v3439
        %s3940 = scalar_lea.vmem %s18, 96
        %v3941 = vld [vmem:[%s3940] sm:$0xf]
        %v3942 = vld [vmem:[%s3940 + $0x4] sm:$0xf]
        %v3943 = vld [vmem:[%s3940 + $0x8] sm:$0xf]
        %v3944 = vld [vmem:[%s3940 + $0xc] sm:$0xf]
        %v3949 = vunpack.c.l.b16 %v3941
        %v3950 = vunpack.c.l.b16 %v3942
        %v3951 = vunpack.c.l.b16 %v3943
        %v3952 = vunpack.c.l.b16 %v3944
        %v3953 = vpack.c.b16 %v3950, %v3949
        %v3954 = vpack.c.b16 %v3952, %v3951
        %v3958 = vsel %vm804, %v3938, 0
        %v3961 = vsel %vm804, %v3939, 0
        %3963 = vmatprep.subr.bf16.mxu0 0
        %3964 = vmatpush1.bf16.msra.mxu0 %v3953
        %3965 = vmatprep.subr.bf16.mxu0 0
        %3966 = vmatpush1.bf16.msra.mxu0 %v3954
        %3967 = vmatprep.subr.bf16.mxu0 0
        %3968 = vmatpush1.bf16.msra.mxu0 0
        %3969 = vmatprep.subr.bf16.mxu0 0
        %3970 = vmatpush1.bf16.msra.mxu0 0
        %3971 = vmatprep.subr.bf16.mxu0 0
        %3972 = vmatpush1.bf16.msra.mxu0 0
        %3973 = vmatprep.subr.bf16.mxu0 0
        %3974 = vmatpush1.bf16.msra.mxu0 0
        %3975 = vmatprep.subr.bf16.mxu0 0
        %3976 = vmatpush1.bf16.msra.mxu0 0
        %3977 = vmatprep.subr.bf16.mxu0 0
        %3978 = vmatpush1.bf16.msra.mxu0 0
        %3979 = vmatprep.subr.bf16.mxu0 0
        %3980 = vmatpush1.bf16.msra.mxu0 0
        %3981 = vmatprep.subr.bf16.mxu0 0
        %3982 = vmatpush1.bf16.msra.mxu0 0
        %3983 = vmatprep.subr.bf16.mxu0 0
        %3984 = vmatpush1.bf16.msra.mxu0 0
        %3985 = vmatprep.subr.bf16.mxu0 0
        %3986 = vmatpush1.bf16.msra.mxu0 0
        %3987 = vmatprep.subr.bf16.mxu0 0
        %3988 = vmatpush1.bf16.msra.mxu0 0
        %3989 = vmatprep.subr.bf16.mxu0 0
        %3990 = vmatpush1.bf16.msra.mxu0 0
        %3991 = vmatprep.subr.bf16.mxu0 0
        %3992 = vmatpush1.bf16.msra.mxu0 0
        %3993 = vmatprep.subr.bf16.mxu0 0
        %3994 = vmatpush1.bf16.msra.mxu0 0
        %3995 = vmatprep.mubr.bf16.mxu0 0
        %3996 = vmatmul.mubr.bf16.gmra.mrb[0].mxu0 %v3958
        %v3997 = vpop.f32.mrb[0].mxu0
        %v3998 = vadd.f32 0.0, %v3997
        %v3999 = vpop.f32.mrb[0].mxu0
        %v4000 = vpop.f32.mrb[0].mxu0
        %v4001 = vadd.f32 0.0, %v4000
        %v4002 = vpop.f32.mrb[0].mxu0
        %4003 = vmatprep.mubr.bf16.mxu0 0
        %4004 = vmatmul.mubr.bf16.gmra.mrb[0].mxu0 %v3961
        %v4005 = vpop.f32.mrb[0].mxu0
        %v4006 = vadd.f32 0.0, %v4005
        %v4007 = vpop.f32.mrb[0].mxu0
        %v4008 = vpop.f32.mrb[0].mxu0
        %v4009 = vpop.f32.mrb[0].mxu0
        %4010 = vdwg.mxu0
        %v4011 = vadd.f32 %v3935, %v3998
        %v4012 = vadd.f32 %v3936, %v4001
        %v4013 = vadd.f32 %v3937, %v4006
        %v4014 = vpack.c.bf16 %v3780, %v3468
        %v4015 = vpack.c.bf16 %v3462, %v3462
        %s4016 = scalar_lea.vmem %s18, 112
        %v4017 = vld [vmem:[%s4016] sm:$0xf]
        %v4018 = vld [vmem:[%s4016 + $0x4] sm:$0xf]
        %v4019 = vld [vmem:[%s4016 + $0x8] sm:$0xf]
        %v4020 = vld [vmem:[%s4016 + $0xc] sm:$0xf]
        %v4025 = vunpack.c.l.b16 %v4017
        %v4026 = vunpack.c.l.b16 %v4018
        %v4027 = vunpack.c.l.b16 %v4019
        %v4028 = vunpack.c.l.b16 %v4020
        %v4029 = vpack.c.b16 %v4026, %v4025
        %v4030 = vpack.c.b16 %v4028, %v4027
        %v4034 = vsel %vm804, %v4014, 0
        %v4037 = vsel %vm804, %v4015, 0
        %4039 = vmatprep.subr.bf16.mxu0 0
        %4040 = vmatpush1.bf16.msra.mxu0 %v4029
        %4041 = vmatprep.subr.bf16.mxu0 0
        %4042 = vmatpush1.bf16.msra.mxu0 %v4030
        %4043 = vmatprep.subr.bf16.mxu0 0
        %4044 = vmatpush1.bf16.msra.mxu0 0
        %4045 = vmatprep.subr.bf16.mxu0 0
        %4046 = vmatpush1.bf16.msra.mxu0 0
        %4047 = vmatprep.subr.bf16.mxu0 0
        %4048 = vmatpush1.bf16.msra.mxu0 0
        %4049 = vmatprep.subr.bf16.mxu0 0
        %4050 = vmatpush1.bf16.msra.mxu0 0
        %4051 = vmatprep.subr.bf16.mxu0 0
        %4052 = vmatpush1.bf16.msra.mxu0 0
        %4053 = vmatprep.subr.bf16.mxu0 0
        %4054 = vmatpush1.bf16.msra.mxu0 0
        %4055 = vmatprep.subr.bf16.mxu0 0
        %4056 = vmatpush1.bf16.msra.mxu0 0
        %4057 = vmatprep.subr.bf16.mxu0 0
        %4058 = vmatpush1.bf16.msra.mxu0 0
        %4059 = vmatprep.subr.bf16.mxu0 0
        %4060 = vmatpush1.bf16.msra.mxu0 0
        %4061 = vmatprep.subr.bf16.mxu0 0
        %4062 = vmatpush1.bf16.msra.mxu0 0
        %4063 = vmatprep.subr.bf16.mxu0 0
        %4064 = vmatpush1.bf16.msra.mxu0 0
        %4065 = vmatprep.subr.bf16.mxu0 0
        %4066 = vmatpush1.bf16.msra.mxu0 0
        %4067 = vmatprep.subr.bf16.mxu0 0
        %4068 = vmatpush1.bf16.msra.mxu0 0
        %4069 = vmatprep.subr.bf16.mxu0 0
        %4070 = vmatpush1.bf16.msra.mxu0 0
        %4071 = vmatprep.mubr.bf16.mxu0 0
        %4072 = vmatmul.mubr.bf16.gmra.mrb[0].mxu0 %v4034
        %v4073 = vpop.f32.mrb[0].mxu0
        %v4074 = vadd.f32 0.0, %v4073
        %v4075 = vpop.f32.mrb[0].mxu0
        %v4076 = vpop.f32.mrb[0].mxu0
        %v4077 = vadd.f32 0.0, %v4076
        %v4078 = vpop.f32.mrb[0].mxu0
        %4079 = vmatprep.mubr.bf16.mxu0 0
        %4080 = vmatmul.mubr.bf16.gmra.mrb[0].mxu0 %v4037
        %v4081 = vpop.f32.mrb[0].mxu0
        %v4082 = vadd.f32 0.0, %v4081
        %v4083 = vpop.f32.mrb[0].mxu0
        %v4084 = vpop.f32.mrb[0].mxu0
        %v4085 = vpop.f32.mrb[0].mxu0
        %4086 = vdwg.mxu0
        %v4087 = vadd.f32 %v4011, %v4074
        %v4088 = vadd.f32 %v4012, %v4077
        %v4089 = vadd.f32 %v4013, %v4082
        %v4090 = vpack.c.bf16 %v3860, %v3620
        %v4091 = vpack.c.bf16 %v3614, %v3614
        %s4092 = scalar_lea.vmem %s18, 128
        %v4093 = vld [vmem:[%s4092] sm:$0xf]
        %v4094 = vld [vmem:[%s4092 + $0x4] sm:$0xf]
        %v4095 = vld [vmem:[%s4092 + $0x8] sm:$0xf]
        %v4096 = vld [vmem:[%s4092 + $0xc] sm:$0xf]
        %v4101 = vunpack.c.l.b16 %v4093
        %v4102 = vunpack.c.l.b16 %v4094
        %v4103 = vunpack.c.l.b16 %v4095
        %v4104 = vunpack.c.l.b16 %v4096
        %v4105 = vpack.c.b16 %v4102, %v4101
        %v4106 = vpack.c.b16 %v4104, %v4103
        %v4110 = vsel %vm804, %v4090, 0
        %v4113 = vsel %vm804, %v4091, 0
        %4115 = vmatprep.subr.bf16.mxu0 0
        %4116 = vmatpush1.bf16.msra.mxu0 %v4105
        %4117 = vmatprep.subr.bf16.mxu0 0
        %4118 = vmatpush1.bf16.msra.mxu0 %v4106
        %4119 = vmatprep.subr.bf16.mxu0 0
        %4120 = vmatpush1.bf16.msra.mxu0 0
        %4121 = vmatprep.subr.bf16.mxu0 0
        %4122 = vmatpush1.bf16.msra.mxu0 0
        %4123 = vmatprep.subr.bf16.mxu0 0
        %4124 = vmatpush1.bf16.msra.mxu0 0
        %4125 = vmatprep.subr.bf16.mxu0 0
        %4126 = vmatpush1.bf16.msra.mxu0 0
        %4127 = vmatprep.subr.bf16.mxu0 0
        %4128 = vmatpush1.bf16.msra.mxu0 0
        %4129 = vmatprep.subr.bf16.mxu0 0
        %4130 = vmatpush1.bf16.msra.mxu0 0
        %4131 = vmatprep.subr.bf16.mxu0 0
        %4132 = vmatpush1.bf16.msra.mxu0 0
        %4133 = vmatprep.subr.bf16.mxu0 0
        %4134 = vmatpush1.bf16.msra.mxu0 0
        %4135 = vmatprep.subr.bf16.mxu0 0
        %4136 = vmatpush1.bf16.msra.mxu0 0
        %4137 = vmatprep.subr.bf16.mxu0 0
        %4138 = vmatpush1.bf16.msra.mxu0 0
        %4139 = vmatprep.subr.bf16.mxu0 0
        %4140 = vmatpush1.bf16.msra.mxu0 0
        %4141 = vmatprep.subr.bf16.mxu0 0
        %4142 = vmatpush1.bf16.msra.mxu0 0
        %4143 = vmatprep.subr.bf16.mxu0 0
        %4144 = vmatpush1.bf16.msra.mxu0 0
        %4145 = vmatprep.subr.bf16.mxu0 0
        %4146 = vmatpush1.bf16.msra.mxu0 0
        %4147 = vmatprep.mubr.bf16.mxu0 0
        %4148 = vmatmul.mubr.bf16.gmra.mrb[0].mxu0 %v4110
        %v4149 = vpop.f32.mrb[0].mxu0
        %v4150 = vadd.f32 0.0, %v4149
        %v4151 = vpop.f32.mrb[0].mxu0
        %v4152 = vpop.f32.mrb[0].mxu0
        %v4153 = vadd.f32 0.0, %v4152
        %v4154 = vpop.f32.mrb[0].mxu0
        %4155 = vmatprep.mubr.bf16.mxu0 0
        %4156 = vmatmul.mubr.bf16.gmra.mrb[0].mxu0 %v4113
        %v4157 = vpop.f32.mrb[0].mxu0
        %v4158 = vadd.f32 0.0, %v4157
        %v4159 = vpop.f32.mrb[0].mxu0
        %v4160 = vpop.f32.mrb[0].mxu0
        %v4161 = vpop.f32.mrb[0].mxu0
        %4162 = vdwg.mxu0
        %v4163 = vadd.f32 %v4087, %v4150
        %v4164 = vadd.f32 %v4088, %v4153
        %v4165 = vadd.f32 %v4089, %v4158
        %v4166 = vld [vmem:[%s19] sm:$0x1]
        %v4168 = vlaneseq
        %v4169 = vshrl.u32 %v4168, 7
        %v4170 = vsub.s32 0, %v4169
        %v4171 = vrot.slane %v4166, %v4170
        %v4173 = vadd.f32 %v4163, %v4171
        %v4174 = vadd.f32 %v4164, %v4171
        %v4175 = vadd.f32 %v4165, %v4171
        %v4176 = vpack.c.bf16 %v4174, %v4173
        %v4177 = vpack.c.bf16 %v4175, %v4175
        %v4178 = vld [vmem:[%s20] sm:$0xf]
        %v4179 = vld [vmem:[%s20 + $0x4] sm:$0xf]
        %v4180 = vld [vmem:[%s20 + $0x8] sm:$0xf]
        %v4181 = vld [vmem:[%s20 + $0xc] sm:$0xf]
        %v4182 = vld [vmem:[%s21] sm:$0x1]
        %v4184 = vlaneseq
        %v4185 = vshrl.u32 %v4184, 7
        %v4186 = vsub.s32 0, %v4185
        %v4187 = vrot.slane %v4182, %v4186
        %v4193 = vunpack.c.l.b16 %v4178
        %v4194 = vunpack.c.l.b16 %v4179
        %v4195 = vunpack.c.l.b16 %v4180
        %v4196 = vunpack.c.l.b16 %v4181
        %v4197 = vpack.c.b16 %v4194, %v4193
        %v4198 = vpack.c.b16 %v4196, %v4195
        %v4202 = vsel %vm804, %v4176, 0
        %v4205 = vsel %vm804, %v4177, 0
        %4207 = vmatprep.subr.bf16.mxu0 0
        %4208 = vmatpush1.bf16.msra.mxu0 %v4197
        %4209 = vmatprep.subr.bf16.mxu0 0
        %4210 = vmatpush1.bf16.msra.mxu0 %v4198
        %4211 = vmatprep.subr.bf16.mxu0 0
        %4212 = vmatpush1.bf16.msra.mxu0 0
        %4213 = vmatprep.subr.bf16.mxu0 0
        %4214 = vmatpush1.bf16.msra.mxu0 0
        %4215 = vmatprep.subr.bf16.mxu0 0
        %4216 = vmatpush1.bf16.msra.mxu0 0
        %4217 = vmatprep.subr.bf16.mxu0 0
        %4218 = vmatpush1.bf16.msra.mxu0 0
        %4219 = vmatprep.subr.bf16.mxu0 0
        %4220 = vmatpush1.bf16.msra.mxu0 0
        %4221 = vmatprep.subr.bf16.mxu0 0
        %4222 = vmatpush1.bf16.msra.mxu0 0
        %4223 = vmatprep.subr.bf16.mxu0 0
        %4224 = vmatpush1.bf16.msra.mxu0 0
        %4225 = vmatprep.subr.bf16.mxu0 0
        %4226 = vmatpush1.bf16.msra.mxu0 0
        %4227 = vmatprep.subr.bf16.mxu0 0
        %4228 = vmatpush1.bf16.msra.mxu0 0
        %4229 = vmatprep.subr.bf16.mxu0 0
        %4230 = vmatpush1.bf16.msra.mxu0 0
        %4231 = vmatprep.subr.bf16.mxu0 0
        %4232 = vmatpush1.bf16.msra.mxu0 0
        %4233 = vmatprep.subr.bf16.mxu0 0
        %4234 = vmatpush1.bf16.msra.mxu0 0
        %4235 = vmatprep.subr.bf16.mxu0 0
        %4236 = vmatpush1.bf16.msra.mxu0 0
        %4237 = vmatprep.subr.bf16.mxu0 0
        %4238 = vmatpush1.bf16.msra.mxu0 0
        %4239 = vmatprep.mubr.bf16.mxu0 0
        %4240 = vmatmul.mubr.bf16.gmra.mrb[0].mxu0 %v4202
        %v4241 = vpop.f32.mrb[0].mxu0
        %v4242 = vadd.f32 %v4187, %v4241
        %v4243 = vpop.f32.mrb[0].mxu0
        %v4244 = vpop.f32.mrb[0].mxu0
        %v4245 = vadd.f32 %v4187, %v4244
        %v4246 = vpop.f32.mrb[0].mxu0
        %4247 = vmatprep.mubr.bf16.mxu0 0
        %4248 = vmatmul.mubr.bf16.gmra.mrb[0].mxu0 %v4205
        %v4249 = vpop.f32.mrb[0].mxu0
        %v4250 = vadd.f32 %v4187, %v4249
        %v4251 = vpop.f32.mrb[0].mxu0
        %v4252 = vpop.f32.mrb[0].mxu0
        %v4253 = vpop.f32.mrb[0].mxu0
        %4254 = vdwg.mxu0
        %v4258 = vrot.slane %v4242, 7
        %v4259 = vrot.slane %v4245, 7
        %v4260 = vrot.slane %v4250, 7
        %v4264 = vsel %vm3438, 0.0, %v4258
        %v4265 = vsel %vm3438, 0.0, %v4259
        %v4266 = vsel %vm3438, 0.0, %v4260
        %v4267 = vsel %vm3438, %v4258, 0.0
        %v4268 = vsel %vm3438, %v4259, 0.0
        %v4269 = vsel %vm3438, %v4260, 0.0
        %v4270 = vpack.c.bf16 %v4264, %v3439
        %v4271 = vpack.c.bf16 %v4265, %v4265
        %v4272 = vld [vmem:[%s22] sm:$0xf]
        %v4273 = vld [vmem:[%s22 + $0x4] sm:$0xf]
        %v4278 = vrot.slane %v4264, 1
        %v4279 = vrot.slane %v4267, 1
        %v4280 = vsel %vm3459, %v4278, %v4279
        %v4281 = vrot.slane %v4265, 1
        %v4282 = vrot.slane %v4268, 1
        %v4283 = vsel %vm3459, %v4281, %v4282
        %v4286 = vpack.c.bf16 %v4280, %v3462
        %v4287 = vpack.c.bf16 %v4283, %v4283
        %s4288 = scalar_lea.vmem %s22, 8
        %v4289 = vld [vmem:[%s4288] sm:$0xf]
        %v4290 = vld [vmem:[%s4288 + $0x4] sm:$0xf]
        %v4293 = vunpack.c.l.b16 %v4289
        %v4294 = vunpack.c.l.b16 %v4290
        %v4295 = vpack.c.b16 %v4294, %v4293
        %v4298 = vsel %vm1380, %v4286, 0
        %v4301 = vsel %vm1380, %v4287, 0
        %4303 = vmatprep.subr.bf16.mxu0 0
        %4304 = vmatpush1.bf16.msra.mxu0 %v4295
        %4305 = vmatprep.subr.bf16.mxu0 0
        %4306 = vmatpush1.bf16.msra.mxu0 0
        %4307 = vmatprep.subr.bf16.mxu0 0
        %4308 = vmatpush1.bf16.msra.mxu0 0
        %4309 = vmatprep.subr.bf16.mxu0 0
        %4310 = vmatpush1.bf16.msra.mxu0 0
        %4311 = vmatprep.subr.bf16.mxu0 0
        %4312 = vmatpush1.bf16.msra.mxu0 0
        %4313 = vmatprep.subr.bf16.mxu0 0
        %4314 = vmatpush1.bf16.msra.mxu0 0
        %4315 = vmatprep.subr.bf16.mxu0 0
        %4316 = vmatpush1.bf16.msra.mxu0 0
        %4317 = vmatprep.subr.bf16.mxu0 0
        %4318 = vmatpush1.bf16.msra.mxu0 0
        %4319 = vmatprep.subr.bf16.mxu0 0
        %4320 = vmatpush1.bf16.msra.mxu0 0
        %4321 = vmatprep.subr.bf16.mxu0 0
        %4322 = vmatpush1.bf16.msra.mxu0 0
        %4323 = vmatprep.subr.bf16.mxu0 0
        %4324 = vmatpush1.bf16.msra.mxu0 0
        %4325 = vmatprep.subr.bf16.mxu0 0
        %4326 = vmatpush1.bf16.msra.mxu0 0
        %4327 = vmatprep.subr.bf16.mxu0 0
        %4328 = vmatpush1.bf16.msra.mxu0 0
        %4329 = vmatprep.subr.bf16.mxu0 0
        %4330 = vmatpush1.bf16.msra.mxu0 0
        %4331 = vmatprep.subr.bf16.mxu0 0
        %4332 = vmatpush1.bf16.msra.mxu0 0
        %4333 = vmatprep.subr.bf16.mxu0 0
        %4334 = vmatpush1.bf16.msra.mxu0 0
        %4335 = vmatprep.mubr.bf16.mxu0 0
        %4336 = vmatmul.mubr.bf16.gmra.mrb[0].mxu0 %v4298
        %v4337 = vpop.f32.mrb[0].mxu0
        %v4338 = vadd.f32 0.0, %v4337
        %v4339 = vpop.f32.mrb[0].mxu0
        %v4340 = vpop.f32.mrb[0].mxu0
        %v4341 = vadd.f32 0.0, %v4340
        %v4342 = vpop.f32.mrb[0].mxu0
        %4343 = vmatprep.mubr.bf16.mxu0 0
        %4344 = vmatmul.mubr.bf16.gmra.mrb[0].mxu0 %v4301
        %v4345 = vpop.f32.mrb[0].mxu0
        %v4346 = vadd.f32 0.0, %v4345
        %v4347 = vpop.f32.mrb[0].mxu0
        %v4348 = vpop.f32.mrb[0].mxu0
        %v4349 = vpop.f32.mrb[0].mxu0
        %4350 = vdwg.mxu0
        %v4353 = vunpack.c.l.b16 %v4272
        %v4354 = vunpack.c.l.b16 %v4273
        %v4355 = vpack.c.b16 %v4354, %v4353
        %v4358 = vsel %vm1380, %v4270, 0
        %v4361 = vsel %vm1380, %v4271, 0
        %4363 = vmatprep.subr.bf16.mxu0 0
        %4364 = vmatpush1.bf16.msra.mxu0 %v4355
        %4365 = vmatprep.subr.bf16.mxu0 0
        %4366 = vmatpush1.bf16.msra.mxu0 0
        %4367 = vmatprep.subr.bf16.mxu0 0
        %4368 = vmatpush1.bf16.msra.mxu0 0
        %4369 = vmatprep.subr.bf16.mxu0 0
        %4370 = vmatpush1.bf16.msra.mxu0 0
        %4371 = vmatprep.subr.bf16.mxu0 0
        %4372 = vmatpush1.bf16.msra.mxu0 0
        %4373 = vmatprep.subr.bf16.mxu0 0
        %4374 = vmatpush1.bf16.msra.mxu0 0
        %4375 = vmatprep.subr.bf16.mxu0 0
        %4376 = vmatpush1.bf16.msra.mxu0 0
        %4377 = vmatprep.subr.bf16.mxu0 0
        %4378 = vmatpush1.bf16.msra.mxu0 0
        %4379 = vmatprep.subr.bf16.mxu0 0
        %4380 = vmatpush1.bf16.msra.mxu0 0
        %4381 = vmatprep.subr.bf16.mxu0 0
        %4382 = vmatpush1.bf16.msra.mxu0 0
        %4383 = vmatprep.subr.bf16.mxu0 0
        %4384 = vmatpush1.bf16.msra.mxu0 0
        %4385 = vmatprep.subr.bf16.mxu0 0
        %4386 = vmatpush1.bf16.msra.mxu0 0
        %4387 = vmatprep.subr.bf16.mxu0 0
        %4388 = vmatpush1.bf16.msra.mxu0 0
        %4389 = vmatprep.subr.bf16.mxu0 0
        %4390 = vmatpush1.bf16.msra.mxu0 0
        %4391 = vmatprep.subr.bf16.mxu0 0
        %4392 = vmatpush1.bf16.msra.mxu0 0
        %4393 = vmatprep.subr.bf16.mxu0 0
        %4394 = vmatpush1.bf16.msra.mxu0 0
        %4395 = vmatprep.mubr.bf16.mxu0 0
        %4396 = vmatmul.mubr.bf16.gmra.mrb[0].mxu0 %v4358
        %v4397 = vpop.f32.mrb[0].mxu0
        %v4398 = vadd.f32 %v4338, %v4397
        %v4399 = vpop.f32.mrb[0].mxu0
        %v4400 = vpop.f32.mrb[0].mxu0
        %v4401 = vadd.f32 %v4341, %v4400
        %v4402 = vpop.f32.mrb[0].mxu0
        %4403 = vmatprep.mubr.bf16.mxu0 0
        %4404 = vmatmul.mubr.bf16.gmra.mrb[0].mxu0 %v4361
        %v4405 = vpop.f32.mrb[0].mxu0
        %v4406 = vadd.f32 %v4346, %v4405
        %v4407 = vpop.f32.mrb[0].mxu0
        %v4408 = vpop.f32.mrb[0].mxu0
        %v4409 = vpop.f32.mrb[0].mxu0
        %4410 = vdwg.mxu0
        %v4411 = vrot.slane %v4264, 2
        %v4412 = vrot.slane %v4267, 2
        %v4413 = vsel %vm3611, %v4411, %v4412
        %v4414 = vrot.slane %v4265, 2
        %v4415 = vrot.slane %v4268, 2
        %v4416 = vsel %vm3611, %v4414, %v4415
        %v4419 = vpack.c.bf16 %v4413, %v3614
        %v4420 = vpack.c.bf16 %v4416, %v4416
        %s4421 = scalar_lea.vmem %s22, 16
        %v4422 = vld [vmem:[%s4421] sm:$0xf]
        %v4423 = vld [vmem:[%s4421 + $0x4] sm:$0xf]
        %v4426 = vunpack.c.l.b16 %v4422
        %v4427 = vunpack.c.l.b16 %v4423
        %v4428 = vpack.c.b16 %v4427, %v4426
        %v4431 = vsel %vm1380, %v4419, 0
        %v4434 = vsel %vm1380, %v4420, 0
        %4436 = vmatprep.subr.bf16.mxu0 0
        %4437 = vmatpush1.bf16.msra.mxu0 %v4428
        %4438 = vmatprep.subr.bf16.mxu0 0
        %4439 = vmatpush1.bf16.msra.mxu0 0
        %4440 = vmatprep.subr.bf16.mxu0 0
        %4441 = vmatpush1.bf16.msra.mxu0 0
        %4442 = vmatprep.subr.bf16.mxu0 0
        %4443 = vmatpush1.bf16.msra.mxu0 0
        %4444 = vmatprep.subr.bf16.mxu0 0
        %4445 = vmatpush1.bf16.msra.mxu0 0
        %4446 = vmatprep.subr.bf16.mxu0 0
        %4447 = vmatpush1.bf16.msra.mxu0 0
        %4448 = vmatprep.subr.bf16.mxu0 0
        %4449 = vmatpush1.bf16.msra.mxu0 0
        %4450 = vmatprep.subr.bf16.mxu0 0
        %4451 = vmatpush1.bf16.msra.mxu0 0
        %4452 = vmatprep.subr.bf16.mxu0 0
        %4453 = vmatpush1.bf16.msra.mxu0 0
        %4454 = vmatprep.subr.bf16.mxu0 0
        %4455 = vmatpush1.bf16.msra.mxu0 0
        %4456 = vmatprep.subr.bf16.mxu0 0
        %4457 = vmatpush1.bf16.msra.mxu0 0
        %4458 = vmatprep.subr.bf16.mxu0 0
        %4459 = vmatpush1.bf16.msra.mxu0 0
        %4460 = vmatprep.subr.bf16.mxu0 0
        %4461 = vmatpush1.bf16.msra.mxu0 0
        %4462 = vmatprep.subr.bf16.mxu0 0
        %4463 = vmatpush1.bf16.msra.mxu0 0
        %4464 = vmatprep.subr.bf16.mxu0 0
        %4465 = vmatpush1.bf16.msra.mxu0 0
        %4466 = vmatprep.subr.bf16.mxu0 0
        %4467 = vmatpush1.bf16.msra.mxu0 0
        %4468 = vmatprep.mubr.bf16.mxu0 0
        %4469 = vmatmul.mubr.bf16.gmra.mrb[0].mxu0 %v4431
        %v4470 = vpop.f32.mrb[0].mxu0
        %v4471 = vadd.f32 0.0, %v4470
        %v4472 = vpop.f32.mrb[0].mxu0
        %v4473 = vpop.f32.mrb[0].mxu0
        %v4474 = vadd.f32 0.0, %v4473
        %v4475 = vpop.f32.mrb[0].mxu0
        %4476 = vmatprep.mubr.bf16.mxu0 0
        %4477 = vmatmul.mubr.bf16.gmra.mrb[0].mxu0 %v4434
        %v4478 = vpop.f32.mrb[0].mxu0
        %v4479 = vadd.f32 0.0, %v4478
        %v4480 = vpop.f32.mrb[0].mxu0
        %v4481 = vpop.f32.mrb[0].mxu0
        %v4482 = vpop.f32.mrb[0].mxu0
        %4483 = vdwg.mxu0
        %v4484 = vadd.f32 %v4398, %v4471
        %v4485 = vadd.f32 %v4401, %v4474
        %v4486 = vadd.f32 %v4406, %v4479
        %v4487 = vpack.c.bf16 %v4265, %v4264
        %v4488 = vpack.c.bf16 %v4266, %v4266
        %s4489 = scalar_lea.vmem %s22, 24
        %v4490 = vld [vmem:[%s4489] sm:$0xf]
        %v4491 = vld [vmem:[%s4489 + $0x4] sm:$0xf]
        %v4494 = vunpack.c.l.b16 %v4490
        %v4495 = vunpack.c.l.b16 %v4491
        %v4496 = vpack.c.b16 %v4495, %v4494
        %v4499 = vsel %vm1380, %v4487, 0
        %v4502 = vsel %vm1380, %v4488, 0
        %4504 = vmatprep.subr.bf16.mxu0 0
        %4505 = vmatpush1.bf16.msra.mxu0 %v4496
        %4506 = vmatprep.subr.bf16.mxu0 0
        %4507 = vmatpush1.bf16.msra.mxu0 0
        %4508 = vmatprep.subr.bf16.mxu0 0
        %4509 = vmatpush1.bf16.msra.mxu0 0
        %4510 = vmatprep.subr.bf16.mxu0 0
        %4511 = vmatpush1.bf16.msra.mxu0 0
        %4512 = vmatprep.subr.bf16.mxu0 0
        %4513 = vmatpush1.bf16.msra.mxu0 0
        %4514 = vmatprep.subr.bf16.mxu0 0
        %4515 = vmatpush1.bf16.msra.mxu0 0
        %4516 = vmatprep.subr.bf16.mxu0 0
        %4517 = vmatpush1.bf16.msra.mxu0 0
        %4518 = vmatprep.subr.bf16.mxu0 0
        %4519 = vmatpush1.bf16.msra.mxu0 0
        %4520 = vmatprep.subr.bf16.mxu0 0
        %4521 = vmatpush1.bf16.msra.mxu0 0
        %4522 = vmatprep.subr.bf16.mxu0 0
        %4523 = vmatpush1.bf16.msra.mxu0 0
        %4524 = vmatprep.subr.bf16.mxu0 0
        %4525 = vmatpush1.bf16.msra.mxu0 0
        %4526 = vmatprep.subr.bf16.mxu0 0
        %4527 = vmatpush1.bf16.msra.mxu0 0
        %4528 = vmatprep.subr.bf16.mxu0 0
        %4529 = vmatpush1.bf16.msra.mxu0 0
        %4530 = vmatprep.subr.bf16.mxu0 0
        %4531 = vmatpush1.bf16.msra.mxu0 0
        %4532 = vmatprep.subr.bf16.mxu0 0
        %4533 = vmatpush1.bf16.msra.mxu0 0
        %4534 = vmatprep.subr.bf16.mxu0 0
        %4535 = vmatpush1.bf16.msra.mxu0 0
        %4536 = vmatprep.mubr.bf16.mxu0 0
        %4537 = vmatmul.mubr.bf16.gmra.mrb[0].mxu0 %v4499
        %v4538 = vpop.f32.mrb[0].mxu0
        %v4539 = vadd.f32 0.0, %v4538
        %v4540 = vpop.f32.mrb[0].mxu0
        %v4541 = vpop.f32.mrb[0].mxu0
        %v4542 = vadd.f32 0.0, %v4541
        %v4543 = vpop.f32.mrb[0].mxu0
        %4544 = vmatprep.mubr.bf16.mxu0 0
        %4545 = vmatmul.mubr.bf16.gmra.mrb[0].mxu0 %v4502
        %v4546 = vpop.f32.mrb[0].mxu0
        %v4547 = vadd.f32 0.0, %v4546
        %v4548 = vpop.f32.mrb[0].mxu0
        %v4549 = vpop.f32.mrb[0].mxu0
        %v4550 = vpop.f32.mrb[0].mxu0
        %4551 = vdwg.mxu0
        %v4552 = vadd.f32 %v4484, %v4539
        %v4553 = vadd.f32 %v4485, %v4542
        %v4554 = vadd.f32 %v4486, %v4547
        %v4557 = vrot.slane %v4266, 1
        %v4558 = vrot.slane %v4269, 1
        %v4559 = vsel %vm3459, %v4557, %v4558
        %v4561 = vpack.c.bf16 %v4283, %v4280
        %v4562 = vpack.c.bf16 %v4559, %v4559
        %s4563 = scalar_lea.vmem %s22, 32
        %v4564 = vld [vmem:[%s4563] sm:$0xf]
        %v4565 = vld [vmem:[%s4563 + $0x4] sm:$0xf]
        %v4568 = vunpack.c.l.b16 %v4564
        %v4569 = vunpack.c.l.b16 %v4565
        %v4570 = vpack.c.b16 %v4569, %v4568
        %v4573 = vsel %vm1380, %v4561, 0
        %v4576 = vsel %vm1380, %v4562, 0
        %4578 = vmatprep.subr.bf16.mxu0 0
        %4579 = vmatpush1.bf16.msra.mxu0 %v4570
        %4580 = vmatprep.subr.bf16.mxu0 0
        %4581 = vmatpush1.bf16.msra.mxu0 0
        %4582 = vmatprep.subr.bf16.mxu0 0
        %4583 = vmatpush1.bf16.msra.mxu0 0
        %4584 = vmatprep.subr.bf16.mxu0 0
        %4585 = vmatpush1.bf16.msra.mxu0 0
        %4586 = vmatprep.subr.bf16.mxu0 0
        %4587 = vmatpush1.bf16.msra.mxu0 0
        %4588 = vmatprep.subr.bf16.mxu0 0
        %4589 = vmatpush1.bf16.msra.mxu0 0
        %4590 = vmatprep.subr.bf16.mxu0 0
        %4591 = vmatpush1.bf16.msra.mxu0 0
        %4592 = vmatprep.subr.bf16.mxu0 0
        %4593 = vmatpush1.bf16.msra.mxu0 0
        %4594 = vmatprep.subr.bf16.mxu0 0
        %4595 = vmatpush1.bf16.msra.mxu0 0
        %4596 = vmatprep.subr.bf16.mxu0 0
        %4597 = vmatpush1.bf16.msra.mxu0 0
        %4598 = vmatprep.subr.bf16.mxu0 0
        %4599 = vmatpush1.bf16.msra.mxu0 0
        %4600 = vmatprep.subr.bf16.mxu0 0
        %4601 = vmatpush1.bf16.msra.mxu0 0
        %4602 = vmatprep.subr.bf16.mxu0 0
        %4603 = vmatpush1.bf16.msra.mxu0 0
        %4604 = vmatprep.subr.bf16.mxu0 0
        %4605 = vmatpush1.bf16.msra.mxu0 0
        %4606 = vmatprep.subr.bf16.mxu0 0
        %4607 = vmatpush1.bf16.msra.mxu0 0
        %4608 = vmatprep.subr.bf16.mxu0 0
        %4609 = vmatpush1.bf16.msra.mxu0 0
        %4610 = vmatprep.mubr.bf16.mxu0 0
        %4611 = vmatmul.mubr.bf16.gmra.mrb[0].mxu0 %v4573
        %v4612 = vpop.f32.mrb[0].mxu0
        %v4613 = vadd.f32 0.0, %v4612
        %v4614 = vpop.f32.mrb[0].mxu0
        %v4615 = vpop.f32.mrb[0].mxu0
        %v4616 = vadd.f32 0.0, %v4615
        %v4617 = vpop.f32.mrb[0].mxu0
        %4618 = vmatprep.mubr.bf16.mxu0 0
        %4619 = vmatmul.mubr.bf16.gmra.mrb[0].mxu0 %v4576
        %v4620 = vpop.f32.mrb[0].mxu0
        %v4621 = vadd.f32 0.0, %v4620
        %v4622 = vpop.f32.mrb[0].mxu0
        %v4623 = vpop.f32.mrb[0].mxu0
        %v4624 = vpop.f32.mrb[0].mxu0
        %4625 = vdwg.mxu0
        %v4626 = vadd.f32 %v4552, %v4613
        %v4627 = vadd.f32 %v4553, %v4616
        %v4628 = vadd.f32 %v4554, %v4621
        %v4629 = vrot.slane %v4266, 2
        %v4630 = vrot.slane %v4269, 2
        %v4631 = vsel %vm3611, %v4629, %v4630
        %v4633 = vpack.c.bf16 %v4416, %v4413
        %v4634 = vpack.c.bf16 %v4631, %v4631
        %s4635 = scalar_lea.vmem %s22, 40
        %v4636 = vld [vmem:[%s4635] sm:$0xf]
        %v4637 = vld [vmem:[%s4635 + $0x4] sm:$0xf]
        %v4640 = vunpack.c.l.b16 %v4636
        %v4641 = vunpack.c.l.b16 %v4637
        %v4642 = vpack.c.b16 %v4641, %v4640
        %v4645 = vsel %vm1380, %v4633, 0
        %v4648 = vsel %vm1380, %v4634, 0
        %4650 = vmatprep.subr.bf16.mxu0 0
        %4651 = vmatpush1.bf16.msra.mxu0 %v4642
        %4652 = vmatprep.subr.bf16.mxu0 0
        %4653 = vmatpush1.bf16.msra.mxu0 0
        %4654 = vmatprep.subr.bf16.mxu0 0
        %4655 = vmatpush1.bf16.msra.mxu0 0
        %4656 = vmatprep.subr.bf16.mxu0 0
        %4657 = vmatpush1.bf16.msra.mxu0 0
        %4658 = vmatprep.subr.bf16.mxu0 0
        %4659 = vmatpush1.bf16.msra.mxu0 0
        %4660 = vmatprep.subr.bf16.mxu0 0
        %4661 = vmatpush1.bf16.msra.mxu0 0
        %4662 = vmatprep.subr.bf16.mxu0 0
        %4663 = vmatpush1.bf16.msra.mxu0 0
        %4664 = vmatprep.subr.bf16.mxu0 0
        %4665 = vmatpush1.bf16.msra.mxu0 0
        %4666 = vmatprep.subr.bf16.mxu0 0
        %4667 = vmatpush1.bf16.msra.mxu0 0
        %4668 = vmatprep.subr.bf16.mxu0 0
        %4669 = vmatpush1.bf16.msra.mxu0 0
        %4670 = vmatprep.subr.bf16.mxu0 0
        %4671 = vmatpush1.bf16.msra.mxu0 0
        %4672 = vmatprep.subr.bf16.mxu0 0
        %4673 = vmatpush1.bf16.msra.mxu0 0
        %4674 = vmatprep.subr.bf16.mxu0 0
        %4675 = vmatpush1.bf16.msra.mxu0 0
        %4676 = vmatprep.subr.bf16.mxu0 0
        %4677 = vmatpush1.bf16.msra.mxu0 0
        %4678 = vmatprep.subr.bf16.mxu0 0
        %4679 = vmatpush1.bf16.msra.mxu0 0
        %4680 = vmatprep.subr.bf16.mxu0 0
        %4681 = vmatpush1.bf16.msra.mxu0 0
        %4682 = vmatprep.mubr.bf16.mxu0 0
        %4683 = vmatmul.mubr.bf16.gmra.mrb[0].mxu0 %v4645
        %v4684 = vpop.f32.mrb[0].mxu0
        %v4685 = vadd.f32 0.0, %v4684
        %v4686 = vpop.f32.mrb[0].mxu0
        %v4687 = vpop.f32.mrb[0].mxu0
        %v4688 = vadd.f32 0.0, %v4687
        %v4689 = vpop.f32.mrb[0].mxu0
        %4690 = vmatprep.mubr.bf16.mxu0 0
        %4691 = vmatmul.mubr.bf16.gmra.mrb[0].mxu0 %v4648
        %v4692 = vpop.f32.mrb[0].mxu0
        %v4693 = vadd.f32 0.0, %v4692
        %v4694 = vpop.f32.mrb[0].mxu0
        %v4695 = vpop.f32.mrb[0].mxu0
        %v4696 = vpop.f32.mrb[0].mxu0
        %4697 = vdwg.mxu0
        %v4698 = vadd.f32 %v4626, %v4685
        %v4699 = vadd.f32 %v4627, %v4688
        %v4700 = vadd.f32 %v4628, %v4693
        %v4701 = vpack.c.bf16 %v4266, %v4265
        %s4702 = scalar_lea.vmem %s22, 48
        %v4703 = vld [vmem:[%s4702] sm:$0xf]
        %v4704 = vld [vmem:[%s4702 + $0x4] sm:$0xf]
        %v4707 = vunpack.c.l.b16 %v4703
        %v4708 = vunpack.c.l.b16 %v4704
        %v4709 = vpack.c.b16 %v4708, %v4707
        %v4712 = vsel %vm1380, %v4701, 0
        %v4714 = vsel %vm1380, %v3939, 0
        %4716 = vmatprep.subr.bf16.mxu0 0
        %4717 = vmatpush1.bf16.msra.mxu0 %v4709
        %4718 = vmatprep.subr.bf16.mxu0 0
        %4719 = vmatpush1.bf16.msra.mxu0 0
        %4720 = vmatprep.subr.bf16.mxu0 0
        %4721 = vmatpush1.bf16.msra.mxu0 0
        %4722 = vmatprep.subr.bf16.mxu0 0
        %4723 = vmatpush1.bf16.msra.mxu0 0
        %4724 = vmatprep.subr.bf16.mxu0 0
        %4725 = vmatpush1.bf16.msra.mxu0 0
        %4726 = vmatprep.subr.bf16.mxu0 0
        %4727 = vmatpush1.bf16.msra.mxu0 0
        %4728 = vmatprep.subr.bf16.mxu0 0
        %4729 = vmatpush1.bf16.msra.mxu0 0
        %4730 = vmatprep.subr.bf16.mxu0 0
        %4731 = vmatpush1.bf16.msra.mxu0 0
        %4732 = vmatprep.subr.bf16.mxu0 0
        %4733 = vmatpush1.bf16.msra.mxu0 0
        %4734 = vmatprep.subr.bf16.mxu0 0
        %4735 = vmatpush1.bf16.msra.mxu0 0
        %4736 = vmatprep.subr.bf16.mxu0 0
        %4737 = vmatpush1.bf16.msra.mxu0 0
        %4738 = vmatprep.subr.bf16.mxu0 0
        %4739 = vmatpush1.bf16.msra.mxu0 0
        %4740 = vmatprep.subr.bf16.mxu0 0
        %4741 = vmatpush1.bf16.msra.mxu0 0
        %4742 = vmatprep.subr.bf16.mxu0 0
        %4743 = vmatpush1.bf16.msra.mxu0 0
        %4744 = vmatprep.subr.bf16.mxu0 0
        %4745 = vmatpush1.bf16.msra.mxu0 0
        %4746 = vmatprep.subr.bf16.mxu0 0
        %4747 = vmatpush1.bf16.msra.mxu0 0
        %4748 = vmatprep.mubr.bf16.mxu0 0
        %4749 = vmatmul.mubr.bf16.gmra.mrb[0].mxu0 %v4712
        %v4750 = vpop.f32.mrb[0].mxu0
        %v4751 = vadd.f32 0.0, %v4750
        %v4752 = vpop.f32.mrb[0].mxu0
        %v4753 = vpop.f32.mrb[0].mxu0
        %v4754 = vadd.f32 0.0, %v4753
        %v4755 = vpop.f32.mrb[0].mxu0
        %4756 = vmatprep.mubr.bf16.mxu0 0
        %4757 = vmatmul.mubr.bf16.gmra.mrb[0].mxu0 %v4714
        %v4758 = vpop.f32.mrb[0].mxu0
        %v4759 = vadd.f32 0.0, %v4758
        %v4760 = vpop.f32.mrb[0].mxu0
        %v4761 = vpop.f32.mrb[0].mxu0
        %v4762 = vpop.f32.mrb[0].mxu0
        %4763 = vdwg.mxu0
        %v4764 = vadd.f32 %v4698, %v4751
        %v4765 = vadd.f32 %v4699, %v4754
        %v4766 = vadd.f32 %v4700, %v4759
        %v4767 = vpack.c.bf16 %v4559, %v4283
        %s4768 = scalar_lea.vmem %s22, 56
        %v4769 = vld [vmem:[%s4768] sm:$0xf]
        %v4770 = vld [vmem:[%s4768 + $0x4] sm:$0xf]
        %v4773 = vunpack.c.l.b16 %v4769
        %v4774 = vunpack.c.l.b16 %v4770
        %v4775 = vpack.c.b16 %v4774, %v4773
        %v4778 = vsel %vm1380, %v4767, 0
        %v4780 = vsel %vm1380, %v4015, 0
        %4782 = vmatprep.subr.bf16.mxu0 0
        %4783 = vmatpush1.bf16.msra.mxu0 %v4775
        %4784 = vmatprep.subr.bf16.mxu0 0
        %4785 = vmatpush1.bf16.msra.mxu0 0
        %4786 = vmatprep.subr.bf16.mxu0 0
        %4787 = vmatpush1.bf16.msra.mxu0 0
        %4788 = vmatprep.subr.bf16.mxu0 0
        %4789 = vmatpush1.bf16.msra.mxu0 0
        %4790 = vmatprep.subr.bf16.mxu0 0
        %4791 = vmatpush1.bf16.msra.mxu0 0
        %4792 = vmatprep.subr.bf16.mxu0 0
        %4793 = vmatpush1.bf16.msra.mxu0 0
        %4794 = vmatprep.subr.bf16.mxu0 0
        %4795 = vmatpush1.bf16.msra.mxu0 0
        %4796 = vmatprep.subr.bf16.mxu0 0
        %4797 = vmatpush1.bf16.msra.mxu0 0
        %4798 = vmatprep.subr.bf16.mxu0 0
        %4799 = vmatpush1.bf16.msra.mxu0 0
        %4800 = vmatprep.subr.bf16.mxu0 0
        %4801 = vmatpush1.bf16.msra.mxu0 0
        %4802 = vmatprep.subr.bf16.mxu0 0
        %4803 = vmatpush1.bf16.msra.mxu0 0
        %4804 = vmatprep.subr.bf16.mxu0 0
        %4805 = vmatpush1.bf16.msra.mxu0 0
        %4806 = vmatprep.subr.bf16.mxu0 0
        %4807 = vmatpush1.bf16.msra.mxu0 0
        %4808 = vmatprep.subr.bf16.mxu0 0
        %4809 = vmatpush1.bf16.msra.mxu0 0
        %4810 = vmatprep.subr.bf16.mxu0 0
        %4811 = vmatpush1.bf16.msra.mxu0 0
        %4812 = vmatprep.subr.bf16.mxu0 0
        %4813 = vmatpush1.bf16.msra.mxu0 0
        %4814 = vmatprep.mubr.bf16.mxu0 0
        %4815 = vmatmul.mubr.bf16.gmra.mrb[0].mxu0 %v4778
        %v4816 = vpop.f32.mrb[0].mxu0
        %v4817 = vadd.f32 0.0, %v4816
        %v4818 = vpop.f32.mrb[0].mxu0
        %v4819 = vpop.f32.mrb[0].mxu0
        %v4820 = vadd.f32 0.0, %v4819
        %v4821 = vpop.f32.mrb[0].mxu0
        %4822 = vmatprep.mubr.bf16.mxu0 0
        %4823 = vmatmul.mubr.bf16.gmra.mrb[0].mxu0 %v4780
        %v4824 = vpop.f32.mrb[0].mxu0
        %v4825 = vadd.f32 0.0, %v4824
        %v4826 = vpop.f32.mrb[0].mxu0
        %v4827 = vpop.f32.mrb[0].mxu0
        %v4828 = vpop.f32.mrb[0].mxu0
        %4829 = vdwg.mxu0
        %v4830 = vadd.f32 %v4764, %v4817
        %v4831 = vadd.f32 %v4765, %v4820
        %v4832 = vadd.f32 %v4766, %v4825
        %v4833 = vpack.c.bf16 %v4631, %v4416
        %s4834 = scalar_lea.vmem %s22, 64
        %v4835 = vld [vmem:[%s4834] sm:$0xf]
        %v4836 = vld [vmem:[%s4834 + $0x4] sm:$0xf]
        %v4839 = vunpack.c.l.b16 %v4835
        %v4840 = vunpack.c.l.b16 %v4836
        %v4841 = vpack.c.b16 %v4840, %v4839
        %v4844 = vsel %vm1380, %v4833, 0
        %v4846 = vsel %vm1380, %v4091, 0
        %4848 = vmatprep.subr.bf16.mxu0 0
        %4849 = vmatpush1.bf16.msra.mxu0 %v4841
        %4850 = vmatprep.subr.bf16.mxu0 0
        %4851 = vmatpush1.bf16.msra.mxu0 0
        %4852 = vmatprep.subr.bf16.mxu0 0
        %4853 = vmatpush1.bf16.msra.mxu0 0
        %4854 = vmatprep.subr.bf16.mxu0 0
        %4855 = vmatpush1.bf16.msra.mxu0 0
        %4856 = vmatprep.subr.bf16.mxu0 0
        %4857 = vmatpush1.bf16.msra.mxu0 0
        %4858 = vmatprep.subr.bf16.mxu0 0
        %4859 = vmatpush1.bf16.msra.mxu0 0
        %4860 = vmatprep.subr.bf16.mxu0 0
        %4861 = vmatpush1.bf16.msra.mxu0 0
        %4862 = vmatprep.subr.bf16.mxu0 0
        %4863 = vmatpush1.bf16.msra.mxu0 0
        %4864 = vmatprep.subr.bf16.mxu0 0
        %4865 = vmatpush1.bf16.msra.mxu0 0
        %4866 = vmatprep.subr.bf16.mxu0 0
        %4867 = vmatpush1.bf16.msra.mxu0 0
        %4868 = vmatprep.subr.bf16.mxu0 0
        %4869 = vmatpush1.bf16.msra.mxu0 0
        %4870 = vmatprep.subr.bf16.mxu0 0
        %4871 = vmatpush1.bf16.msra.mxu0 0
        %4872 = vmatprep.subr.bf16.mxu0 0
        %4873 = vmatpush1.bf16.msra.mxu0 0
        %4874 = vmatprep.subr.bf16.mxu0 0
        %4875 = vmatpush1.bf16.msra.mxu0 0
        %4876 = vmatprep.subr.bf16.mxu0 0
        %4877 = vmatpush1.bf16.msra.mxu0 0
        %4878 = vmatprep.subr.bf16.mxu0 0
        %4879 = vmatpush1.bf16.msra.mxu0 0
        %4880 = vmatprep.mubr.bf16.mxu0 0
        %4881 = vmatmul.mubr.bf16.gmra.mrb[0].mxu0 %v4844
        %v4882 = vpop.f32.mrb[0].mxu0
        %v4883 = vadd.f32 0.0, %v4882
        %v4884 = vpop.f32.mrb[0].mxu0
        %v4885 = vpop.f32.mrb[0].mxu0
        %v4886 = vadd.f32 0.0, %v4885
        %v4887 = vpop.f32.mrb[0].mxu0
        %4888 = vmatprep.mubr.bf16.mxu0 0
        %4889 = vmatmul.mubr.bf16.gmra.mrb[0].mxu0 %v4846
        %v4890 = vpop.f32.mrb[0].mxu0
        %v4891 = vadd.f32 0.0, %v4890
        %v4892 = vpop.f32.mrb[0].mxu0
        %v4893 = vpop.f32.mrb[0].mxu0
        %v4894 = vpop.f32.mrb[0].mxu0
        %4895 = vdwg.mxu0
        %v4896 = vadd.f32 %v4830, %v4883
        %v4897 = vadd.f32 %v4831, %v4886
        %v4898 = vadd.f32 %v4832, %v4891
        %v4899 = vld [vmem:[%s23] sm:$0x1]
        %v4901 = vlaneseq
        %v4902 = vshrl.u32 %v4901, 7
        %v4903 = vsub.s32 0, %v4902
        %v4904 = vrot.slane %v4899, %v4903
        %v4906 = vadd.f32 %v4896, %v4904
        %v4907 = vadd.f32 %v4897, %v4904
        %v4908 = vadd.f32 %v4898, %v4904
        %v4910 = vrot.slane %v4906, 1
        %4911 = vrot.lane.b32.xlu0 %v4910, 16
        %v4912 = vpop.permute.xlu0 %4911
        %v4914 = vrot.slane %v4906, 2
        %4915 = vrot.lane.b32.xlu0 %v4914, 32
        %v4916 = vpop.permute.xlu0 %4915
        %v4918 = vrot.slane %v4906, 3
        %4919 = vrot.lane.b32.xlu0 %v4918, 48
        %v4920 = vpop.permute.xlu0 %4919
        %v4922 = vrot.slane %v4906, 4
        %4923 = vrot.lane.b32.xlu0 %v4922, 64
        %v4924 = vpop.permute.xlu0 %4923
        %v4926 = vrot.slane %v4906, 5
        %4927 = vrot.lane.b32.xlu0 %v4926, 80
        %v4928 = vpop.permute.xlu0 %4927
        %v4930 = vrot.slane %v4906, 6
        %4931 = vrot.lane.b32.xlu0 %v4930, 96
        %v4932 = vpop.permute.xlu0 %4931
        %v4934 = vrot.slane %v4906, 7
        %4935 = vrot.lane.b32.xlu0 %v4934, 112
        %v4936 = vpop.permute.xlu0 %4935
        %v4939 = vrot.slane %v4907, 1
        %4940 = vrot.lane.b32.xlu0 %v4939, 16
        %v4941 = vpop.permute.xlu0 %4940
        %v4943 = vrot.slane %v4907, 2
        %4944 = vrot.lane.b32.xlu0 %v4943, 32
        %v4945 = vpop.permute.xlu0 %4944
        %v4947 = vrot.slane %v4907, 3
        %4948 = vrot.lane.b32.xlu0 %v4947, 48
        %v4949 = vpop.permute.xlu0 %4948
        %v4951 = vrot.slane %v4907, 4
        %4952 = vrot.lane.b32.xlu0 %v4951, 64
        %v4953 = vpop.permute.xlu0 %4952
        %v4955 = vrot.slane %v4907, 5
        %4956 = vrot.lane.b32.xlu0 %v4955, 80
        %v4957 = vpop.permute.xlu0 %4956
        %v4959 = vrot.slane %v4907, 6
        %4960 = vrot.lane.b32.xlu0 %v4959, 96
        %v4961 = vpop.permute.xlu0 %4960
        %v4963 = vrot.slane %v4907, 7
        %4964 = vrot.lane.b32.xlu0 %v4963, 112
        %v4965 = vpop.permute.xlu0 %4964
        %v4967 = vsel %vm1380, %v4906, %v4912
        %v4968 = vsel %vm804, %v4967, %v4916
        %vm4969 = vcmask 392192
        %v4970 = vsel %vm4969, %v4968, %v4920
        %v4971 = vsel %vm1597, %v4970, %v4924
        %vm4972 = vcmask 654336
        %v4973 = vsel %vm4972, %v4971, %v4928
        %vm4974 = vcmask 785408
        %v4975 = vsel %vm4974, %v4973, %v4932
        %vm4976 = vcmask 916480
        %v4977 = vsel %vm4976, %v4975, %v4936
        %v4978 = vsel %vm1380, %v4907, %v4941
        %v4979 = vsel %vm804, %v4978, %v4945
        %v4980 = vsel %vm4969, %v4979, %v4949
        %v4981 = vsel %vm1597, %v4980, %v4953
        %v4982 = vsel %vm4972, %v4981, %v4957
        %v4983 = vsel %vm4974, %v4982, %v4961
        %v4984 = vsel %vm4976, %v4983, %v4965
        %v4986 = vrot.slane %v4908, 1
        %4987 = vrot.lane.b32.xlu0 %v4986, 16
        %v4988 = vpop.permute.xlu0 %4987
        %v4990 = vrot.slane %v4908, 2
        %4991 = vrot.lane.b32.xlu0 %v4990, 32
        %v4992 = vpop.permute.xlu0 %4991
        %v4994 = vrot.slane %v4908, 3
        %4995 = vrot.lane.b32.xlu0 %v4994, 48
        %v4996 = vpop.permute.xlu0 %4995
        %v4998 = vrot.slane %v4908, 4
        %4999 = vrot.lane.b32.xlu0 %v4998, 64
        %v5000 = vpop.permute.xlu0 %4999
        %v5002 = vrot.slane %v4908, 5
        %5003 = vrot.lane.b32.xlu0 %v5002, 80
        %v5004 = vpop.permute.xlu0 %5003
        %v5006 = vrot.slane %v4908, 6
        %5007 = vrot.lane.b32.xlu0 %v5006, 96
        %v5008 = vpop.permute.xlu0 %5007
        %v5010 = vrot.slane %v4908, 7
        %5011 = vrot.lane.b32.xlu0 %v5010, 112
        %v5012 = vpop.permute.xlu0 %5011
        %v5014 = vsel %vm1380, %v4908, %v4988
        %v5015 = vsel %vm804, %v5014, %v4992
        %v5016 = vsel %vm4969, %v5015, %v4996
        %v5017 = vsel %vm1597, %v5016, %v5000
        %v5018 = vsel %vm4972, %v5017, %v5004
        %v5019 = vsel %vm4974, %v5018, %v5008
        %v5020 = vsel %vm4976, %v5019, %v5012
        %v5021 = vpack.c.bf16 %v4977, %v4977
        %v5022 = vpack.c.bf16 %v4984, %v4984
        %v5023 = vpack.c.bf16 %v5020, %v5020
        %v5024 = vld [vmem:[%s24] sm:$0xf]
        %v5025 = vld [vmem:[%s24 + $0x4] sm:$0xf]
        %v5026 = vld [vmem:[%s24 + $0x8] sm:$0xf]
        %v5027 = vld [vmem:[%s24 + $0xc] sm:$0xf]
        %v5028 = vld [vmem:[%s24 + $0x10] sm:$0xf]
        %v5029 = vld [vmem:[%s24 + $0x14] sm:$0xf]
        %v5030 = vld [vmem:[%s24 + $0x18] sm:$0xf]
        %v5031 = vld [vmem:[%s24 + $0x1c] sm:$0xf]
        %v5032 = vld [vmem:[%s24 + $0x20] sm:$0xf]
        %v5033 = vld [vmem:[%s24 + $0x24] sm:$0xf]
        %v5034 = vld [vmem:[%s24 + $0x28] sm:$0xf]
        %v5035 = vld [vmem:[%s24 + $0x2c] sm:$0xf]
        %v5036 = vld [vmem:[%s24 + $0x30] sm:$0xf]
        %v5037 = vld [vmem:[%s24 + $0x34] sm:$0xf]
        %v5038 = vld [vmem:[%s24 + $0x38] sm:$0xf]
        %v5039 = vld [vmem:[%s24 + $0x3c] sm:$0xf]
        %v5040 = vld [vmem:[%s24 + $0x40] sm:$0xf]
        %v5041 = vld [vmem:[%s24 + $0x44] sm:$0xf]
        %v5042 = vld [vmem:[%s24 + $0x48] sm:$0xf]
        %v5043 = vld [vmem:[%s24 + $0x4c] sm:$0xf]
        %v5044 = vld [vmem:[%s24 + $0x50] sm:$0xf]
        %v5045 = vld [vmem:[%s24 + $0x54] sm:$0xf]
        %v5046 = vld [vmem:[%s24 + $0x58] sm:$0xf]
        %v5047 = vld [vmem:[%s24 + $0x5c] sm:$0xf]
        %v5048 = vld [vmem:[%s24 + $0x60] sm:$0xf]
        %v5049 = vld [vmem:[%s24 + $0x64] sm:$0xf]
        %v5050 = vld [vmem:[%s24 + $0x68] sm:$0xf]
        %v5051 = vld [vmem:[%s24 + $0x6c] sm:$0xf]
        %v5052 = vld [vmem:[%s24 + $0x70] sm:$0xf]
        %v5053 = vld [vmem:[%s24 + $0x74] sm:$0xf]
        %v5054 = vld [vmem:[%s24 + $0x78] sm:$0xf]
        %v5055 = vld [vmem:[%s24 + $0x7c] sm:$0xf]
        %v5056 = vld [vmem:[%s24 + $0x80] sm:$0xf]
        %v5057 = vld [vmem:[%s24 + $0x84] sm:$0xf]
        %v5058 = vld [vmem:[%s24 + $0x88] sm:$0xf]
        %v5059 = vld [vmem:[%s24 + $0x8c] sm:$0xf]
        %v5060 = vld [vmem:[%s24 + $0x90] sm:$0xf]
        %v5061 = vld [vmem:[%s24 + $0x94] sm:$0xf]
        %v5062 = vld [vmem:[%s24 + $0x98] sm:$0xf]
        %v5063 = vld [vmem:[%s24 + $0x9c] sm:$0xf]
        %v5064 = vld [vmem:[%s24 + $0xa0] sm:$0xf]
        %v5065 = vld [vmem:[%s24 + $0xa4] sm:$0xf]
        %v5066 = vld [vmem:[%s24 + $0xa8] sm:$0xf]
        %v5067 = vld [vmem:[%s24 + $0xac] sm:$0xf]
        %v5068 = vld [vmem:[%s24 + $0xb0] sm:$0xf]
        %v5069 = vld [vmem:[%s24 + $0xb4] sm:$0xf]
        %v5070 = vld [vmem:[%s24 + $0xb8] sm:$0xf]
        %v5071 = vld [vmem:[%s24 + $0xbc] sm:$0xf]
        %v5072 = vld [vmem:[%s25] sm:$0x1]
        %v5121 = vunpack.c.l.b16 %v5024
        %v5122 = vunpack.c.l.b16 %v5025
        %v5123 = vunpack.c.l.b16 %v5026
        %v5124 = vunpack.c.l.b16 %v5027
        %v5125 = vunpack.c.l.b16 %v5028
        %v5126 = vunpack.c.l.b16 %v5029
        %v5127 = vunpack.c.l.b16 %v5030
        %v5128 = vunpack.c.l.b16 %v5031
        %v5129 = vunpack.c.l.b16 %v5032
        %v5130 = vunpack.c.l.b16 %v5033
        %v5131 = vunpack.c.l.b16 %v5034
        %v5132 = vunpack.c.l.b16 %v5035
        %v5133 = vunpack.c.l.b16 %v5036
        %v5134 = vunpack.c.l.b16 %v5037
        %v5135 = vunpack.c.l.b16 %v5038
        %v5136 = vunpack.c.l.b16 %v5039
        %v5137 = vunpack.c.l.b16 %v5040
        %v5138 = vunpack.c.l.b16 %v5041
        %v5139 = vunpack.c.l.b16 %v5042
        %v5140 = vunpack.c.l.b16 %v5043
        %v5141 = vunpack.c.l.b16 %v5044
        %v5142 = vunpack.c.l.b16 %v5045
        %v5143 = vunpack.c.l.b16 %v5046
        %v5144 = vunpack.c.l.b16 %v5047
        %v5145 = vunpack.c.l.b16 %v5048
        %v5146 = vunpack.c.l.b16 %v5049
        %v5147 = vunpack.c.l.b16 %v5050
        %v5148 = vunpack.c.l.b16 %v5051
        %v5149 = vunpack.c.l.b16 %v5052
        %v5150 = vunpack.c.l.b16 %v5053
        %v5151 = vunpack.c.l.b16 %v5054
        %v5152 = vunpack.c.l.b16 %v5055
        %v5153 = vunpack.c.l.b16 %v5056
        %v5154 = vunpack.c.l.b16 %v5057
        %v5155 = vunpack.c.l.b16 %v5058
        %v5156 = vunpack.c.l.b16 %v5059
        %v5157 = vunpack.c.l.b16 %v5060
        %v5158 = vunpack.c.l.b16 %v5061
        %v5159 = vunpack.c.l.b16 %v5062
        %v5160 = vunpack.c.l.b16 %v5063
        %v5161 = vunpack.c.l.b16 %v5064
        %v5162 = vunpack.c.l.b16 %v5065
        %v5163 = vunpack.c.l.b16 %v5066
        %v5164 = vunpack.c.l.b16 %v5067
        %v5165 = vunpack.c.l.b16 %v5068
        %v5166 = vunpack.c.l.b16 %v5069
        %v5167 = vunpack.c.l.b16 %v5070
        %v5168 = vunpack.c.l.b16 %v5071
        %v5169 = vpack.c.b16 %v5122, %v5121
        %v5170 = vpack.c.b16 %v5124, %v5123
        %v5171 = vpack.c.b16 %v5126, %v5125
        %v5172 = vpack.c.b16 %v5128, %v5127
        %v5173 = vpack.c.b16 %v5130, %v5129
        %v5174 = vpack.c.b16 %v5132, %v5131
        %v5175 = vpack.c.b16 %v5134, %v5133
        %v5176 = vpack.c.b16 %v5136, %v5135
        %v5177 = vpack.c.b16 %v5138, %v5137
        %v5178 = vpack.c.b16 %v5140, %v5139
        %v5179 = vpack.c.b16 %v5142, %v5141
        %v5180 = vpack.c.b16 %v5144, %v5143
        %v5181 = vpack.c.b16 %v5146, %v5145
        %v5182 = vpack.c.b16 %v5148, %v5147
        %v5183 = vpack.c.b16 %v5150, %v5149
        %v5184 = vpack.c.b16 %v5152, %v5151
        %v5185 = vpack.c.b16 %v5154, %v5153
        %v5186 = vpack.c.b16 %v5156, %v5155
        %v5187 = vpack.c.b16 %v5158, %v5157
        %v5188 = vpack.c.b16 %v5160, %v5159
        %v5189 = vpack.c.b16 %v5162, %v5161
        %v5190 = vpack.c.b16 %v5164, %v5163
        %v5191 = vpack.c.b16 %v5166, %v5165
        %v5192 = vpack.c.b16 %v5168, %v5167
        %5217 = vmatprep.subr.bf16.mxu0 0
        %5218 = vmatpush1.bf16.msra.mxu0 %v5169
        %5219 = vmatprep.subr.bf16.mxu0 0
        %5220 = vmatpush1.bf16.msra.mxu0 %v5170
        %5221 = vmatprep.subr.bf16.mxu0 0
        %5222 = vmatpush1.bf16.msra.mxu0 %v5171
        %5223 = vmatprep.subr.bf16.mxu0 0
        %5224 = vmatpush1.bf16.msra.mxu0 %v5172
        %5225 = vmatprep.subr.bf16.mxu0 0
        %5226 = vmatpush1.bf16.msra.mxu0 %v5173
        %5227 = vmatprep.subr.bf16.mxu0 0
        %5228 = vmatpush1.bf16.msra.mxu0 %v5174
        %5229 = vmatprep.subr.bf16.mxu0 0
        %5230 = vmatpush1.bf16.msra.mxu0 %v5175
        %5231 = vmatprep.subr.bf16.mxu0 0
        %5232 = vmatpush1.bf16.msra.mxu0 %v5176
        %5233 = vmatprep.subr.bf16.mxu0 0
        %5234 = vmatpush1.bf16.msra.mxu0 %v5177
        %5235 = vmatprep.subr.bf16.mxu0 0
        %5236 = vmatpush1.bf16.msra.mxu0 %v5178
        %5237 = vmatprep.subr.bf16.mxu0 0
        %5238 = vmatpush1.bf16.msra.mxu0 %v5179
        %5239 = vmatprep.subr.bf16.mxu0 0
        %5240 = vmatpush1.bf16.msra.mxu0 %v5180
        %5241 = vmatprep.subr.bf16.mxu0 0
        %5242 = vmatpush1.bf16.msra.mxu0 %v5181
        %5243 = vmatprep.subr.bf16.mxu0 0
        %5244 = vmatpush1.bf16.msra.mxu0 %v5182
        %5245 = vmatprep.subr.bf16.mxu0 0
        %5246 = vmatpush1.bf16.msra.mxu0 %v5183
        %5247 = vmatprep.subr.bf16.mxu0 0
        %5248 = vmatpush1.bf16.msra.mxu0 %v5184
        %5249 = vmatprep.mubr.bf16.mxu0 %v5022
        %5250 = vmatmul.mubr.bf16.gmra.mrb[0].mxu0 %v5021
        %v5251 = vpop.f32.mrb[0].mxu0
        %v5252 = vadd.f32 %v5072, %v5251
        %v5253 = vpop.f32.mrb[0].mxu0
        %v5254 = vpop.f32.mrb[0].mxu0
        %v5255 = vpop.f32.mrb[0].mxu0
        %5256 = vdwg.mxu0
        %5257 = vmatprep.subr.bf16.mxu0 0
        %5258 = vmatpush1.bf16.msra.mxu0 %v5185
        %5259 = vmatprep.subr.bf16.mxu0 0
        %5260 = vmatpush1.bf16.msra.mxu0 %v5186
        %5261 = vmatprep.subr.bf16.mxu0 0
        %5262 = vmatpush1.bf16.msra.mxu0 %v5187
        %5263 = vmatprep.subr.bf16.mxu0 0
        %5264 = vmatpush1.bf16.msra.mxu0 %v5188
        %5265 = vmatprep.subr.bf16.mxu0 0
        %5266 = vmatpush1.bf16.msra.mxu0 %v5189
        %5267 = vmatprep.subr.bf16.mxu0 0
        %5268 = vmatpush1.bf16.msra.mxu0 %v5190
        %5269 = vmatprep.subr.bf16.mxu0 0
        %5270 = vmatpush1.bf16.msra.mxu0 %v5191
        %5271 = vmatprep.subr.bf16.mxu0 0
        %5272 = vmatpush1.bf16.msra.mxu0 %v5192
        %5273 = vmatprep.subr.bf16.mxu0 0
        %5274 = vmatpush1.bf16.msra.mxu0 0
        %5275 = vmatprep.subr.bf16.mxu0 0
        %5276 = vmatpush1.bf16.msra.mxu0 0
        %5277 = vmatprep.subr.bf16.mxu0 0
        %5278 = vmatpush1.bf16.msra.mxu0 0
        %5279 = vmatprep.subr.bf16.mxu0 0
        %5280 = vmatpush1.bf16.msra.mxu0 0
        %5281 = vmatprep.subr.bf16.mxu0 0
        %5282 = vmatpush1.bf16.msra.mxu0 0
        %5283 = vmatprep.subr.bf16.mxu0 0
        %5284 = vmatpush1.bf16.msra.mxu0 0
        %5285 = vmatprep.subr.bf16.mxu0 0
        %5286 = vmatpush1.bf16.msra.mxu0 0
        %5287 = vmatprep.subr.bf16.mxu0 0
        %5288 = vmatpush1.bf16.msra.mxu0 0
        %5289 = vmatprep.mubr.bf16.mxu0 0
        %5290 = vmatmul.mubr.bf16.gmra.mrb[0].mxu0 %v5023
        %v5291 = vpop.f32.mrb[0].mxu0
        %v5292 = vadd.f32 %v5252, %v5291
        %v5293 = vpop.f32.mrb[0].mxu0
        %v5294 = vpop.f32.mrb[0].mxu0
        %v5295 = vpop.f32.mrb[0].mxu0
        %5296 = vdwg.mxu0
        %5297 = vst [vmem:[%s792] sm:$0x1] %v5292
        %s5298 = sand.u32 %s604, 1
        %s5299 = scalar_lea.sflag [#allocation3], %s5298
        %s5300 = sand.u32 %s604, 1
        %s5301 = scalar_lea.vmem [#allocation2], %s5300
        // Predicated region
        $region125: #{bert_yl_forward.1} parent=123 // pred_check
          %p5302 = pneg %p614
        $region126: #{bert_yl_forward.1} parent=123 // pred_check_branch
          %5304 = sbr.rel (%p5302) target = $region128
        $region127: #{bert_yl_forward.1} parent=123 // pred_region
          %s5306 = ssub.s32 16, 16
          %5307 = vsyncadd %s5299, %s5306
          %s5308 = smul.addr %s40, 16
          %s5309 = scalar_lea.hbm %s26, %s5308
          %s5311 = sshll.u32 %s5301, 4
          %s5312 = int_to_ptr.vmem [resolvable:$true] %s5311
          %5314 = dma.vmem_to_hbm [thread:$0]  %s5312, 16, %s5309, %s5299
        $region128: #{bert_yl_forward.1} parent=123 // pred_fallthru
          _
      $region124: #{bert_yl_forward.1} parent=5 // pred_fallthru
        _
      %p5315 = scmp.le.s32.totalorder 2, %s35
      // Predicated region
      $region129: #{bert_yl_forward.1} parent=5 // pred_check
        %p5316 = pneg %p5315
      $region130: #{bert_yl_forward.1} parent=5 // pred_check_branch
        %5318 = sbr.rel (%p5316) target = $region132
      $region131: #{bert_yl_forward.1} parent=5 // pred_region
        %s5319 = ssub.s32 %s35, 2
        // Predicated region
        $region133: #{bert_yl_forward.1} parent=131 // pred_check
          %p5320 = pneg %p620
        $region134: #{bert_yl_forward.1} parent=131 // pred_check_branch
          %5322 = sbr.rel (%p5320) target = $region136
        $region135: #{bert_yl_forward.1} parent=131 // pred_region
          %s5323 = sand.u32 %s605, 1
          %s5324 = scalar_lea.sflag [#allocation3], %s5323
          %s5325 = sand.u32 %s605, 1
          %s5326 = scalar_lea.vmem [#allocation2], %s5325
          %5327 = dma.done %s5324, 16
        $region136: #{bert_yl_forward.1} parent=131 // pred_fallthru
          _
      $region132: #{bert_yl_forward.1} parent=5 // pred_fallthru
        _
    $region6: #{bert_yl_forward.1} parent=1 // loop_footer
      %s39 = sadd.s32 1, %s35
    $region7: #{bert_yl_forward.1} parent=1 // loop_footer_branch
      %34 = sbr.rel target = $region3
    $region8: #{bert_yl_forward.1} parent=1 // loop_exit
      _
    %5328 = vsyncpa [#allocation3], 1
    %s5329 = scalar_lea.sflag [#allocation3], 1
    %5330 = vsyncpa %s5329, 1

</llo_original>
